<compile_context>
chip_gen: v7x
topology: tpu7x:2x2x1
jax: 0.10.0
libtpu: 0.0.40
codegen_flags: <defaults>
</compile_context>

<pallas_src>
import math
import functools

import jax
import jax.numpy as jnp
from jax.experimental import pallas as pl
from jax.experimental.pallas import tpu as pltpu

_VMEM_LIMIT = 32 * 1024 * 1024   # well under 64 MiB (v7x) / 128 MiB (v5e/v6e)
_LN_EPS = 1e-5                   # torch.nn.LayerNorm default
_NEG = 1e9                       # masked_fill value magnitude


def _layernorm(z, gamma, beta):
    mean = jnp.mean(z, axis=-1, keepdims=True)
    var = jnp.mean(jnp.square(z - mean), axis=-1, keepdims=True)
    return (z - mean) * jax.lax.rsqrt(var + _LN_EPS) * gamma + beta


def _mha_core(q3, k3, v3, bias, ctx_ref, num_heads):
    """Scaled-dot-product attention for all heads.

    q3: (B, Lq, D), k3/v3: (B, Lk, D) f32 (heads = contiguous d_k-wide lane blocks,
    scale already folded into the query projection). bias broadcasts against
    (B, Lq, Lk). Head contexts are written into ctx_ref (B, Lq, D) so the caller can
    run a single concat-heads output projection.
    """
    D = q3.shape[-1]
    dk = D // num_heads
    for h in range(num_heads):
        sl = slice(h * dk, (h + 1) * dk)
        s = jnp.einsum('bqd,bkd->bqk',
                       q3[:, :, sl].astype(jnp.bfloat16),
                       k3[:, :, sl].astype(jnp.bfloat16),
                       preferred_element_type=jnp.float32)
        s = s + bias                                   # additive mask, f32
        m = jnp.max(s, axis=-1, keepdims=True)
        e = jnp.exp(s - m)
        p = e / jnp.sum(e, axis=-1, keepdims=True)     # exact division (torch parity)
        ctx_ref[:, :, sl] = jnp.einsum('bqk,bkd->bqd',
                                       p.astype(jnp.bfloat16),
                                       v3[:, :, sl].astype(jnp.bfloat16),
                                       preferred_element_type=jnp.float32)


# ----------------------------- encoder stack kernel ---------------------------------
# grid=(num_layers,), "arbitrary". Per-layer weights are streamed (double-buffered);
# the residual stream lives in the h_ref VMEM scratch across grid steps.

_ENC_WEIGHT_NAMES = ('wqkv', 'bqkv', 'wo', 'bo', 'g1', 'b1',
                     'wf1', 'bf1', 'wf2', 'bf2', 'g2', 'b2')


def _encoder_stack_kernel(x_ref, kb_ref,
                          wqkv_ref, bqkv_ref, wo_ref, bo_ref, g1_ref, be1_ref,
                          wf1_ref, bf1_ref, wf2_ref, bf2_ref, g2_ref, be2_ref,
                          o_ref, h_ref, ctx_ref, *, num_heads):
    layer = pl.program_id(0)

    @pl.when(layer == 0)
    def _():
        h_ref[...] = x_ref[...]

    x = h_ref[...]                            # (B, S, D) f32 residual stream
    B, S, D = x.shape
    x2 = x.reshape(B * S, D)

    # ---- self-attention: fused QKV projection (single MXU matmul, N = 3*D) ----
    qkv = jnp.dot(x2.astype(jnp.bfloat16), wqkv_ref[0],
                  preferred_element_type=jnp.float32) + bqkv_ref[0]
    qkv = qkv.reshape(B, S, 3 * D)
    kbias = kb_ref[...][:, None, :]           # (B, 1, S) key-keep bias

    _mha_core(qkv[:, :, :D], qkv[:, :, D:2 * D], qkv[:, :, 2 * D:],
              kbias, ctx_ref, num_heads)

    # concat-heads output projection: one (B*S, D) @ (D, D) matmul
    attn = jnp.dot(ctx_ref[...].reshape(B * S, D).astype(jnp.bfloat16), wo_ref[0],
                   preferred_element_type=jnp.float32) + bo_ref[0]
    h1 = _layernorm(x2 + attn, g1_ref[0], be1_ref[0])

    # ---- FFN ----
    mid = jnp.maximum(jnp.dot(h1.astype(jnp.bfloat16), wf1_ref[0],
                              preferred_element_type=jnp.float32) + bf1_ref[0], 0.0)
    y = jnp.dot(mid.astype(jnp.bfloat16), wf2_ref[0],
                preferred_element_type=jnp.float32) + bf2_ref[0]
    h2 = _layernorm(h1 + y, g2_ref[0], be2_ref[0]).reshape(B, S, D)

    h_ref[...] = h2
    o_ref[...] = h2


# ----------------------------- decoder stack kernel ---------------------------------

_DEC_WEIGHT_NAMES = ('wqkv', 'bqkv', 'wo1', 'bo1', 'g1', 'b1',
                     'wqc', 'bqc', 'wkvc', 'bkvc', 'wo2', 'bo2', 'g2', 'b2',
                     'wf1', 'bf1', 'wf2', 'bf2', 'g3', 'b3')


def _decoder_stack_kernel(x_ref, enc_ref, tb_ref, skb_ref,
                          wqkv_ref, bqkv_ref, wo1_ref, bo1_ref, g1_ref, be1_ref,
                          wqc_ref, bqc_ref, wkvc_ref, bkvc_ref, wo2_ref, bo2_ref,
                          g2_ref, be2_ref,
                          wf1_ref, bf1_ref, wf2_ref, bf2_ref, g3_ref, be3_ref,
                          o_ref, h_ref, ctx_ref, *, num_heads):
    layer = pl.program_id(0)

    @pl.when(layer == 0)
    def _():
        h_ref[...] = x_ref[...]

    x = h_ref[...]                            # (B, T, D) f32 residual stream
    B, T, D = x.shape
    S = enc_ref.shape[1]
    x2 = x.reshape(B * T, D)

    # ---- masked self-attention (fused QKV, scale folded into Wq) ----
    qkv = jnp.dot(x2.astype(jnp.bfloat16), wqkv_ref[0],
                  preferred_element_type=jnp.float32) + bqkv_ref[0]
    qkv = qkv.reshape(B, T, 3 * D)
    _mha_core(qkv[:, :, :D], qkv[:, :, D:2 * D], qkv[:, :, 2 * D:],
              tb_ref[...], ctx_ref, num_heads)
    attn = jnp.dot(ctx_ref[...].reshape(B * T, D).astype(jnp.bfloat16), wo1_ref[0],
                   preferred_element_type=jnp.float32) + bo1_ref[0]
    h1 = _layernorm(x2 + attn, g1_ref[0], be1_ref[0])

    # ---- cross attention (fused KV projection of the resident encoder output) ----
    enc2 = enc_ref[...].reshape(B * S, D)
    qc = (jnp.dot(h1.astype(jnp.bfloat16), wqc_ref[0],
                  preferred_element_type=jnp.float32) + bqc_ref[0]).reshape(B, T, D)
    kvc = (jnp.dot(enc2.astype(jnp.bfloat16), wkvc_ref[0],
                   preferred_element_type=jnp.float32) + bkvc_ref[0]).reshape(B, S, 2 * D)
    skbias = skb_ref[...][:, None, :]         # (B, 1, S) key-keep bias
    _mha_core(qc, kvc[:, :, :D], kvc[:, :, D:], skbias, ctx_ref, num_heads)
    attn = jnp.dot(ctx_ref[...].reshape(B * T, D).astype(jnp.bfloat16), wo2_ref[0],
                   preferred_element_type=jnp.float32) + bo2_ref[0]
    h2 = _layernorm(h1 + attn, g2_ref[0], be2_ref[0])

    # ---- FFN ----
    mid = jnp.maximum(jnp.dot(h2.astype(jnp.bfloat16), wf1_ref[0],
                              preferred_element_type=jnp.float32) + bf1_ref[0], 0.0)
    y = jnp.dot(mid.astype(jnp.bfloat16), wf2_ref[0],
                preferred_element_type=jnp.float32) + bf2_ref[0]
    h3 = _layernorm(h2 + y, g3_ref[0], be3_ref[0]).reshape(B, T, D)

    h_ref[...] = h3
    o_ref[...] = h3


# ------------------------------- pallas_call wrappers --------------------------------

def _resident_spec(shape):
    n = len(shape)
    return pl.BlockSpec(shape, lambda l, n=n: (0,) * n)


def _layer_spec(arr):
    n = arr.ndim
    return pl.BlockSpec((1,) + arr.shape[1:], lambda l, n=n: (l,) + (0,) * (n - 1))


def encoder_stack(x, kbias, w, num_heads):
    B, S, D = x.shape
    num_layers = w['wqkv'].shape[0]
    weights = [w[k] for k in _ENC_WEIGHT_NAMES]
    return pl.pallas_call(
        functools.partial(_encoder_stack_kernel, num_heads=num_heads),
        out_shape=jax.ShapeDtypeStruct((B, S, D), jnp.float32),
        grid=(num_layers,),
        in_specs=[_resident_spec((B, S, D)), _resident_spec((B, S))]
                 + [_layer_spec(a) for a in weights],
        out_specs=pl.BlockSpec((B, S, D), lambda l: (0, 0, 0)),
        scratch_shapes=[pltpu.VMEM((B, S, D), jnp.float32),   # residual stream
                        pltpu.VMEM((B, S, D), jnp.float32)],  # head-context assembly
        compiler_params=pltpu.CompilerParams(
            dimension_semantics=("arbitrary",),
            vmem_limit_bytes=_VMEM_LIMIT),
    )(x, kbias, *weights)


def decoder_stack(x, enc_out, tgt_bias, src_kbias, w, num_heads):
    B, T, D = x.shape
    S = enc_out.shape[1]
    num_layers = w['wqkv'].shape[0]
    weights = [w[k] for k in _DEC_WEIGHT_NAMES]
    return pl.pallas_call(
        functools.partial(_decoder_stack_kernel, num_heads=num_heads),
        out_shape=jax.ShapeDtypeStruct((B, T, D), jnp.float32),
        grid=(num_layers,),
        in_specs=[_resident_spec((B, T, D)), _resident_spec((B, S, D)),
                  _resident_spec((B, T, T)), _resident_spec((B, S))]
                 + [_layer_spec(a) for a in weights],
        out_specs=pl.BlockSpec((B, T, D), lambda l: (0, 0, 0)),
        scratch_shapes=[pltpu.VMEM((B, T, D), jnp.float32),   # residual stream
                        pltpu.VMEM((B, T, D), jnp.float32)],  # head-context assembly
        compiler_params=pltpu.CompilerParams(
            dimension_semantics=("arbitrary",),
            vmem_limit_bytes=_VMEM_LIMIT),
    )(x, enc_out, tgt_bias, src_kbias, *weights)


# --------------------------- final vocab projection ----------------------------------

def _linear_kernel(x_ref, w_ref, b_ref, o_ref):
    o_ref[...] = jnp.dot(x_ref[...].astype(jnp.bfloat16), w_ref[...],
                         preferred_element_type=jnp.float32) + b_ref[...]


def _row_tile(R, cap=512):
    # largest row tile (multiple of 8, divisor of R) that still yields >= 2 grid steps,
    # so both v7x TensorCores get work; fall back to a single full-size block.
    cands = [t for t in range(8, min(cap, R) + 1, 8) if R % t == 0 and R // t >= 2]
    return max(cands) if cands else R


def linear_rows(x, w_bf16, b_row):
    B, L, D = x.shape
    V = w_bf16.shape[1]
    R = B * L
    tr = _row_tile(R)
    x2 = x.reshape(R, D)
    out = pl.pallas_call(
        _linear_kernel,
        out_shape=jax.ShapeDtypeStruct((R, V), jnp.float32),
        grid=(R // tr,),
        in_specs=[pl.BlockSpec((tr, D), lambda i: (i, 0)),
                  pl.BlockSpec((D, V), lambda i: (0, 0)),
                  pl.BlockSpec((1, V), lambda i: (0, 0))],
        out_specs=pl.BlockSpec((tr, V), lambda i: (i, 0)),
        compiler_params=pltpu.CompilerParams(
            dimension_semantics=("parallel",),
            vmem_limit_bytes=_VMEM_LIMIT),
    )(x2, w_bf16, b_row)
    return out.reshape(B, L, V)


# --------------------------- parameter construction ----------------------------------

def _init_linear(key, d_in, d_out, scale=0.02):
    kw, kb = jax.random.split(key)
    w = scale * jax.random.normal(kw, (d_in, d_out), jnp.float32)
    b = scale * jax.random.normal(kb, (d_out,), jnp.float32)
    return w, b


def _init_mha(key, d_model):
    keys = jax.random.split(key, 4)
    p = {}
    for name, k in zip(('q', 'k', 'v', 'o'), keys):
        w, b = _init_linear(k, d_model, d_model)
        p['w' + name] = w
        p['b' + name] = b
    return p


def _init_ffn(key, d_model, d_ff):
    k1, k2 = jax.random.split(key)
    w1, b1 = _init_linear(k1, d_model, d_ff)
    w2, b2 = _init_linear(k2, d_ff, d_model)
    return {'w1': w1, 'b1': b1, 'w2': w2, 'b2': b2}


def _init_ln(d_model):
    return {'gamma': jnp.ones((d_model,), jnp.float32),
            'beta': jnp.zeros((d_model,), jnp.float32)}


def _make_pe(max_seq, d_model):
    pos = jnp.arange(max_seq, dtype=jnp.float32)[:, None]
    div = jnp.exp(jnp.arange(0, d_model, 2, dtype=jnp.float32)
                  * (-math.log(10000.0) / d_model))
    pe = jnp.zeros((max_seq, d_model), jnp.float32)
    pe = pe.at[:, 0::2].set(jnp.sin(pos * div))
    pe = pe.at[:, 1::2].set(jnp.cos(pos * div))
    return pe


def init_transformer(key, src_vocab, tgt_vocab, d_model, num_heads,
                     num_layers, d_ff, max_seq):
    keys = iter(jax.random.split(key, 8 * num_layers + 8))
    params = {
        'enc_embed': 0.02 * jax.random.normal(next(keys), (src_vocab, d_model), jnp.float32),
        'dec_embed': 0.02 * jax.random.normal(next(keys), (tgt_vocab, d_model), jnp.float32),
        'pe': _make_pe(max_seq, d_model),
        'encoder_layers': [],
        'decoder_layers': [],
    }
    for _ in range(num_layers):
        params['encoder_layers'].append({
            'self_attn': _init_mha(next(keys), d_model),
            'ffn': _init_ffn(next(keys), d_model, d_ff),
            'ln1': _init_ln(d_model),
            'ln2': _init_ln(d_model),
        })
    for _ in range(num_layers):
        params['decoder_layers'].append({
            'self_attn': _init_mha(next(keys), d_model),
            'cross_attn': _init_mha(next(keys), d_model),
            'ffn': _init_ffn(next(keys), d_model, d_ff),
            'ln1': _init_ln(d_model),
            'ln2': _init_ln(d_model),
            'ln3': _init_ln(d_model),
        })
    fc_w, fc_b = _init_linear(next(keys), d_model, tgt_vocab)
    params['fc_w'] = fc_w
    params['fc_b'] = fc_b
    return params


def pack_params(params, num_heads):
    """One-time (init-time) preprocessing: fuse QKV weights, fold 1/sqrt(d_k) into W_q,
    cast MXU operands to bf16 and stack per-layer weights along a leading layer axis so
    whole encoder / decoder stacks run as single layer-gridded pallas_calls."""
    D = params['enc_embed'].shape[1]
    scale = 1.0 / math.sqrt(D // num_heads)
    bf16 = jnp.bfloat16

    def row(v):
        return v.reshape(1, -1)

    def pack_self(p):
        wqkv = jnp.concatenate([p['wq'] * scale, p['wk'], p['wv']], axis=1).astype(bf16)
        bqkv = row(jnp.concatenate([p['bq'] * scale, p['bk'], p['bv']]))
        return wqkv, bqkv, p['wo'].astype(bf16), row(p['bo'])

    def pack_cross(p):
        wq = (p['wq'] * scale).astype(bf16)
        bq = row(p['bq'] * scale)
        wkv = jnp.concatenate([p['wk'], p['wv']], axis=1).astype(bf16)
        bkv = row(jnp.concatenate([p['bk'], p['bv']]))
        return wq, bq, wkv, bkv, p['wo'].astype(bf16), row(p['bo'])

    enc_layers = []
    for lp in params['encoder_layers']:
        wqkv, bqkv, wo, bo = pack_self(lp['self_attn'])
        enc_layers.append(dict(
            wqkv=wqkv, bqkv=bqkv, wo=wo, bo=bo,
            g1=row(lp['ln1']['gamma']), b1=row(lp['ln1']['beta']),
            wf1=lp['ffn']['w1'].astype(bf16), bf1=row(lp['ffn']['b1']),
            wf2=lp['ffn']['w2'].astype(bf16), bf2=row(lp['ffn']['b2']),
            g2=row(lp['ln2']['gamma']), b2=row(lp['ln2']['beta'])))

    dec_layers = []
    for lp in params['decoder_layers']:
        wqkv, bqkv, wo1, bo1 = pack_self(lp['self_attn'])
        wqc, bqc, wkvc, bkvc, wo2, bo2 = pack_cross(lp['cross_attn'])
        dec_layers.append(dict(
            wqkv=wqkv, bqkv=bqkv, wo1=wo1, bo1=bo1,
            g1=row(lp['ln1']['gamma']), b1=row(lp['ln1']['beta']),
            wqc=wqc, bqc=bqc, wkvc=wkvc, bkvc=bkvc, wo2=wo2, bo2=bo2,
            g2=row(lp['ln2']['gamma']), b2=row(lp['ln2']['beta']),
            wf1=lp['ffn']['w1'].astype(bf16), bf1=row(lp['ffn']['b1']),
            wf2=lp['ffn']['w2'].astype(bf16), bf2=row(lp['ffn']['b2']),
            g3=row(lp['ln3']['gamma']), b3=row(lp['ln3']['beta'])))

    def stack(layers):
        return {k: jnp.stack([l[k] for l in layers]) for k in layers[0]}

    return {
        'enc_embed': params['enc_embed'],
        'dec_embed': params['dec_embed'],
        'pe': params['pe'],
        'enc': stack(enc_layers),
        'dec': stack(dec_layers),
        'fc_w': params['fc_w'].astype(bf16),
        'fc_b': row(params['fc_b']),
    }


# ---------------------------------- forward pass -------------------------------------

def transformer_forward(packed, src, tgt, num_heads):
    B, S = src.shape
    T = tgt.shape[1]
    pe = packed['pe']

    # masks (JAX glue): additive biases, 0 = attend / -1e9 = masked (generate_mask)
    src_keep = (src != 0).astype(jnp.float32)                         # (B, S)
    tgt_keep = (tgt != 0).astype(jnp.float32)                         # (B, T)
    enc_kbias = (src_keep - 1.0) * _NEG                               # (B, S) key bias
    causal = jnp.tril(jnp.ones((T, T), jnp.float32))
    dec_bias = (tgt_keep[:, :, None] * causal[None] - 1.0) * _NEG     # (B, T, T)

    # embedding + positional encoding (dropout = identity, inference semantics)
    src_x = jnp.take(packed['enc_embed'], src, axis=0) + pe[None, :S, :]
    tgt_x = jnp.take(packed['dec_embed'], tgt, axis=0) + pe[None, :T, :]

    enc_out = encoder_stack(src_x, enc_kbias, packed['enc'], num_heads)
    dec_out = decoder_stack(tgt_x, enc_out, dec_bias, enc_kbias, packed['dec'], num_heads)
    return linear_rows(dec_out, packed['fc_w'], packed['fc_b'])


# -------------------------------------- main -----------------------------------------

if __name__ == "__main__":
    # lane-dense small config: d_model / d_ff / vocab are multiples of 128
    SRC_VOCAB = 256
    TGT_VOCAB = 256
    D_MODEL = 128
    NUM_HEADS = 4
    NUM_LAYERS = 2
    D_FF = 256
    MAX_SEQ = 16
    SEQ = 8
    BATCH = 2

    key = jax.random.PRNGKey(0)
    k_params, k_src, k_tgt = jax.random.split(key, 3)

    params = init_transformer(k_params, SRC_VOCAB, TGT_VOCAB, D_MODEL,
                              NUM_HEADS, NUM_LAYERS, D_FF, MAX_SEQ)
    packed = pack_params(params, NUM_HEADS)      # init-time weight preprocessing

    src = jax.random.randint(k_src, (BATCH, SEQ), 0, SRC_VOCAB, dtype=jnp.int32)
    tgt = jax.random.randint(k_tgt, (BATCH, SEQ), 0, TGT_VOCAB, dtype=jnp.int32)

    fwd = jax.jit(functools.partial(transformer_forward, num_heads=NUM_HEADS))
    out = jax.block_until_ready(fwd(packed, src, tgt))

    assert out.shape == (BATCH, SEQ, TGT_VOCAB), out.shape
    assert out.dtype == jnp.float32
    assert bool(jnp.all(jnp.isfinite(out)))
    print("KERNEL_OK")
</pallas_src>

<mosaic_0001>
module attributes {stable_mosaic.version = 11 : i64} {
  func.func @_linear_kernel(%arg0: i32, %arg1: memref<8x128xf32, #tpu.memory_space<vmem>>, %arg2: memref<128x256xbf16, #tpu.memory_space<vmem>>, %arg3: memref<1x256xf32, #tpu.memory_space<vmem>>, %arg4: memref<8x256xf32, #tpu.memory_space<vmem>>) attributes {dimension_semantics = [#tpu.dimension_semantics<parallel>], iteration_bounds = array<i64: 2>, scalar_prefetch = 0 : i64, scratch_operands = 0 : i64, tpu.core_type = #tpu.core_type<tc>, window_params = [{transform_indices = @transform_0, window_bounds = array<i64: 8, 128>}, {pipeline_mode = #tpu.pipeline_mode<synchronous>, transform_indices = @transform_1, window_bounds = array<i64: 128, 256>}, {pipeline_mode = #tpu.pipeline_mode<synchronous>, transform_indices = @transform_2, window_bounds = array<i64: 1, 256>}, {transform_indices = @transform_3, window_bounds = array<i64: 8, 256>}]} {
    %c0 = arith.constant 0 : index
    %c0_0 = arith.constant 0 : index
    %0 = vector.load %arg1[%c0, %c0_0] : memref<8x128xf32, #tpu.memory_space<vmem>>, vector<8x128xf32>
    %1 = arith.truncf %0 : vector<8x128xf32> to vector<8x128xbf16>
    %c0_1 = arith.constant 0 : index
    %c0_2 = arith.constant 0 : index
    %2 = vector.load %arg2[%c0_1, %c0_2] : memref<128x256xbf16, #tpu.memory_space<vmem>>, vector<128x256xbf16>
    %cst = arith.constant dense<0.000000e+00> : vector<8x256xf32>
    %3 = tpu.matmul %1, %2, %cst {dimension_numbers = #tpu.dot_dimension_numbers<[1], [0], [0], [1], [0, 0, 1, 1], [], []>} : vector<8x128xbf16>, vector<128x256xbf16>, vector<8x256xf32> -> vector<8x256xf32>
    %c0_3 = arith.constant 0 : index
    %c0_4 = arith.constant 0 : index
    %4 = vector.load %arg3[%c0_3, %c0_4] : memref<1x256xf32, #tpu.memory_space<vmem>>, vector<1x256xf32>
    %5 = vector.broadcast %4 : vector<1x256xf32> to vector<8x256xf32>
    %6 = arith.addf %3, %5 : vector<8x256xf32>
    %c0_5 = arith.constant 0 : index
    %c0_6 = arith.constant 0 : index
    %7 = vector.load %arg4[%c0_5, %c0_6] : memref<8x256xf32, #tpu.memory_space<vmem>>, vector<8x256xf32>
    tpu.vector_store %arg4[%c0_5, %c0_6], %6 {strides = array<i32>} : memref<8x256xf32, #tpu.memory_space<vmem>>, vector<8x256xf32>,
    return
  }
  func.func @transform_0(%arg0: i32) -> (i32, i32) {
    %c0_i32 = arith.constant 0 : i32
    %c0_i32_0 = arith.constant 0 : i32
    return %arg0, %c0_i32 : i32, i32
  }
  func.func @transform_1(%arg0: i32) -> (i32, i32) {
    %c0_i32 = arith.constant 0 : i32
    %c0_i32_0 = arith.constant 0 : i32
    %c0_i32_1 = arith.constant 0 : i32
    return %c0_i32, %c0_i32_0 : i32, i32
  }
  func.func @transform_2(%arg0: i32) -> (i32, i32) {
    %c0_i32 = arith.constant 0 : i32
    %c0_i32_0 = arith.constant 0 : i32
    %c0_i32_1 = arith.constant 0 : i32
    return %c0_i32, %c0_i32_0 : i32, i32
  }
  func.func @transform_3(%arg0: i32) -> (i32, i32) {
    %c0_i32 = arith.constant 0 : i32
    %c0_i32_0 = arith.constant 0 : i32
    return %arg0, %c0_i32 : i32, i32
  }
}

module attributes {stable_mosaic.version = 11 : i64} {
  func.func @_encoder_stack_kernel(%arg0: i32, %arg1: memref<2x8x128xf32, #tpu.memory_space<vmem>>, %arg2: memref<2x8xf32, #tpu.memory_space<vmem>>, %arg3: memref<1x128x384xbf16, #tpu.memory_space<vmem>>, %arg4: memref<1x1x384xf32, #tpu.memory_space<vmem>>, %arg5: memref<1x128x128xbf16, #tpu.memory_space<vmem>>, %arg6: memref<1x1x128xf32, #tpu.memory_space<vmem>>, %arg7: memref<1x1x128xf32, #tpu.memory_space<vmem>>, %arg8: memref<1x1x128xf32, #tpu.memory_space<vmem>>, %arg9: memref<1x128x256xbf16, #tpu.memory_space<vmem>>, %arg10: memref<1x1x256xf32, #tpu.memory_space<vmem>>, %arg11: memref<1x256x128xbf16, #tpu.memory_space<vmem>>, %arg12: memref<1x1x128xf32, #tpu.memory_space<vmem>>, %arg13: memref<1x1x128xf32, #tpu.memory_space<vmem>>, %arg14: memref<1x1x128xf32, #tpu.memory_space<vmem>>, %arg15: memref<2x8x128xf32, #tpu.memory_space<vmem>>, %arg16: memref<2x8x128xf32, #tpu.memory_space<vmem>>, %arg17: memref<2x8x128xf32, #tpu.memory_space<vmem>>) attributes {dimension_semantics = [#tpu.dimension_semantics<arbitrary>], iteration_bounds = array<i64: 2>, scalar_prefetch = 0 : i64, scratch_operands = 2 : i64, tpu.core_type = #tpu.core_type<tc>, window_params = [{pipeline_mode = #tpu.pipeline_mode<synchronous>, transform_indices = @transform_0, window_bounds = array<i64: 2, 8, 128>}, {pipeline_mode = #tpu.pipeline_mode<synchronous>, transform_indices = @transform_1, window_bounds = array<i64: 2, 8>}, {transform_indices = @transform_2, window_bounds = array<i64: 1, 128, 384>}, {transform_indices = @transform_3, window_bounds = array<i64: 1, 1, 384>}, {transform_indices = @transform_4, window_bounds = array<i64: 1, 128, 128>}, {transform_indices = @transform_5, window_bounds = array<i64: 1, 1, 128>}, {transform_indices = @transform_6, window_bounds = array<i64: 1, 1, 128>}, {transform_indices = @transform_7, window_bounds = array<i64: 1, 1, 128>}, {transform_indices = @transform_8, window_bounds = array<i64: 1, 128, 256>}, {transform_indices = @transform_9, window_bounds = array<i64: 1, 1, 256>}, {transform_indices = @transform_10, window_bounds = array<i64: 1, 256, 128>}, {transform_indices = @transform_11, window_bounds = array<i64: 1, 1, 128>}, {transform_indices = @transform_12, window_bounds = array<i64: 1, 1, 128>}, {transform_indices = @transform_13, window_bounds = array<i64: 1, 1, 128>}, {pipeline_mode = #tpu.pipeline_mode<synchronous>, transform_indices = @transform_14, window_bounds = array<i64: 2, 8, 128>}]} {
    %c0_i32 = arith.constant 0 : i32
    %0 = arith.cmpi eq, %arg0, %c0_i32 : i32
    %1 = arith.extui %0 : i1 to i32
    %c0_i32_0 = arith.constant 0 : i32
    %2 = arith.cmpi ne, %1, %c0_i32_0 : i32
    scf.if %2 {
      %c0_89 = arith.constant 0 : index
      %c0_90 = arith.constant 0 : index
      %c0_91 = arith.constant 0 : index
      %188 = vector.load %arg1[%c0_89, %c0_90, %c0_91] : memref<2x8x128xf32, #tpu.memory_space<vmem>>, vector<2x8x128xf32>
      %c0_92 = arith.constant 0 : index
      %c0_93 = arith.constant 0 : index
      %c0_94 = arith.constant 0 : index
      %189 = vector.load %arg16[%c0_92, %c0_93, %c0_94] : memref<2x8x128xf32, #tpu.memory_space<vmem>>, vector<2x8x128xf32>
      tpu.vector_store %arg16[%c0_92, %c0_93, %c0_94], %188 {strides = array<i32>} : memref<2x8x128xf32, #tpu.memory_space<vmem>>, vector<2x8x128xf32>,
    } else {
    }
    %c0 = arith.constant 0 : index
    %c0_1 = arith.constant 0 : index
    %c0_2 = arith.constant 0 : index
    %3 = vector.load %arg16[%c0, %c0_1, %c0_2] : memref<2x8x128xf32, #tpu.memory_space<vmem>>, vector<2x8x128xf32>
    %4 = vector.shape_cast %3 : vector<2x8x128xf32> to vector<16x128xf32>
    %5 = arith.truncf %4 : vector<16x128xf32> to vector<16x128xbf16>
    %c0_3 = arith.constant 0 : index
    %c0_4 = arith.constant 0 : index
    %c0_5 = arith.constant 0 : index
    %6 = vector.load %arg3[%c0_3, %c0_4, %c0_5] : memref<1x128x384xbf16, #tpu.memory_space<vmem>>, vector<1x128x384xbf16>
    %7 = vector.shape_cast %6 : vector<1x128x384xbf16> to vector<128x384xbf16>
    %cst = arith.constant dense<0.000000e+00> : vector<16x384xf32>
    %8 = tpu.matmul %5, %7, %cst {dimension_numbers = #tpu.dot_dimension_numbers<[1], [0], [0], [1], [0, 0, 1, 1], [], []>} : vector<16x128xbf16>, vector<128x384xbf16>, vector<16x384xf32> -> vector<16x384xf32>
    %c0_6 = arith.constant 0 : index
    %c0_7 = arith.constant 0 : index
    %c0_8 = arith.constant 0 : index
    %9 = vector.load %arg4[%c0_6, %c0_7, %c0_8] : memref<1x1x384xf32, #tpu.memory_space<vmem>>, vector<1x1x384xf32>
    %10 = vector.shape_cast %9 : vector<1x1x384xf32> to vector<1x384xf32>
    %11 = vector.broadcast %10 : vector<1x384xf32> to vector<16x384xf32>
    %12 = arith.addf %8, %11 : vector<16x384xf32>
    %13 = vector.shape_cast %12 : vector<16x384xf32> to vector<2x8x384xf32>
    %c0_9 = arith.constant 0 : index
    %c0_10 = arith.constant 0 : index
    %14 = vector.load %arg2[%c0_9, %c0_10] : memref<2x8xf32, #tpu.memory_space<vmem>>, vector<2x8xf32>
    %15 = vector.shape_cast %14 : vector<2x8xf32> to vector<2x1x8xf32>
    %16 = vector.extract_strided_slice %13 {offsets = [0, 0, 0], sizes = [2, 8, 128], strides = [1, 1, 1]} : vector<2x8x384xf32> to vector<2x8x128xf32>
    %17 = vector.extract_strided_slice %13 {offsets = [0, 0, 128], sizes = [2, 8, 128], strides = [1, 1, 1]} : vector<2x8x384xf32> to vector<2x8x128xf32>
    %18 = vector.extract_strided_slice %13 {offsets = [0, 0, 256], sizes = [2, 8, 128], strides = [1, 1, 1]} : vector<2x8x384xf32> to vector<2x8x128xf32>
    %19 = vector.extract_strided_slice %16 {offsets = [0, 0, 0], sizes = [2, 8, 32], strides = [1, 1, 1]} : vector<2x8x128xf32> to vector<2x8x32xf32>
    %20 = arith.truncf %19 : vector<2x8x32xf32> to vector<2x8x32xbf16>
    %21 = vector.extract_strided_slice %17 {offsets = [0, 0, 0], sizes = [2, 8, 32], strides = [1, 1, 1]} : vector<2x8x128xf32> to vector<2x8x32xf32>
    %22 = arith.truncf %21 : vector<2x8x32xf32> to vector<2x8x32xbf16>
    "tpu.trace_start"() <{level = 10 : i32, message = "bqd,bkd->bqk"}> : () -> ()
    %cst_11 = arith.constant dense<0.000000e+00> : vector<2x8x8xf32>
    %23 = tpu.matmul %20, %22, %cst_11 {dimension_numbers = #tpu.dot_dimension_numbers<[2], [2], [1], [1], [0, 0, 0, 1, 1, 1], [0], [0]>} : vector<2x8x32xbf16>, vector<2x8x32xbf16>, vector<2x8x8xf32> -> vector<2x8x8xf32>
    "tpu.trace_stop"() : () -> ()
    %24 = vector.broadcast %15 : vector<2x1x8xf32> to vector<2x8x8xf32>
    %25 = arith.addf %23, %24 : vector<2x8x8xf32>
    %cst_12 = arith.constant dense<0xFF800000> : vector<2x8xf32>
    %26 = vector.multi_reduction <maximumf>, %25, %cst_12 [2] : vector<2x8x8xf32> to vector<2x8xf32>
    %27 = vector.shape_cast %26 : vector<2x8xf32> to vector<2x8x1xf32>
    %28 = vector.broadcast %27 : vector<2x8x1xf32> to vector<2x8x8xf32>
    %29 = arith.subf %25, %28 : vector<2x8x8xf32>
    %30 = math.exp %29 : vector<2x8x8xf32>
    %cst_13 = arith.constant dense<0.000000e+00> : vector<2x8xf32>
    %31 = vector.multi_reduction <add>, %30, %cst_13 [2] : vector<2x8x8xf32> to vector<2x8xf32>
    %32 = vector.shape_cast %31 : vector<2x8xf32> to vector<2x8x1xf32>
    %33 = vector.broadcast %32 : vector<2x8x1xf32> to vector<2x8x8xf32>
    %34 = arith.divf %30, %33 : vector<2x8x8xf32>
    %35 = arith.truncf %34 : vector<2x8x8xf32> to vector<2x8x8xbf16>
    %36 = vector.extract_strided_slice %18 {offsets = [0, 0, 0], sizes = [2, 8, 32], strides = [1, 1, 1]} : vector<2x8x128xf32> to vector<2x8x32xf32>
    %37 = arith.truncf %36 : vector<2x8x32xf32> to vector<2x8x32xbf16>
    "tpu.trace_start"() <{level = 10 : i32, message = "bqk,bkd->bqd"}> : () -> ()
    %cst_14 = arith.constant dense<0.000000e+00> : vector<2x8x32xf32>
    %38 = tpu.matmul %35, %37, %cst_14 {dimension_numbers = #tpu.dot_dimension_numbers<[2], [1], [1], [2], [0, 0, 0, 1, 1, 2], [0], [0]>} : vector<2x8x8xbf16>, vector<2x8x32xbf16>, vector<2x8x32xf32> -> vector<2x8x32xf32>
    "tpu.trace_stop"() : () -> ()
    %c0_15 = arith.constant 0 : index
    %c0_16 = arith.constant 0 : index
    %c0_17 = arith.constant 0 : index
    %39 = vector.load %arg17[%c0_15, %c0_16, %c0_17] : memref<2x8x128xf32, #tpu.memory_space<vmem>>, vector<2x8x32xf32>
    tpu.vector_store %arg17[%c0_15, %c0_16, %c0_17], %38 {strides = array<i32>} : memref<2x8x128xf32, #tpu.memory_space<vmem>>, vector<2x8x32xf32>,
    %40 = vector.extract_strided_slice %16 {offsets = [0, 0, 32], sizes = [2, 8, 32], strides = [1, 1, 1]} : vector<2x8x128xf32> to vector<2x8x32xf32>
    %41 = arith.truncf %40 : vector<2x8x32xf32> to vector<2x8x32xbf16>
    %42 = vector.extract_strided_slice %17 {offsets = [0, 0, 32], sizes = [2, 8, 32], strides = [1, 1, 1]} : vector<2x8x128xf32> to vector<2x8x32xf32>
    %43 = arith.truncf %42 : vector<2x8x32xf32> to vector<2x8x32xbf16>
    "tpu.trace_start"() <{level = 10 : i32, message = "bqd,bkd->bqk"}> : () -> ()
    %cst_18 = arith.constant dense<0.000000e+00> : vector<2x8x8xf32>
    %44 = tpu.matmul %41, %43, %cst_18 {dimension_numbers = #tpu.dot_dimension_numbers<[2], [2], [1], [1], [0, 0, 0, 1, 1, 1], [0], [0]>} : vector<2x8x32xbf16>, vector<2x8x32xbf16>, vector<2x8x8xf32> -> vector<2x8x8xf32>
    "tpu.trace_stop"() : () -> ()
    %45 = vector.broadcast %15 : vector<2x1x8xf32> to vector<2x8x8xf32>
    %46 = arith.addf %44, %45 : vector<2x8x8xf32>
    %cst_19 = arith.constant dense<0xFF800000> : vector<2x8xf32>
    %47 = vector.multi_reduction <maximumf>, %46, %cst_19 [2] : vector<2x8x8xf32> to vector<2x8xf32>
    %48 = vector.shape_cast %47 : vector<2x8xf32> to vector<2x8x1xf32>
    %49 = vector.broadcast %48 : vector<2x8x1xf32> to vector<2x8x8xf32>
    %50 = arith.subf %46, %49 : vector<2x8x8xf32>
    %51 = math.exp %50 : vector<2x8x8xf32>
    %cst_20 = arith.constant dense<0.000000e+00> : vector<2x8xf32>
    %52 = vector.multi_reduction <add>, %51, %cst_20 [2] : vector<2x8x8xf32> to vector<2x8xf32>
    %53 = vector.shape_cast %52 : vector<2x8xf32> to vector<2x8x1xf32>
    %54 = vector.broadcast %53 : vector<2x8x1xf32> to vector<2x8x8xf32>
    %55 = arith.divf %51, %54 : vector<2x8x8xf32>
    %56 = arith.truncf %55 : vector<2x8x8xf32> to vector<2x8x8xbf16>
    %57 = vector.extract_strided_slice %18 {offsets = [0, 0, 32], sizes = [2, 8, 32], strides = [1, 1, 1]} : vector<2x8x128xf32> to vector<2x8x32xf32>
    %58 = arith.truncf %57 : vector<2x8x32xf32> to vector<2x8x32xbf16>
    "tpu.trace_start"() <{level = 10 : i32, message = "bqk,bkd->bqd"}> : () -> ()
    %cst_21 = arith.constant dense<0.000000e+00> : vector<2x8x32xf32>
    %59 = tpu.matmul %56, %58, %cst_21 {dimension_numbers = #tpu.dot_dimension_numbers<[2], [1], [1], [2], [0, 0, 0, 1, 1, 2], [0], [0]>} : vector<2x8x8xbf16>, vector<2x8x32xbf16>, vector<2x8x32xf32> -> vector<2x8x32xf32>
    "tpu.trace_stop"() : () -> ()
    %c0_22 = arith.constant 0 : index
    %c0_23 = arith.constant 0 : index
    %c32 = arith.constant 32 : index
    %60 = vector.load %arg17[%c0_22, %c0_23, %c32] : memref<2x8x128xf32, #tpu.memory_space<vmem>>, vector<2x8x32xf32>
    tpu.vector_store %arg17[%c0_22, %c0_23, %c32], %59 {strides = array<i32>} : memref<2x8x128xf32, #tpu.memory_space<vmem>>, vector<2x8x32xf32>,
    %61 = vector.extract_strided_slice %16 {offsets = [0, 0, 64], sizes = [2, 8, 32], strides = [1, 1, 1]} : vector<2x8x128xf32> to vector<2x8x32xf32>
    %62 = arith.truncf %61 : vector<2x8x32xf32> to vector<2x8x32xbf16>
    %63 = vector.extract_strided_slice %17 {offsets = [0, 0, 64], sizes = [2, 8, 32], strides = [1, 1, 1]} : vector<2x8x128xf32> to vector<2x8x32xf32>
    %64 = arith.truncf %63 : vector<2x8x32xf32> to vector<2x8x32xbf16>
    "tpu.trace_start"() <{level = 10 : i32, message = "bqd,bkd->bqk"}> : () -> ()
    %cst_24 = arith.constant dense<0.000000e+00> : vector<2x8x8xf32>
    %65 = tpu.matmul %62, %64, %cst_24 {dimension_numbers = #tpu.dot_dimension_numbers<[2], [2], [1], [1], [0, 0, 0, 1, 1, 1], [0], [0]>} : vector<2x8x32xbf16>, vector<2x8x32xbf16>, vector<2x8x8xf32> -> vector<2x8x8xf32>
    "tpu.trace_stop"() : () -> ()
    %66 = vector.broadcast %15 : vector<2x1x8xf32> to vector<2x8x8xf32>
    %67 = arith.addf %65, %66 : vector<2x8x8xf32>
    %cst_25 = arith.constant dense<0xFF800000> : vector<2x8xf32>
    %68 = vector.multi_reduction <maximumf>, %67, %cst_25 [2] : vector<2x8x8xf32> to vector<2x8xf32>
    %69 = vector.shape_cast %68 : vector<2x8xf32> to vector<2x8x1xf32>
    %70 = vector.broadcast %69 : vector<2x8x1xf32> to vector<2x8x8xf32>
    %71 = arith.subf %67, %70 : vector<2x8x8xf32>
    %72 = math.exp %71 : vector<2x8x8xf32>
    %cst_26 = arith.constant dense<0.000000e+00> : vector<2x8xf32>
    %73 = vector.multi_reduction <add>, %72, %cst_26 [2] : vector<2x8x8xf32> to vector<2x8xf32>
    %74 = vector.shape_cast %73 : vector<2x8xf32> to vector<2x8x1xf32>
    %75 = vector.broadcast %74 : vector<2x8x1xf32> to vector<2x8x8xf32>
    %76 = arith.divf %72, %75 : vector<2x8x8xf32>
    %77 = arith.truncf %76 : vector<2x8x8xf32> to vector<2x8x8xbf16>
    %78 = vector.extract_strided_slice %18 {offsets = [0, 0, 64], sizes = [2, 8, 32], strides = [1, 1, 1]} : vector<2x8x128xf32> to vector<2x8x32xf32>
    %79 = arith.truncf %78 : vector<2x8x32xf32> to vector<2x8x32xbf16>
    "tpu.trace_start"() <{level = 10 : i32, message = "bqk,bkd->bqd"}> : () -> ()
    %cst_27 = arith.constant dense<0.000000e+00> : vector<2x8x32xf32>
    %80 = tpu.matmul %77, %79, %cst_27 {dimension_numbers = #tpu.dot_dimension_numbers<[2], [1], [1], [2], [0, 0, 0, 1, 1, 2], [0], [0]>} : vector<2x8x8xbf16>, vector<2x8x32xbf16>, vector<2x8x32xf32> -> vector<2x8x32xf32>
    "tpu.trace_stop"() : () -> ()
    %c0_28 = arith.constant 0 : index
    %c0_29 = arith.constant 0 : index
    %c64 = arith.constant 64 : index
    %81 = vector.load %arg17[%c0_28, %c0_29, %c64] : memref<2x8x128xf32, #tpu.memory_space<vmem>>, vector<2x8x32xf32>
    tpu.vector_store %arg17[%c0_28, %c0_29, %c64], %80 {strides = array<i32>} : memref<2x8x128xf32, #tpu.memory_space<vmem>>, vector<2x8x32xf32>,
    %82 = vector.extract_strided_slice %16 {offsets = [0, 0, 96], sizes = [2, 8, 32], strides = [1, 1, 1]} : vector<2x8x128xf32> to vector<2x8x32xf32>
    %83 = arith.truncf %82 : vector<2x8x32xf32> to vector<2x8x32xbf16>
    %84 = vector.extract_strided_slice %17 {offsets = [0, 0, 96], sizes = [2, 8, 32], strides = [1, 1, 1]} : vector<2x8x128xf32> to vector<2x8x32xf32>
    %85 = arith.truncf %84 : vector<2x8x32xf32> to vector<2x8x32xbf16>
    "tpu.trace_start"() <{level = 10 : i32, message = "bqd,bkd->bqk"}> : () -> ()
    %cst_30 = arith.constant dense<0.000000e+00> : vector<2x8x8xf32>
    %86 = tpu.matmul %83, %85, %cst_30 {dimension_numbers = #tpu.dot_dimension_numbers<[2], [2], [1], [1], [0, 0, 0, 1, 1, 1], [0], [0]>} : vector<2x8x32xbf16>, vector<2x8x32xbf16>, vector<2x8x8xf32> -> vector<2x8x8xf32>
    "tpu.trace_stop"() : () -> ()
    %87 = vector.broadcast %15 : vector<2x1x8xf32> to vector<2x8x8xf32>
    %88 = arith.addf %86, %87 : vector<2x8x8xf32>
    %cst_31 = arith.constant dense<0xFF800000> : vector<2x8xf32>
    %89 = vector.multi_reduction <maximumf>, %88, %cst_31 [2] : vector<2x8x8xf32> to vector<2x8xf32>
    %90 = vector.shape_cast %89 : vector<2x8xf32> to vector<2x8x1xf32>
    %91 = vector.broadcast %90 : vector<2x8x1xf32> to vector<2x8x8xf32>
    %92 = arith.subf %88, %91 : vector<2x8x8xf32>
    %93 = math.exp %92 : vector<2x8x8xf32>
    %cst_32 = arith.constant dense<0.000000e+00> : vector<2x8xf32>
    %94 = vector.multi_reduction <add>, %93, %cst_32 [2] : vector<2x8x8xf32> to vector<2x8xf32>
    %95 = vector.shape_cast %94 : vector<2x8xf32> to vector<2x8x1xf32>
    %96 = vector.broadcast %95 : vector<2x8x1xf32> to vector<2x8x8xf32>
    %97 = arith.divf %93, %96 : vector<2x8x8xf32>
    %98 = arith.truncf %97 : vector<2x8x8xf32> to vector<2x8x8xbf16>
    %99 = vector.extract_strided_slice %18 {offsets = [0, 0, 96], sizes = [2, 8, 32], strides = [1, 1, 1]} : vector<2x8x128xf32> to vector<2x8x32xf32>
    %100 = arith.truncf %99 : vector<2x8x32xf32> to vector<2x8x32xbf16>
    "tpu.trace_start"() <{level = 10 : i32, message = "bqk,bkd->bqd"}> : () -> ()
    %cst_33 = arith.constant dense<0.000000e+00> : vector<2x8x32xf32>
    %101 = tpu.matmul %98, %100, %cst_33 {dimension_numbers = #tpu.dot_dimension_numbers<[2], [1], [1], [2], [0, 0, 0, 1, 1, 2], [0], [0]>} : vector<2x8x8xbf16>, vector<2x8x32xbf16>, vector<2x8x32xf32> -> vector<2x8x32xf32>
    "tpu.trace_stop"() : () -> ()
    %c0_34 = arith.constant 0 : index
    %c0_35 = arith.constant 0 : index
    %c96 = arith.constant 96 : index
    %102 = vector.load %arg17[%c0_34, %c0_35, %c96] : memref<2x8x128xf32, #tpu.memory_space<vmem>>, vector<2x8x32xf32>
    tpu.vector_store %arg17[%c0_34, %c0_35, %c96], %101 {strides = array<i32>} : memref<2x8x128xf32, #tpu.memory_space<vmem>>, vector<2x8x32xf32>,
    %c0_36 = arith.constant 0 : index
    %c0_37 = arith.constant 0 : index
    %c0_38 = arith.constant 0 : index
    %103 = vector.load %arg17[%c0_36, %c0_37, %c0_38] : memref<2x8x128xf32, #tpu.memory_space<vmem>>, vector<2x8x128xf32>
    %104 = vector.shape_cast %103 : vector<2x8x128xf32> to vector<16x128xf32>
    %105 = arith.truncf %104 : vector<16x128xf32> to vector<16x128xbf16>
    %c0_39 = arith.constant 0 : index
    %c0_40 = arith.constant 0 : index
    %c0_41 = arith.constant 0 : index
    %106 = vector.load %arg5[%c0_39, %c0_40, %c0_41] : memref<1x128x128xbf16, #tpu.memory_space<vmem>>, vector<1x128x128xbf16>
    %107 = vector.shape_cast %106 : vector<1x128x128xbf16> to vector<128x128xbf16>
    %cst_42 = arith.constant dense<0.000000e+00> : vector<16x128xf32>
    %108 = tpu.matmul %105, %107, %cst_42 {dimension_numbers = #tpu.dot_dimension_numbers<[1], [0], [0], [1], [0, 0, 1, 1], [], []>} : vector<16x128xbf16>, vector<128x128xbf16>, vector<16x128xf32> -> vector<16x128xf32>
    %c0_43 = arith.constant 0 : index
    %c0_44 = arith.constant 0 : index
    %c0_45 = arith.constant 0 : index
    %109 = vector.load %arg6[%c0_43, %c0_44, %c0_45] : memref<1x1x128xf32, #tpu.memory_space<vmem>>, vector<1x1x128xf32>
    %110 = vector.shape_cast %109 : vector<1x1x128xf32> to vector<1x128xf32>
    %111 = vector.broadcast %110 : vector<1x128xf32> to vector<16x128xf32>
    %112 = arith.addf %108, %111 : vector<16x128xf32>
    %113 = arith.addf %4, %112 : vector<16x128xf32>
    %c0_46 = arith.constant 0 : index
    %c0_47 = arith.constant 0 : index
    %c0_48 = arith.constant 0 : index
    %114 = vector.load %arg7[%c0_46, %c0_47, %c0_48] : memref<1x1x128xf32, #tpu.memory_space<vmem>>, vector<1x1x128xf32>
    %115 = vector.shape_cast %114 : vector<1x1x128xf32> to vector<1x128xf32>
    %c0_49 = arith.constant 0 : index
    %c0_50 = arith.constant 0 : index
    %c0_51 = arith.constant 0 : index
    %116 = vector.load %arg8[%c0_49, %c0_50, %c0_51] : memref<1x1x128xf32, #tpu.memory_space<vmem>>, vector<1x1x128xf32>
    %117 = vector.shape_cast %116 : vector<1x1x128xf32> to vector<1x128xf32>
    %cst_52 = arith.constant dense<0.000000e+00> : vector<16xf32>
    %118 = vector.multi_reduction <add>, %113, %cst_52 [1] : vector<16x128xf32> to vector<16xf32>
    %119 = vector.shape_cast %118 : vector<16xf32> to vector<16x1xf32>
    %cst_53 = arith.constant 1.280000e+02 : f32
    %120 = vector.broadcast %cst_53 : f32 to vector<16x1xf32>
    %121 = arith.divf %119, %120 : vector<16x1xf32>
    %122 = vector.broadcast %121 : vector<16x1xf32> to vector<16x128xf32>
    %123 = arith.subf %113, %122 : vector<16x128xf32>
    %124 = arith.mulf %123, %123 : vector<16x128xf32>
    %cst_54 = arith.constant dense<0.000000e+00> : vector<16xf32>
    %125 = vector.multi_reduction <add>, %124, %cst_54 [1] : vector<16x128xf32> to vector<16xf32>
    %126 = vector.shape_cast %125 : vector<16xf32> to vector<16x1xf32>
    %cst_55 = arith.constant 1.280000e+02 : f32
    %127 = vector.broadcast %cst_55 : f32 to vector<16x1xf32>
    %128 = arith.divf %126, %127 : vector<16x1xf32>
    %129 = vector.broadcast %121 : vector<16x1xf32> to vector<16x128xf32>
    %130 = arith.subf %113, %129 : vector<16x128xf32>
    %cst_56 = arith.constant 9.99999974E-6 : f32
    %131 = vector.broadcast %cst_56 : f32 to vector<16x1xf32>
    %132 = arith.addf %128, %131 : vector<16x1xf32>
    %133 = math.rsqrt %132 : vector<16x1xf32>
    %134 = vector.broadcast %133 : vector<16x1xf32> to vector<16x128xf32>
    %135 = arith.mulf %130, %134 : vector<16x128xf32>
    %136 = vector.broadcast %115 : vector<1x128xf32> to vector<16x128xf32>
    %137 = arith.mulf %135, %136 : vector<16x128xf32>
    %138 = vector.broadcast %117 : vector<1x128xf32> to vector<16x128xf32>
    %139 = arith.addf %137, %138 : vector<16x128xf32>
    %140 = arith.truncf %139 : vector<16x128xf32> to vector<16x128xbf16>
    %c0_57 = arith.constant 0 : index
    %c0_58 = arith.constant 0 : index
    %c0_59 = arith.constant 0 : index
    %141 = vector.load %arg9[%c0_57, %c0_58, %c0_59] : memref<1x128x256xbf16, #tpu.memory_space<vmem>>, vector<1x128x256xbf16>
    %142 = vector.shape_cast %141 : vector<1x128x256xbf16> to vector<128x256xbf16>
    %cst_60 = arith.constant dense<0.000000e+00> : vector<16x256xf32>
    %143 = tpu.matmul %140, %142, %cst_60 {dimension_numbers = #tpu.dot_dimension_numbers<[1], [0], [0], [1], [0, 0, 1, 1], [], []>} : vector<16x128xbf16>, vector<128x256xbf16>, vector<16x256xf32> -> vector<16x256xf32>
    %c0_61 = arith.constant 0 : index
    %c0_62 = arith.constant 0 : index
    %c0_63 = arith.constant 0 : index
    %144 = vector.load %arg10[%c0_61, %c0_62, %c0_63] : memref<1x1x256xf32, #tpu.memory_space<vmem>>, vector<1x1x256xf32>
    %145 = vector.shape_cast %144 : vector<1x1x256xf32> to vector<1x256xf32>
    %146 = vector.broadcast %145 : vector<1x256xf32> to vector<16x256xf32>
    %147 = arith.addf %143, %146 : vector<16x256xf32>
    %cst_64 = arith.constant 0.000000e+00 : f32
    %148 = vector.broadcast %cst_64 : f32 to vector<16x256xf32>
    %149 = arith.maximumf %147, %148 : vector<16x256xf32>
    %150 = arith.truncf %149 : vector<16x256xf32> to vector<16x256xbf16>
    %c0_65 = arith.constant 0 : index
    %c0_66 = arith.constant 0 : index
    %c0_67 = arith.constant 0 : index
    %151 = vector.load %arg11[%c0_65, %c0_66, %c0_67] : memref<1x256x128xbf16, #tpu.memory_space<vmem>>, vector<1x256x128xbf16>
    %152 = vector.shape_cast %151 : vector<1x256x128xbf16> to vector<256x128xbf16>
    %cst_68 = arith.constant dense<0.000000e+00> : vector<16x128xf32>
    %153 = tpu.matmul %150, %152, %cst_68 {dimension_numbers = #tpu.dot_dimension_numbers<[1], [0], [0], [1], [0, 0, 1, 1], [], []>} : vector<16x256xbf16>, vector<256x128xbf16>, vector<16x128xf32> -> vector<16x128xf32>
    %c0_69 = arith.constant 0 : index
    %c0_70 = arith.constant 0 : index
    %c0_71 = arith.constant 0 : index
    %154 = vector.load %arg12[%c0_69, %c0_70, %c0_71] : memref<1x1x128xf32, #tpu.memory_space<vmem>>, vector<1x1x128xf32>
    %155 = vector.shape_cast %154 : vector<1x1x128xf32> to vector<1x128xf32>
    %156 = vector.broadcast %155 : vector<1x128xf32> to vector<16x128xf32>
    %157 = arith.addf %153, %156 : vector<16x128xf32>
    %158 = arith.addf %139, %157 : vector<16x128xf32>
    %c0_72 = arith.constant 0 : index
    %c0_73 = arith.constant 0 : index
    %c0_74 = arith.constant 0 : index
    %159 = vector.load %arg13[%c0_72, %c0_73, %c0_74] : memref<1x1x128xf32, #tpu.memory_space<vmem>>, vector<1x1x128xf32>
    %160 = vector.shape_cast %159 : vector<1x1x128xf32> to vector<1x128xf32>
    %c0_75 = arith.constant 0 : index
    %c0_76 = arith.constant 0 : index
    %c0_77 = arith.constant 0 : index
    %161 = vector.load %arg14[%c0_75, %c0_76, %c0_77] : memref<1x1x128xf32, #tpu.memory_space<vmem>>, vector<1x1x128xf32>
    %162 = vector.shape_cast %161 : vector<1x1x128xf32> to vector<1x128xf32>
    %cst_78 = arith.constant dense<0.000000e+00> : vector<16xf32>
    %163 = vector.multi_reduction <add>, %158, %cst_78 [1] : vector<16x128xf32> to vector<16xf32>
    %164 = vector.shape_cast %163 : vector<16xf32> to vector<16x1xf32>
    %cst_79 = arith.constant 1.280000e+02 : f32
    %165 = vector.broadcast %cst_79 : f32 to vector<16x1xf32>
    %166 = arith.divf %164, %165 : vector<16x1xf32>
    %167 = vector.broadcast %166 : vector<16x1xf32> to vector<16x128xf32>
    %168 = arith.subf %158, %167 : vector<16x128xf32>
    %169 = arith.mulf %168, %168 : vector<16x128xf32>
    %cst_80 = arith.constant dense<0.000000e+00> : vector<16xf32>
    %170 = vector.multi_reduction <add>, %169, %cst_80 [1] : vector<16x128xf32> to vector<16xf32>
    %171 = vector.shape_cast %170 : vector<16xf32> to vector<16x1xf32>
    %cst_81 = arith.constant 1.280000e+02 : f32
    %172 = vector.broadcast %cst_81 : f32 to vector<16x1xf32>
    %173 = arith.divf %171, %172 : vector<16x1xf32>
    %174 = vector.broadcast %166 : vector<16x1xf32> to vector<16x128xf32>
    %175 = arith.subf %158, %174 : vector<16x128xf32>
    %cst_82 = arith.constant 9.99999974E-6 : f32
    %176 = vector.broadcast %cst_82 : f32 to vector<16x1xf32>
    %177 = arith.addf %173, %176 : vector<16x1xf32>
    %178 = math.rsqrt %177 : vector<16x1xf32>
    %179 = vector.broadcast %178 : vector<16x1xf32> to vector<16x128xf32>
    %180 = arith.mulf %175, %179 : vector<16x128xf32>
    %181 = vector.broadcast %160 : vector<1x128xf32> to vector<16x128xf32>
    %182 = arith.mulf %180, %181 : vector<16x128xf32>
    %183 = vector.broadcast %162 : vector<1x128xf32> to vector<16x128xf32>
    %184 = arith.addf %182, %183 : vector<16x128xf32>
    %185 = vector.shape_cast %184 : vector<16x128xf32> to vector<2x8x128xf32>
    %c0_83 = arith.constant 0 : index
    %c0_84 = arith.constant 0 : index
    %c0_85 = arith.constant 0 : index
    %186 = vector.load %arg16[%c0_83, %c0_84, %c0_85] : memref<2x8x128xf32, #tpu.memory_space<vmem>>, vector<2x8x128xf32>
    tpu.vector_store %arg16[%c0_83, %c0_84, %c0_85], %185 {strides = array<i32>} : memref<2x8x128xf32, #tpu.memory_space<vmem>>, vector<2x8x128xf32>,
    %c0_86 = arith.constant 0 : index
    %c0_87 = arith.constant 0 : index
    %c0_88 = arith.constant 0 : index
    %187 = vector.load %arg15[%c0_86, %c0_87, %c0_88] : memref<2x8x128xf32, #tpu.memory_space<vmem>>, vector<2x8x128xf32>
    tpu.vector_store %arg15[%c0_86, %c0_87, %c0_88], %185 {strides = array<i32>} : memref<2x8x128xf32, #tpu.memory_space<vmem>>, vector<2x8x128xf32>,
    return
  }
  func.func @transform_0(%arg0: i32) -> (i32, i32, i32) {
    %c0_i32 = arith.constant 0 : i32
    %c0_i32_0 = arith.constant 0 : i32
    %c0_i32_1 = arith.constant 0 : i32
    %c0_i32_2 = arith.constant 0 : i32
    return %c0_i32, %c0_i32_0, %c0_i32_1 : i32, i32, i32
  }
  func.func @transform_1(%arg0: i32) -> (i32, i32) {
    %c0_i32 = arith.constant 0 : i32
    %c0_i32_0 = arith.constant 0 : i32
    %c0_i32_1 = arith.constant 0 : i32
    return %c0_i32, %c0_i32_0 : i32, i32
  }
  func.func @transform_2(%arg0: i32) -> (i32, i32, i32) {
    %c0_i32 = arith.constant 0 : i32
    %c0_i32_0 = arith.constant 0 : i32
    %c0_i32_1 = arith.constant 0 : i32
    return %arg0, %c0_i32, %c0_i32_0 : i32, i32, i32
  }
  func.func @transform_3(%arg0: i32) -> (i32, i32, i32) {
    %c0_i32 = arith.constant 0 : i32
    %c0_i32_0 = arith.constant 0 : i32
    %c0_i32_1 = arith.constant 0 : i32
    return %arg0, %c0_i32, %c0_i32_0 : i32, i32, i32
  }
  func.func @transform_4(%arg0: i32) -> (i32, i32, i32) {
    %c0_i32 = arith.constant 0 : i32
    %c0_i32_0 = arith.constant 0 : i32
    %c0_i32_1 = arith.constant 0 : i32
    return %arg0, %c0_i32, %c0_i32_0 : i32, i32, i32
  }
  func.func @transform_5(%arg0: i32) -> (i32, i32, i32) {
    %c0_i32 = arith.constant 0 : i32
    %c0_i32_0 = arith.constant 0 : i32
    %c0_i32_1 = arith.constant 0 : i32
    return %arg0, %c0_i32, %c0_i32_0 : i32, i32, i32
  }
  func.func @transform_6(%arg0: i32) -> (i32, i32, i32) {
    %c0_i32 = arith.constant 0 : i32
    %c0_i32_0 = arith.constant 0 : i32
    %c0_i32_1 = arith.constant 0 : i32
    return %arg0, %c0_i32, %c0_i32_0 : i32, i32, i32
  }
  func.func @transform_7(%arg0: i32) -> (i32, i32, i32) {
    %c0_i32 = arith.constant 0 : i32
    %c0_i32_0 = arith.constant 0 : i32
    %c0_i32_1 = arith.constant 0 : i32
    return %arg0, %c0_i32, %c0_i32_0 : i32, i32, i32
  }
  func.func @transform_8(%arg0: i32) -> (i32, i32, i32) {
    %c0_i32 = arith.constant 0 : i32
    %c0_i32_0 = arith.constant 0 : i32
    %c0_i32_1 = arith.constant 0 : i32
    return %arg0, %c0_i32, %c0_i32_0 : i32, i32, i32
  }
  func.func @transform_9(%arg0: i32) -> (i32, i32, i32) {
    %c0_i32 = arith.constant 0 : i32
    %c0_i32_0 = arith.constant 0 : i32
    %c0_i32_1 = arith.constant 0 : i32
    return %arg0, %c0_i32, %c0_i32_0 : i32, i32, i32
  }
  func.func @transform_10(%arg0: i32) -> (i32, i32, i32) {
    %c0_i32 = arith.constant 0 : i32
    %c0_i32_0 = arith.constant 0 : i32
    %c0_i32_1 = arith.constant 0 : i32
    return %arg0, %c0_i32, %c0_i32_0 : i32, i32, i32
  }
  func.func @transform_11(%arg0: i32) -> (i32, i32, i32) {
    %c0_i32 = arith.constant 0 : i32
    %c0_i32_0 = arith.constant 0 : i32
    %c0_i32_1 = arith.constant 0 : i32
    return %arg0, %c0_i32, %c0_i32_0 : i32, i32, i32
  }
  func.func @transform_12(%arg0: i32) -> (i32, i32, i32) {
    %c0_i32 = arith.constant 0 : i32
    %c0_i32_0 = arith.constant 0 : i32
    %c0_i32_1 = arith.constant 0 : i32
    return %arg0, %c0_i32, %c0_i32_0 : i32, i32, i32
  }
  func.func @transform_13(%arg0: i32) -> (i32, i32, i32) {
    %c0_i32 = arith.constant 0 : i32
    %c0_i32_0 = arith.constant 0 : i32
    %c0_i32_1 = arith.constant 0 : i32
    return %arg0, %c0_i32, %c0_i32_0 : i32, i32, i32
  }
  func.func @transform_14(%arg0: i32) -> (i32, i32, i32) {
    %c0_i32 = arith.constant 0 : i32
    %c0_i32_0 = arith.constant 0 : i32
    %c0_i32_1 = arith.constant 0 : i32
    %c0_i32_2 = arith.constant 0 : i32
    return %c0_i32, %c0_i32_0, %c0_i32_1 : i32, i32, i32
  }
}

module attributes {stable_mosaic.version = 11 : i64} {
  func.func @_decoder_stack_kernel(%arg0: i32, %arg1: memref<2x8x128xf32, #tpu.memory_space<vmem>>, %arg2: memref<2x8x128xf32, #tpu.memory_space<vmem>>, %arg3: memref<2x8x8xf32, #tpu.memory_space<vmem>>, %arg4: memref<2x8xf32, #tpu.memory_space<vmem>>, %arg5: memref<1x128x384xbf16, #tpu.memory_space<vmem>>, %arg6: memref<1x1x384xf32, #tpu.memory_space<vmem>>, %arg7: memref<1x128x128xbf16, #tpu.memory_space<vmem>>, %arg8: memref<1x1x128xf32, #tpu.memory_space<vmem>>, %arg9: memref<1x1x128xf32, #tpu.memory_space<vmem>>, %arg10: memref<1x1x128xf32, #tpu.memory_space<vmem>>, %arg11: memref<1x128x128xbf16, #tpu.memory_space<vmem>>, %arg12: memref<1x1x128xf32, #tpu.memory_space<vmem>>, %arg13: memref<1x128x256xbf16, #tpu.memory_space<vmem>>, %arg14: memref<1x1x256xf32, #tpu.memory_space<vmem>>, %arg15: memref<1x128x128xbf16, #tpu.memory_space<vmem>>, %arg16: memref<1x1x128xf32, #tpu.memory_space<vmem>>, %arg17: memref<1x1x128xf32, #tpu.memory_space<vmem>>, %arg18: memref<1x1x128xf32, #tpu.memory_space<vmem>>, %arg19: memref<1x128x256xbf16, #tpu.memory_space<vmem>>, %arg20: memref<1x1x256xf32, #tpu.memory_space<vmem>>, %arg21: memref<1x256x128xbf16, #tpu.memory_space<vmem>>, %arg22: memref<1x1x128xf32, #tpu.memory_space<vmem>>, %arg23: memref<1x1x128xf32, #tpu.memory_space<vmem>>, %arg24: memref<1x1x128xf32, #tpu.memory_space<vmem>>, %arg25: memref<2x8x128xf32, #tpu.memory_space<vmem>>, %arg26: memref<2x8x128xf32, #tpu.memory_space<vmem>>, %arg27: memref<2x8x128xf32, #tpu.memory_space<vmem>>) attributes {dimension_semantics = [#tpu.dimension_semantics<arbitrary>], iteration_bounds = array<i64: 2>, scalar_prefetch = 0 : i64, scratch_operands = 2 : i64, tpu.core_type = #tpu.core_type<tc>, window_params = [{pipeline_mode = #tpu.pipeline_mode<synchronous>, transform_indices = @transform_0, window_bounds = array<i64: 2, 8, 128>}, {pipeline_mode = #tpu.pipeline_mode<synchronous>, transform_indices = @transform_1, window_bounds = array<i64: 2, 8, 128>}, {pipeline_mode = #tpu.pipeline_mode<synchronous>, transform_indices = @transform_2, window_bounds = array<i64: 2, 8, 8>}, {pipeline_mode = #tpu.pipeline_mode<synchronous>, transform_indices = @transform_3, window_bounds = array<i64: 2, 8>}, {transform_indices = @transform_4, window_bounds = array<i64: 1, 128, 384>}, {transform_indices = @transform_5, window_bounds = array<i64: 1, 1, 384>}, {transform_indices = @transform_6, window_bounds = array<i64: 1, 128, 128>}, {transform_indices = @transform_7, window_bounds = array<i64: 1, 1, 128>}, {transform_indices = @transform_8, window_bounds = array<i64: 1, 1, 128>}, {transform_indices = @transform_9, window_bounds = array<i64: 1, 1, 128>}, {transform_indices = @transform_10, window_bounds = array<i64: 1, 128, 128>}, {transform_indices = @transform_11, window_bounds = array<i64: 1, 1, 128>}, {transform_indices = @transform_12, window_bounds = array<i64: 1, 128, 256>}, {transform_indices = @transform_13, window_bounds = array<i64: 1, 1, 256>}, {transform_indices = @transform_14, window_bounds = array<i64: 1, 128, 128>}, {transform_indices = @transform_15, window_bounds = array<i64: 1, 1, 128>}, {transform_indices = @transform_16, window_bounds = array<i64: 1, 1, 128>}, {transform_indices = @transform_17, window_bounds = array<i64: 1, 1, 128>}, {transform_indices = @transform_18, window_bounds = array<i64: 1, 128, 256>}, {transform_indices = @transform_19, window_bounds = array<i64: 1, 1, 256>}, {transform_indices = @transform_20, window_bounds = array<i64: 1, 256, 128>}, {transform_indices = @transform_21, window_bounds = array<i64: 1, 1, 128>}, {transform_indices = @transform_22, window_bounds = array<i64: 1, 1, 128>}, {transform_indices = @transform_23, window_bounds = array<i64: 1, 1, 128>}, {pipeline_mode = #tpu.pipeline_mode<synchronous>, transform_indices = @transform_24, window_bounds = array<i64: 2, 8, 128>}]} {
    %c0_i32 = arith.constant 0 : i32
    %0 = arith.cmpi eq, %arg0, %c0_i32 : i32
    %1 = arith.extui %0 : i1 to i32
    %c0_i32_0 = arith.constant 0 : i32
    %2 = arith.cmpi ne, %1, %c0_i32_0 : i32
    scf.if %2 {
      %c0_158 = arith.constant 0 : index
      %c0_159 = arith.constant 0 : index
      %c0_160 = arith.constant 0 : index
      %328 = vector.load %arg1[%c0_158, %c0_159, %c0_160] : memref<2x8x128xf32, #tpu.memory_space<vmem>>, vector<2x8x128xf32>
      %c0_161 = arith.constant 0 : index
      %c0_162 = arith.constant 0 : index
      %c0_163 = arith.constant 0 : index
      %329 = vector.load %arg26[%c0_161, %c0_162, %c0_163] : memref<2x8x128xf32, #tpu.memory_space<vmem>>, vector<2x8x128xf32>
      tpu.vector_store %arg26[%c0_161, %c0_162, %c0_163], %328 {strides = array<i32>} : memref<2x8x128xf32, #tpu.memory_space<vmem>>, vector<2x8x128xf32>,
    } else {
    }
    %c0 = arith.constant 0 : index
    %c0_1 = arith.constant 0 : index
    %c0_2 = arith.constant 0 : index
    %3 = vector.load %arg26[%c0, %c0_1, %c0_2] : memref<2x8x128xf32, #tpu.memory_space<vmem>>, vector<2x8x128xf32>
    %4 = vector.shape_cast %3 : vector<2x8x128xf32> to vector<16x128xf32>
    %5 = arith.truncf %4 : vector<16x128xf32> to vector<16x128xbf16>
    %c0_3 = arith.constant 0 : index
    %c0_4 = arith.constant 0 : index
    %c0_5 = arith.constant 0 : index
    %6 = vector.load %arg5[%c0_3, %c0_4, %c0_5] : memref<1x128x384xbf16, #tpu.memory_space<vmem>>, vector<1x128x384xbf16>
    %7 = vector.shape_cast %6 : vector<1x128x384xbf16> to vector<128x384xbf16>
    %cst = arith.constant dense<0.000000e+00> : vector<16x384xf32>
    %8 = tpu.matmul %5, %7, %cst {dimension_numbers = #tpu.dot_dimension_numbers<[1], [0], [0], [1], [0, 0, 1, 1], [], []>} : vector<16x128xbf16>, vector<128x384xbf16>, vector<16x384xf32> -> vector<16x384xf32>
    %c0_6 = arith.constant 0 : index
    %c0_7 = arith.constant 0 : index
    %c0_8 = arith.constant 0 : index
    %9 = vector.load %arg6[%c0_6, %c0_7, %c0_8] : memref<1x1x384xf32, #tpu.memory_space<vmem>>, vector<1x1x384xf32>
    %10 = vector.shape_cast %9 : vector<1x1x384xf32> to vector<1x384xf32>
    %11 = vector.broadcast %10 : vector<1x384xf32> to vector<16x384xf32>
    %12 = arith.addf %8, %11 : vector<16x384xf32>
    %13 = vector.shape_cast %12 : vector<16x384xf32> to vector<2x8x384xf32>
    %14 = vector.extract_strided_slice %13 {offsets = [0, 0, 0], sizes = [2, 8, 128], strides = [1, 1, 1]} : vector<2x8x384xf32> to vector<2x8x128xf32>
    %15 = vector.extract_strided_slice %13 {offsets = [0, 0, 128], sizes = [2, 8, 128], strides = [1, 1, 1]} : vector<2x8x384xf32> to vector<2x8x128xf32>
    %16 = vector.extract_strided_slice %13 {offsets = [0, 0, 256], sizes = [2, 8, 128], strides = [1, 1, 1]} : vector<2x8x384xf32> to vector<2x8x128xf32>
    %c0_9 = arith.constant 0 : index
    %c0_10 = arith.constant 0 : index
    %c0_11 = arith.constant 0 : index
    %17 = vector.load %arg3[%c0_9, %c0_10, %c0_11] : memref<2x8x8xf32, #tpu.memory_space<vmem>>, vector<2x8x8xf32>
    %18 = vector.extract_strided_slice %14 {offsets = [0, 0, 0], sizes = [2, 8, 32], strides = [1, 1, 1]} : vector<2x8x128xf32> to vector<2x8x32xf32>
    %19 = arith.truncf %18 : vector<2x8x32xf32> to vector<2x8x32xbf16>
    %20 = vector.extract_strided_slice %15 {offsets = [0, 0, 0], sizes = [2, 8, 32], strides = [1, 1, 1]} : vector<2x8x128xf32> to vector<2x8x32xf32>
    %21 = arith.truncf %20 : vector<2x8x32xf32> to vector<2x8x32xbf16>
    "tpu.trace_start"() <{level = 10 : i32, message = "bqd,bkd->bqk"}> : () -> ()
    %cst_12 = arith.constant dense<0.000000e+00> : vector<2x8x8xf32>
    %22 = tpu.matmul %19, %21, %cst_12 {dimension_numbers = #tpu.dot_dimension_numbers<[2], [2], [1], [1], [0, 0, 0, 1, 1, 1], [0], [0]>} : vector<2x8x32xbf16>, vector<2x8x32xbf16>, vector<2x8x8xf32> -> vector<2x8x8xf32>
    "tpu.trace_stop"() : () -> ()
    %23 = arith.addf %22, %17 : vector<2x8x8xf32>
    %cst_13 = arith.constant dense<0xFF800000> : vector<2x8xf32>
    %24 = vector.multi_reduction <maximumf>, %23, %cst_13 [2] : vector<2x8x8xf32> to vector<2x8xf32>
    %25 = vector.shape_cast %24 : vector<2x8xf32> to vector<2x8x1xf32>
    %26 = vector.broadcast %25 : vector<2x8x1xf32> to vector<2x8x8xf32>
    %27 = arith.subf %23, %26 : vector<2x8x8xf32>
    %28 = math.exp %27 : vector<2x8x8xf32>
    %cst_14 = arith.constant dense<0.000000e+00> : vector<2x8xf32>
    %29 = vector.multi_reduction <add>, %28, %cst_14 [2] : vector<2x8x8xf32> to vector<2x8xf32>
    %30 = vector.shape_cast %29 : vector<2x8xf32> to vector<2x8x1xf32>
    %31 = vector.broadcast %30 : vector<2x8x1xf32> to vector<2x8x8xf32>
    %32 = arith.divf %28, %31 : vector<2x8x8xf32>
    %33 = arith.truncf %32 : vector<2x8x8xf32> to vector<2x8x8xbf16>
    %34 = vector.extract_strided_slice %16 {offsets = [0, 0, 0], sizes = [2, 8, 32], strides = [1, 1, 1]} : vector<2x8x128xf32> to vector<2x8x32xf32>
    %35 = arith.truncf %34 : vector<2x8x32xf32> to vector<2x8x32xbf16>
    "tpu.trace_start"() <{level = 10 : i32, message = "bqk,bkd->bqd"}> : () -> ()
    %cst_15 = arith.constant dense<0.000000e+00> : vector<2x8x32xf32>
    %36 = tpu.matmul %33, %35, %cst_15 {dimension_numbers = #tpu.dot_dimension_numbers<[2], [1], [1], [2], [0, 0, 0, 1, 1, 2], [0], [0]>} : vector<2x8x8xbf16>, vector<2x8x32xbf16>, vector<2x8x32xf32> -> vector<2x8x32xf32>
    "tpu.trace_stop"() : () -> ()
    %c0_16 = arith.constant 0 : index
    %c0_17 = arith.constant 0 : index
    %c0_18 = arith.constant 0 : index
    %37 = vector.load %arg27[%c0_16, %c0_17, %c0_18] : memref<2x8x128xf32, #tpu.memory_space<vmem>>, vector<2x8x32xf32>
    tpu.vector_store %arg27[%c0_16, %c0_17, %c0_18], %36 {strides = array<i32>} : memref<2x8x128xf32, #tpu.memory_space<vmem>>, vector<2x8x32xf32>,
    %38 = vector.extract_strided_slice %14 {offsets = [0, 0, 32], sizes = [2, 8, 32], strides = [1, 1, 1]} : vector<2x8x128xf32> to vector<2x8x32xf32>
    %39 = arith.truncf %38 : vector<2x8x32xf32> to vector<2x8x32xbf16>
    %40 = vector.extract_strided_slice %15 {offsets = [0, 0, 32], sizes = [2, 8, 32], strides = [1, 1, 1]} : vector<2x8x128xf32> to vector<2x8x32xf32>
    %41 = arith.truncf %40 : vector<2x8x32xf32> to vector<2x8x32xbf16>
    "tpu.trace_start"() <{level = 10 : i32, message = "bqd,bkd->bqk"}> : () -> ()
    %cst_19 = arith.constant dense<0.000000e+00> : vector<2x8x8xf32>
    %42 = tpu.matmul %39, %41, %cst_19 {dimension_numbers = #tpu.dot_dimension_numbers<[2], [2], [1], [1], [0, 0, 0, 1, 1, 1], [0], [0]>} : vector<2x8x32xbf16>, vector<2x8x32xbf16>, vector<2x8x8xf32> -> vector<2x8x8xf32>
    "tpu.trace_stop"() : () -> ()
    %43 = arith.addf %42, %17 : vector<2x8x8xf32>
    %cst_20 = arith.constant dense<0xFF800000> : vector<2x8xf32>
    %44 = vector.multi_reduction <maximumf>, %43, %cst_20 [2] : vector<2x8x8xf32> to vector<2x8xf32>
    %45 = vector.shape_cast %44 : vector<2x8xf32> to vector<2x8x1xf32>
    %46 = vector.broadcast %45 : vector<2x8x1xf32> to vector<2x8x8xf32>
    %47 = arith.subf %43, %46 : vector<2x8x8xf32>
    %48 = math.exp %47 : vector<2x8x8xf32>
    %cst_21 = arith.constant dense<0.000000e+00> : vector<2x8xf32>
    %49 = vector.multi_reduction <add>, %48, %cst_21 [2] : vector<2x8x8xf32> to vector<2x8xf32>
    %50 = vector.shape_cast %49 : vector<2x8xf32> to vector<2x8x1xf32>
    %51 = vector.broadcast %50 : vector<2x8x1xf32> to vector<2x8x8xf32>
    %52 = arith.divf %48, %51 : vector<2x8x8xf32>
    %53 = arith.truncf %52 : vector<2x8x8xf32> to vector<2x8x8xbf16>
    %54 = vector.extract_strided_slice %16 {offsets = [0, 0, 32], sizes = [2, 8, 32], strides = [1, 1, 1]} : vector<2x8x128xf32> to vector<2x8x32xf32>
    %55 = arith.truncf %54 : vector<2x8x32xf32> to vector<2x8x32xbf16>
    "tpu.trace_start"() <{level = 10 : i32, message = "bqk,bkd->bqd"}> : () -> ()
    %cst_22 = arith.constant dense<0.000000e+00> : vector<2x8x32xf32>
    %56 = tpu.matmul %53, %55, %cst_22 {dimension_numbers = #tpu.dot_dimension_numbers<[2], [1], [1], [2], [0, 0, 0, 1, 1, 2], [0], [0]>} : vector<2x8x8xbf16>, vector<2x8x32xbf16>, vector<2x8x32xf32> -> vector<2x8x32xf32>
    "tpu.trace_stop"() : () -> ()
    %c0_23 = arith.constant 0 : index
    %c0_24 = arith.constant 0 : index
    %c32 = arith.constant 32 : index
    %57 = vector.load %arg27[%c0_23, %c0_24, %c32] : memref<2x8x128xf32, #tpu.memory_space<vmem>>, vector<2x8x32xf32>
    tpu.vector_store %arg27[%c0_23, %c0_24, %c32], %56 {strides = array<i32>} : memref<2x8x128xf32, #tpu.memory_space<vmem>>, vector<2x8x32xf32>,
    %58 = vector.extract_strided_slice %14 {offsets = [0, 0, 64], sizes = [2, 8, 32], strides = [1, 1, 1]} : vector<2x8x128xf32> to vector<2x8x32xf32>
    %59 = arith.truncf %58 : vector<2x8x32xf32> to vector<2x8x32xbf16>
    %60 = vector.extract_strided_slice %15 {offsets = [0, 0, 64], sizes = [2, 8, 32], strides = [1, 1, 1]} : vector<2x8x128xf32> to vector<2x8x32xf32>
    %61 = arith.truncf %60 : vector<2x8x32xf32> to vector<2x8x32xbf16>
    "tpu.trace_start"() <{level = 10 : i32, message = "bqd,bkd->bqk"}> : () -> ()
    %cst_25 = arith.constant dense<0.000000e+00> : vector<2x8x8xf32>
    %62 = tpu.matmul %59, %61, %cst_25 {dimension_numbers = #tpu.dot_dimension_numbers<[2], [2], [1], [1], [0, 0, 0, 1, 1, 1], [0], [0]>} : vector<2x8x32xbf16>, vector<2x8x32xbf16>, vector<2x8x8xf32> -> vector<2x8x8xf32>
    "tpu.trace_stop"() : () -> ()
    %63 = arith.addf %62, %17 : vector<2x8x8xf32>
    %cst_26 = arith.constant dense<0xFF800000> : vector<2x8xf32>
    %64 = vector.multi_reduction <maximumf>, %63, %cst_26 [2] : vector<2x8x8xf32> to vector<2x8xf32>
    %65 = vector.shape_cast %64 : vector<2x8xf32> to vector<2x8x1xf32>
    %66 = vector.broadcast %65 : vector<2x8x1xf32> to vector<2x8x8xf32>
    %67 = arith.subf %63, %66 : vector<2x8x8xf32>
    %68 = math.exp %67 : vector<2x8x8xf32>
    %cst_27 = arith.constant dense<0.000000e+00> : vector<2x8xf32>
    %69 = vector.multi_reduction <add>, %68, %cst_27 [2] : vector<2x8x8xf32> to vector<2x8xf32>
    %70 = vector.shape_cast %69 : vector<2x8xf32> to vector<2x8x1xf32>
    %71 = vector.broadcast %70 : vector<2x8x1xf32> to vector<2x8x8xf32>
    %72 = arith.divf %68, %71 : vector<2x8x8xf32>
    %73 = arith.truncf %72 : vector<2x8x8xf32> to vector<2x8x8xbf16>
    %74 = vector.extract_strided_slice %16 {offsets = [0, 0, 64], sizes = [2, 8, 32], strides = [1, 1, 1]} : vector<2x8x128xf32> to vector<2x8x32xf32>
    %75 = arith.truncf %74 : vector<2x8x32xf32> to vector<2x8x32xbf16>
    "tpu.trace_start"() <{level = 10 : i32, message = "bqk,bkd->bqd"}> : () -> ()
    %cst_28 = arith.constant dense<0.000000e+00> : vector<2x8x32xf32>
    %76 = tpu.matmul %73, %75, %cst_28 {dimension_numbers = #tpu.dot_dimension_numbers<[2], [1], [1], [2], [0, 0, 0, 1, 1, 2], [0], [0]>} : vector<2x8x8xbf16>, vector<2x8x32xbf16>, vector<2x8x32xf32> -> vector<2x8x32xf32>
    "tpu.trace_stop"() : () -> ()
    %c0_29 = arith.constant 0 : index
    %c0_30 = arith.constant 0 : index
    %c64 = arith.constant 64 : index
    %77 = vector.load %arg27[%c0_29, %c0_30, %c64] : memref<2x8x128xf32, #tpu.memory_space<vmem>>, vector<2x8x32xf32>
    tpu.vector_store %arg27[%c0_29, %c0_30, %c64], %76 {strides = array<i32>} : memref<2x8x128xf32, #tpu.memory_space<vmem>>, vector<2x8x32xf32>,
    %78 = vector.extract_strided_slice %14 {offsets = [0, 0, 96], sizes = [2, 8, 32], strides = [1, 1, 1]} : vector<2x8x128xf32> to vector<2x8x32xf32>
    %79 = arith.truncf %78 : vector<2x8x32xf32> to vector<2x8x32xbf16>
    %80 = vector.extract_strided_slice %15 {offsets = [0, 0, 96], sizes = [2, 8, 32], strides = [1, 1, 1]} : vector<2x8x128xf32> to vector<2x8x32xf32>
    %81 = arith.truncf %80 : vector<2x8x32xf32> to vector<2x8x32xbf16>
    "tpu.trace_start"() <{level = 10 : i32, message = "bqd,bkd->bqk"}> : () -> ()
    %cst_31 = arith.constant dense<0.000000e+00> : vector<2x8x8xf32>
    %82 = tpu.matmul %79, %81, %cst_31 {dimension_numbers = #tpu.dot_dimension_numbers<[2], [2], [1], [1], [0, 0, 0, 1, 1, 1], [0], [0]>} : vector<2x8x32xbf16>, vector<2x8x32xbf16>, vector<2x8x8xf32> -> vector<2x8x8xf32>
    "tpu.trace_stop"() : () -> ()
    %83 = arith.addf %82, %17 : vector<2x8x8xf32>
    %cst_32 = arith.constant dense<0xFF800000> : vector<2x8xf32>
    %84 = vector.multi_reduction <maximumf>, %83, %cst_32 [2] : vector<2x8x8xf32> to vector<2x8xf32>
    %85 = vector.shape_cast %84 : vector<2x8xf32> to vector<2x8x1xf32>
    %86 = vector.broadcast %85 : vector<2x8x1xf32> to vector<2x8x8xf32>
    %87 = arith.subf %83, %86 : vector<2x8x8xf32>
    %88 = math.exp %87 : vector<2x8x8xf32>
    %cst_33 = arith.constant dense<0.000000e+00> : vector<2x8xf32>
    %89 = vector.multi_reduction <add>, %88, %cst_33 [2] : vector<2x8x8xf32> to vector<2x8xf32>
    %90 = vector.shape_cast %89 : vector<2x8xf32> to vector<2x8x1xf32>
    %91 = vector.broadcast %90 : vector<2x8x1xf32> to vector<2x8x8xf32>
    %92 = arith.divf %88, %91 : vector<2x8x8xf32>
    %93 = arith.truncf %92 : vector<2x8x8xf32> to vector<2x8x8xbf16>
    %94 = vector.extract_strided_slice %16 {offsets = [0, 0, 96], sizes = [2, 8, 32], strides = [1, 1, 1]} : vector<2x8x128xf32> to vector<2x8x32xf32>
    %95 = arith.truncf %94 : vector<2x8x32xf32> to vector<2x8x32xbf16>
    "tpu.trace_start"() <{level = 10 : i32, message = "bqk,bkd->bqd"}> : () -> ()
    %cst_34 = arith.constant dense<0.000000e+00> : vector<2x8x32xf32>
    %96 = tpu.matmul %93, %95, %cst_34 {dimension_numbers = #tpu.dot_dimension_numbers<[2], [1], [1], [2], [0, 0, 0, 1, 1, 2], [0], [0]>} : vector<2x8x8xbf16>, vector<2x8x32xbf16>, vector<2x8x32xf32> -> vector<2x8x32xf32>
    "tpu.trace_stop"() : () -> ()
    %c0_35 = arith.constant 0 : index
    %c0_36 = arith.constant 0 : index
    %c96 = arith.constant 96 : index
    %97 = vector.load %arg27[%c0_35, %c0_36, %c96] : memref<2x8x128xf32, #tpu.memory_space<vmem>>, vector<2x8x32xf32>
    tpu.vector_store %arg27[%c0_35, %c0_36, %c96], %96 {strides = array<i32>} : memref<2x8x128xf32, #tpu.memory_space<vmem>>, vector<2x8x32xf32>,
    %c0_37 = arith.constant 0 : index
    %c0_38 = arith.constant 0 : index
    %c0_39 = arith.constant 0 : index
    %98 = vector.load %arg27[%c0_37, %c0_38, %c0_39] : memref<2x8x128xf32, #tpu.memory_space<vmem>>, vector<2x8x128xf32>
    %99 = vector.shape_cast %98 : vector<2x8x128xf32> to vector<16x128xf32>
    %100 = arith.truncf %99 : vector<16x128xf32> to vector<16x128xbf16>
    %c0_40 = arith.constant 0 : index
    %c0_41 = arith.constant 0 : index
    %c0_42 = arith.constant 0 : index
    %101 = vector.load %arg7[%c0_40, %c0_41, %c0_42] : memref<1x128x128xbf16, #tpu.memory_space<vmem>>, vector<1x128x128xbf16>
    %102 = vector.shape_cast %101 : vector<1x128x128xbf16> to vector<128x128xbf16>
    %cst_43 = arith.constant dense<0.000000e+00> : vector<16x128xf32>
    %103 = tpu.matmul %100, %102, %cst_43 {dimension_numbers = #tpu.dot_dimension_numbers<[1], [0], [0], [1], [0, 0, 1, 1], [], []>} : vector<16x128xbf16>, vector<128x128xbf16>, vector<16x128xf32> -> vector<16x128xf32>
    %c0_44 = arith.constant 0 : index
    %c0_45 = arith.constant 0 : index
    %c0_46 = arith.constant 0 : index
    %104 = vector.load %arg8[%c0_44, %c0_45, %c0_46] : memref<1x1x128xf32, #tpu.memory_space<vmem>>, vector<1x1x128xf32>
    %105 = vector.shape_cast %104 : vector<1x1x128xf32> to vector<1x128xf32>
    %106 = vector.broadcast %105 : vector<1x128xf32> to vector<16x128xf32>
    %107 = arith.addf %103, %106 : vector<16x128xf32>
    %108 = arith.addf %4, %107 : vector<16x128xf32>
    %c0_47 = arith.constant 0 : index
    %c0_48 = arith.constant 0 : index
    %c0_49 = arith.constant 0 : index
    %109 = vector.load %arg9[%c0_47, %c0_48, %c0_49] : memref<1x1x128xf32, #tpu.memory_space<vmem>>, vector<1x1x128xf32>
    %110 = vector.shape_cast %109 : vector<1x1x128xf32> to vector<1x128xf32>
    %c0_50 = arith.constant 0 : index
    %c0_51 = arith.constant 0 : index
    %c0_52 = arith.constant 0 : index
    %111 = vector.load %arg10[%c0_50, %c0_51, %c0_52] : memref<1x1x128xf32, #tpu.memory_space<vmem>>, vector<1x1x128xf32>
    %112 = vector.shape_cast %111 : vector<1x1x128xf32> to vector<1x128xf32>
    %cst_53 = arith.constant dense<0.000000e+00> : vector<16xf32>
    %113 = vector.multi_reduction <add>, %108, %cst_53 [1] : vector<16x128xf32> to vector<16xf32>
    %114 = vector.shape_cast %113 : vector<16xf32> to vector<16x1xf32>
    %cst_54 = arith.constant 1.280000e+02 : f32
    %115 = vector.broadcast %cst_54 : f32 to vector<16x1xf32>
    %116 = arith.divf %114, %115 : vector<16x1xf32>
    %117 = vector.broadcast %116 : vector<16x1xf32> to vector<16x128xf32>
    %118 = arith.subf %108, %117 : vector<16x128xf32>
    %119 = arith.mulf %118, %118 : vector<16x128xf32>
    %cst_55 = arith.constant dense<0.000000e+00> : vector<16xf32>
    %120 = vector.multi_reduction <add>, %119, %cst_55 [1] : vector<16x128xf32> to vector<16xf32>
    %121 = vector.shape_cast %120 : vector<16xf32> to vector<16x1xf32>
    %cst_56 = arith.constant 1.280000e+02 : f32
    %122 = vector.broadcast %cst_56 : f32 to vector<16x1xf32>
    %123 = arith.divf %121, %122 : vector<16x1xf32>
    %124 = vector.broadcast %116 : vector<16x1xf32> to vector<16x128xf32>
    %125 = arith.subf %108, %124 : vector<16x128xf32>
    %cst_57 = arith.constant 9.99999974E-6 : f32
    %126 = vector.broadcast %cst_57 : f32 to vector<16x1xf32>
    %127 = arith.addf %123, %126 : vector<16x1xf32>
    %128 = math.rsqrt %127 : vector<16x1xf32>
    %129 = vector.broadcast %128 : vector<16x1xf32> to vector<16x128xf32>
    %130 = arith.mulf %125, %129 : vector<16x128xf32>
    %131 = vector.broadcast %110 : vector<1x128xf32> to vector<16x128xf32>
    %132 = arith.mulf %130, %131 : vector<16x128xf32>
    %133 = vector.broadcast %112 : vector<1x128xf32> to vector<16x128xf32>
    %134 = arith.addf %132, %133 : vector<16x128xf32>
    %c0_58 = arith.constant 0 : index
    %c0_59 = arith.constant 0 : index
    %c0_60 = arith.constant 0 : index
    %135 = vector.load %arg2[%c0_58, %c0_59, %c0_60] : memref<2x8x128xf32, #tpu.memory_space<vmem>>, vector<2x8x128xf32>
    %136 = vector.shape_cast %135 : vector<2x8x128xf32> to vector<16x128xf32>
    %137 = arith.truncf %134 : vector<16x128xf32> to vector<16x128xbf16>
    %c0_61 = arith.constant 0 : index
    %c0_62 = arith.constant 0 : index
    %c0_63 = arith.constant 0 : index
    %138 = vector.load %arg11[%c0_61, %c0_62, %c0_63] : memref<1x128x128xbf16, #tpu.memory_space<vmem>>, vector<1x128x128xbf16>
    %139 = vector.shape_cast %138 : vector<1x128x128xbf16> to vector<128x128xbf16>
    %cst_64 = arith.constant dense<0.000000e+00> : vector<16x128xf32>
    %140 = tpu.matmul %137, %139, %cst_64 {dimension_numbers = #tpu.dot_dimension_numbers<[1], [0], [0], [1], [0, 0, 1, 1], [], []>} : vector<16x128xbf16>, vector<128x128xbf16>, vector<16x128xf32> -> vector<16x128xf32>
    %c0_65 = arith.constant 0 : index
    %c0_66 = arith.constant 0 : index
    %c0_67 = arith.constant 0 : index
    %141 = vector.load %arg12[%c0_65, %c0_66, %c0_67] : memref<1x1x128xf32, #tpu.memory_space<vmem>>, vector<1x1x128xf32>
    %142 = vector.shape_cast %141 : vector<1x1x128xf32> to vector<1x128xf32>
    %143 = vector.broadcast %142 : vector<1x128xf32> to vector<16x128xf32>
    %144 = arith.addf %140, %143 : vector<16x128xf32>
    %145 = vector.shape_cast %144 : vector<16x128xf32> to vector<2x8x128xf32>
    %146 = arith.truncf %136 : vector<16x128xf32> to vector<16x128xbf16>
    %c0_68 = arith.constant 0 : index
    %c0_69 = arith.constant 0 : index
    %c0_70 = arith.constant 0 : index
    %147 = vector.load %arg13[%c0_68, %c0_69, %c0_70] : memref<1x128x256xbf16, #tpu.memory_space<vmem>>, vector<1x128x256xbf16>
    %148 = vector.shape_cast %147 : vector<1x128x256xbf16> to vector<128x256xbf16>
    %cst_71 = arith.constant dense<0.000000e+00> : vector<16x256xf32>
    %149 = tpu.matmul %146, %148, %cst_71 {dimension_numbers = #tpu.dot_dimension_numbers<[1], [0], [0], [1], [0, 0, 1, 1], [], []>} : vector<16x128xbf16>, vector<128x256xbf16>, vector<16x256xf32> -> vector<16x256xf32>
    %c0_72 = arith.constant 0 : index
    %c0_73 = arith.constant 0 : index
    %c0_74 = arith.constant 0 : index
    %150 = vector.load %arg14[%c0_72, %c0_73, %c0_74] : memref<1x1x256xf32, #tpu.memory_space<vmem>>, vector<1x1x256xf32>
    %151 = vector.shape_cast %150 : vector<1x1x256xf32> to vector<1x256xf32>
    %152 = vector.broadcast %151 : vector<1x256xf32> to vector<16x256xf32>
    %153 = arith.addf %149, %152 : vector<16x256xf32>
    %154 = vector.shape_cast %153 : vector<16x256xf32> to vector<2x8x256xf32>
    %c0_75 = arith.constant 0 : index
    %c0_76 = arith.constant 0 : index
    %155 = vector.load %arg4[%c0_75, %c0_76] : memref<2x8xf32, #tpu.memory_space<vmem>>, vector<2x8xf32>
    %156 = vector.shape_cast %155 : vector<2x8xf32> to vector<2x1x8xf32>
    %157 = vector.extract_strided_slice %154 {offsets = [0, 0, 0], sizes = [2, 8, 128], strides = [1, 1, 1]} : vector<2x8x256xf32> to vector<2x8x128xf32>
    %158 = vector.extract_strided_slice %154 {offsets = [0, 0, 128], sizes = [2, 8, 128], strides = [1, 1, 1]} : vector<2x8x256xf32> to vector<2x8x128xf32>
    %159 = vector.extract_strided_slice %145 {offsets = [0, 0, 0], sizes = [2, 8, 32], strides = [1, 1, 1]} : vector<2x8x128xf32> to vector<2x8x32xf32>
    %160 = arith.truncf %159 : vector<2x8x32xf32> to vector<2x8x32xbf16>
    %161 = vector.extract_strided_slice %157 {offsets = [0, 0, 0], sizes = [2, 8, 32], strides = [1, 1, 1]} : vector<2x8x128xf32> to vector<2x8x32xf32>
    %162 = arith.truncf %161 : vector<2x8x32xf32> to vector<2x8x32xbf16>
    "tpu.trace_start"() <{level = 10 : i32, message = "bqd,bkd->bqk"}> : () -> ()
    %cst_77 = arith.constant dense<0.000000e+00> : vector<2x8x8xf32>
    %163 = tpu.matmul %160, %162, %cst_77 {dimension_numbers = #tpu.dot_dimension_numbers<[2], [2], [1], [1], [0, 0, 0, 1, 1, 1], [0], [0]>} : vector<2x8x32xbf16>, vector<2x8x32xbf16>, vector<2x8x8xf32> -> vector<2x8x8xf32>
    "tpu.trace_stop"() : () -> ()
    %164 = vector.broadcast %156 : vector<2x1x8xf32> to vector<2x8x8xf32>
    %165 = arith.addf %163, %164 : vector<2x8x8xf32>
    %cst_78 = arith.constant dense<0xFF800000> : vector<2x8xf32>
    %166 = vector.multi_reduction <maximumf>, %165, %cst_78 [2] : vector<2x8x8xf32> to vector<2x8xf32>
    %167 = vector.shape_cast %166 : vector<2x8xf32> to vector<2x8x1xf32>
    %168 = vector.broadcast %167 : vector<2x8x1xf32> to vector<2x8x8xf32>
    %169 = arith.subf %165, %168 : vector<2x8x8xf32>
    %170 = math.exp %169 : vector<2x8x8xf32>
    %cst_79 = arith.constant dense<0.000000e+00> : vector<2x8xf32>
    %171 = vector.multi_reduction <add>, %170, %cst_79 [2] : vector<2x8x8xf32> to vector<2x8xf32>
    %172 = vector.shape_cast %171 : vector<2x8xf32> to vector<2x8x1xf32>
    %173 = vector.broadcast %172 : vector<2x8x1xf32> to vector<2x8x8xf32>
    %174 = arith.divf %170, %173 : vector<2x8x8xf32>
    %175 = arith.truncf %174 : vector<2x8x8xf32> to vector<2x8x8xbf16>
    %176 = vector.extract_strided_slice %158 {offsets = [0, 0, 0], sizes = [2, 8, 32], strides = [1, 1, 1]} : vector<2x8x128xf32> to vector<2x8x32xf32>
    %177 = arith.truncf %176 : vector<2x8x32xf32> to vector<2x8x32xbf16>
    "tpu.trace_start"() <{level = 10 : i32, message = "bqk,bkd->bqd"}> : () -> ()
    %cst_80 = arith.constant dense<0.000000e+00> : vector<2x8x32xf32>
    %178 = tpu.matmul %175, %177, %cst_80 {dimension_numbers = #tpu.dot_dimension_numbers<[2], [1], [1], [2], [0, 0, 0, 1, 1, 2], [0], [0]>} : vector<2x8x8xbf16>, vector<2x8x32xbf16>, vector<2x8x32xf32> -> vector<2x8x32xf32>
    "tpu.trace_stop"() : () -> ()
    %c0_81 = arith.constant 0 : index
    %c0_82 = arith.constant 0 : index
    %c0_83 = arith.constant 0 : index
    %179 = vector.load %arg27[%c0_81, %c0_82, %c0_83] : memref<2x8x128xf32, #tpu.memory_space<vmem>>, vector<2x8x32xf32>
    tpu.vector_store %arg27[%c0_81, %c0_82, %c0_83], %178 {strides = array<i32>} : memref<2x8x128xf32, #tpu.memory_space<vmem>>, vector<2x8x32xf32>,
    %180 = vector.extract_strided_slice %145 {offsets = [0, 0, 32], sizes = [2, 8, 32], strides = [1, 1, 1]} : vector<2x8x128xf32> to vector<2x8x32xf32>
    %181 = arith.truncf %180 : vector<2x8x32xf32> to vector<2x8x32xbf16>
    %182 = vector.extract_strided_slice %157 {offsets = [0, 0, 32], sizes = [2, 8, 32], strides = [1, 1, 1]} : vector<2x8x128xf32> to vector<2x8x32xf32>
    %183 = arith.truncf %182 : vector<2x8x32xf32> to vector<2x8x32xbf16>
    "tpu.trace_start"() <{level = 10 : i32, message = "bqd,bkd->bqk"}> : () -> ()
    %cst_84 = arith.constant dense<0.000000e+00> : vector<2x8x8xf32>
    %184 = tpu.matmul %181, %183, %cst_84 {dimension_numbers = #tpu.dot_dimension_numbers<[2], [2], [1], [1], [0, 0, 0, 1, 1, 1], [0], [0]>} : vector<2x8x32xbf16>, vector<2x8x32xbf16>, vector<2x8x8xf32> -> vector<2x8x8xf32>
    "tpu.trace_stop"() : () -> ()
    %185 = vector.broadcast %156 : vector<2x1x8xf32> to vector<2x8x8xf32>
    %186 = arith.addf %184, %185 : vector<2x8x8xf32>
    %cst_85 = arith.constant dense<0xFF800000> : vector<2x8xf32>
    %187 = vector.multi_reduction <maximumf>, %186, %cst_85 [2] : vector<2x8x8xf32> to vector<2x8xf32>
    %188 = vector.shape_cast %187 : vector<2x8xf32> to vector<2x8x1xf32>
    %189 = vector.broadcast %188 : vector<2x8x1xf32> to vector<2x8x8xf32>
    %190 = arith.subf %186, %189 : vector<2x8x8xf32>
    %191 = math.exp %190 : vector<2x8x8xf32>
    %cst_86 = arith.constant dense<0.000000e+00> : vector<2x8xf32>
    %192 = vector.multi_reduction <add>, %191, %cst_86 [2] : vector<2x8x8xf32> to vector<2x8xf32>
    %193 = vector.shape_cast %192 : vector<2x8xf32> to vector<2x8x1xf32>
    %194 = vector.broadcast %193 : vector<2x8x1xf32> to vector<2x8x8xf32>
    %195 = arith.divf %191, %194 : vector<2x8x8xf32>
    %196 = arith.truncf %195 : vector<2x8x8xf32> to vector<2x8x8xbf16>
    %197 = vector.extract_strided_slice %158 {offsets = [0, 0, 32], sizes = [2, 8, 32], strides = [1, 1, 1]} : vector<2x8x128xf32> to vector<2x8x32xf32>
    %198 = arith.truncf %197 : vector<2x8x32xf32> to vector<2x8x32xbf16>
    "tpu.trace_start"() <{level = 10 : i32, message = "bqk,bkd->bqd"}> : () -> ()
    %cst_87 = arith.constant dense<0.000000e+00> : vector<2x8x32xf32>
    %199 = tpu.matmul %196, %198, %cst_87 {dimension_numbers = #tpu.dot_dimension_numbers<[2], [1], [1], [2], [0, 0, 0, 1, 1, 2], [0], [0]>} : vector<2x8x8xbf16>, vector<2x8x32xbf16>, vector<2x8x32xf32> -> vector<2x8x32xf32>
    "tpu.trace_stop"() : () -> ()
    %c0_88 = arith.constant 0 : index
    %c0_89 = arith.constant 0 : index
    %c32_90 = arith.constant 32 : index
    %200 = vector.load %arg27[%c0_88, %c0_89, %c32_90] : memref<2x8x128xf32, #tpu.memory_space<vmem>>, vector<2x8x32xf32>
    tpu.vector_store %arg27[%c0_88, %c0_89, %c32_90], %199 {strides = array<i32>} : memref<2x8x128xf32, #tpu.memory_space<vmem>>, vector<2x8x32xf32>,
    %201 = vector.extract_strided_slice %145 {offsets = [0, 0, 64], sizes = [2, 8, 32], strides = [1, 1, 1]} : vector<2x8x128xf32> to vector<2x8x32xf32>
    %202 = arith.truncf %201 : vector<2x8x32xf32> to vector<2x8x32xbf16>
    %203 = vector.extract_strided_slice %157 {offsets = [0, 0, 64], sizes = [2, 8, 32], strides = [1, 1, 1]} : vector<2x8x128xf32> to vector<2x8x32xf32>
    %204 = arith.truncf %203 : vector<2x8x32xf32> to vector<2x8x32xbf16>
    "tpu.trace_start"() <{level = 10 : i32, message = "bqd,bkd->bqk"}> : () -> ()
    %cst_91 = arith.constant dense<0.000000e+00> : vector<2x8x8xf32>
    %205 = tpu.matmul %202, %204, %cst_91 {dimension_numbers = #tpu.dot_dimension_numbers<[2], [2], [1], [1], [0, 0, 0, 1, 1, 1], [0], [0]>} : vector<2x8x32xbf16>, vector<2x8x32xbf16>, vector<2x8x8xf32> -> vector<2x8x8xf32>
    "tpu.trace_stop"() : () -> ()
    %206 = vector.broadcast %156 : vector<2x1x8xf32> to vector<2x8x8xf32>
    %207 = arith.addf %205, %206 : vector<2x8x8xf32>
    %cst_92 = arith.constant dense<0xFF800000> : vector<2x8xf32>
    %208 = vector.multi_reduction <maximumf>, %207, %cst_92 [2] : vector<2x8x8xf32> to vector<2x8xf32>
    %209 = vector.shape_cast %208 : vector<2x8xf32> to vector<2x8x1xf32>
    %210 = vector.broadcast %209 : vector<2x8x1xf32> to vector<2x8x8xf32>
    %211 = arith.subf %207, %210 : vector<2x8x8xf32>
    %212 = math.exp %211 : vector<2x8x8xf32>
    %cst_93 = arith.constant dense<0.000000e+00> : vector<2x8xf32>
    %213 = vector.multi_reduction <add>, %212, %cst_93 [2] : vector<2x8x8xf32> to vector<2x8xf32>
    %214 = vector.shape_cast %213 : vector<2x8xf32> to vector<2x8x1xf32>
    %215 = vector.broadcast %214 : vector<2x8x1xf32> to vector<2x8x8xf32>
    %216 = arith.divf %212, %215 : vector<2x8x8xf32>
    %217 = arith.truncf %216 : vector<2x8x8xf32> to vector<2x8x8xbf16>
    %218 = vector.extract_strided_slice %158 {offsets = [0, 0, 64], sizes = [2, 8, 32], strides = [1, 1, 1]} : vector<2x8x128xf32> to vector<2x8x32xf32>
    %219 = arith.truncf %218 : vector<2x8x32xf32> to vector<2x8x32xbf16>
    "tpu.trace_start"() <{level = 10 : i32, message = "bqk,bkd->bqd"}> : () -> ()
    %cst_94 = arith.constant dense<0.000000e+00> : vector<2x8x32xf32>
    %220 = tpu.matmul %217, %219, %cst_94 {dimension_numbers = #tpu.dot_dimension_numbers<[2], [1], [1], [2], [0, 0, 0, 1, 1, 2], [0], [0]>} : vector<2x8x8xbf16>, vector<2x8x32xbf16>, vector<2x8x32xf32> -> vector<2x8x32xf32>
    "tpu.trace_stop"() : () -> ()
    %c0_95 = arith.constant 0 : index
    %c0_96 = arith.constant 0 : index
    %c64_97 = arith.constant 64 : index
    %221 = vector.load %arg27[%c0_95, %c0_96, %c64_97] : memref<2x8x128xf32, #tpu.memory_space<vmem>>, vector<2x8x32xf32>
    tpu.vector_store %arg27[%c0_95, %c0_96, %c64_97], %220 {strides = array<i32>} : memref<2x8x128xf32, #tpu.memory_space<vmem>>, vector<2x8x32xf32>,
    %222 = vector.extract_strided_slice %145 {offsets = [0, 0, 96], sizes = [2, 8, 32], strides = [1, 1, 1]} : vector<2x8x128xf32> to vector<2x8x32xf32>
    %223 = arith.truncf %222 : vector<2x8x32xf32> to vector<2x8x32xbf16>
    %224 = vector.extract_strided_slice %157 {offsets = [0, 0, 96], sizes = [2, 8, 32], strides = [1, 1, 1]} : vector<2x8x128xf32> to vector<2x8x32xf32>
    %225 = arith.truncf %224 : vector<2x8x32xf32> to vector<2x8x32xbf16>
    "tpu.trace_start"() <{level = 10 : i32, message = "bqd,bkd->bqk"}> : () -> ()
    %cst_98 = arith.constant dense<0.000000e+00> : vector<2x8x8xf32>
    %226 = tpu.matmul %223, %225, %cst_98 {dimension_numbers = #tpu.dot_dimension_numbers<[2], [2], [1], [1], [0, 0, 0, 1, 1, 1], [0], [0]>} : vector<2x8x32xbf16>, vector<2x8x32xbf16>, vector<2x8x8xf32> -> vector<2x8x8xf32>
    "tpu.trace_stop"() : () -> ()
    %227 = vector.broadcast %156 : vector<2x1x8xf32> to vector<2x8x8xf32>
    %228 = arith.addf %226, %227 : vector<2x8x8xf32>
    %cst_99 = arith.constant dense<0xFF800000> : vector<2x8xf32>
    %229 = vector.multi_reduction <maximumf>, %228, %cst_99 [2] : vector<2x8x8xf32> to vector<2x8xf32>
    %230 = vector.shape_cast %229 : vector<2x8xf32> to vector<2x8x1xf32>
    %231 = vector.broadcast %230 : vector<2x8x1xf32> to vector<2x8x8xf32>
    %232 = arith.subf %228, %231 : vector<2x8x8xf32>
    %233 = math.exp %232 : vector<2x8x8xf32>
    %cst_100 = arith.constant dense<0.000000e+00> : vector<2x8xf32>
    %234 = vector.multi_reduction <add>, %233, %cst_100 [2] : vector<2x8x8xf32> to vector<2x8xf32>
    %235 = vector.shape_cast %234 : vector<2x8xf32> to vector<2x8x1xf32>
    %236 = vector.broadcast %235 : vector<2x8x1xf32> to vector<2x8x8xf32>
    %237 = arith.divf %233, %236 : vector<2x8x8xf32>
    %238 = arith.truncf %237 : vector<2x8x8xf32> to vector<2x8x8xbf16>
    %239 = vector.extract_strided_slice %158 {offsets = [0, 0, 96], sizes = [2, 8, 32], strides = [1, 1, 1]} : vector<2x8x128xf32> to vector<2x8x32xf32>
    %240 = arith.truncf %239 : vector<2x8x32xf32> to vector<2x8x32xbf16>
    "tpu.trace_start"() <{level = 10 : i32, message = "bqk,bkd->bqd"}> : () -> ()
    %cst_101 = arith.constant dense<0.000000e+00> : vector<2x8x32xf32>
    %241 = tpu.matmul %238, %240, %cst_101 {dimension_numbers = #tpu.dot_dimension_numbers<[2], [1], [1], [2], [0, 0, 0, 1, 1, 2], [0], [0]>} : vector<2x8x8xbf16>, vector<2x8x32xbf16>, vector<2x8x32xf32> -> vector<2x8x32xf32>
    "tpu.trace_stop"() : () -> ()
    %c0_102 = arith.constant 0 : index
    %c0_103 = arith.constant 0 : index
    %c96_104 = arith.constant 96 : index
    %242 = vector.load %arg27[%c0_102, %c0_103, %c96_104] : memref<2x8x128xf32, #tpu.memory_space<vmem>>, vector<2x8x32xf32>
    tpu.vector_store %arg27[%c0_102, %c0_103, %c96_104], %241 {strides = array<i32>} : memref<2x8x128xf32, #tpu.memory_space<vmem>>, vector<2x8x32xf32>,
    %c0_105 = arith.constant 0 : index
    %c0_106 = arith.constant 0 : index
    %c0_107 = arith.constant 0 : index
    %243 = vector.load %arg27[%c0_105, %c0_106, %c0_107] : memref<2x8x128xf32, #tpu.memory_space<vmem>>, vector<2x8x128xf32>
    %244 = vector.shape_cast %243 : vector<2x8x128xf32> to vector<16x128xf32>
    %245 = arith.truncf %244 : vector<16x128xf32> to vector<16x128xbf16>
    %c0_108 = arith.constant 0 : index
    %c0_109 = arith.constant 0 : index
    %c0_110 = arith.constant 0 : index
    %246 = vector.load %arg15[%c0_108, %c0_109, %c0_110] : memref<1x128x128xbf16, #tpu.memory_space<vmem>>, vector<1x128x128xbf16>
    %247 = vector.shape_cast %246 : vector<1x128x128xbf16> to vector<128x128xbf16>
    %cst_111 = arith.constant dense<0.000000e+00> : vector<16x128xf32>
    %248 = tpu.matmul %245, %247, %cst_111 {dimension_numbers = #tpu.dot_dimension_numbers<[1], [0], [0], [1], [0, 0, 1, 1], [], []>} : vector<16x128xbf16>, vector<128x128xbf16>, vector<16x128xf32> -> vector<16x128xf32>
    %c0_112 = arith.constant 0 : index
    %c0_113 = arith.constant 0 : index
    %c0_114 = arith.constant 0 : index
    %249 = vector.load %arg16[%c0_112, %c0_113, %c0_114] : memref<1x1x128xf32, #tpu.memory_space<vmem>>, vector<1x1x128xf32>
    %250 = vector.shape_cast %249 : vector<1x1x128xf32> to vector<1x128xf32>
    %251 = vector.broadcast %250 : vector<1x128xf32> to vector<16x128xf32>
    %252 = arith.addf %248, %251 : vector<16x128xf32>
    %253 = arith.addf %134, %252 : vector<16x128xf32>
    %c0_115 = arith.constant 0 : index
    %c0_116 = arith.constant 0 : index
    %c0_117 = arith.constant 0 : index
    %254 = vector.load %arg17[%c0_115, %c0_116, %c0_117] : memref<1x1x128xf32, #tpu.memory_space<vmem>>, vector<1x1x128xf32>
    %255 = vector.shape_cast %254 : vector<1x1x128xf32> to vector<1x128xf32>
    %c0_118 = arith.constant 0 : index
    %c0_119 = arith.constant 0 : index
    %c0_120 = arith.constant 0 : index
    %256 = vector.load %arg18[%c0_118, %c0_119, %c0_120] : memref<1x1x128xf32, #tpu.memory_space<vmem>>, vector<1x1x128xf32>
    %257 = vector.shape_cast %256 : vector<1x1x128xf32> to vector<1x128xf32>
    %cst_121 = arith.constant dense<0.000000e+00> : vector<16xf32>
    %258 = vector.multi_reduction <add>, %253, %cst_121 [1] : vector<16x128xf32> to vector<16xf32>
    %259 = vector.shape_cast %258 : vector<16xf32> to vector<16x1xf32>
    %cst_122 = arith.constant 1.280000e+02 : f32
    %260 = vector.broadcast %cst_122 : f32 to vector<16x1xf32>
    %261 = arith.divf %259, %260 : vector<16x1xf32>
    %262 = vector.broadcast %261 : vector<16x1xf32> to vector<16x128xf32>
    %263 = arith.subf %253, %262 : vector<16x128xf32>
    %264 = arith.mulf %263, %263 : vector<16x128xf32>
    %cst_123 = arith.constant dense<0.000000e+00> : vector<16xf32>
    %265 = vector.multi_reduction <add>, %264, %cst_123 [1] : vector<16x128xf32> to vector<16xf32>
    %266 = vector.shape_cast %265 : vector<16xf32> to vector<16x1xf32>
    %cst_124 = arith.constant 1.280000e+02 : f32
    %267 = vector.broadcast %cst_124 : f32 to vector<16x1xf32>
    %268 = arith.divf %266, %267 : vector<16x1xf32>
    %269 = vector.broadcast %261 : vector<16x1xf32> to vector<16x128xf32>
    %270 = arith.subf %253, %269 : vector<16x128xf32>
    %cst_125 = arith.constant 9.99999974E-6 : f32
    %271 = vector.broadcast %cst_125 : f32 to vector<16x1xf32>
    %272 = arith.addf %268, %271 : vector<16x1xf32>
    %273 = math.rsqrt %272 : vector<16x1xf32>
    %274 = vector.broadcast %273 : vector<16x1xf32> to vector<16x128xf32>
    %275 = arith.mulf %270, %274 : vector<16x128xf32>
    %276 = vector.broadcast %255 : vector<1x128xf32> to vector<16x128xf32>
    %277 = arith.mulf %275, %276 : vector<16x128xf32>
    %278 = vector.broadcast %257 : vector<1x128xf32> to vector<16x128xf32>
    %279 = arith.addf %277, %278 : vector<16x128xf32>
    %280 = arith.truncf %279 : vector<16x128xf32> to vector<16x128xbf16>
    %c0_126 = arith.constant 0 : index
    %c0_127 = arith.constant 0 : index
    %c0_128 = arith.constant 0 : index
    %281 = vector.load %arg19[%c0_126, %c0_127, %c0_128] : memref<1x128x256xbf16, #tpu.memory_space<vmem>>, vector<1x128x256xbf16>
    %282 = vector.shape_cast %281 : vector<1x128x256xbf16> to vector<128x256xbf16>
    %cst_129 = arith.constant dense<0.000000e+00> : vector<16x256xf32>
    %283 = tpu.matmul %280, %282, %cst_129 {dimension_numbers = #tpu.dot_dimension_numbers<[1], [0], [0], [1], [0, 0, 1, 1], [], []>} : vector<16x128xbf16>, vector<128x256xbf16>, vector<16x256xf32> -> vector<16x256xf32>
    %c0_130 = arith.constant 0 : index
    %c0_131 = arith.constant 0 : index
    %c0_132 = arith.constant 0 : index
    %284 = vector.load %arg20[%c0_130, %c0_131, %c0_132] : memref<1x1x256xf32, #tpu.memory_space<vmem>>, vector<1x1x256xf32>
    %285 = vector.shape_cast %284 : vector<1x1x256xf32> to vector<1x256xf32>
    %286 = vector.broadcast %285 : vector<1x256xf32> to vector<16x256xf32>
    %287 = arith.addf %283, %286 : vector<16x256xf32>
    %cst_133 = arith.constant 0.000000e+00 : f32
    %288 = vector.broadcast %cst_133 : f32 to vector<16x256xf32>
    %289 = arith.maximumf %287, %288 : vector<16x256xf32>
    %290 = arith.truncf %289 : vector<16x256xf32> to vector<16x256xbf16>
    %c0_134 = arith.constant 0 : index
    %c0_135 = arith.constant 0 : index
    %c0_136 = arith.constant 0 : index
    %291 = vector.load %arg21[%c0_134, %c0_135, %c0_136] : memref<1x256x128xbf16, #tpu.memory_space<vmem>>, vector<1x256x128xbf16>
    %292 = vector.shape_cast %291 : vector<1x256x128xbf16> to vector<256x128xbf16>
    %cst_137 = arith.constant dense<0.000000e+00> : vector<16x128xf32>
    %293 = tpu.matmul %290, %292, %cst_137 {dimension_numbers = #tpu.dot_dimension_numbers<[1], [0], [0], [1], [0, 0, 1, 1], [], []>} : vector<16x256xbf16>, vector<256x128xbf16>, vector<16x128xf32> -> vector<16x128xf32>
    %c0_138 = arith.constant 0 : index
    %c0_139 = arith.constant 0 : index
    %c0_140 = arith.constant 0 : index
    %294 = vector.load %arg22[%c0_138, %c0_139, %c0_140] : memref<1x1x128xf32, #tpu.memory_space<vmem>>, vector<1x1x128xf32>
    %295 = vector.shape_cast %294 : vector<1x1x128xf32> to vector<1x128xf32>
    %296 = vector.broadcast %295 : vector<1x128xf32> to vector<16x128xf32>
    %297 = arith.addf %293, %296 : vector<16x128xf32>
    %298 = arith.addf %279, %297 : vector<16x128xf32>
    %c0_141 = arith.constant 0 : index
    %c0_142 = arith.constant 0 : index
    %c0_143 = arith.constant 0 : index
    %299 = vector.load %arg23[%c0_141, %c0_142, %c0_143] : memref<1x1x128xf32, #tpu.memory_space<vmem>>, vector<1x1x128xf32>
    %300 = vector.shape_cast %299 : vector<1x1x128xf32> to vector<1x128xf32>
    %c0_144 = arith.constant 0 : index
    %c0_145 = arith.constant 0 : index
    %c0_146 = arith.constant 0 : index
    %301 = vector.load %arg24[%c0_144, %c0_145, %c0_146] : memref<1x1x128xf32, #tpu.memory_space<vmem>>, vector<1x1x128xf32>
    %302 = vector.shape_cast %301 : vector<1x1x128xf32> to vector<1x128xf32>
    %cst_147 = arith.constant dense<0.000000e+00> : vector<16xf32>
    %303 = vector.multi_reduction <add>, %298, %cst_147 [1] : vector<16x128xf32> to vector<16xf32>
    %304 = vector.shape_cast %303 : vector<16xf32> to vector<16x1xf32>
    %cst_148 = arith.constant 1.280000e+02 : f32
    %305 = vector.broadcast %cst_148 : f32 to vector<16x1xf32>
    %306 = arith.divf %304, %305 : vector<16x1xf32>
    %307 = vector.broadcast %306 : vector<16x1xf32> to vector<16x128xf32>
    %308 = arith.subf %298, %307 : vector<16x128xf32>
    %309 = arith.mulf %308, %308 : vector<16x128xf32>
    %cst_149 = arith.constant dense<0.000000e+00> : vector<16xf32>
    %310 = vector.multi_reduction <add>, %309, %cst_149 [1] : vector<16x128xf32> to vector<16xf32>
    %311 = vector.shape_cast %310 : vector<16xf32> to vector<16x1xf32>
    %cst_150 = arith.constant 1.280000e+02 : f32
    %312 = vector.broadcast %cst_150 : f32 to vector<16x1xf32>
    %313 = arith.divf %311, %312 : vector<16x1xf32>
    %314 = vector.broadcast %306 : vector<16x1xf32> to vector<16x128xf32>
    %315 = arith.subf %298, %314 : vector<16x128xf32>
    %cst_151 = arith.constant 9.99999974E-6 : f32
    %316 = vector.broadcast %cst_151 : f32 to vector<16x1xf32>
    %317 = arith.addf %313, %316 : vector<16x1xf32>
    %318 = math.rsqrt %317 : vector<16x1xf32>
    %319 = vector.broadcast %318 : vector<16x1xf32> to vector<16x128xf32>
    %320 = arith.mulf %315, %319 : vector<16x128xf32>
    %321 = vector.broadcast %300 : vector<1x128xf32> to vector<16x128xf32>
    %322 = arith.mulf %320, %321 : vector<16x128xf32>
    %323 = vector.broadcast %302 : vector<1x128xf32> to vector<16x128xf32>
    %324 = arith.addf %322, %323 : vector<16x128xf32>
    %325 = vector.shape_cast %324 : vector<16x128xf32> to vector<2x8x128xf32>
    %c0_152 = arith.constant 0 : index
    %c0_153 = arith.constant 0 : index
    %c0_154 = arith.constant 0 : index
    %326 = vector.load %arg26[%c0_152, %c0_153, %c0_154] : memref<2x8x128xf32, #tpu.memory_space<vmem>>, vector<2x8x128xf32>
    tpu.vector_store %arg26[%c0_152, %c0_153, %c0_154], %325 {strides = array<i32>} : memref<2x8x128xf32, #tpu.memory_space<vmem>>, vector<2x8x128xf32>,
    %c0_155 = arith.constant 0 : index
    %c0_156 = arith.constant 0 : index
    %c0_157 = arith.constant 0 : index
    %327 = vector.load %arg25[%c0_155, %c0_156, %c0_157] : memref<2x8x128xf32, #tpu.memory_space<vmem>>, vector<2x8x128xf32>
    tpu.vector_store %arg25[%c0_155, %c0_156, %c0_157], %325 {strides = array<i32>} : memref<2x8x128xf32, #tpu.memory_space<vmem>>, vector<2x8x128xf32>,
    return
  }
  func.func @transform_0(%arg0: i32) -> (i32, i32, i32) {
    %c0_i32 = arith.constant 0 : i32
    %c0_i32_0 = arith.constant 0 : i32
    %c0_i32_1 = arith.constant 0 : i32
    %c0_i32_2 = arith.constant 0 : i32
    return %c0_i32, %c0_i32_0, %c0_i32_1 : i32, i32, i32
  }
  func.func @transform_1(%arg0: i32) -> (i32, i32, i32) {
    %c0_i32 = arith.constant 0 : i32
    %c0_i32_0 = arith.constant 0 : i32
    %c0_i32_1 = arith.constant 0 : i32
    %c0_i32_2 = arith.constant 0 : i32
    return %c0_i32, %c0_i32_0, %c0_i32_1 : i32, i32, i32
  }
  func.func @transform_2(%arg0: i32) -> (i32, i32, i32) {
    %c0_i32 = arith.constant 0 : i32
    %c0_i32_0 = arith.constant 0 : i32
    %c0_i32_1 = arith.constant 0 : i32
    %c0_i32_2 = arith.constant 0 : i32
    return %c0_i32, %c0_i32_0, %c0_i32_1 : i32, i32, i32
  }
  func.func @transform_3(%arg0: i32) -> (i32, i32) {
    %c0_i32 = arith.constant 0 : i32
    %c0_i32_0 = arith.constant 0 : i32
    %c0_i32_1 = arith.constant 0 : i32
    return %c0_i32, %c0_i32_0 : i32, i32
  }
  func.func @transform_4(%arg0: i32) -> (i32, i32, i32) {
    %c0_i32 = arith.constant 0 : i32
    %c0_i32_0 = arith.constant 0 : i32
    %c0_i32_1 = arith.constant 0 : i32
    return %arg0, %c0_i32, %c0_i32_0 : i32, i32, i32
  }
  func.func @transform_5(%arg0: i32) -> (i32, i32, i32) {
    %c0_i32 = arith.constant 0 : i32
    %c0_i32_0 = arith.constant 0 : i32
    %c0_i32_1 = arith.constant 0 : i32
    return %arg0, %c0_i32, %c0_i32_0 : i32, i32, i32
  }
  func.func @transform_6(%arg0: i32) -> (i32, i32, i32) {
    %c0_i32 = arith.constant 0 : i32
    %c0_i32_0 = arith.constant 0 : i32
    %c0_i32_1 = arith.constant 0 : i32
    return %arg0, %c0_i32, %c0_i32_0 : i32, i32, i32
  }
  func.func @transform_7(%arg0: i32) -> (i32, i32, i32) {
    %c0_i32 = arith.constant 0 : i32
    %c0_i32_0 = arith.constant 0 : i32
    %c0_i32_1 = arith.constant 0 : i32
    return %arg0, %c0_i32, %c0_i32_0 : i32, i32, i32
  }
  func.func @transform_8(%arg0: i32) -> (i32, i32, i32) {
    %c0_i32 = arith.constant 0 : i32
    %c0_i32_0 = arith.constant 0 : i32
    %c0_i32_1 = arith.constant 0 : i32
    return %arg0, %c0_i32, %c0_i32_0 : i32, i32, i32
  }
  func.func @transform_9(%arg0: i32) -> (i32, i32, i32) {
    %c0_i32 = arith.constant 0 : i32
    %c0_i32_0 = arith.constant 0 : i32
    %c0_i32_1 = arith.constant 0 : i32
    return %arg0, %c0_i32, %c0_i32_0 : i32, i32, i32
  }
  func.func @transform_10(%arg0: i32) -> (i32, i32, i32) {
    %c0_i32 = arith.constant 0 : i32
    %c0_i32_0 = arith.constant 0 : i32
    %c0_i32_1 = arith.constant 0 : i32
    return %arg0, %c0_i32, %c0_i32_0 : i32, i32, i32
  }
  func.func @transform_11(%arg0: i32) -> (i32, i32, i32) {
    %c0_i32 = arith.constant 0 : i32
    %c0_i32_0 = arith.constant 0 : i32
    %c0_i32_1 = arith.constant 0 : i32
    return %arg0, %c0_i32, %c0_i32_0 : i32, i32, i32
  }
  func.func @transform_12(%arg0: i32) -> (i32, i32, i32) {
    %c0_i32 = arith.constant 0 : i32
    %c0_i32_0 = arith.constant 0 : i32
    %c0_i32_1 = arith.constant 0 : i32
    return %arg0, %c0_i32, %c0_i32_0 : i32, i32, i32
  }
  func.func @transform_13(%arg0: i32) -> (i32, i32, i32) {
    %c0_i32 = arith.constant 0 : i32
    %c0_i32_0 = arith.constant 0 : i32
    %c0_i32_1 = arith.constant 0 : i32
    return %arg0, %c0_i32, %c0_i32_0 : i32, i32, i32
  }
  func.func @transform_14(%arg0: i32) -> (i32, i32, i32) {
    %c0_i32 = arith.constant 0 : i32
    %c0_i32_0 = arith.constant 0 : i32
    %c0_i32_1 = arith.constant 0 : i32
    return %arg0, %c0_i32, %c0_i32_0 : i32, i32, i32
  }
  func.func @transform_15(%arg0: i32) -> (i32, i32, i32) {
    %c0_i32 = arith.constant 0 : i32
    %c0_i32_0 = arith.constant 0 : i32
    %c0_i32_1 = arith.constant 0 : i32
    return %arg0, %c0_i32, %c0_i32_0 : i32, i32, i32
  }
  func.func @transform_16(%arg0: i32) -> (i32, i32, i32) {
    %c0_i32 = arith.constant 0 : i32
    %c0_i32_0 = arith.constant 0 : i32
    %c0_i32_1 = arith.constant 0 : i32
    return %arg0, %c0_i32, %c0_i32_0 : i32, i32, i32
  }
  func.func @transform_17(%arg0: i32) -> (i32, i32, i32) {
    %c0_i32 = arith.constant 0 : i32
    %c0_i32_0 = arith.constant 0 : i32
    %c0_i32_1 = arith.constant 0 : i32
    return %arg0, %c0_i32, %c0_i32_0 : i32, i32, i32
  }
  func.func @transform_18(%arg0: i32) -> (i32, i32, i32) {
    %c0_i32 = arith.constant 0 : i32
    %c0_i32_0 = arith.constant 0 : i32
    %c0_i32_1 = arith.constant 0 : i32
    return %arg0, %c0_i32, %c0_i32_0 : i32, i32, i32
  }
  func.func @transform_19(%arg0: i32) -> (i32, i32, i32) {
    %c0_i32 = arith.constant 0 : i32
    %c0_i32_0 = arith.constant 0 : i32
    %c0_i32_1 = arith.constant 0 : i32
    return %arg0, %c0_i32, %c0_i32_0 : i32, i32, i32
  }
  func.func @transform_20(%arg0: i32) -> (i32, i32, i32) {
    %c0_i32 = arith.constant 0 : i32
    %c0_i32_0 = arith.constant 0 : i32
    %c0_i32_1 = arith.constant 0 : i32
    return %arg0, %c0_i32, %c0_i32_0 : i32, i32, i32
  }
  func.func @transform_21(%arg0: i32) -> (i32, i32, i32) {
    %c0_i32 = arith.constant 0 : i32
    %c0_i32_0 = arith.constant 0 : i32
    %c0_i32_1 = arith.constant 0 : i32
    return %arg0, %c0_i32, %c0_i32_0 : i32, i32, i32
  }
  func.func @transform_22(%arg0: i32) -> (i32, i32, i32) {
    %c0_i32 = arith.constant 0 : i32
    %c0_i32_0 = arith.constant 0 : i32
    %c0_i32_1 = arith.constant 0 : i32
    return %arg0, %c0_i32, %c0_i32_0 : i32, i32, i32
  }
  func.func @transform_23(%arg0: i32) -> (i32, i32, i32) {
    %c0_i32 = arith.constant 0 : i32
    %c0_i32_0 = arith.constant 0 : i32
    %c0_i32_1 = arith.constant 0 : i32
    return %arg0, %c0_i32, %c0_i32_0 : i32, i32, i32
  }
  func.func @transform_24(%arg0: i32) -> (i32, i32, i32) {
    %c0_i32 = arith.constant 0 : i32
    %c0_i32_0 = arith.constant 0 : i32
    %c0_i32_1 = arith.constant 0 : i32
    %c0_i32_2 = arith.constant 0 : i32
    return %c0_i32, %c0_i32_0, %c0_i32_1 : i32, i32, i32
  }
}

</mosaic_0001>

<llo_original>
// kernel: transformer_forward.5
$region0: #{transformer_forward.5}
  #allocation0 [shape = 'u32[]', space=smem, size = 0x4, offset = 0x4, fixed_abs, tag = 'smem constant byte address 0x4 - core index']
  #allocation1 [shape = 'u32[144,128]{1,0:T(1,128)}', space=vmem, size = 0x12000, scoped, tag = 'internal scratch']
  %s0 = inlined_call_operand.vmem [shape: f32[16,128], index: 0, kind: input, shape index: {}]
  %s1 = inlined_call_operand.vmem [shape: bf16[128,256], index: 1, kind: input, shape index: {}]
  %s2 = inlined_call_operand.vmem [shape: f32[1,256], index: 2, kind: input, shape index: {}]
  %s3 = inlined_call_operand.hbm [shape: f32[16,256], index: 3, kind: output, shape index: {}]
  %s4 = sld [smem:[#allocation0]]
  $region45: #{transformer_forward.5} parent=0
    _
  %s6 = ssub.s32 1, %s4
  %s7 = scalar_select 0, %s6, %s4
  $region1: #{transformer_forward.5} parent=0
    #allocation2 [shape = 'u8[16384]{0}', space=vmem, size = 0x4000, scoped, tag = 'output window, operand 0']
    #allocation3 [shape = 's32[2]{0}', space=sflag, size = 0x8, scoped, tag = 'scoped memory for transformer_forward.5']
    %8 = vsyncpa [#allocation3], 0
    %s9 = scalar_lea.sflag [#allocation3], 1
    %10 = vsyncpa %s9, 0
    loop: start=0, step=1, limit=4
    $region2: #{transformer_forward.5} parent=1 // loop_pre_header
      _
    $region3: #{transformer_forward.5} parent=1 // loop_header
      %s12 = sphi 0, %s16
      %p13 = scmp.ge.s32.totalorder %s12, 4
      %s22 = sphi 0, %s24
      %s25 = sphi 0, %s22
      %s26 = sphi 0, %s25
      %s42 = sphi 0, %s26
      %s46 = sphi 0, %s46
      %s48 = sphi 0, %s46
      %s49 = sphi 0, %s48
      %s63 = sphi 0, %s49
      %s67 = sphi 0, %s67
      %s69 = sphi 0, %s67
      %s70 = sphi 0, %s69
      %s84 = sphi 0, %s70
      %s90 = sphi 0, %s92
      %s93 = sphi 0, %s90
      %s94 = sphi 0, %s93
      %s110 = sphi 0, %s94
    $region4: #{transformer_forward.5} parent=1 // loop_header_branch
      %15 = sbr.rel (%p13) target = $region8
    $region5: #{transformer_forward.5} parent=1 // loop_body
      %s17 = ssub.s32 %s12, 1
      %s18 = ssub.s32 %s12, 2
      %s19 = sadd.s32 %s12, 1
      %s20 = ssub.s32 %s12, %s19
      %p21 = scmp.eq.s32.totalorder %s20, 0
      %s23 = sadd.s32 %s22, 1
      %s24 = scalar_select %p21, %s22, %s23
      %p27 = pneg %p21
      %p28 = scmp.eq.s32.totalorder %s12, 1
      %p29 = por %p27, %p28
      %p30 = scmp.ne.s32.totalorder %s22, %s25
      %p31 = scmp.eq.s32.totalorder %s12, 0
      %p32 = por %p30, %p31
      %p33 = scmp.ne.s32.totalorder %s22, %s25
      %p34 = scmp.eq.s32.totalorder %s17, 1
      %p35 = por %p33, %p34
      %p36 = scmp.ne.s32.totalorder %s25, %s26
      %p37 = scmp.eq.s32.totalorder %s17, 0
      %p38 = por %p36, %p37
      %p39 = scmp.ne.s32.totalorder %s25, %s26
      %p40 = scmp.eq.s32.totalorder %s18, 1
      %p41 = por %p39, %p40
      %p43 = scmp.ne.s32.totalorder %s26, %s42
      %p44 = scmp.eq.s32.totalorder %s18, 0
      %p45 = por %p43, %p44
      %s47 = sadd.s32 %s46, 1
      %p50 = scmp.eq.s32.totalorder %s12, 1
      %p51 = scmp.ne.s32.totalorder %s46, %s48
      %p52 = scmp.eq.s32.totalorder %s12, 0
      %p53 = por %p51, %p52
      %p54 = scmp.ne.s32.totalorder %s46, %s48
      %p55 = scmp.eq.s32.totalorder %s17, 1
      %p56 = por %p54, %p55
      %p57 = scmp.ne.s32.totalorder %s48, %s49
      %p58 = scmp.eq.s32.totalorder %s17, 0
      %p59 = por %p57, %p58
      %p60 = scmp.ne.s32.totalorder %s48, %s49
      %p61 = scmp.eq.s32.totalorder %s18, 1
      %p62 = por %p60, %p61
      %p64 = scmp.ne.s32.totalorder %s49, %s63
      %p65 = scmp.eq.s32.totalorder %s18, 0
      %p66 = por %p64, %p65
      %s68 = sadd.s32 %s67, 1
      %p71 = scmp.eq.s32.totalorder %s12, 1
      %p72 = scmp.ne.s32.totalorder %s67, %s69
      %p73 = scmp.eq.s32.totalorder %s12, 0
      %p74 = por %p72, %p73
      %p75 = scmp.ne.s32.totalorder %s67, %s69
      %p76 = scmp.eq.s32.totalorder %s17, 1
      %p77 = por %p75, %p76
      %p78 = scmp.ne.s32.totalorder %s69, %s70
      %p79 = scmp.eq.s32.totalorder %s17, 0
      %p80 = por %p78, %p79
      %p81 = scmp.ne.s32.totalorder %s69, %s70
      %p82 = scmp.eq.s32.totalorder %s18, 1
      %p83 = por %p81, %p82
      %p85 = scmp.ne.s32.totalorder %s70, %s84
      %p86 = scmp.eq.s32.totalorder %s18, 0
      %p87 = por %p85, %p86
      %s88 = ssub.s32 %s12, %s19
      %p89 = scmp.eq.s32.totalorder %s88, 0
      %s91 = sadd.s32 %s90, 1
      %s92 = scalar_select %p89, %s90, %s91
      %p95 = pneg %p89
      %p96 = scmp.eq.s32.totalorder %s12, 1
      %p97 = por %p95, %p96
      %p98 = scmp.ne.s32.totalorder %s90, %s93
      %p99 = scmp.eq.s32.totalorder %s12, 0
      %p100 = por %p98, %p99
      %p101 = scmp.ne.s32.totalorder %s90, %s93
      %p102 = scmp.eq.s32.totalorder %s17, 1
      %p103 = por %p101, %p102
      %p104 = scmp.ne.s32.totalorder %s93, %s94
      %p105 = scmp.eq.s32.totalorder %s17, 0
      %p106 = por %p104, %p105
      %p107 = scmp.ne.s32.totalorder %s93, %s94
      %p108 = scmp.eq.s32.totalorder %s18, 1
      %p109 = por %p107, %p108
      %p111 = scmp.ne.s32.totalorder %s94, %s110
      %p112 = scmp.eq.s32.totalorder %s18, 0
      %p113 = por %p111, %p112
      %p114 = scmp.le.s32.totalorder 1, %s12
      %p115 = scmp.lt.s32.totalorder %s12, 3
      %p116 = pnand %p114, %p115
      %p117 = pneg %p116
      // Predicated region
      $region9: #{transformer_forward.5} parent=5 // pred_check
        _
      $region10: #{transformer_forward.5} parent=5 // pred_check_branch
        %119 = sbr.rel (%p116) target = $region12
      $region11: #{transformer_forward.5} parent=5 // pred_region
        %s120 = ssub.s32 %s12, 1
        // Predicated region
        $region13: #{transformer_forward.5} parent=11 // pred_check
          %p121 = pneg %p59
        $region14: #{transformer_forward.5} parent=11 // pred_check_branch
          %123 = sbr.rel (%p121) target = $region16
        $region15: #{transformer_forward.5} parent=11 // pred_region
          _
        $region16: #{transformer_forward.5} parent=11 // pred_fallthru
          _
        // Predicated region
        $region17: #{transformer_forward.5} parent=11 // pred_check
          %p124 = pneg %p80
        $region18: #{transformer_forward.5} parent=11 // pred_check_branch
          %126 = sbr.rel (%p124) target = $region20
        $region19: #{transformer_forward.5} parent=11 // pred_region
          _
        $region20: #{transformer_forward.5} parent=11 // pred_fallthru
          _
      $region12: #{transformer_forward.5} parent=5 // pred_fallthru
        _
      %p127 = scmp.lt.s32.totalorder %s12, 2
      // Predicated region
      $region21: #{transformer_forward.5} parent=5 // pred_check
        %p128 = pneg %p127
      $region22: #{transformer_forward.5} parent=5 // pred_check_branch
        %130 = sbr.rel (%p128) target = $region24
      $region23: #{transformer_forward.5} parent=5 // pred_region
        // Predicated region
        $region25: #{transformer_forward.5} parent=23 // pred_check
          %p131 = pneg %p32
        $region26: #{transformer_forward.5} parent=23 // pred_check_branch
          %133 = sbr.rel (%p131) target = $region28
        $region27: #{transformer_forward.5} parent=23 // pred_region
          %p134 = scmp.lt.s32.totalorder %s12, 1
          %s135 = scalar_select %p134, %s12, 1
          %s136 = smul.addr %s135, 8
          %s137 = scalar_lea.vmem %s0, %s136
        $region28: #{transformer_forward.5} parent=23 // pred_fallthru
          _
      $region24: #{transformer_forward.5} parent=5 // pred_fallthru
        _
      %p138 = scmp.le.s32.totalorder 1, %s12
      %p139 = scmp.lt.s32.totalorder %s12, 3
      %p140 = pnand %p138, %p139
      %p141 = pneg %p140
      // Predicated region
      $region29: #{transformer_forward.5} parent=5 // pred_check
        _
      $region30: #{transformer_forward.5} parent=5 // pred_check_branch
        %143 = sbr.rel (%p140) target = $region32
      $region31: #{transformer_forward.5} parent=5 // pred_region
        %s144 = ssub.s32 %s12, 1
        %p145 = scmp.lt.s32.totalorder %s17, 1
        %s146 = scalar_select %p145, %s17, 1
        %s147 = smul.addr %s146, 8
        %s148 = scalar_lea.vmem %s0, %s147
        %p149 = pneg %p38
        %p150 = pneg %p35
        %p151 = pneg %p59
        %p152 = pneg %p56
        %p153 = pneg %p80
        %p154 = pneg %p77
        %p155 = pneg %p106
        %p156 = pneg %p103
        %s157 = sand.u32 %s93, 1
        %s158 = scalar_lea.sflag [#allocation3], %s157
        %s159 = sand.u32 %s93, 1
        %s160 = smul.addr %s159, 16
        %s161 = scalar_lea.vmem [#allocation2], %s160
        %p162 = scmp.lt.s32.totalorder %s17, 1
        %s163 = scalar_select %p162, %s17, 1
        %s164 = smul.addr %s163, 8
        %s165 = scalar_lea.vmem %s0, %s164
        %v167 = vld [vmem:[%s165] sm:$0xff]
        %v168 = vpack.c.bf16 %v167, %v167
        %v169 = vld [vmem:[%s1] sm:$0xff]
        %v170 = vld [vmem:[%s1 + $0x8] sm:$0xff]
        %v171 = vld [vmem:[%s1 + $0x10] sm:$0xff]
        %v172 = vld [vmem:[%s1 + $0x18] sm:$0xff]
        %v173 = vld [vmem:[%s1 + $0x20] sm:$0xff]
        %v174 = vld [vmem:[%s1 + $0x28] sm:$0xff]
        %v175 = vld [vmem:[%s1 + $0x30] sm:$0xff]
        %v176 = vld [vmem:[%s1 + $0x38] sm:$0xff]
        %v177 = vld [vmem:[%s1 + $0x40] sm:$0xff]
        %v178 = vld [vmem:[%s1 + $0x48] sm:$0xff]
        %v179 = vld [vmem:[%s1 + $0x50] sm:$0xff]
        %v180 = vld [vmem:[%s1 + $0x58] sm:$0xff]
        %v181 = vld [vmem:[%s1 + $0x60] sm:$0xff]
        %v182 = vld [vmem:[%s1 + $0x68] sm:$0xff]
        %v183 = vld [vmem:[%s1 + $0x70] sm:$0xff]
        %v184 = vld [vmem:[%s1 + $0x78] sm:$0xff]
        %v185 = vld [vmem:[%s2] sm:$0x3]
        %v187 = vlaneseq
        %v188 = vshrl.u32 %v187, 7
        %v189 = vsub.s32 0, %v188
        %v190 = vrot.slane %v185, %v189
        %v191 = vlaneseq
        %v192 = vshrl.u32 %v191, 7
        %v193 = vsub.s32 1, %v192
        %v194 = vrot.slane %v185, %v193
        %v213 = vunpack.c.l.b16 %v169
        %v214 = vunpack.c.h.b16 %v169
        %v215 = vunpack.c.l.b16 %v170
        %v216 = vunpack.c.h.b16 %v170
        %v217 = vunpack.c.l.b16 %v171
        %v218 = vunpack.c.h.b16 %v171
        %v219 = vunpack.c.l.b16 %v172
        %v220 = vunpack.c.h.b16 %v172
        %v221 = vunpack.c.l.b16 %v173
        %v222 = vunpack.c.h.b16 %v173
        %v223 = vunpack.c.l.b16 %v174
        %v224 = vunpack.c.h.b16 %v174
        %v225 = vunpack.c.l.b16 %v175
        %v226 = vunpack.c.h.b16 %v175
        %v227 = vunpack.c.l.b16 %v176
        %v228 = vunpack.c.h.b16 %v176
        %v229 = vunpack.c.l.b16 %v177
        %v230 = vunpack.c.h.b16 %v177
        %v231 = vunpack.c.l.b16 %v178
        %v232 = vunpack.c.h.b16 %v178
        %v233 = vunpack.c.l.b16 %v179
        %v234 = vunpack.c.h.b16 %v179
        %v235 = vunpack.c.l.b16 %v180
        %v236 = vunpack.c.h.b16 %v180
        %v237 = vunpack.c.l.b16 %v181
        %v238 = vunpack.c.h.b16 %v181
        %v239 = vunpack.c.l.b16 %v182
        %v240 = vunpack.c.h.b16 %v182
        %v241 = vunpack.c.l.b16 %v183
        %v242 = vunpack.c.h.b16 %v183
        %v243 = vunpack.c.l.b16 %v184
        %v244 = vunpack.c.h.b16 %v184
        %v245 = vpack.c.b16 %v215, %v213
        %v246 = vpack.c.b16 %v216, %v214
        %v247 = vpack.c.b16 %v219, %v217
        %v248 = vpack.c.b16 %v220, %v218
        %v249 = vpack.c.b16 %v223, %v221
        %v250 = vpack.c.b16 %v224, %v222
        %v251 = vpack.c.b16 %v227, %v225
        %v252 = vpack.c.b16 %v228, %v226
        %v253 = vpack.c.b16 %v231, %v229
        %v254 = vpack.c.b16 %v232, %v230
        %v255 = vpack.c.b16 %v235, %v233
        %v256 = vpack.c.b16 %v236, %v234
        %v257 = vpack.c.b16 %v239, %v237
        %v258 = vpack.c.b16 %v240, %v238
        %v259 = vpack.c.b16 %v243, %v241
        %v260 = vpack.c.b16 %v244, %v242
        %277 = vmatprep.subr.bf16.mxu0 %v246
        %278 = vmatpush1.bf16.msra.mxu0 %v245
        %279 = vmatprep.subr.bf16.mxu0 %v248
        %280 = vmatpush1.bf16.msra.mxu0 %v247
        %281 = vmatprep.subr.bf16.mxu0 %v250
        %282 = vmatpush1.bf16.msra.mxu0 %v249
        %283 = vmatprep.subr.bf16.mxu0 %v252
        %284 = vmatpush1.bf16.msra.mxu0 %v251
        %285 = vmatprep.subr.bf16.mxu0 %v254
        %286 = vmatpush1.bf16.msra.mxu0 %v253
        %287 = vmatprep.subr.bf16.mxu0 %v256
        %288 = vmatpush1.bf16.msra.mxu0 %v255
        %289 = vmatprep.subr.bf16.mxu0 %v258
        %290 = vmatpush1.bf16.msra.mxu0 %v257
        %291 = vmatprep.subr.bf16.mxu0 %v260
        %292 = vmatpush1.bf16.msra.mxu0 %v259
        %293 = vmatprep.subr.bf16.mxu0 0
        %294 = vmatpush1.bf16.msra.mxu0 0
        %295 = vmatprep.subr.bf16.mxu0 0
        %296 = vmatpush1.bf16.msra.mxu0 0
        %297 = vmatprep.subr.bf16.mxu0 0
        %298 = vmatpush1.bf16.msra.mxu0 0
        %299 = vmatprep.subr.bf16.mxu0 0
        %300 = vmatpush1.bf16.msra.mxu0 0
        %301 = vmatprep.subr.bf16.mxu0 0
        %302 = vmatpush1.bf16.msra.mxu0 0
        %303 = vmatprep.subr.bf16.mxu0 0
        %304 = vmatpush1.bf16.msra.mxu0 0
        %305 = vmatprep.subr.bf16.mxu0 0
        %306 = vmatpush1.bf16.msra.mxu0 0
        %307 = vmatprep.subr.bf16.mxu0 0
        %308 = vmatpush1.bf16.msra.mxu0 0
        %309 = vmatprep.mubr.bf16.mxu0 0
        %310 = vmatmul.mubr.bf16.gmra.mrb[0].mxu0 %v168
        %v311 = vpop.f32.mrb[0].mxu0
        %v312 = vadd.f32 %v190, %v311
        %v313 = vpop.f32.mrb[0].mxu0
        %v314 = vadd.f32 %v194, %v313
        %v315 = vpop.f32.mrb[0].mxu0
        %v316 = vpop.f32.mrb[0].mxu0
        %317 = vdwg.mxu0
        %318 = vst [vmem:[%s161] sm:$0xff] %v312
        %319 = vst [vmem:[%s161 + $0x8] sm:$0xff] %v314
        %s320 = sand.u32 %s93, 1
        %s321 = scalar_lea.sflag [#allocation3], %s320
        %s322 = sand.u32 %s93, 1
        %s323 = smul.addr %s322, 16
        %s324 = scalar_lea.vmem [#allocation2], %s323
        // Predicated region
        $region33: #{transformer_forward.5} parent=31 // pred_check
          %p325 = pneg %p103
        $region34: #{transformer_forward.5} parent=31 // pred_check_branch
          %327 = sbr.rel (%p325) target = $region36
        $region35: #{transformer_forward.5} parent=31 // pred_region
          %s329 = ssub.s32 256, 256
          %330 = vsyncadd %s321, %s329
          %s331 = smul.addr %s17, 2
          %s332 = smul.addr %s331, 128
          %s333 = scalar_lea.hbm %s3, %s332
          %s335 = sshll.u32 %s324, 4
          %s336 = int_to_ptr.vmem [resolvable:$true] %s335
          %338 = dma.vmem_to_hbm [thread:$0]  %s336, 256, %s333, %s321
        $region36: #{transformer_forward.5} parent=31 // pred_fallthru
          _
      $region32: #{transformer_forward.5} parent=5 // pred_fallthru
        _
      %p339 = scmp.le.s32.totalorder 2, %s12
      // Predicated region
      $region37: #{transformer_forward.5} parent=5 // pred_check
        %p340 = pneg %p339
      $region38: #{transformer_forward.5} parent=5 // pred_check_branch
        %342 = sbr.rel (%p340) target = $region40
      $region39: #{transformer_forward.5} parent=5 // pred_region
        %s343 = ssub.s32 %s12, 2
        // Predicated region
        $region41: #{transformer_forward.5} parent=39 // pred_check
          %p344 = pneg %p109
        $region42: #{transformer_forward.5} parent=39 // pred_check_branch
          %346 = sbr.rel (%p344) target = $region44
        $region43: #{transformer_forward.5} parent=39 // pred_region
          %s347 = sand.u32 %s94, 1
          %s348 = scalar_lea.sflag [#allocation3], %s347
          %s349 = sand.u32 %s94, 1
          %s350 = smul.addr %s349, 16
          %s351 = scalar_lea.vmem [#allocation2], %s350
          %352 = dma.done %s348, 256
        $region44: #{transformer_forward.5} parent=39 // pred_fallthru
          _
      $region40: #{transformer_forward.5} parent=5 // pred_fallthru
        _
    $region6: #{transformer_forward.5} parent=1 // loop_footer
      %s16 = sadd.s32 1, %s12
    $region7: #{transformer_forward.5} parent=1 // loop_footer_branch
      %11 = sbr.rel target = $region3
    $region8: #{transformer_forward.5} parent=1 // loop_exit
      _
    %353 = vsyncpa [#allocation3], 1
    %s354 = scalar_lea.sflag [#allocation3], 1
    %355 = vsyncpa %s354, 1

// kernel: transformer_forward.3
$region0: #{transformer_forward.3}
  #allocation0 [shape = 'u32[]', space=smem, size = 0x4, offset = 0x4, fixed_abs, tag = 'smem constant byte address 0x4 - core index']
  #allocation1 [shape = 'u32[144,128]{1,0:T(1,128)}', space=vmem, size = 0x12000, scoped, tag = 'internal scratch']
  #allocation2 [shape = 'f32[2,8,128]{2,1,0:T(8,128)}', space=vmem, size = 0x2000, scoped, tag = 'scratch operand']
  #allocation3 [shape = 'f32[2,8,128]{2,1,0:T(8,128)}', space=vmem, size = 0x2000, scoped, tag = 'scratch operand']
  %s0 = inlined_call_operand.vmem [shape: f32[2,8,128], index: 0, kind: input, shape index: {}]
  %s1 = inlined_call_operand.vmem [shape: f32[2,8], index: 1, kind: input, shape index: {}]
  %s2 = inlined_call_operand.vmem [shape: bf16[2,128,384], index: 2, kind: input, shape index: {}]
  %s3 = inlined_call_operand.vmem [shape: f32[2,1,384], index: 3, kind: input, shape index: {}]
  %s4 = inlined_call_operand.hbm [shape: bf16[2,128,128], index: 4, kind: input, shape index: {}]
  %s5 = inlined_call_operand.vmem [shape: f32[2,1,128], index: 5, kind: input, shape index: {}]
  %s6 = inlined_call_operand.vmem [shape: f32[2,1,128], index: 6, kind: input, shape index: {}]
  %s7 = inlined_call_operand.vmem [shape: f32[2,1,128], index: 7, kind: input, shape index: {}]
  %s8 = inlined_call_operand.hbm [shape: bf16[2,128,256], index: 8, kind: input, shape index: {}]
  %s9 = inlined_call_operand.vmem [shape: f32[2,1,256], index: 9, kind: input, shape index: {}]
  %s10 = inlined_call_operand.hbm [shape: bf16[2,256,128], index: 10, kind: input, shape index: {}]
  %s11 = inlined_call_operand.vmem [shape: f32[2,1,128], index: 11, kind: input, shape index: {}]
  %s12 = inlined_call_operand.vmem [shape: f32[2,1,128], index: 12, kind: input, shape index: {}]
  %s13 = inlined_call_operand.vmem [shape: f32[2,1,128], index: 13, kind: input, shape index: {}]
  %s14 = inlined_call_operand.vmem [shape: f32[2,8,128], index: 14, kind: output, shape index: {}]
  %s15 = sld [smem:[#allocation0]]
  $region105: #{transformer_forward.3} parent=0
    _
  %s17 = ssub.s32 1, %s15
  %s18 = scalar_select 0, %s17, %s15
  $region1: #{transformer_forward.3} parent=0
    #allocation4 [shape = 'u8[65536]{0}', space=vmem, size = 0x10000, scoped, tag = 'input window, operand 4']
    #allocation5 [shape = 's32[2]{0}', space=sflag, size = 0x8, scoped, tag = 'scoped memory for transformer_forward.3']
    #allocation6 [shape = 'u8[131072]{0}', space=vmem, size = 0x20000, scoped, tag = 'input window, operand 8']
    #allocation7 [shape = 's32[2]{0}', space=sflag, size = 0x8, scoped, tag = 'scoped memory for transformer_forward.3']
    #allocation8 [shape = 'u8[131072]{0}', space=vmem, size = 0x20000, scoped, tag = 'input window, operand 10']
    %19 = vsyncpa [#allocation5], 0
    %s20 = scalar_lea.sflag [#allocation5], 1
    %21 = vsyncpa %s20, 0
    %22 = vsyncpa [#allocation7], 0
    %s23 = scalar_lea.sflag [#allocation7], 1
    %24 = vsyncpa %s23, 0
    loop: start=0, step=1, limit=4
    $region2: #{transformer_forward.3} parent=1 // loop_pre_header
      _
    $region3: #{transformer_forward.3} parent=1 // loop_header
      %s26 = sphi 0, %s30
      %p27 = scmp.ge.s32.totalorder %s26, 4
      %s34 = sphi 0, %s34
      %s36 = sphi 0, %s34
      %s37 = sphi 0, %s36
      %s51 = sphi 0, %s37
      %s55 = sphi 0, %s55
      %s57 = sphi 0, %s55
      %s58 = sphi 0, %s57
      %s72 = sphi 0, %s58
      %s78 = sphi 0, %s80
      %s81 = sphi 0, %s78
      %s82 = sphi 0, %s81
      %s98 = sphi 0, %s82
      %s104 = sphi 0, %s106
      %s107 = sphi 0, %s104
      %s108 = sphi 0, %s107
      %s124 = sphi 0, %s108
      %s130 = sphi 0, %s132
      %s133 = sphi 0, %s130
      %s134 = sphi 0, %s133
      %s150 = sphi 0, %s134
      %s156 = sphi 0, %s158
      %s159 = sphi 0, %s156
      %s160 = sphi 0, %s159
      %s176 = sphi 0, %s160
      %s182 = sphi 0, %s184
      %s185 = sphi 0, %s182
      %s186 = sphi 0, %s185
      %s202 = sphi 0, %s186
      %s208 = sphi 0, %s210
      %s211 = sphi 0, %s208
      %s212 = sphi 0, %s211
      %s228 = sphi 0, %s212
      %s234 = sphi 0, %s236
      %s237 = sphi 0, %s234
      %s238 = sphi 0, %s237
      %s254 = sphi 0, %s238
      %s260 = sphi 0, %s262
      %s263 = sphi 0, %s260
      %s264 = sphi 0, %s263
      %s280 = sphi 0, %s264
      %s286 = sphi 0, %s288
      %s289 = sphi 0, %s286
      %s290 = sphi 0, %s289
      %s306 = sphi 0, %s290
      %s312 = sphi 0, %s314
      %s315 = sphi 0, %s312
      %s316 = sphi 0, %s315
      %s332 = sphi 0, %s316
      %s338 = sphi 0, %s340
      %s341 = sphi 0, %s338
      %s342 = sphi 0, %s341
      %s358 = sphi 0, %s342
      %s364 = sphi 0, %s366
      %s367 = sphi 0, %s364
      %s368 = sphi 0, %s367
      %s384 = sphi 0, %s368
      %s388 = sphi 0, %s388
      %s390 = sphi 0, %s388
      %s391 = sphi 0, %s390
      %s405 = sphi 0, %s391
    $region4: #{transformer_forward.3} parent=1 // loop_header_branch
      %29 = sbr.rel (%p27) target = $region8
    $region5: #{transformer_forward.3} parent=1 // loop_body
      %s31 = ssub.s32 %s26, 1
      %s32 = ssub.s32 %s26, 2
      %s33 = sadd.s32 %s26, 1
      %s35 = sadd.s32 %s34, 1
      %p38 = scmp.eq.s32.totalorder %s26, 1
      %p39 = scmp.ne.s32.totalorder %s34, %s36
      %p40 = scmp.eq.s32.totalorder %s26, 0
      %p41 = por %p39, %p40
      %p42 = scmp.ne.s32.totalorder %s34, %s36
      %p43 = scmp.eq.s32.totalorder %s31, 1
      %p44 = por %p42, %p43
      %p45 = scmp.ne.s32.totalorder %s36, %s37
      %p46 = scmp.eq.s32.totalorder %s31, 0
      %p47 = por %p45, %p46
      %p48 = scmp.ne.s32.totalorder %s36, %s37
      %p49 = scmp.eq.s32.totalorder %s32, 1
      %p50 = por %p48, %p49
      %p52 = scmp.ne.s32.totalorder %s37, %s51
      %p53 = scmp.eq.s32.totalorder %s32, 0
      %p54 = por %p52, %p53
      %s56 = sadd.s32 %s55, 1
      %p59 = scmp.eq.s32.totalorder %s26, 1
      %p60 = scmp.ne.s32.totalorder %s55, %s57
      %p61 = scmp.eq.s32.totalorder %s26, 0
      %p62 = por %p60, %p61
      %p63 = scmp.ne.s32.totalorder %s55, %s57
      %p64 = scmp.eq.s32.totalorder %s31, 1
      %p65 = por %p63, %p64
      %p66 = scmp.ne.s32.totalorder %s57, %s58
      %p67 = scmp.eq.s32.totalorder %s31, 0
      %p68 = por %p66, %p67
      %p69 = scmp.ne.s32.totalorder %s57, %s58
      %p70 = scmp.eq.s32.totalorder %s32, 1
      %p71 = por %p69, %p70
      %p73 = scmp.ne.s32.totalorder %s58, %s72
      %p74 = scmp.eq.s32.totalorder %s32, 0
      %p75 = por %p73, %p74
      %s76 = ssub.s32 %s26, %s33
      %p77 = scmp.eq.s32.totalorder %s76, 0
      %s79 = sadd.s32 %s78, 1
      %s80 = scalar_select %p77, %s78, %s79
      %p83 = pneg %p77
      %p84 = scmp.eq.s32.totalorder %s26, 1
      %p85 = por %p83, %p84
      %p86 = scmp.ne.s32.totalorder %s78, %s81
      %p87 = scmp.eq.s32.totalorder %s26, 0
      %p88 = por %p86, %p87
      %p89 = scmp.ne.s32.totalorder %s78, %s81
      %p90 = scmp.eq.s32.totalorder %s31, 1
      %p91 = por %p89, %p90
      %p92 = scmp.ne.s32.totalorder %s81, %s82
      %p93 = scmp.eq.s32.totalorder %s31, 0
      %p94 = por %p92, %p93
      %p95 = scmp.ne.s32.totalorder %s81, %s82
      %p96 = scmp.eq.s32.totalorder %s32, 1
      %p97 = por %p95, %p96
      %p99 = scmp.ne.s32.totalorder %s82, %s98
      %p100 = scmp.eq.s32.totalorder %s32, 0
      %p101 = por %p99, %p100
      %s102 = ssub.s32 %s26, %s33
      %p103 = scmp.eq.s32.totalorder %s102, 0
      %s105 = sadd.s32 %s104, 1
      %s106 = scalar_select %p103, %s104, %s105
      %p109 = pneg %p103
      %p110 = scmp.eq.s32.totalorder %s26, 1
      %p111 = por %p109, %p110
      %p112 = scmp.ne.s32.totalorder %s104, %s107
      %p113 = scmp.eq.s32.totalorder %s26, 0
      %p114 = por %p112, %p113
      %p115 = scmp.ne.s32.totalorder %s104, %s107
      %p116 = scmp.eq.s32.totalorder %s31, 1
      %p117 = por %p115, %p116
      %p118 = scmp.ne.s32.totalorder %s107, %s108
      %p119 = scmp.eq.s32.totalorder %s31, 0
      %p120 = por %p118, %p119
      %p121 = scmp.ne.s32.totalorder %s107, %s108
      %p122 = scmp.eq.s32.totalorder %s32, 1
      %p123 = por %p121, %p122
      %p125 = scmp.ne.s32.totalorder %s108, %s124
      %p126 = scmp.eq.s32.totalorder %s32, 0
      %p127 = por %p125, %p126
      %s128 = ssub.s32 %s26, %s33
      %p129 = scmp.eq.s32.totalorder %s128, 0
      %s131 = sadd.s32 %s130, 1
      %s132 = scalar_select %p129, %s130, %s131
      %p135 = pneg %p129
      %p136 = scmp.eq.s32.totalorder %s26, 1
      %p137 = por %p135, %p136
      %p138 = scmp.ne.s32.totalorder %s130, %s133
      %p139 = scmp.eq.s32.totalorder %s26, 0
      %p140 = por %p138, %p139
      %p141 = scmp.ne.s32.totalorder %s130, %s133
      %p142 = scmp.eq.s32.totalorder %s31, 1
      %p143 = por %p141, %p142
      %p144 = scmp.ne.s32.totalorder %s133, %s134
      %p145 = scmp.eq.s32.totalorder %s31, 0
      %p146 = por %p144, %p145
      %p147 = scmp.ne.s32.totalorder %s133, %s134
      %p148 = scmp.eq.s32.totalorder %s32, 1
      %p149 = por %p147, %p148
      %p151 = scmp.ne.s32.totalorder %s134, %s150
      %p152 = scmp.eq.s32.totalorder %s32, 0
      %p153 = por %p151, %p152
      %s154 = ssub.s32 %s26, %s33
      %p155 = scmp.eq.s32.totalorder %s154, 0
      %s157 = sadd.s32 %s156, 1
      %s158 = scalar_select %p155, %s156, %s157
      %p161 = pneg %p155
      %p162 = scmp.eq.s32.totalorder %s26, 1
      %p163 = por %p161, %p162
      %p164 = scmp.ne.s32.totalorder %s156, %s159
      %p165 = scmp.eq.s32.totalorder %s26, 0
      %p166 = por %p164, %p165
      %p167 = scmp.ne.s32.totalorder %s156, %s159
      %p168 = scmp.eq.s32.totalorder %s31, 1
      %p169 = por %p167, %p168
      %p170 = scmp.ne.s32.totalorder %s159, %s160
      %p171 = scmp.eq.s32.totalorder %s31, 0
      %p172 = por %p170, %p171
      %p173 = scmp.ne.s32.totalorder %s159, %s160
      %p174 = scmp.eq.s32.totalorder %s32, 1
      %p175 = por %p173, %p174
      %p177 = scmp.ne.s32.totalorder %s160, %s176
      %p178 = scmp.eq.s32.totalorder %s32, 0
      %p179 = por %p177, %p178
      %s180 = ssub.s32 %s26, %s33
      %p181 = scmp.eq.s32.totalorder %s180, 0
      %s183 = sadd.s32 %s182, 1
      %s184 = scalar_select %p181, %s182, %s183
      %p187 = pneg %p181
      %p188 = scmp.eq.s32.totalorder %s26, 1
      %p189 = por %p187, %p188
      %p190 = scmp.ne.s32.totalorder %s182, %s185
      %p191 = scmp.eq.s32.totalorder %s26, 0
      %p192 = por %p190, %p191
      %p193 = scmp.ne.s32.totalorder %s182, %s185
      %p194 = scmp.eq.s32.totalorder %s31, 1
      %p195 = por %p193, %p194
      %p196 = scmp.ne.s32.totalorder %s185, %s186
      %p197 = scmp.eq.s32.totalorder %s31, 0
      %p198 = por %p196, %p197
      %p199 = scmp.ne.s32.totalorder %s185, %s186
      %p200 = scmp.eq.s32.totalorder %s32, 1
      %p201 = por %p199, %p200
      %p203 = scmp.ne.s32.totalorder %s186, %s202
      %p204 = scmp.eq.s32.totalorder %s32, 0
      %p205 = por %p203, %p204
      %s206 = ssub.s32 %s26, %s33
      %p207 = scmp.eq.s32.totalorder %s206, 0
      %s209 = sadd.s32 %s208, 1
      %s210 = scalar_select %p207, %s208, %s209
      %p213 = pneg %p207
      %p214 = scmp.eq.s32.totalorder %s26, 1
      %p215 = por %p213, %p214
      %p216 = scmp.ne.s32.totalorder %s208, %s211
      %p217 = scmp.eq.s32.totalorder %s26, 0
      %p218 = por %p216, %p217
      %p219 = scmp.ne.s32.totalorder %s208, %s211
      %p220 = scmp.eq.s32.totalorder %s31, 1
      %p221 = por %p219, %p220
      %p222 = scmp.ne.s32.totalorder %s211, %s212
      %p223 = scmp.eq.s32.totalorder %s31, 0
      %p224 = por %p222, %p223
      %p225 = scmp.ne.s32.totalorder %s211, %s212
      %p226 = scmp.eq.s32.totalorder %s32, 1
      %p227 = por %p225, %p226
      %p229 = scmp.ne.s32.totalorder %s212, %s228
      %p230 = scmp.eq.s32.totalorder %s32, 0
      %p231 = por %p229, %p230
      %s232 = ssub.s32 %s26, %s33
      %p233 = scmp.eq.s32.totalorder %s232, 0
      %s235 = sadd.s32 %s234, 1
      %s236 = scalar_select %p233, %s234, %s235
      %p239 = pneg %p233
      %p240 = scmp.eq.s32.totalorder %s26, 1
      %p241 = por %p239, %p240
      %p242 = scmp.ne.s32.totalorder %s234, %s237
      %p243 = scmp.eq.s32.totalorder %s26, 0
      %p244 = por %p242, %p243
      %p245 = scmp.ne.s32.totalorder %s234, %s237
      %p246 = scmp.eq.s32.totalorder %s31, 1
      %p247 = por %p245, %p246
      %p248 = scmp.ne.s32.totalorder %s237, %s238
      %p249 = scmp.eq.s32.totalorder %s31, 0
      %p250 = por %p248, %p249
      %p251 = scmp.ne.s32.totalorder %s237, %s238
      %p252 = scmp.eq.s32.totalorder %s32, 1
      %p253 = por %p251, %p252
      %p255 = scmp.ne.s32.totalorder %s238, %s254
      %p256 = scmp.eq.s32.totalorder %s32, 0
      %p257 = por %p255, %p256
      %s258 = ssub.s32 %s26, %s33
      %p259 = scmp.eq.s32.totalorder %s258, 0
      %s261 = sadd.s32 %s260, 1
      %s262 = scalar_select %p259, %s260, %s261
      %p265 = pneg %p259
      %p266 = scmp.eq.s32.totalorder %s26, 1
      %p267 = por %p265, %p266
      %p268 = scmp.ne.s32.totalorder %s260, %s263
      %p269 = scmp.eq.s32.totalorder %s26, 0
      %p270 = por %p268, %p269
      %p271 = scmp.ne.s32.totalorder %s260, %s263
      %p272 = scmp.eq.s32.totalorder %s31, 1
      %p273 = por %p271, %p272
      %p274 = scmp.ne.s32.totalorder %s263, %s264
      %p275 = scmp.eq.s32.totalorder %s31, 0
      %p276 = por %p274, %p275
      %p277 = scmp.ne.s32.totalorder %s263, %s264
      %p278 = scmp.eq.s32.totalorder %s32, 1
      %p279 = por %p277, %p278
      %p281 = scmp.ne.s32.totalorder %s264, %s280
      %p282 = scmp.eq.s32.totalorder %s32, 0
      %p283 = por %p281, %p282
      %s284 = ssub.s32 %s26, %s33
      %p285 = scmp.eq.s32.totalorder %s284, 0
      %s287 = sadd.s32 %s286, 1
      %s288 = scalar_select %p285, %s286, %s287
      %p291 = pneg %p285
      %p292 = scmp.eq.s32.totalorder %s26, 1
      %p293 = por %p291, %p292
      %p294 = scmp.ne.s32.totalorder %s286, %s289
      %p295 = scmp.eq.s32.totalorder %s26, 0
      %p296 = por %p294, %p295
      %p297 = scmp.ne.s32.totalorder %s286, %s289
      %p298 = scmp.eq.s32.totalorder %s31, 1
      %p299 = por %p297, %p298
      %p300 = scmp.ne.s32.totalorder %s289, %s290
      %p301 = scmp.eq.s32.totalorder %s31, 0
      %p302 = por %p300, %p301
      %p303 = scmp.ne.s32.totalorder %s289, %s290
      %p304 = scmp.eq.s32.totalorder %s32, 1
      %p305 = por %p303, %p304
      %p307 = scmp.ne.s32.totalorder %s290, %s306
      %p308 = scmp.eq.s32.totalorder %s32, 0
      %p309 = por %p307, %p308
      %s310 = ssub.s32 %s26, %s33
      %p311 = scmp.eq.s32.totalorder %s310, 0
      %s313 = sadd.s32 %s312, 1
      %s314 = scalar_select %p311, %s312, %s313
      %p317 = pneg %p311
      %p318 = scmp.eq.s32.totalorder %s26, 1
      %p319 = por %p317, %p318
      %p320 = scmp.ne.s32.totalorder %s312, %s315
      %p321 = scmp.eq.s32.totalorder %s26, 0
      %p322 = por %p320, %p321
      %p323 = scmp.ne.s32.totalorder %s312, %s315
      %p324 = scmp.eq.s32.totalorder %s31, 1
      %p325 = por %p323, %p324
      %p326 = scmp.ne.s32.totalorder %s315, %s316
      %p327 = scmp.eq.s32.totalorder %s31, 0
      %p328 = por %p326, %p327
      %p329 = scmp.ne.s32.totalorder %s315, %s316
      %p330 = scmp.eq.s32.totalorder %s32, 1
      %p331 = por %p329, %p330
      %p333 = scmp.ne.s32.totalorder %s316, %s332
      %p334 = scmp.eq.s32.totalorder %s32, 0
      %p335 = por %p333, %p334
      %s336 = ssub.s32 %s26, %s33
      %p337 = scmp.eq.s32.totalorder %s336, 0
      %s339 = sadd.s32 %s338, 1
      %s340 = scalar_select %p337, %s338, %s339
      %p343 = pneg %p337
      %p344 = scmp.eq.s32.totalorder %s26, 1
      %p345 = por %p343, %p344
      %p346 = scmp.ne.s32.totalorder %s338, %s341
      %p347 = scmp.eq.s32.totalorder %s26, 0
      %p348 = por %p346, %p347
      %p349 = scmp.ne.s32.totalorder %s338, %s341
      %p350 = scmp.eq.s32.totalorder %s31, 1
      %p351 = por %p349, %p350
      %p352 = scmp.ne.s32.totalorder %s341, %s342
      %p353 = scmp.eq.s32.totalorder %s31, 0
      %p354 = por %p352, %p353
      %p355 = scmp.ne.s32.totalorder %s341, %s342
      %p356 = scmp.eq.s32.totalorder %s32, 1
      %p357 = por %p355, %p356
      %p359 = scmp.ne.s32.totalorder %s342, %s358
      %p360 = scmp.eq.s32.totalorder %s32, 0
      %p361 = por %p359, %p360
      %s362 = ssub.s32 %s26, %s33
      %p363 = scmp.eq.s32.totalorder %s362, 0
      %s365 = sadd.s32 %s364, 1
      %s366 = scalar_select %p363, %s364, %s365
      %p369 = pneg %p363
      %p370 = scmp.eq.s32.totalorder %s26, 1
      %p371 = por %p369, %p370
      %p372 = scmp.ne.s32.totalorder %s364, %s367
      %p373 = scmp.eq.s32.totalorder %s26, 0
      %p374 = por %p372, %p373
      %p375 = scmp.ne.s32.totalorder %s364, %s367
      %p376 = scmp.eq.s32.totalorder %s31, 1
      %p377 = por %p375, %p376
      %p378 = scmp.ne.s32.totalorder %s367, %s368
      %p379 = scmp.eq.s32.totalorder %s31, 0
      %p380 = por %p378, %p379
      %p381 = scmp.ne.s32.totalorder %s367, %s368
      %p382 = scmp.eq.s32.totalorder %s32, 1
      %p383 = por %p381, %p382
      %p385 = scmp.ne.s32.totalorder %s368, %s384
      %p386 = scmp.eq.s32.totalorder %s32, 0
      %p387 = por %p385, %p386
      %s389 = sadd.s32 %s388, 1
      %p392 = scmp.eq.s32.totalorder %s26, 1
      %p393 = scmp.ne.s32.totalorder %s388, %s390
      %p394 = scmp.eq.s32.totalorder %s26, 0
      %p395 = por %p393, %p394
      %p396 = scmp.ne.s32.totalorder %s388, %s390
      %p397 = scmp.eq.s32.totalorder %s31, 1
      %p398 = por %p396, %p397
      %p399 = scmp.ne.s32.totalorder %s390, %s391
      %p400 = scmp.eq.s32.totalorder %s31, 0
      %p401 = por %p399, %p400
      %p402 = scmp.ne.s32.totalorder %s390, %s391
      %p403 = scmp.eq.s32.totalorder %s32, 1
      %p404 = por %p402, %p403
      %p406 = scmp.ne.s32.totalorder %s391, %s405
      %p407 = scmp.eq.s32.totalorder %s32, 0
      %p408 = por %p406, %p407
      %p409 = scmp.le.s32.totalorder 1, %s26
      %p410 = scmp.lt.s32.totalorder %s26, 3
      %p411 = pnand %p409, %p410
      %p412 = pneg %p411
      // Predicated region
      $region9: #{transformer_forward.3} parent=5 // pred_check
        _
      $region10: #{transformer_forward.3} parent=5 // pred_check_branch
        %414 = sbr.rel (%p411) target = $region12
      $region11: #{transformer_forward.3} parent=5 // pred_region
        %s415 = ssub.s32 %s26, 1
        // Predicated region
        $region13: #{transformer_forward.3} parent=11 // pred_check
          %p416 = pneg %p47
        $region14: #{transformer_forward.3} parent=11 // pred_check_branch
          %418 = sbr.rel (%p416) target = $region16
        $region15: #{transformer_forward.3} parent=11 // pred_region
          _
        $region16: #{transformer_forward.3} parent=11 // pred_fallthru
          _
        // Predicated region
        $region17: #{transformer_forward.3} parent=11 // pred_check
          %p419 = pneg %p68
        $region18: #{transformer_forward.3} parent=11 // pred_check_branch
          %421 = sbr.rel (%p419) target = $region20
        $region19: #{transformer_forward.3} parent=11 // pred_region
          _
        $region20: #{transformer_forward.3} parent=11 // pred_fallthru
          _
      $region12: #{transformer_forward.3} parent=5 // pred_fallthru
        _
      %p422 = scmp.lt.s32.totalorder %s26, 2
      // Predicated region
      $region21: #{transformer_forward.3} parent=5 // pred_check
        %p423 = pneg %p422
      $region22: #{transformer_forward.3} parent=5 // pred_check_branch
        %425 = sbr.rel (%p423) target = $region24
      $region23: #{transformer_forward.3} parent=5 // pred_region
        // Predicated region
        $region25: #{transformer_forward.3} parent=23 // pred_check
          %p426 = pneg %p88
        $region26: #{transformer_forward.3} parent=23 // pred_check_branch
          %428 = sbr.rel (%p426) target = $region28
        $region27: #{transformer_forward.3} parent=23 // pred_region
          %p429 = scmp.lt.s32.totalorder %s26, 1
          %s430 = scalar_select %p429, %s26, 1
          %s431 = smul.addr %s430, 48
          %s432 = smul.addr %s431, 4
          %s433 = scalar_lea.vmem %s2, %s432
        $region28: #{transformer_forward.3} parent=23 // pred_fallthru
          _
        // Predicated region
        $region29: #{transformer_forward.3} parent=23 // pred_check
          %p434 = pneg %p114
        $region30: #{transformer_forward.3} parent=23 // pred_check_branch
          %436 = sbr.rel (%p434) target = $region32
        $region31: #{transformer_forward.3} parent=23 // pred_region
          %p437 = scmp.lt.s32.totalorder %s26, 1
          %s438 = scalar_select %p437, %s26, 1
          %s439 = smul.addr %s438, 3
          %s440 = scalar_lea.vmem %s3, %s439
        $region32: #{transformer_forward.3} parent=23 // pred_fallthru
          _
        // Predicated region
        $region33: #{transformer_forward.3} parent=23 // pred_check
          %p441 = pneg %p140
        $region34: #{transformer_forward.3} parent=23 // pred_check_branch
          %443 = sbr.rel (%p441) target = $region36
        $region35: #{transformer_forward.3} parent=23 // pred_region
          %s444 = sand.u32 %s130, 1
          %s445 = scalar_lea.sflag [#allocation5], %s444
          %s446 = sand.u32 %s130, 1
          %s447 = smul.addr %s446, 64
          %s448 = scalar_lea.vmem [#allocation4], %s447
          %s450 = ssub.s32 1024, 1024
          %451 = vsyncadd %s445, %s450
          %s452 = smul.addr %s26, 16
          %s453 = smul.addr %s452, 64
          %s454 = scalar_lea.hbm %s4, %s453
          %s455 = sshll.u32 %s448, 4
          %s456 = int_to_ptr.vmem [resolvable:$true] %s455
          %461 = dma.hbm_to_vmem [thread:$0]  %s454, 1024, %s456, %s445, 64, 64, 4
        $region36: #{transformer_forward.3} parent=23 // pred_fallthru
          _
        // Predicated region
        $region37: #{transformer_forward.3} parent=23 // pred_check
          %p462 = pneg %p166
        $region38: #{transformer_forward.3} parent=23 // pred_check_branch
          %464 = sbr.rel (%p462) target = $region40
        $region39: #{transformer_forward.3} parent=23 // pred_region
          %p465 = scmp.lt.s32.totalorder %s26, 1
          %s466 = scalar_select %p465, %s26, 1
          %s467 = scalar_lea.vmem %s5, %s466
        $region40: #{transformer_forward.3} parent=23 // pred_fallthru
          _
        // Predicated region
        $region41: #{transformer_forward.3} parent=23 // pred_check
          %p468 = pneg %p192
        $region42: #{transformer_forward.3} parent=23 // pred_check_branch
          %470 = sbr.rel (%p468) target = $region44
        $region43: #{transformer_forward.3} parent=23 // pred_region
          %p471 = scmp.lt.s32.totalorder %s26, 1
          %s472 = scalar_select %p471, %s26, 1
          %s473 = scalar_lea.vmem %s6, %s472
        $region44: #{transformer_forward.3} parent=23 // pred_fallthru
          _
        // Predicated region
        $region45: #{transformer_forward.3} parent=23 // pred_check
          %p474 = pneg %p218
        $region46: #{transformer_forward.3} parent=23 // pred_check_branch
          %476 = sbr.rel (%p474) target = $region48
        $region47: #{transformer_forward.3} parent=23 // pred_region
          %p477 = scmp.lt.s32.totalorder %s26, 1
          %s478 = scalar_select %p477, %s26, 1
          %s479 = scalar_lea.vmem %s7, %s478
        $region48: #{transformer_forward.3} parent=23 // pred_fallthru
          _
        // Predicated region
        $region49: #{transformer_forward.3} parent=23 // pred_check
          %p480 = pneg %p244
        $region50: #{transformer_forward.3} parent=23 // pred_check_branch
          %482 = sbr.rel (%p480) target = $region52
        $region51: #{transformer_forward.3} parent=23 // pred_region
          %s483 = sand.u32 %s26, 1
          %s484 = scalar_lea.sflag [#allocation7], %s483
          %s485 = sand.u32 %s234, 1
          %s486 = smul.addr %s485, 128
          %s487 = scalar_lea.vmem [#allocation6], %s486
          %s489 = ssub.s32 2048, 2048
          %490 = vsyncadd %s484, %s489
          %s491 = smul.addr %s26, 32
          %s492 = smul.addr %s491, 64
          %s493 = scalar_lea.hbm %s8, %s492
          %s494 = sshll.u32 %s487, 4
          %s495 = int_to_ptr.vmem [resolvable:$true] %s494
          %500 = dma.hbm_to_vmem [thread:$0]  %s493, 2048, %s495, %s484, 128, 128, 8
        $region52: #{transformer_forward.3} parent=23 // pred_fallthru
          _
        // Predicated region
        $region53: #{transformer_forward.3} parent=23 // pred_check
          %p501 = pneg %p270
        $region54: #{transformer_forward.3} parent=23 // pred_check_branch
          %503 = sbr.rel (%p501) target = $region56
        $region55: #{transformer_forward.3} parent=23 // pred_region
          %p504 = scmp.lt.s32.totalorder %s26, 1
          %s505 = scalar_select %p504, %s26, 1
          %s506 = smul.addr %s505, 2
          %s507 = scalar_lea.vmem %s9, %s506
        $region56: #{transformer_forward.3} parent=23 // pred_fallthru
          _
        // Predicated region
        $region57: #{transformer_forward.3} parent=23 // pred_check
          %p508 = pneg %p296
        $region58: #{transformer_forward.3} parent=23 // pred_check_branch
          %510 = sbr.rel (%p508) target = $region60
        $region59: #{transformer_forward.3} parent=23 // pred_region
          %s511 = sand.u32 %s26, 1
          %s512 = scalar_lea.sflag [#allocation7], %s511
          %s513 = sand.u32 %s286, 1
          %s514 = smul.addr %s513, 128
          %s515 = scalar_lea.vmem [#allocation8], %s514
          %s517 = ssub.s32 2048, 2048
          %518 = vsyncadd %s512, %s517
          %s519 = smul.addr %s26, 32
          %s520 = smul.addr %s519, 64
          %s521 = scalar_lea.hbm %s10, %s520
          %s522 = sshll.u32 %s515, 4
          %s523 = int_to_ptr.vmem [resolvable:$true] %s522
          %528 = dma.hbm_to_vmem [thread:$0]  %s521, 2048, %s523, %s512, 64, 64, 4
        $region60: #{transformer_forward.3} parent=23 // pred_fallthru
          _
        // Predicated region
        $region61: #{transformer_forward.3} parent=23 // pred_check
          %p529 = pneg %p322
        $region62: #{transformer_forward.3} parent=23 // pred_check_branch
          %531 = sbr.rel (%p529) target = $region64
        $region63: #{transformer_forward.3} parent=23 // pred_region
          %p532 = scmp.lt.s32.totalorder %s26, 1
          %s533 = scalar_select %p532, %s26, 1
          %s534 = scalar_lea.vmem %s11, %s533
        $region64: #{transformer_forward.3} parent=23 // pred_fallthru
          _
        // Predicated region
        $region65: #{transformer_forward.3} parent=23 // pred_check
          %p535 = pneg %p348
        $region66: #{transformer_forward.3} parent=23 // pred_check_branch
          %537 = sbr.rel (%p535) target = $region68
        $region67: #{transformer_forward.3} parent=23 // pred_region
          %p538 = scmp.lt.s32.totalorder %s26, 1
          %s539 = scalar_select %p538, %s26, 1
          %s540 = scalar_lea.vmem %s12, %s539
        $region68: #{transformer_forward.3} parent=23 // pred_fallthru
          _
        // Predicated region
        $region69: #{transformer_forward.3} parent=23 // pred_check
          %p541 = pneg %p374
        $region70: #{transformer_forward.3} parent=23 // pred_check_branch
          %543 = sbr.rel (%p541) target = $region72
        $region71: #{transformer_forward.3} parent=23 // pred_region
          %p544 = scmp.lt.s32.totalorder %s26, 1
          %s545 = scalar_select %p544, %s26, 1
          %s546 = scalar_lea.vmem %s13, %s545
        $region72: #{transformer_forward.3} parent=23 // pred_fallthru
          _
      $region24: #{transformer_forward.3} parent=5 // pred_fallthru
        _
      %p547 = scmp.le.s32.totalorder 1, %s26
      %p548 = scmp.lt.s32.totalorder %s26, 3
      %p549 = pnand %p547, %p548
      %p550 = pneg %p549
      // Predicated region
      $region73: #{transformer_forward.3} parent=5 // pred_check
        _
      $region74: #{transformer_forward.3} parent=5 // pred_check_branch
        %552 = sbr.rel (%p549) target = $region76
      $region75: #{transformer_forward.3} parent=5 // pred_region
        %s553 = ssub.s32 %s26, 1
        %s554 = sand.u32 %s133, 1
        %s555 = scalar_lea.sflag [#allocation5], %s554
        %s556 = sand.u32 %s133, 1
        %s557 = smul.addr %s556, 64
        %s558 = scalar_lea.vmem [#allocation4], %s557
        // Predicated region
        $region77: #{transformer_forward.3} parent=75 // pred_check
          %p559 = pneg %p146
        $region78: #{transformer_forward.3} parent=75 // pred_check_branch
          %561 = sbr.rel (%p559) target = $region80
        $region79: #{transformer_forward.3} parent=75 // pred_region
          %562 = dma.done %s555, 1024
        $region80: #{transformer_forward.3} parent=75 // pred_fallthru
          _
        %s563 = sand.u32 %s31, 1
        %s564 = scalar_lea.sflag [#allocation7], %s563
        %s565 = sand.u32 %s237, 1
        %s566 = smul.addr %s565, 128
        %s567 = scalar_lea.vmem [#allocation6], %s566
        // Predicated region
        $region81: #{transformer_forward.3} parent=75 // pred_check
          %p568 = pneg %p250
        $region82: #{transformer_forward.3} parent=75 // pred_check_branch
          %570 = sbr.rel (%p568) target = $region84
        $region83: #{transformer_forward.3} parent=75 // pred_region
          %571 = dma.done %s564, 2048
        $region84: #{transformer_forward.3} parent=75 // pred_fallthru
          _
        %s572 = sand.u32 %s31, 1
        %s573 = scalar_lea.sflag [#allocation7], %s572
        %s574 = sand.u32 %s289, 1
        %s575 = smul.addr %s574, 128
        %s576 = scalar_lea.vmem [#allocation8], %s575
        // Predicated region
        $region85: #{transformer_forward.3} parent=75 // pred_check
          %p577 = pneg %p302
        $region86: #{transformer_forward.3} parent=75 // pred_check_branch
          %579 = sbr.rel (%p577) target = $region88
        $region87: #{transformer_forward.3} parent=75 // pred_region
          %580 = dma.done %s573, 2048
        $region88: #{transformer_forward.3} parent=75 // pred_fallthru
          _
        %p581 = pneg %p47
        %p582 = pneg %p44
        %p583 = pneg %p68
        %p584 = pneg %p65
        %p585 = scmp.lt.s32.totalorder %s31, 1
        %s586 = scalar_select %p585, %s31, 1
        %s587 = smul.addr %s586, 48
        %s588 = smul.addr %s587, 4
        %s589 = scalar_lea.vmem %s2, %s588
        %p590 = pneg %p94
        %p591 = pneg %p91
        %p592 = scmp.lt.s32.totalorder %s31, 1
        %s593 = scalar_select %p592, %s31, 1
        %s594 = smul.addr %s593, 3
        %s595 = scalar_lea.vmem %s3, %s594
        %p596 = pneg %p120
        %p597 = pneg %p117
        %s598 = sand.u32 %s133, 1
        %s599 = scalar_lea.sflag [#allocation5], %s598
        %s600 = sand.u32 %s133, 1
        %s601 = smul.addr %s600, 64
        %s602 = scalar_lea.vmem [#allocation4], %s601
        %p603 = pneg %p146
        %p604 = pneg %p143
        %p605 = scmp.lt.s32.totalorder %s31, 1
        %s606 = scalar_select %p605, %s31, 1
        %s607 = scalar_lea.vmem %s5, %s606
        %p608 = pneg %p172
        %p609 = pneg %p169
        %p610 = scmp.lt.s32.totalorder %s31, 1
        %s611 = scalar_select %p610, %s31, 1
        %s612 = scalar_lea.vmem %s6, %s611
        %p613 = pneg %p198
        %p614 = pneg %p195
        %p615 = scmp.lt.s32.totalorder %s31, 1
        %s616 = scalar_select %p615, %s31, 1
        %s617 = scalar_lea.vmem %s7, %s616
        %p618 = pneg %p224
        %p619 = pneg %p221
        %s620 = sand.u32 %s31, 1
        %s621 = scalar_lea.sflag [#allocation7], %s620
        %s622 = sand.u32 %s237, 1
        %s623 = smul.addr %s622, 128
        %s624 = scalar_lea.vmem [#allocation6], %s623
        %p625 = pneg %p250
        %p626 = pneg %p247
        %p627 = scmp.lt.s32.totalorder %s31, 1
        %s628 = scalar_select %p627, %s31, 1
        %s629 = smul.addr %s628, 2
        %s630 = scalar_lea.vmem %s9, %s629
        %p631 = pneg %p276
        %p632 = pneg %p273
        %s633 = sand.u32 %s31, 1
        %s634 = scalar_lea.sflag [#allocation7], %s633
        %s635 = sand.u32 %s289, 1
        %s636 = smul.addr %s635, 128
        %s637 = scalar_lea.vmem [#allocation8], %s636
        %p638 = pneg %p302
        %p639 = pneg %p299
        %p640 = scmp.lt.s32.totalorder %s31, 1
        %s641 = scalar_select %p640, %s31, 1
        %s642 = scalar_lea.vmem %s11, %s641
        %p643 = pneg %p328
        %p644 = pneg %p325
        %p645 = scmp.lt.s32.totalorder %s31, 1
        %s646 = scalar_select %p645, %s31, 1
        %s647 = scalar_lea.vmem %s12, %s646
        %p648 = pneg %p354
        %p649 = pneg %p351
        %p650 = scmp.lt.s32.totalorder %s31, 1
        %s651 = scalar_select %p650, %s31, 1
        %s652 = scalar_lea.vmem %s13, %s651
        %p653 = pneg %p380
        %p654 = pneg %p377
        %p655 = pneg %p401
        %p656 = pneg %p398
        %p657 = scmp.lt.s32.totalorder %s31, 1
        %s658 = scalar_select %p657, %s31, 1
        %s659 = smul.addr %s658, 48
        %s660 = smul.addr %s659, 4
        %s661 = scalar_lea.vmem %s2, %s660
        %p662 = scmp.lt.s32.totalorder %s31, 1
        %s663 = scalar_select %p662, %s31, 1
        %s664 = smul.addr %s663, 3
        %s665 = scalar_lea.vmem %s3, %s664
        %p666 = scmp.lt.s32.totalorder %s31, 1
        %s667 = scalar_select %p666, %s31, 1
        %s668 = scalar_lea.vmem %s5, %s667
        %p669 = scmp.lt.s32.totalorder %s31, 1
        %s670 = scalar_select %p669, %s31, 1
        %s671 = scalar_lea.vmem %s6, %s670
        %p672 = scmp.lt.s32.totalorder %s31, 1
        %s673 = scalar_select %p672, %s31, 1
        %s674 = scalar_lea.vmem %s7, %s673
        %p675 = scmp.lt.s32.totalorder %s31, 1
        %s676 = scalar_select %p675, %s31, 1
        %s677 = smul.addr %s676, 2
        %s678 = scalar_lea.vmem %s9, %s677
        %p679 = scmp.lt.s32.totalorder %s31, 1
        %s680 = scalar_select %p679, %s31, 1
        %s681 = scalar_lea.vmem %s11, %s680
        %p682 = scmp.lt.s32.totalorder %s31, 1
        %s683 = scalar_select %p682, %s31, 1
        %s684 = scalar_lea.vmem %s12, %s683
        %p685 = scmp.lt.s32.totalorder %s31, 1
        %s686 = scalar_select %p685, %s31, 1
        %s687 = scalar_lea.vmem %s13, %s686
        %p689 = scmp.eq.s32.totalorder %s31, 0
        // Predicated region
        $region89: #{transformer_forward.3} parent=75 // pred_check
          %p690 = pneg %p689
        $region90: #{transformer_forward.3} parent=75 // pred_check_branch
          %692 = sbr.rel (%p690) target = $region92
        $region91: #{transformer_forward.3} parent=75 // pred_region
          %v693 = vld [vmem:[%s0] sm:$0xff]
          %v694 = vld [vmem:[%s0 + $0x8] sm:$0xff]
          %695 = vst [vmem:[#allocation2] sm:$0xff] %v693
          %696 = vst [vmem:[#allocation2 + $0x8] sm:$0xff] %v694
        $region92: #{transformer_forward.3} parent=75 // pred_fallthru
          _
        %v697 = vld [vmem:[#allocation2] sm:$0xff]
        %v698 = vld [vmem:[#allocation2 + $0x8] sm:$0xff]
        %v699 = vpack.c.bf16 %v698, %v697
        %v700 = vld [vmem:[%s661] sm:$0xff]
        %v701 = vld [vmem:[%s661 + $0x8] sm:$0xf]
        %v702 = vld [vmem:[%s661 + $0xc] sm:$0xff]
        %v703 = vld [vmem:[%s661 + $0x14] sm:$0xf]
        %v704 = vld [vmem:[%s661 + $0x18] sm:$0xff]
        %v705 = vld [vmem:[%s661 + $0x20] sm:$0xf]
        %v706 = vld [vmem:[%s661 + $0x24] sm:$0xff]
        %v707 = vld [vmem:[%s661 + $0x2c] sm:$0xf]
        %v708 = vld [vmem:[%s661 + $0x30] sm:$0xff]
        %v709 = vld [vmem:[%s661 + $0x38] sm:$0xf]
        %v710 = vld [vmem:[%s661 + $0x3c] sm:$0xff]
        %v711 = vld [vmem:[%s661 + $0x44] sm:$0xf]
        %v712 = vld [vmem:[%s661 + $0x48] sm:$0xff]
        %v713 = vld [vmem:[%s661 + $0x50] sm:$0xf]
        %v714 = vld [vmem:[%s661 + $0x54] sm:$0xff]
        %v715 = vld [vmem:[%s661 + $0x5c] sm:$0xf]
        %v716 = vld [vmem:[%s661 + $0x60] sm:$0xff]
        %v717 = vld [vmem:[%s661 + $0x68] sm:$0xf]
        %v718 = vld [vmem:[%s661 + $0x6c] sm:$0xff]
        %v719 = vld [vmem:[%s661 + $0x74] sm:$0xf]
        %v720 = vld [vmem:[%s661 + $0x78] sm:$0xff]
        %v721 = vld [vmem:[%s661 + $0x80] sm:$0xf]
        %v722 = vld [vmem:[%s661 + $0x84] sm:$0xff]
        %v723 = vld [vmem:[%s661 + $0x8c] sm:$0xf]
        %v724 = vld [vmem:[%s661 + $0x90] sm:$0xff]
        %v725 = vld [vmem:[%s661 + $0x98] sm:$0xf]
        %v726 = vld [vmem:[%s661 + $0x9c] sm:$0xff]
        %v727 = vld [vmem:[%s661 + $0xa4] sm:$0xf]
        %v728 = vld [vmem:[%s661 + $0xa8] sm:$0xff]
        %v729 = vld [vmem:[%s661 + $0xb0] sm:$0xf]
        %v730 = vld [vmem:[%s661 + $0xb4] sm:$0xff]
        %v731 = vld [vmem:[%s661 + $0xbc] sm:$0xf]
        %v732 = vld [vmem:[%s665] sm:$0x7]
        %v734 = vlaneseq
        %v735 = vshrl.u32 %v734, 7
        %v736 = vsub.s32 0, %v735
        %v737 = vrot.slane %v732, %v736
        %v738 = vlaneseq
        %v739 = vshrl.u32 %v738, 7
        %v740 = vsub.s32 1, %v739
        %v741 = vrot.slane %v732, %v740
        %v742 = vlaneseq
        %v743 = vshrl.u32 %v742, 7
        %v744 = vsub.s32 2, %v743
        %v745 = vrot.slane %v732, %v744
        %v781 = vunpack.c.l.b16 %v700
        %v782 = vunpack.c.h.b16 %v700
        %v783 = vunpack.c.l.b16 %v701
        %v784 = vunpack.c.l.b16 %v702
        %v785 = vunpack.c.h.b16 %v702
        %v786 = vunpack.c.l.b16 %v703
        %v787 = vunpack.c.l.b16 %v704
        %v788 = vunpack.c.h.b16 %v704
        %v789 = vunpack.c.l.b16 %v705
        %v790 = vunpack.c.l.b16 %v706
        %v791 = vunpack.c.h.b16 %v706
        %v792 = vunpack.c.l.b16 %v707
        %v793 = vunpack.c.l.b16 %v708
        %v794 = vunpack.c.h.b16 %v708
        %v795 = vunpack.c.l.b16 %v709
        %v796 = vunpack.c.l.b16 %v710
        %v797 = vunpack.c.h.b16 %v710
        %v798 = vunpack.c.l.b16 %v711
        %v799 = vunpack.c.l.b16 %v712
        %v800 = vunpack.c.h.b16 %v712
        %v801 = vunpack.c.l.b16 %v713
        %v802 = vunpack.c.l.b16 %v714
        %v803 = vunpack.c.h.b16 %v714
        %v804 = vunpack.c.l.b16 %v715
        %v805 = vunpack.c.l.b16 %v716
        %v806 = vunpack.c.h.b16 %v716
        %v807 = vunpack.c.l.b16 %v717
        %v808 = vunpack.c.l.b16 %v718
        %v809 = vunpack.c.h.b16 %v718
        %v810 = vunpack.c.l.b16 %v719
        %v811 = vunpack.c.l.b16 %v720
        %v812 = vunpack.c.h.b16 %v720
        %v813 = vunpack.c.l.b16 %v721
        %v814 = vunpack.c.l.b16 %v722
        %v815 = vunpack.c.h.b16 %v722
        %v816 = vunpack.c.l.b16 %v723
        %v817 = vunpack.c.l.b16 %v724
        %v818 = vunpack.c.h.b16 %v724
        %v819 = vunpack.c.l.b16 %v725
        %v820 = vunpack.c.l.b16 %v726
        %v821 = vunpack.c.h.b16 %v726
        %v822 = vunpack.c.l.b16 %v727
        %v823 = vunpack.c.l.b16 %v728
        %v824 = vunpack.c.h.b16 %v728
        %v825 = vunpack.c.l.b16 %v729
        %v826 = vunpack.c.l.b16 %v730
        %v827 = vunpack.c.h.b16 %v730
        %v828 = vunpack.c.l.b16 %v731
        %v829 = vpack.c.b16 %v784, %v781
        %v830 = vpack.c.b16 %v785, %v782
        %v831 = vpack.c.b16 %v786, %v783
        %v832 = vpack.c.b16 %v790, %v787
        %v833 = vpack.c.b16 %v791, %v788
        %v834 = vpack.c.b16 %v792, %v789
        %v835 = vpack.c.b16 %v796, %v793
        %v836 = vpack.c.b16 %v797, %v794
        %v837 = vpack.c.b16 %v798, %v795
        %v838 = vpack.c.b16 %v802, %v799
        %v839 = vpack.c.b16 %v803, %v800
        %v840 = vpack.c.b16 %v804, %v801
        %v841 = vpack.c.b16 %v808, %v805
        %v842 = vpack.c.b16 %v809, %v806
        %v843 = vpack.c.b16 %v810, %v807
        %v844 = vpack.c.b16 %v814, %v811
        %v845 = vpack.c.b16 %v815, %v812
        %v846 = vpack.c.b16 %v816, %v813
        %v847 = vpack.c.b16 %v820, %v817
        %v848 = vpack.c.b16 %v821, %v818
        %v849 = vpack.c.b16 %v822, %v819
        %v850 = vpack.c.b16 %v826, %v823
        %v851 = vpack.c.b16 %v827, %v824
        %v852 = vpack.c.b16 %v828, %v825
        %877 = vmatprep.subr.bf16.mxu0 %v830
        %878 = vmatpush1.bf16.msra.mxu0 %v829
        %879 = vmatprep.subr.bf16.mxu0 %v833
        %880 = vmatpush1.bf16.msra.mxu0 %v832
        %881 = vmatprep.subr.bf16.mxu0 %v836
        %882 = vmatpush1.bf16.msra.mxu0 %v835
        %883 = vmatprep.subr.bf16.mxu0 %v839
        %884 = vmatpush1.bf16.msra.mxu0 %v838
        %885 = vmatprep.subr.bf16.mxu0 %v842
        %886 = vmatpush1.bf16.msra.mxu0 %v841
        %887 = vmatprep.subr.bf16.mxu0 %v845
        %888 = vmatpush1.bf16.msra.mxu0 %v844
        %889 = vmatprep.subr.bf16.mxu0 %v848
        %890 = vmatpush1.bf16.msra.mxu0 %v847
        %891 = vmatprep.subr.bf16.mxu0 %v851
        %892 = vmatpush1.bf16.msra.mxu0 %v850
        %893 = vmatprep.subr.bf16.mxu0 0
        %894 = vmatpush1.bf16.msra.mxu0 0
        %895 = vmatprep.subr.bf16.mxu0 0
        %896 = vmatpush1.bf16.msra.mxu0 0
        %897 = vmatprep.subr.bf16.mxu0 0
        %898 = vmatpush1.bf16.msra.mxu0 0
        %899 = vmatprep.subr.bf16.mxu0 0
        %900 = vmatpush1.bf16.msra.mxu0 0
        %901 = vmatprep.subr.bf16.mxu0 0
        %902 = vmatpush1.bf16.msra.mxu0 0
        %903 = vmatprep.subr.bf16.mxu0 0
        %904 = vmatpush1.bf16.msra.mxu0 0
        %905 = vmatprep.subr.bf16.mxu0 0
        %906 = vmatpush1.bf16.msra.mxu0 0
        %907 = vmatprep.subr.bf16.mxu0 0
        %908 = vmatpush1.bf16.msra.mxu0 0
        %909 = vmatprep.mubr.bf16.mxu0 0
        %910 = vmatmul.mubr.bf16.gmra.mrb[0].mxu0 %v699
        %v911 = vpop.f32.mrb[0].mxu0
        %v912 = vadd.f32 %v737, %v911
        %v913 = vpop.f32.mrb[0].mxu0
        %v914 = vadd.f32 %v741, %v913
        %v915 = vpop.f32.mrb[0].mxu0
        %v916 = vadd.f32 %v737, %v915
        %v917 = vpop.f32.mrb[0].mxu0
        %v918 = vadd.f32 %v741, %v917
        %919 = vdwg.mxu0
        %920 = vmatprep.subr.bf16.mxu0 0
        %921 = vmatpush1.bf16.msra.mxu0 %v831
        %922 = vmatprep.subr.bf16.mxu0 0
        %923 = vmatpush1.bf16.msra.mxu0 %v834
        %924 = vmatprep.subr.bf16.mxu0 0
        %925 = vmatpush1.bf16.msra.mxu0 %v837
        %926 = vmatprep.subr.bf16.mxu0 0
        %927 = vmatpush1.bf16.msra.mxu0 %v840
        %928 = vmatprep.subr.bf16.mxu0 0
        %929 = vmatpush1.bf16.msra.mxu0 %v843
        %930 = vmatprep.subr.bf16.mxu0 0
        %931 = vmatpush1.bf16.msra.mxu0 %v846
        %932 = vmatprep.subr.bf16.mxu0 0
        %933 = vmatpush1.bf16.msra.mxu0 %v849
        %934 = vmatprep.subr.bf16.mxu0 0
        %935 = vmatpush1.bf16.msra.mxu0 %v852
        %936 = vmatprep.subr.bf16.mxu0 0
        %937 = vmatpush1.bf16.msra.mxu0 0
        %938 = vmatprep.subr.bf16.mxu0 0
        %939 = vmatpush1.bf16.msra.mxu0 0
        %940 = vmatprep.subr.bf16.mxu0 0
        %941 = vmatpush1.bf16.msra.mxu0 0
        %942 = vmatprep.subr.bf16.mxu0 0
        %943 = vmatpush1.bf16.msra.mxu0 0
        %944 = vmatprep.subr.bf16.mxu0 0
        %945 = vmatpush1.bf16.msra.mxu0 0
        %946 = vmatprep.subr.bf16.mxu0 0
        %947 = vmatpush1.bf16.msra.mxu0 0
        %948 = vmatprep.subr.bf16.mxu0 0
        %949 = vmatpush1.bf16.msra.mxu0 0
        %950 = vmatprep.subr.bf16.mxu0 0
        %951 = vmatpush1.bf16.msra.mxu0 0
        %952 = vmatprep.mubr.bf16.mxu0 0
        %953 = vmatmul.mubr.bf16.gmra.mrb[0].mxu0 %v699
        %v954 = vpop.f32.mrb[0].mxu0
        %v955 = vadd.f32 %v745, %v954
        %v956 = vpop.f32.mrb[0].mxu0
        %v957 = vpop.f32.mrb[0].mxu0
        %v958 = vadd.f32 %v745, %v957
        %v959 = vpop.f32.mrb[0].mxu0
        %960 = vdwg.mxu0
        %v961 = vld [vmem:[%s1] sm:$0x3]
        %v964 = vunpack.c.l.s4 1966171168
        %v965 = vunpack.c.0.s8 %v964
        %v966 = vlaneseq
        %v967 = vshrl.u32 %v966, 7
        %v968 = vsub.s32 %v965, %v967
        %v969 = vrot.slane %v961, %v968
        %v970 = vcombine.high %v969, %v969
        %v972 = vunpack.c.l.s4 1966171168
        %v973 = vunpack.c.0.s8 %v972
        %v974 = vlaneseq
        %v975 = vshrl.u32 %v974, 7
        %v976 = vsub.s32 %v973, %v975
        %v977 = vrot.slane %v969, %v976
        %v979 = vunpack.c.l.s4 1966171168
        %v980 = vunpack.c.0.s8 %v979
        %v981 = vlaneseq
        %v982 = vshrl.u32 %v981, 7
        %v983 = vsub.s32 %v980, %v982
        %v984 = vrot.slane %v970, %v983
        %v985 = vpack.c.bf16 %v912, %v912
        %v986 = vpack.c.bf16 %v916, %v916
        %v987 = vpack.c.bf16 %v914, %v914
        %v988 = vpack.c.bf16 %v918, %v918
        %v989 = vlaneseq
        %v990 = vshrl.u32 %v989, 7
        %v991 = vsub.s32 0, %v990
        %v992 = vrot.slane %v977, %v991
        %v993 = vlaneseq
        %v994 = vshrl.u32 %v993, 7
        %v995 = vsub.s32 0, %v994
        %v996 = vrot.slane %v984, %v995
        %vm999 = vcmask 261120
        %v1001 = vsel %vm999, %v985, 0
        %v1004 = vsel %vm999, %v987, 0
        %1006 = vmatprep.subr.bf16.mxu0 0
        %1007 = vmatpush1.bf16.xpose.msra.mxu0 %v1004
        %1008 = vmatprep.subr.bf16.mxu0 0
        %1009 = vmatpush1.bf16.xpose.msra.mxu0 0
        %1010 = vmatprep.subr.bf16.mxu0 0
        %1011 = vmatpush1.bf16.xpose.msra.mxu0 0
        %1012 = vmatprep.subr.bf16.mxu0 0
        %1013 = vmatpush1.bf16.xpose.msra.mxu0 0
        %1014 = vmatprep.subr.bf16.mxu0 0
        %1015 = vmatpush1.bf16.xpose.msra.mxu0 0
        %1016 = vmatprep.subr.bf16.mxu0 0
        %1017 = vmatpush1.bf16.xpose.msra.mxu0 0
        %1018 = vmatprep.subr.bf16.mxu0 0
        %1019 = vmatpush1.bf16.xpose.msra.mxu0 0
        %1020 = vmatprep.subr.bf16.mxu0 0
        %1021 = vmatpush1.bf16.xpose.msra.mxu0 0
        %1022 = vmatprep.subr.bf16.mxu0 0
        %1023 = vmatpush1.bf16.xpose.msra.mxu0 0
        %1024 = vmatprep.subr.bf16.mxu0 0
        %1025 = vmatpush1.bf16.xpose.msra.mxu0 0
        %1026 = vmatprep.subr.bf16.mxu0 0
        %1027 = vmatpush1.bf16.xpose.msra.mxu0 0
        %1028 = vmatprep.subr.bf16.mxu0 0
        %1029 = vmatpush1.bf16.xpose.msra.mxu0 0
        %1030 = vmatprep.subr.bf16.mxu0 0
        %1031 = vmatpush1.bf16.xpose.msra.mxu0 0
        %1032 = vmatprep.subr.bf16.mxu0 0
        %1033 = vmatpush1.bf16.xpose.msra.mxu0 0
        %1034 = vmatprep.subr.bf16.mxu0 0
        %1035 = vmatpush1.bf16.xpose.msra.mxu0 0
        %1036 = vmatprep.subr.bf16.mxu0 0
        %1037 = vmatpush1.bf16.xpose.msra.mxu0 0
        %1038 = vmatprep.mubr.bf16.mxu0 0
        %1039 = vmatmul.mubr.bf16.gmra.mrb[0].mxu0 %v1001
        %v1040 = vpop.f32.mrb[0].mxu0
        %v1041 = vadd.f32 %v992, %v1040
        %v1042 = vpop.f32.mrb[0].mxu0
        %v1043 = vpop.f32.mrb[0].mxu0
        %v1044 = vpop.f32.mrb[0].mxu0
        %1045 = vdwg.mxu0
        %v1047 = vsel %vm999, %v986, 0
        %v1050 = vsel %vm999, %v988, 0
        %1052 = vmatprep.subr.bf16.mxu0 0
        %1053 = vmatpush1.bf16.xpose.msra.mxu0 %v1050
        %1054 = vmatprep.subr.bf16.mxu0 0
        %1055 = vmatpush1.bf16.xpose.msra.mxu0 0
        %1056 = vmatprep.subr.bf16.mxu0 0
        %1057 = vmatpush1.bf16.xpose.msra.mxu0 0
        %1058 = vmatprep.subr.bf16.mxu0 0
        %1059 = vmatpush1.bf16.xpose.msra.mxu0 0
        %1060 = vmatprep.subr.bf16.mxu0 0
        %1061 = vmatpush1.bf16.xpose.msra.mxu0 0
        %1062 = vmatprep.subr.bf16.mxu0 0
        %1063 = vmatpush1.bf16.xpose.msra.mxu0 0
        %1064 = vmatprep.subr.bf16.mxu0 0
        %1065 = vmatpush1.bf16.xpose.msra.mxu0 0
        %1066 = vmatprep.subr.bf16.mxu0 0
        %1067 = vmatpush1.bf16.xpose.msra.mxu0 0
        %1068 = vmatprep.subr.bf16.mxu0 0
        %1069 = vmatpush1.bf16.xpose.msra.mxu0 0
        %1070 = vmatprep.subr.bf16.mxu0 0
        %1071 = vmatpush1.bf16.xpose.msra.mxu0 0
        %1072 = vmatprep.subr.bf16.mxu0 0
        %1073 = vmatpush1.bf16.xpose.msra.mxu0 0
        %1074 = vmatprep.subr.bf16.mxu0 0
        %1075 = vmatpush1.bf16.xpose.msra.mxu0 0
        %1076 = vmatprep.subr.bf16.mxu0 0
        %1077 = vmatpush1.bf16.xpose.msra.mxu0 0
        %1078 = vmatprep.subr.bf16.mxu0 0
        %1079 = vmatpush1.bf16.xpose.msra.mxu0 0
        %1080 = vmatprep.subr.bf16.mxu0 0
        %1081 = vmatpush1.bf16.xpose.msra.mxu0 0
        %1082 = vmatprep.subr.bf16.mxu0 0
        %1083 = vmatpush1.bf16.xpose.msra.mxu0 0
        %1084 = vmatprep.mubr.bf16.mxu0 0
        %1085 = vmatmul.mubr.bf16.gmra.mrb[0].mxu0 %v1047
        %v1086 = vpop.f32.mrb[0].mxu0
        %v1087 = vadd.f32 %v996, %v1086
        %v1088 = vpop.f32.mrb[0].mxu0
        %v1089 = vpop.f32.mrb[0].mxu0
        %v1090 = vpop.f32.mrb[0].mxu0
        %1091 = vdwg.mxu0
        %vm1092 = vcmask 64512
        %v1093 = vsel %vm1092, %v1041, -inf
        %1094 = vmax.xlane.f32.xlu0 %v1093
        %v1095 = vpop.xlane.xlu0 %1094
        %v1096 = vsel %vm1092, %v1087, -inf
        %1097 = vmax.xlane.f32.xlu0 %v1096
        %v1098 = vpop.xlane.xlu0 %1097
        %v1099 = vsub.f32 %v1041, %v1095
        %v1100 = vsub.f32 %v1087, %v1098
        %v1101 = vmul.f32 %v1099, 1.442695
        %v1102 = vpow.pop %v1101
        %v1103 = vmul.f32 %v1100, 1.442695
        %v1104 = vpow.pop %v1103
        %v1105 = vsel %vm1092, %v1102, 0.0
        %1106 = vadd.xlane.f32.xlu0 %v1105
        %v1107 = vpop.xlane.xlu0 %1106
        %v1108 = vsel %vm1092, %v1104, 0.0
        %1109 = vadd.xlane.f32.xlu0 %v1108
        %v1110 = vpop.xlane.xlu0 %1109
        %v1111 = vrcp.pop %v1107
        %v1112 = vmul.f32 %v1102, %v1111
        %v1113 = vrcp.pop %v1110
        %v1114 = vmul.f32 %v1104, %v1113
        %v1115 = vpack.c.bf16 %v1112, %v1112
        %v1116 = vpack.c.bf16 %v1114, %v1114
        %v1117 = vpack.c.bf16 %v955, %v955
        %v1118 = vpack.c.bf16 %v958, %v958
        %v1120 = vsel %vm1092, %v1115, 0
        %vm1122 = vcmask 1043456
        %v1124 = vsel %vm1122, %v1117, 0
        %1126 = vmatprep.subr.bf16.mxu0 0
        %1127 = vmatpush1.bf16.msra.mxu0 %v1124
        %1128 = vmatprep.subr.bf16.mxu0 0
        %1129 = vmatpush1.bf16.msra.mxu0 0
        %1130 = vmatprep.subr.bf16.mxu0 0
        %1131 = vmatpush1.bf16.msra.mxu0 0
        %1132 = vmatprep.subr.bf16.mxu0 0
        %1133 = vmatpush1.bf16.msra.mxu0 0
        %1134 = vmatprep.subr.bf16.mxu0 0
        %1135 = vmatpush1.bf16.msra.mxu0 0
        %1136 = vmatprep.subr.bf16.mxu0 0
        %1137 = vmatpush1.bf16.msra.mxu0 0
        %1138 = vmatprep.subr.bf16.mxu0 0
        %1139 = vmatpush1.bf16.msra.mxu0 0
        %1140 = vmatprep.subr.bf16.mxu0 0
        %1141 = vmatpush1.bf16.msra.mxu0 0
        %1142 = vmatprep.subr.bf16.mxu0 0
        %1143 = vmatpush1.bf16.msra.mxu0 0
        %1144 = vmatprep.subr.bf16.mxu0 0
        %1145 = vmatpush1.bf16.msra.mxu0 0
        %1146 = vmatprep.subr.bf16.mxu0 0
        %1147 = vmatpush1.bf16.msra.mxu0 0
        %1148 = vmatprep.subr.bf16.mxu0 0
        %1149 = vmatpush1.bf16.msra.mxu0 0
        %1150 = vmatprep.subr.bf16.mxu0 0
        %1151 = vmatpush1.bf16.msra.mxu0 0
        %1152 = vmatprep.subr.bf16.mxu0 0
        %1153 = vmatpush1.bf16.msra.mxu0 0
        %1154 = vmatprep.subr.bf16.mxu0 0
        %1155 = vmatpush1.bf16.msra.mxu0 0
        %1156 = vmatprep.subr.bf16.mxu0 0
        %1157 = vmatpush1.bf16.msra.mxu0 0
        %1158 = vmatprep.mubr.bf16.mxu0 0
        %1159 = vmatmul.mubr.bf16.gmra.mrb[0].mxu0 %v1120
        %v1160 = vpop.f32.mrb[0].mxu0
        %v1161 = vadd.f32 0.0, %v1160
        %v1162 = vpop.f32.mrb[0].mxu0
        %v1163 = vpop.f32.mrb[0].mxu0
        %v1164 = vpop.f32.mrb[0].mxu0
        %1165 = vdwg.mxu0
        %v1167 = vsel %vm1092, %v1116, 0
        %v1170 = vsel %vm1122, %v1118, 0
        %1172 = vmatprep.subr.bf16.mxu0 0
        %1173 = vmatpush1.bf16.msra.mxu0 %v1170
        %1174 = vmatprep.subr.bf16.mxu0 0
        %1175 = vmatpush1.bf16.msra.mxu0 0
        %1176 = vmatprep.subr.bf16.mxu0 0
        %1177 = vmatpush1.bf16.msra.mxu0 0
        %1178 = vmatprep.subr.bf16.mxu0 0
        %1179 = vmatpush1.bf16.msra.mxu0 0
        %1180 = vmatprep.subr.bf16.mxu0 0
        %1181 = vmatpush1.bf16.msra.mxu0 0
        %1182 = vmatprep.subr.bf16.mxu0 0
        %1183 = vmatpush1.bf16.msra.mxu0 0
        %1184 = vmatprep.subr.bf16.mxu0 0
        %1185 = vmatpush1.bf16.msra.mxu0 0
        %1186 = vmatprep.subr.bf16.mxu0 0
        %1187 = vmatpush1.bf16.msra.mxu0 0
        %1188 = vmatprep.subr.bf16.mxu0 0
        %1189 = vmatpush1.bf16.msra.mxu0 0
        %1190 = vmatprep.subr.bf16.mxu0 0
        %1191 = vmatpush1.bf16.msra.mxu0 0
        %1192 = vmatprep.subr.bf16.mxu0 0
        %1193 = vmatpush1.bf16.msra.mxu0 0
        %1194 = vmatprep.subr.bf16.mxu0 0
        %1195 = vmatpush1.bf16.msra.mxu0 0
        %1196 = vmatprep.subr.bf16.mxu0 0
        %1197 = vmatpush1.bf16.msra.mxu0 0
        %1198 = vmatprep.subr.bf16.mxu0 0
        %1199 = vmatpush1.bf16.msra.mxu0 0
        %1200 = vmatprep.subr.bf16.mxu0 0
        %1201 = vmatpush1.bf16.msra.mxu0 0
        %1202 = vmatprep.subr.bf16.mxu0 0
        %1203 = vmatpush1.bf16.msra.mxu0 0
        %1204 = vmatprep.mubr.bf16.mxu0 0
        %1205 = vmatmul.mubr.bf16.gmra.mrb[0].mxu0 %v1167
        %v1206 = vpop.f32.mrb[0].mxu0
        %v1207 = vadd.f32 0.0, %v1206
        %v1208 = vpop.f32.mrb[0].mxu0
        %v1209 = vpop.f32.mrb[0].mxu0
        %v1210 = vpop.f32.mrb[0].mxu0
        %1211 = vdwg.mxu0
        %1212 = vst.msk [vmem:[#allocation3] sm:$0xff] %vm999, %v1161
        %1213 = vst.msk [vmem:[#allocation3 + $0x8] sm:$0xff] %vm999, %v1207
        %1215 = vrot.lane.b32.xlu0 %v985, 96
        %v1216 = vpop.permute.xlu0 %1215
        %1218 = vrot.lane.b32.xlu0 %v987, 96
        %v1219 = vpop.permute.xlu0 %1218
        %v1221 = vsel %vm999, %v1216, 0
        %v1224 = vsel %vm999, %v1219, 0
        %1226 = vmatprep.subr.bf16.mxu0 0
        %1227 = vmatpush1.bf16.xpose.msra.mxu0 %v1224
        %1228 = vmatprep.subr.bf16.mxu0 0
        %1229 = vmatpush1.bf16.xpose.msra.mxu0 0
        %1230 = vmatprep.subr.bf16.mxu0 0
        %1231 = vmatpush1.bf16.xpose.msra.mxu0 0
        %1232 = vmatprep.subr.bf16.mxu0 0
        %1233 = vmatpush1.bf16.xpose.msra.mxu0 0
        %1234 = vmatprep.subr.bf16.mxu0 0
        %1235 = vmatpush1.bf16.xpose.msra.mxu0 0
        %1236 = vmatprep.subr.bf16.mxu0 0
        %1237 = vmatpush1.bf16.xpose.msra.mxu0 0
        %1238 = vmatprep.subr.bf16.mxu0 0
        %1239 = vmatpush1.bf16.xpose.msra.mxu0 0
        %1240 = vmatprep.subr.bf16.mxu0 0
        %1241 = vmatpush1.bf16.xpose.msra.mxu0 0
        %1242 = vmatprep.subr.bf16.mxu0 0
        %1243 = vmatpush1.bf16.xpose.msra.mxu0 0
        %1244 = vmatprep.subr.bf16.mxu0 0
        %1245 = vmatpush1.bf16.xpose.msra.mxu0 0
        %1246 = vmatprep.subr.bf16.mxu0 0
        %1247 = vmatpush1.bf16.xpose.msra.mxu0 0
        %1248 = vmatprep.subr.bf16.mxu0 0
        %1249 = vmatpush1.bf16.xpose.msra.mxu0 0
        %1250 = vmatprep.subr.bf16.mxu0 0
        %1251 = vmatpush1.bf16.xpose.msra.mxu0 0
        %1252 = vmatprep.subr.bf16.mxu0 0
        %1253 = vmatpush1.bf16.xpose.msra.mxu0 0
        %1254 = vmatprep.subr.bf16.mxu0 0
        %1255 = vmatpush1.bf16.xpose.msra.mxu0 0
        %1256 = vmatprep.subr.bf16.mxu0 0
        %1257 = vmatpush1.bf16.xpose.msra.mxu0 0
        %1258 = vmatprep.mubr.bf16.mxu0 0
        %1259 = vmatmul.mubr.bf16.gmra.mrb[0].mxu0 %v1221
        %v1260 = vpop.f32.mrb[0].mxu0
        %v1261 = vadd.f32 %v992, %v1260
        %v1262 = vpop.f32.mrb[0].mxu0
        %v1263 = vpop.f32.mrb[0].mxu0
        %v1264 = vpop.f32.mrb[0].mxu0
        %1265 = vdwg.mxu0
        %1267 = vrot.lane.b32.xlu0 %v986, 96
        %v1268 = vpop.permute.xlu0 %1267
        %1270 = vrot.lane.b32.xlu0 %v988, 96
        %v1271 = vpop.permute.xlu0 %1270
        %v1273 = vsel %vm999, %v1268, 0
        %v1276 = vsel %vm999, %v1271, 0
        %1278 = vmatprep.subr.bf16.mxu0 0
        %1279 = vmatpush1.bf16.xpose.msra.mxu0 %v1276
        %1280 = vmatprep.subr.bf16.mxu0 0
        %1281 = vmatpush1.bf16.xpose.msra.mxu0 0
        %1282 = vmatprep.subr.bf16.mxu0 0
        %1283 = vmatpush1.bf16.xpose.msra.mxu0 0
        %1284 = vmatprep.subr.bf16.mxu0 0
        %1285 = vmatpush1.bf16.xpose.msra.mxu0 0
        %1286 = vmatprep.subr.bf16.mxu0 0
        %1287 = vmatpush1.bf16.xpose.msra.mxu0 0
        %1288 = vmatprep.subr.bf16.mxu0 0
        %1289 = vmatpush1.bf16.xpose.msra.mxu0 0
        %1290 = vmatprep.subr.bf16.mxu0 0
        %1291 = vmatpush1.bf16.xpose.msra.mxu0 0
        %1292 = vmatprep.subr.bf16.mxu0 0
        %1293 = vmatpush1.bf16.xpose.msra.mxu0 0
        %1294 = vmatprep.subr.bf16.mxu0 0
        %1295 = vmatpush1.bf16.xpose.msra.mxu0 0
        %1296 = vmatprep.subr.bf16.mxu0 0
        %1297 = vmatpush1.bf16.xpose.msra.mxu0 0
        %1298 = vmatprep.subr.bf16.mxu0 0
        %1299 = vmatpush1.bf16.xpose.msra.mxu0 0
        %1300 = vmatprep.subr.bf16.mxu0 0
        %1301 = vmatpush1.bf16.xpose.msra.mxu0 0
        %1302 = vmatprep.subr.bf16.mxu0 0
        %1303 = vmatpush1.bf16.xpose.msra.mxu0 0
        %1304 = vmatprep.subr.bf16.mxu0 0
        %1305 = vmatpush1.bf16.xpose.msra.mxu0 0
        %1306 = vmatprep.subr.bf16.mxu0 0
        %1307 = vmatpush1.bf16.xpose.msra.mxu0 0
        %1308 = vmatprep.subr.bf16.mxu0 0
        %1309 = vmatpush1.bf16.xpose.msra.mxu0 0
        %1310 = vmatprep.mubr.bf16.mxu0 0
        %1311 = vmatmul.mubr.bf16.gmra.mrb[0].mxu0 %v1273
        %v1312 = vpop.f32.mrb[0].mxu0
        %v1313 = vadd.f32 %v996, %v1312
        %v1314 = vpop.f32.mrb[0].mxu0
        %v1315 = vpop.f32.mrb[0].mxu0
        %v1316 = vpop.f32.mrb[0].mxu0
        %1317 = vdwg.mxu0
        %v1318 = vsel %vm1092, %v1261, -inf
        %1319 = vmax.xlane.f32.xlu0 %v1318
        %v1320 = vpop.xlane.xlu0 %1319
        %v1321 = vsel %vm1092, %v1313, -inf
        %1322 = vmax.xlane.f32.xlu0 %v1321
        %v1323 = vpop.xlane.xlu0 %1322
        %v1324 = vsub.f32 %v1261, %v1320
        %v1325 = vsub.f32 %v1313, %v1323
        %v1326 = vmul.f32 %v1324, 1.442695
        %v1327 = vpow.pop %v1326
        %v1328 = vmul.f32 %v1325, 1.442695
        %v1329 = vpow.pop %v1328
        %v1330 = vsel %vm1092, %v1327, 0.0
        %1331 = vadd.xlane.f32.xlu0 %v1330
        %v1332 = vpop.xlane.xlu0 %1331
        %v1333 = vsel %vm1092, %v1329, 0.0
        %1334 = vadd.xlane.f32.xlu0 %v1333
        %v1335 = vpop.xlane.xlu0 %1334
        %v1336 = vrcp.pop %v1332
        %v1337 = vmul.f32 %v1327, %v1336
        %v1338 = vrcp.pop %v1335
        %v1339 = vmul.f32 %v1329, %v1338
        %v1340 = vpack.c.bf16 %v1337, %v1337
        %v1341 = vpack.c.bf16 %v1339, %v1339
        %1343 = vrot.lane.b32.xlu0 %v1117, 96
        %v1344 = vpop.permute.xlu0 %1343
        %v1346 = vsel %vm1092, %v1340, 0
        %v1349 = vsel %vm1122, %v1344, 0
        %1351 = vmatprep.subr.bf16.mxu0 0
        %1352 = vmatpush1.bf16.msra.mxu0 %v1349
        %1353 = vmatprep.subr.bf16.mxu0 0
        %1354 = vmatpush1.bf16.msra.mxu0 0
        %1355 = vmatprep.subr.bf16.mxu0 0
        %1356 = vmatpush1.bf16.msra.mxu0 0
        %1357 = vmatprep.subr.bf16.mxu0 0
        %1358 = vmatpush1.bf16.msra.mxu0 0
        %1359 = vmatprep.subr.bf16.mxu0 0
        %1360 = vmatpush1.bf16.msra.mxu0 0
        %1361 = vmatprep.subr.bf16.mxu0 0
        %1362 = vmatpush1.bf16.msra.mxu0 0
        %1363 = vmatprep.subr.bf16.mxu0 0
        %1364 = vmatpush1.bf16.msra.mxu0 0
        %1365 = vmatprep.subr.bf16.mxu0 0
        %1366 = vmatpush1.bf16.msra.mxu0 0
        %1367 = vmatprep.subr.bf16.mxu0 0
        %1368 = vmatpush1.bf16.msra.mxu0 0
        %1369 = vmatprep.subr.bf16.mxu0 0
        %1370 = vmatpush1.bf16.msra.mxu0 0
        %1371 = vmatprep.subr.bf16.mxu0 0
        %1372 = vmatpush1.bf16.msra.mxu0 0
        %1373 = vmatprep.subr.bf16.mxu0 0
        %1374 = vmatpush1.bf16.msra.mxu0 0
        %1375 = vmatprep.subr.bf16.mxu0 0
        %1376 = vmatpush1.bf16.msra.mxu0 0
        %1377 = vmatprep.subr.bf16.mxu0 0
        %1378 = vmatpush1.bf16.msra.mxu0 0
        %1379 = vmatprep.subr.bf16.mxu0 0
        %1380 = vmatpush1.bf16.msra.mxu0 0
        %1381 = vmatprep.subr.bf16.mxu0 0
        %1382 = vmatpush1.bf16.msra.mxu0 0
        %1383 = vmatprep.mubr.bf16.mxu0 0
        %1384 = vmatmul.mubr.bf16.gmra.mrb[0].mxu0 %v1346
        %v1385 = vpop.f32.mrb[0].mxu0
        %v1386 = vadd.f32 0.0, %v1385
        %v1387 = vpop.f32.mrb[0].mxu0
        %v1388 = vpop.f32.mrb[0].mxu0
        %v1389 = vpop.f32.mrb[0].mxu0
        %1390 = vdwg.mxu0
        %1392 = vrot.lane.b32.xlu0 %v1118, 96
        %v1393 = vpop.permute.xlu0 %1392
        %v1395 = vsel %vm1092, %v1341, 0
        %v1398 = vsel %vm1122, %v1393, 0
        %1400 = vmatprep.subr.bf16.mxu0 0
        %1401 = vmatpush1.bf16.msra.mxu0 %v1398
        %1402 = vmatprep.subr.bf16.mxu0 0
        %1403 = vmatpush1.bf16.msra.mxu0 0
        %1404 = vmatprep.subr.bf16.mxu0 0
        %1405 = vmatpush1.bf16.msra.mxu0 0
        %1406 = vmatprep.subr.bf16.mxu0 0
        %1407 = vmatpush1.bf16.msra.mxu0 0
        %1408 = vmatprep.subr.bf16.mxu0 0
        %1409 = vmatpush1.bf16.msra.mxu0 0
        %1410 = vmatprep.subr.bf16.mxu0 0
        %1411 = vmatpush1.bf16.msra.mxu0 0
        %1412 = vmatprep.subr.bf16.mxu0 0
        %1413 = vmatpush1.bf16.msra.mxu0 0
        %1414 = vmatprep.subr.bf16.mxu0 0
        %1415 = vmatpush1.bf16.msra.mxu0 0
        %1416 = vmatprep.subr.bf16.mxu0 0
        %1417 = vmatpush1.bf16.msra.mxu0 0
        %1418 = vmatprep.subr.bf16.mxu0 0
        %1419 = vmatpush1.bf16.msra.mxu0 0
        %1420 = vmatprep.subr.bf16.mxu0 0
        %1421 = vmatpush1.bf16.msra.mxu0 0
        %1422 = vmatprep.subr.bf16.mxu0 0
        %1423 = vmatpush1.bf16.msra.mxu0 0
        %1424 = vmatprep.subr.bf16.mxu0 0
        %1425 = vmatpush1.bf16.msra.mxu0 0
        %1426 = vmatprep.subr.bf16.mxu0 0
        %1427 = vmatpush1.bf16.msra.mxu0 0
        %1428 = vmatprep.subr.bf16.mxu0 0
        %1429 = vmatpush1.bf16.msra.mxu0 0
        %1430 = vmatprep.subr.bf16.mxu0 0
        %1431 = vmatpush1.bf16.msra.mxu0 0
        %1432 = vmatprep.mubr.bf16.mxu0 0
        %1433 = vmatmul.mubr.bf16.gmra.mrb[0].mxu0 %v1395
        %v1434 = vpop.f32.mrb[0].mxu0
        %v1435 = vadd.f32 0.0, %v1434
        %v1436 = vpop.f32.mrb[0].mxu0
        %v1437 = vpop.f32.mrb[0].mxu0
        %v1438 = vpop.f32.mrb[0].mxu0
        %1439 = vdwg.mxu0
        %1442 = vrot.lane.b32.xlu0 %v1386, 32
        %v1443 = vpop.permute.xlu0 %1442
        %1444 = vrot.lane.b32.xlu0 %v1435, 32
        %v1445 = vpop.permute.xlu0 %1444
        %vm1448 = vcmask 523520
        %1449 = vst.msk [vmem:[#allocation3] sm:$0xff] %vm1448, %v1443
        %1450 = vst.msk [vmem:[#allocation3 + $0x8] sm:$0xff] %vm1448, %v1445
        %1451 = vrot.lane.b32.xlu0 %v985, 64
        %v1452 = vpop.permute.xlu0 %1451
        %1453 = vrot.lane.b32.xlu0 %v987, 64
        %v1454 = vpop.permute.xlu0 %1453
        %v1456 = vsel %vm999, %v1452, 0
        %v1459 = vsel %vm999, %v1454, 0
        %1461 = vmatprep.subr.bf16.mxu0 0
        %1462 = vmatpush1.bf16.xpose.msra.mxu0 %v1459
        %1463 = vmatprep.subr.bf16.mxu0 0
        %1464 = vmatpush1.bf16.xpose.msra.mxu0 0
        %1465 = vmatprep.subr.bf16.mxu0 0
        %1466 = vmatpush1.bf16.xpose.msra.mxu0 0
        %1467 = vmatprep.subr.bf16.mxu0 0
        %1468 = vmatpush1.bf16.xpose.msra.mxu0 0
        %1469 = vmatprep.subr.bf16.mxu0 0
        %1470 = vmatpush1.bf16.xpose.msra.mxu0 0
        %1471 = vmatprep.subr.bf16.mxu0 0
        %1472 = vmatpush1.bf16.xpose.msra.mxu0 0
        %1473 = vmatprep.subr.bf16.mxu0 0
        %1474 = vmatpush1.bf16.xpose.msra.mxu0 0
        %1475 = vmatprep.subr.bf16.mxu0 0
        %1476 = vmatpush1.bf16.xpose.msra.mxu0 0
        %1477 = vmatprep.subr.bf16.mxu0 0
        %1478 = vmatpush1.bf16.xpose.msra.mxu0 0
        %1479 = vmatprep.subr.bf16.mxu0 0
        %1480 = vmatpush1.bf16.xpose.msra.mxu0 0
        %1481 = vmatprep.subr.bf16.mxu0 0
        %1482 = vmatpush1.bf16.xpose.msra.mxu0 0
        %1483 = vmatprep.subr.bf16.mxu0 0
        %1484 = vmatpush1.bf16.xpose.msra.mxu0 0
        %1485 = vmatprep.subr.bf16.mxu0 0
        %1486 = vmatpush1.bf16.xpose.msra.mxu0 0
        %1487 = vmatprep.subr.bf16.mxu0 0
        %1488 = vmatpush1.bf16.xpose.msra.mxu0 0
        %1489 = vmatprep.subr.bf16.mxu0 0
        %1490 = vmatpush1.bf16.xpose.msra.mxu0 0
        %1491 = vmatprep.subr.bf16.mxu0 0
        %1492 = vmatpush1.bf16.xpose.msra.mxu0 0
        %1493 = vmatprep.mubr.bf16.mxu0 0
        %1494 = vmatmul.mubr.bf16.gmra.mrb[0].mxu0 %v1456
        %v1495 = vpop.f32.mrb[0].mxu0
        %v1496 = vadd.f32 %v992, %v1495
        %v1497 = vpop.f32.mrb[0].mxu0
        %v1498 = vpop.f32.mrb[0].mxu0
        %v1499 = vpop.f32.mrb[0].mxu0
        %1500 = vdwg.mxu0
        %1501 = vrot.lane.b32.xlu0 %v986, 64
        %v1502 = vpop.permute.xlu0 %1501
        %1503 = vrot.lane.b32.xlu0 %v988, 64
        %v1504 = vpop.permute.xlu0 %1503
        %v1506 = vsel %vm999, %v1502, 0
        %v1509 = vsel %vm999, %v1504, 0
        %1511 = vmatprep.subr.bf16.mxu0 0
        %1512 = vmatpush1.bf16.xpose.msra.mxu0 %v1509
        %1513 = vmatprep.subr.bf16.mxu0 0
        %1514 = vmatpush1.bf16.xpose.msra.mxu0 0
        %1515 = vmatprep.subr.bf16.mxu0 0
        %1516 = vmatpush1.bf16.xpose.msra.mxu0 0
        %1517 = vmatprep.subr.bf16.mxu0 0
        %1518 = vmatpush1.bf16.xpose.msra.mxu0 0
        %1519 = vmatprep.subr.bf16.mxu0 0
        %1520 = vmatpush1.bf16.xpose.msra.mxu0 0
        %1521 = vmatprep.subr.bf16.mxu0 0
        %1522 = vmatpush1.bf16.xpose.msra.mxu0 0
        %1523 = vmatprep.subr.bf16.mxu0 0
        %1524 = vmatpush1.bf16.xpose.msra.mxu0 0
        %1525 = vmatprep.subr.bf16.mxu0 0
        %1526 = vmatpush1.bf16.xpose.msra.mxu0 0
        %1527 = vmatprep.subr.bf16.mxu0 0
        %1528 = vmatpush1.bf16.xpose.msra.mxu0 0
        %1529 = vmatprep.subr.bf16.mxu0 0
        %1530 = vmatpush1.bf16.xpose.msra.mxu0 0
        %1531 = vmatprep.subr.bf16.mxu0 0
        %1532 = vmatpush1.bf16.xpose.msra.mxu0 0
        %1533 = vmatprep.subr.bf16.mxu0 0
        %1534 = vmatpush1.bf16.xpose.msra.mxu0 0
        %1535 = vmatprep.subr.bf16.mxu0 0
        %1536 = vmatpush1.bf16.xpose.msra.mxu0 0
        %1537 = vmatprep.subr.bf16.mxu0 0
        %1538 = vmatpush1.bf16.xpose.msra.mxu0 0
        %1539 = vmatprep.subr.bf16.mxu0 0
        %1540 = vmatpush1.bf16.xpose.msra.mxu0 0
        %1541 = vmatprep.subr.bf16.mxu0 0
        %1542 = vmatpush1.bf16.xpose.msra.mxu0 0
        %1543 = vmatprep.mubr.bf16.mxu0 0
        %1544 = vmatmul.mubr.bf16.gmra.mrb[0].mxu0 %v1506
        %v1545 = vpop.f32.mrb[0].mxu0
        %v1546 = vadd.f32 %v996, %v1545
        %v1547 = vpop.f32.mrb[0].mxu0
        %v1548 = vpop.f32.mrb[0].mxu0
        %v1549 = vpop.f32.mrb[0].mxu0
        %1550 = vdwg.mxu0
        %v1551 = vsel %vm1092, %v1496, -inf
        %1552 = vmax.xlane.f32.xlu0 %v1551
        %v1553 = vpop.xlane.xlu0 %1552
        %v1554 = vsel %vm1092, %v1546, -inf
        %1555 = vmax.xlane.f32.xlu0 %v1554
        %v1556 = vpop.xlane.xlu0 %1555
        %v1557 = vsub.f32 %v1496, %v1553
        %v1558 = vsub.f32 %v1546, %v1556
        %v1559 = vmul.f32 %v1557, 1.442695
        %v1560 = vpow.pop %v1559
        %v1561 = vmul.f32 %v1558, 1.442695
        %v1562 = vpow.pop %v1561
        %v1563 = vsel %vm1092, %v1560, 0.0
        %1564 = vadd.xlane.f32.xlu0 %v1563
        %v1565 = vpop.xlane.xlu0 %1564
        %v1566 = vsel %vm1092, %v1562, 0.0
        %1567 = vadd.xlane.f32.xlu0 %v1566
        %v1568 = vpop.xlane.xlu0 %1567
        %v1569 = vrcp.pop %v1565
        %v1570 = vmul.f32 %v1560, %v1569
        %v1571 = vrcp.pop %v1568
        %v1572 = vmul.f32 %v1562, %v1571
        %v1573 = vpack.c.bf16 %v1570, %v1570
        %v1574 = vpack.c.bf16 %v1572, %v1572
        %1575 = vrot.lane.b32.xlu0 %v1117, 64
        %v1576 = vpop.permute.xlu0 %1575
        %v1578 = vsel %vm1092, %v1573, 0
        %v1581 = vsel %vm1122, %v1576, 0
        %1583 = vmatprep.subr.bf16.mxu0 0
        %1584 = vmatpush1.bf16.msra.mxu0 %v1581
        %1585 = vmatprep.subr.bf16.mxu0 0
        %1586 = vmatpush1.bf16.msra.mxu0 0
        %1587 = vmatprep.subr.bf16.mxu0 0
        %1588 = vmatpush1.bf16.msra.mxu0 0
        %1589 = vmatprep.subr.bf16.mxu0 0
        %1590 = vmatpush1.bf16.msra.mxu0 0
        %1591 = vmatprep.subr.bf16.mxu0 0
        %1592 = vmatpush1.bf16.msra.mxu0 0
        %1593 = vmatprep.subr.bf16.mxu0 0
        %1594 = vmatpush1.bf16.msra.mxu0 0
        %1595 = vmatprep.subr.bf16.mxu0 0
        %1596 = vmatpush1.bf16.msra.mxu0 0
        %1597 = vmatprep.subr.bf16.mxu0 0
        %1598 = vmatpush1.bf16.msra.mxu0 0
        %1599 = vmatprep.subr.bf16.mxu0 0
        %1600 = vmatpush1.bf16.msra.mxu0 0
        %1601 = vmatprep.subr.bf16.mxu0 0
        %1602 = vmatpush1.bf16.msra.mxu0 0
        %1603 = vmatprep.subr.bf16.mxu0 0
        %1604 = vmatpush1.bf16.msra.mxu0 0
        %1605 = vmatprep.subr.bf16.mxu0 0
        %1606 = vmatpush1.bf16.msra.mxu0 0
        %1607 = vmatprep.subr.bf16.mxu0 0
        %1608 = vmatpush1.bf16.msra.mxu0 0
        %1609 = vmatprep.subr.bf16.mxu0 0
        %1610 = vmatpush1.bf16.msra.mxu0 0
        %1611 = vmatprep.subr.bf16.mxu0 0
        %1612 = vmatpush1.bf16.msra.mxu0 0
        %1613 = vmatprep.subr.bf16.mxu0 0
        %1614 = vmatpush1.bf16.msra.mxu0 0
        %1615 = vmatprep.mubr.bf16.mxu0 0
        %1616 = vmatmul.mubr.bf16.gmra.mrb[0].mxu0 %v1578
        %v1617 = vpop.f32.mrb[0].mxu0
        %v1618 = vadd.f32 0.0, %v1617
        %v1619 = vpop.f32.mrb[0].mxu0
        %v1620 = vpop.f32.mrb[0].mxu0
        %v1621 = vpop.f32.mrb[0].mxu0
        %1622 = vdwg.mxu0
        %1623 = vrot.lane.b32.xlu0 %v1118, 64
        %v1624 = vpop.permute.xlu0 %1623
        %v1626 = vsel %vm1092, %v1574, 0
        %v1629 = vsel %vm1122, %v1624, 0
        %1631 = vmatprep.subr.bf16.mxu0 0
        %1632 = vmatpush1.bf16.msra.mxu0 %v1629
        %1633 = vmatprep.subr.bf16.mxu0 0
        %1634 = vmatpush1.bf16.msra.mxu0 0
        %1635 = vmatprep.subr.bf16.mxu0 0
        %1636 = vmatpush1.bf16.msra.mxu0 0
        %1637 = vmatprep.subr.bf16.mxu0 0
        %1638 = vmatpush1.bf16.msra.mxu0 0
        %1639 = vmatprep.subr.bf16.mxu0 0
        %1640 = vmatpush1.bf16.msra.mxu0 0
        %1641 = vmatprep.subr.bf16.mxu0 0
        %1642 = vmatpush1.bf16.msra.mxu0 0
        %1643 = vmatprep.subr.bf16.mxu0 0
        %1644 = vmatpush1.bf16.msra.mxu0 0
        %1645 = vmatprep.subr.bf16.mxu0 0
        %1646 = vmatpush1.bf16.msra.mxu0 0
        %1647 = vmatprep.subr.bf16.mxu0 0
        %1648 = vmatpush1.bf16.msra.mxu0 0
        %1649 = vmatprep.subr.bf16.mxu0 0
        %1650 = vmatpush1.bf16.msra.mxu0 0
        %1651 = vmatprep.subr.bf16.mxu0 0
        %1652 = vmatpush1.bf16.msra.mxu0 0
        %1653 = vmatprep.subr.bf16.mxu0 0
        %1654 = vmatpush1.bf16.msra.mxu0 0
        %1655 = vmatprep.subr.bf16.mxu0 0
        %1656 = vmatpush1.bf16.msra.mxu0 0
        %1657 = vmatprep.subr.bf16.mxu0 0
        %1658 = vmatpush1.bf16.msra.mxu0 0
        %1659 = vmatprep.subr.bf16.mxu0 0
        %1660 = vmatpush1.bf16.msra.mxu0 0
        %1661 = vmatprep.subr.bf16.mxu0 0
        %1662 = vmatpush1.bf16.msra.mxu0 0
        %1663 = vmatprep.mubr.bf16.mxu0 0
        %1664 = vmatmul.mubr.bf16.gmra.mrb[0].mxu0 %v1626
        %v1665 = vpop.f32.mrb[0].mxu0
        %v1666 = vadd.f32 0.0, %v1665
        %v1667 = vpop.f32.mrb[0].mxu0
        %v1668 = vpop.f32.mrb[0].mxu0
        %v1669 = vpop.f32.mrb[0].mxu0
        %1670 = vdwg.mxu0
        %1673 = vrot.lane.b32.xlu0 %v1618, 64
        %v1674 = vpop.permute.xlu0 %1673
        %1675 = vrot.lane.b32.xlu0 %v1666, 64
        %v1676 = vpop.permute.xlu0 %1675
        %vm1679 = vcmask 785920
        %1680 = vst.msk [vmem:[#allocation3] sm:$0xff] %vm1679, %v1674
        %1681 = vst.msk [vmem:[#allocation3 + $0x8] sm:$0xff] %vm1679, %v1676
        %1682 = vrot.lane.b32.xlu0 %v985, 32
        %v1683 = vpop.permute.xlu0 %1682
        %1684 = vrot.lane.b32.xlu0 %v987, 32
        %v1685 = vpop.permute.xlu0 %1684
        %v1687 = vsel %vm999, %v1683, 0
        %v1690 = vsel %vm999, %v1685, 0
        %1692 = vmatprep.subr.bf16.mxu0 0
        %1693 = vmatpush1.bf16.xpose.msra.mxu0 %v1690
        %1694 = vmatprep.subr.bf16.mxu0 0
        %1695 = vmatpush1.bf16.xpose.msra.mxu0 0
        %1696 = vmatprep.subr.bf16.mxu0 0
        %1697 = vmatpush1.bf16.xpose.msra.mxu0 0
        %1698 = vmatprep.subr.bf16.mxu0 0
        %1699 = vmatpush1.bf16.xpose.msra.mxu0 0
        %1700 = vmatprep.subr.bf16.mxu0 0
        %1701 = vmatpush1.bf16.xpose.msra.mxu0 0
        %1702 = vmatprep.subr.bf16.mxu0 0
        %1703 = vmatpush1.bf16.xpose.msra.mxu0 0
        %1704 = vmatprep.subr.bf16.mxu0 0
        %1705 = vmatpush1.bf16.xpose.msra.mxu0 0
        %1706 = vmatprep.subr.bf16.mxu0 0
        %1707 = vmatpush1.bf16.xpose.msra.mxu0 0
        %1708 = vmatprep.subr.bf16.mxu0 0
        %1709 = vmatpush1.bf16.xpose.msra.mxu0 0
        %1710 = vmatprep.subr.bf16.mxu0 0
        %1711 = vmatpush1.bf16.xpose.msra.mxu0 0
        %1712 = vmatprep.subr.bf16.mxu0 0
        %1713 = vmatpush1.bf16.xpose.msra.mxu0 0
        %1714 = vmatprep.subr.bf16.mxu0 0
        %1715 = vmatpush1.bf16.xpose.msra.mxu0 0
        %1716 = vmatprep.subr.bf16.mxu0 0
        %1717 = vmatpush1.bf16.xpose.msra.mxu0 0
        %1718 = vmatprep.subr.bf16.mxu0 0
        %1719 = vmatpush1.bf16.xpose.msra.mxu0 0
        %1720 = vmatprep.subr.bf16.mxu0 0
        %1721 = vmatpush1.bf16.xpose.msra.mxu0 0
        %1722 = vmatprep.subr.bf16.mxu0 0
        %1723 = vmatpush1.bf16.xpose.msra.mxu0 0
        %1724 = vmatprep.mubr.bf16.mxu0 0
        %1725 = vmatmul.mubr.bf16.gmra.mrb[0].mxu0 %v1687
        %v1726 = vpop.f32.mrb[0].mxu0
        %v1727 = vadd.f32 %v992, %v1726
        %v1728 = vpop.f32.mrb[0].mxu0
        %v1729 = vpop.f32.mrb[0].mxu0
        %v1730 = vpop.f32.mrb[0].mxu0
        %1731 = vdwg.mxu0
        %1732 = vrot.lane.b32.xlu0 %v986, 32
        %v1733 = vpop.permute.xlu0 %1732
        %1734 = vrot.lane.b32.xlu0 %v988, 32
        %v1735 = vpop.permute.xlu0 %1734
        %v1737 = vsel %vm999, %v1733, 0
        %v1740 = vsel %vm999, %v1735, 0
        %1742 = vmatprep.subr.bf16.mxu0 0
        %1743 = vmatpush1.bf16.xpose.msra.mxu0 %v1740
        %1744 = vmatprep.subr.bf16.mxu0 0
        %1745 = vmatpush1.bf16.xpose.msra.mxu0 0
        %1746 = vmatprep.subr.bf16.mxu0 0
        %1747 = vmatpush1.bf16.xpose.msra.mxu0 0
        %1748 = vmatprep.subr.bf16.mxu0 0
        %1749 = vmatpush1.bf16.xpose.msra.mxu0 0
        %1750 = vmatprep.subr.bf16.mxu0 0
        %1751 = vmatpush1.bf16.xpose.msra.mxu0 0
        %1752 = vmatprep.subr.bf16.mxu0 0
        %1753 = vmatpush1.bf16.xpose.msra.mxu0 0
        %1754 = vmatprep.subr.bf16.mxu0 0
        %1755 = vmatpush1.bf16.xpose.msra.mxu0 0
        %1756 = vmatprep.subr.bf16.mxu0 0
        %1757 = vmatpush1.bf16.xpose.msra.mxu0 0
        %1758 = vmatprep.subr.bf16.mxu0 0
        %1759 = vmatpush1.bf16.xpose.msra.mxu0 0
        %1760 = vmatprep.subr.bf16.mxu0 0
        %1761 = vmatpush1.bf16.xpose.msra.mxu0 0
        %1762 = vmatprep.subr.bf16.mxu0 0
        %1763 = vmatpush1.bf16.xpose.msra.mxu0 0
        %1764 = vmatprep.subr.bf16.mxu0 0
        %1765 = vmatpush1.bf16.xpose.msra.mxu0 0
        %1766 = vmatprep.subr.bf16.mxu0 0
        %1767 = vmatpush1.bf16.xpose.msra.mxu0 0
        %1768 = vmatprep.subr.bf16.mxu0 0
        %1769 = vmatpush1.bf16.xpose.msra.mxu0 0
        %1770 = vmatprep.subr.bf16.mxu0 0
        %1771 = vmatpush1.bf16.xpose.msra.mxu0 0
        %1772 = vmatprep.subr.bf16.mxu0 0
        %1773 = vmatpush1.bf16.xpose.msra.mxu0 0
        %1774 = vmatprep.mubr.bf16.mxu0 0
        %1775 = vmatmul.mubr.bf16.gmra.mrb[0].mxu0 %v1737
        %v1776 = vpop.f32.mrb[0].mxu0
        %v1777 = vadd.f32 %v996, %v1776
        %v1778 = vpop.f32.mrb[0].mxu0
        %v1779 = vpop.f32.mrb[0].mxu0
        %v1780 = vpop.f32.mrb[0].mxu0
        %1781 = vdwg.mxu0
        %v1782 = vsel %vm1092, %v1727, -inf
        %1783 = vmax.xlane.f32.xlu0 %v1782
        %v1784 = vpop.xlane.xlu0 %1783
        %v1785 = vsel %vm1092, %v1777, -inf
        %1786 = vmax.xlane.f32.xlu0 %v1785
        %v1787 = vpop.xlane.xlu0 %1786
        %v1788 = vsub.f32 %v1727, %v1784
        %v1789 = vsub.f32 %v1777, %v1787
        %v1790 = vmul.f32 %v1788, 1.442695
        %v1791 = vpow.pop %v1790
        %v1792 = vmul.f32 %v1789, 1.442695
        %v1793 = vpow.pop %v1792
        %v1794 = vsel %vm1092, %v1791, 0.0
        %1795 = vadd.xlane.f32.xlu0 %v1794
        %v1796 = vpop.xlane.xlu0 %1795
        %v1797 = vsel %vm1092, %v1793, 0.0
        %1798 = vadd.xlane.f32.xlu0 %v1797
        %v1799 = vpop.xlane.xlu0 %1798
        %v1800 = vrcp.pop %v1796
        %v1801 = vmul.f32 %v1791, %v1800
        %v1802 = vrcp.pop %v1799
        %v1803 = vmul.f32 %v1793, %v1802
        %v1804 = vpack.c.bf16 %v1801, %v1801
        %v1805 = vpack.c.bf16 %v1803, %v1803
        %1806 = vrot.lane.b32.xlu0 %v1117, 32
        %v1807 = vpop.permute.xlu0 %1806
        %v1809 = vsel %vm1092, %v1804, 0
        %v1812 = vsel %vm1122, %v1807, 0
        %1814 = vmatprep.subr.bf16.mxu0 0
        %1815 = vmatpush1.bf16.msra.mxu0 %v1812
        %1816 = vmatprep.subr.bf16.mxu0 0
        %1817 = vmatpush1.bf16.msra.mxu0 0
        %1818 = vmatprep.subr.bf16.mxu0 0
        %1819 = vmatpush1.bf16.msra.mxu0 0
        %1820 = vmatprep.subr.bf16.mxu0 0
        %1821 = vmatpush1.bf16.msra.mxu0 0
        %1822 = vmatprep.subr.bf16.mxu0 0
        %1823 = vmatpush1.bf16.msra.mxu0 0
        %1824 = vmatprep.subr.bf16.mxu0 0
        %1825 = vmatpush1.bf16.msra.mxu0 0
        %1826 = vmatprep.subr.bf16.mxu0 0
        %1827 = vmatpush1.bf16.msra.mxu0 0
        %1828 = vmatprep.subr.bf16.mxu0 0
        %1829 = vmatpush1.bf16.msra.mxu0 0
        %1830 = vmatprep.subr.bf16.mxu0 0
        %1831 = vmatpush1.bf16.msra.mxu0 0
        %1832 = vmatprep.subr.bf16.mxu0 0
        %1833 = vmatpush1.bf16.msra.mxu0 0
        %1834 = vmatprep.subr.bf16.mxu0 0
        %1835 = vmatpush1.bf16.msra.mxu0 0
        %1836 = vmatprep.subr.bf16.mxu0 0
        %1837 = vmatpush1.bf16.msra.mxu0 0
        %1838 = vmatprep.subr.bf16.mxu0 0
        %1839 = vmatpush1.bf16.msra.mxu0 0
        %1840 = vmatprep.subr.bf16.mxu0 0
        %1841 = vmatpush1.bf16.msra.mxu0 0
        %1842 = vmatprep.subr.bf16.mxu0 0
        %1843 = vmatpush1.bf16.msra.mxu0 0
        %1844 = vmatprep.subr.bf16.mxu0 0
        %1845 = vmatpush1.bf16.msra.mxu0 0
        %1846 = vmatprep.mubr.bf16.mxu0 0
        %1847 = vmatmul.mubr.bf16.gmra.mrb[0].mxu0 %v1809
        %v1848 = vpop.f32.mrb[0].mxu0
        %v1849 = vadd.f32 0.0, %v1848
        %v1850 = vpop.f32.mrb[0].mxu0
        %v1851 = vpop.f32.mrb[0].mxu0
        %v1852 = vpop.f32.mrb[0].mxu0
        %1853 = vdwg.mxu0
        %1854 = vrot.lane.b32.xlu0 %v1118, 32
        %v1855 = vpop.permute.xlu0 %1854
        %v1857 = vsel %vm1092, %v1805, 0
        %v1860 = vsel %vm1122, %v1855, 0
        %1862 = vmatprep.subr.bf16.mxu0 0
        %1863 = vmatpush1.bf16.msra.mxu0 %v1860
        %1864 = vmatprep.subr.bf16.mxu0 0
        %1865 = vmatpush1.bf16.msra.mxu0 0
        %1866 = vmatprep.subr.bf16.mxu0 0
        %1867 = vmatpush1.bf16.msra.mxu0 0
        %1868 = vmatprep.subr.bf16.mxu0 0
        %1869 = vmatpush1.bf16.msra.mxu0 0
        %1870 = vmatprep.subr.bf16.mxu0 0
        %1871 = vmatpush1.bf16.msra.mxu0 0
        %1872 = vmatprep.subr.bf16.mxu0 0
        %1873 = vmatpush1.bf16.msra.mxu0 0
        %1874 = vmatprep.subr.bf16.mxu0 0
        %1875 = vmatpush1.bf16.msra.mxu0 0
        %1876 = vmatprep.subr.bf16.mxu0 0
        %1877 = vmatpush1.bf16.msra.mxu0 0
        %1878 = vmatprep.subr.bf16.mxu0 0
        %1879 = vmatpush1.bf16.msra.mxu0 0
        %1880 = vmatprep.subr.bf16.mxu0 0
        %1881 = vmatpush1.bf16.msra.mxu0 0
        %1882 = vmatprep.subr.bf16.mxu0 0
        %1883 = vmatpush1.bf16.msra.mxu0 0
        %1884 = vmatprep.subr.bf16.mxu0 0
        %1885 = vmatpush1.bf16.msra.mxu0 0
        %1886 = vmatprep.subr.bf16.mxu0 0
        %1887 = vmatpush1.bf16.msra.mxu0 0
        %1888 = vmatprep.subr.bf16.mxu0 0
        %1889 = vmatpush1.bf16.msra.mxu0 0
        %1890 = vmatprep.subr.bf16.mxu0 0
        %1891 = vmatpush1.bf16.msra.mxu0 0
        %1892 = vmatprep.subr.bf16.mxu0 0
        %1893 = vmatpush1.bf16.msra.mxu0 0
        %1894 = vmatprep.mubr.bf16.mxu0 0
        %1895 = vmatmul.mubr.bf16.gmra.mrb[0].mxu0 %v1857
        %v1896 = vpop.f32.mrb[0].mxu0
        %v1897 = vadd.f32 0.0, %v1896
        %v1898 = vpop.f32.mrb[0].mxu0
        %v1899 = vpop.f32.mrb[0].mxu0
        %v1900 = vpop.f32.mrb[0].mxu0
        %1901 = vdwg.mxu0
        %1904 = vrot.lane.b32.xlu0 %v1849, 96
        %v1905 = vpop.permute.xlu0 %1904
        %1906 = vrot.lane.b32.xlu0 %v1897, 96
        %v1907 = vpop.permute.xlu0 %1906
        %vm1910 = vcmask 1048320
        %1911 = vst.msk [vmem:[#allocation3] sm:$0xff] %vm1910, %v1905
        %1912 = vst.msk [vmem:[#allocation3 + $0x8] sm:$0xff] %vm1910, %v1907
        %v1913 = vld [vmem:[#allocation3] sm:$0xff]
        %v1914 = vld [vmem:[#allocation3 + $0x8] sm:$0xff]
        %v1915 = vpack.c.bf16 %v1914, %v1913
        %v1916 = vld [vmem:[%s558] sm:$0xf]
        %v1917 = vld [vmem:[%s558 + $0x4] sm:$0xf]
        %v1918 = vld [vmem:[%s558 + $0x8] sm:$0xf]
        %v1919 = vld [vmem:[%s558 + $0xc] sm:$0xf]
        %v1920 = vld [vmem:[%s558 + $0x10] sm:$0xf]
        %v1921 = vld [vmem:[%s558 + $0x14] sm:$0xf]
        %v1922 = vld [vmem:[%s558 + $0x18] sm:$0xf]
        %v1923 = vld [vmem:[%s558 + $0x1c] sm:$0xf]
        %v1924 = vld [vmem:[%s558 + $0x20] sm:$0xf]
        %v1925 = vld [vmem:[%s558 + $0x24] sm:$0xf]
        %v1926 = vld [vmem:[%s558 + $0x28] sm:$0xf]
        %v1927 = vld [vmem:[%s558 + $0x2c] sm:$0xf]
        %v1928 = vld [vmem:[%s558 + $0x30] sm:$0xf]
        %v1929 = vld [vmem:[%s558 + $0x34] sm:$0xf]
        %v1930 = vld [vmem:[%s558 + $0x38] sm:$0xf]
        %v1931 = vld [vmem:[%s558 + $0x3c] sm:$0xf]
        %v1932 = vld [vmem:[%s668] sm:$0x1]
        %v1934 = vlaneseq
        %v1935 = vshrl.u32 %v1934, 7
        %v1936 = vsub.s32 0, %v1935
        %v1937 = vrot.slane %v1932, %v1936
        %v1955 = vunpack.c.l.b16 %v1916
        %v1956 = vunpack.c.l.b16 %v1917
        %v1957 = vunpack.c.l.b16 %v1918
        %v1958 = vunpack.c.l.b16 %v1919
        %v1959 = vunpack.c.l.b16 %v1920
        %v1960 = vunpack.c.l.b16 %v1921
        %v1961 = vunpack.c.l.b16 %v1922
        %v1962 = vunpack.c.l.b16 %v1923
        %v1963 = vunpack.c.l.b16 %v1924
        %v1964 = vunpack.c.l.b16 %v1925
        %v1965 = vunpack.c.l.b16 %v1926
        %v1966 = vunpack.c.l.b16 %v1927
        %v1967 = vunpack.c.l.b16 %v1928
        %v1968 = vunpack.c.l.b16 %v1929
        %v1969 = vunpack.c.l.b16 %v1930
        %v1970 = vunpack.c.l.b16 %v1931
        %v1971 = vpack.c.b16 %v1956, %v1955
        %v1972 = vpack.c.b16 %v1958, %v1957
        %v1973 = vpack.c.b16 %v1960, %v1959
        %v1974 = vpack.c.b16 %v1962, %v1961
        %v1975 = vpack.c.b16 %v1964, %v1963
        %v1976 = vpack.c.b16 %v1966, %v1965
        %v1977 = vpack.c.b16 %v1968, %v1967
        %v1978 = vpack.c.b16 %v1970, %v1969
        %1987 = vmatprep.subr.bf16.mxu0 0
        %1988 = vmatpush1.bf16.msra.mxu0 %v1971
        %1989 = vmatprep.subr.bf16.mxu0 0
        %1990 = vmatpush1.bf16.msra.mxu0 %v1972
        %1991 = vmatprep.subr.bf16.mxu0 0
        %1992 = vmatpush1.bf16.msra.mxu0 %v1973
        %1993 = vmatprep.subr.bf16.mxu0 0
        %1994 = vmatpush1.bf16.msra.mxu0 %v1974
        %1995 = vmatprep.subr.bf16.mxu0 0
        %1996 = vmatpush1.bf16.msra.mxu0 %v1975
        %1997 = vmatprep.subr.bf16.mxu0 0
        %1998 = vmatpush1.bf16.msra.mxu0 %v1976
        %1999 = vmatprep.subr.bf16.mxu0 0
        %2000 = vmatpush1.bf16.msra.mxu0 %v1977
        %2001 = vmatprep.subr.bf16.mxu0 0
        %2002 = vmatpush1.bf16.msra.mxu0 %v1978
        %2003 = vmatprep.subr.bf16.mxu0 0
        %2004 = vmatpush1.bf16.msra.mxu0 0
        %2005 = vmatprep.subr.bf16.mxu0 0
        %2006 = vmatpush1.bf16.msra.mxu0 0
        %2007 = vmatprep.subr.bf16.mxu0 0
        %2008 = vmatpush1.bf16.msra.mxu0 0
        %2009 = vmatprep.subr.bf16.mxu0 0
        %2010 = vmatpush1.bf16.msra.mxu0 0
        %2011 = vmatprep.subr.bf16.mxu0 0
        %2012 = vmatpush1.bf16.msra.mxu0 0
        %2013 = vmatprep.subr.bf16.mxu0 0
        %2014 = vmatpush1.bf16.msra.mxu0 0
        %2015 = vmatprep.subr.bf16.mxu0 0
        %2016 = vmatpush1.bf16.msra.mxu0 0
        %2017 = vmatprep.subr.bf16.mxu0 0
        %2018 = vmatpush1.bf16.msra.mxu0 0
        %2019 = vmatprep.mubr.bf16.mxu0 0
        %2020 = vmatmul.mubr.bf16.gmra.mrb[0].mxu0 %v1915
        %v2021 = vpop.f32.mrb[0].mxu0
        %v2022 = vadd.f32 %v1937, %v2021
        %v2023 = vpop.f32.mrb[0].mxu0
        %v2024 = vpop.f32.mrb[0].mxu0
        %v2025 = vadd.f32 %v1937, %v2024
        %v2026 = vpop.f32.mrb[0].mxu0
        %2027 = vdwg.mxu0
        %v2028 = vadd.f32 %v697, %v2022
        %v2029 = vadd.f32 %v698, %v2025
        %v2030 = vld [vmem:[%s671] sm:$0x1]
        %v2031 = vld [vmem:[%s674] sm:$0x1]
        %2032 = vadd.xlane.f32.xlu0 %v2028
        %v2033 = vpop.xlane.xlu0 %2032
        %2034 = vadd.xlane.f32.xlu0 %v2029
        %v2035 = vpop.xlane.xlu0 %2034
        %v2036 = vrcp.pop 128.0
        %v2037 = vmul.f32 %v2033, %v2036
        %v2038 = vmul.f32 %v2035, %v2036
        %v2039 = vsub.f32 %v2028, %v2037
        %v2040 = vsub.f32 %v2029, %v2038
        %v2041 = vmul.f32 %v2039, %v2039
        %v2042 = vmul.f32 %v2040, %v2040
        %2043 = vadd.xlane.f32.xlu0 %v2041
        %v2044 = vpop.xlane.xlu0 %2043
        %2045 = vadd.xlane.f32.xlu0 %v2042
        %v2046 = vpop.xlane.xlu0 %2045
        %v2047 = vmul.f32 %v2044, %v2036
        %v2048 = vmul.f32 %v2046, %v2036
        %v2049 = vadd.f32 %v2047, 1e-05
        %v2050 = vadd.f32 %v2048, 1e-05
        %v2051 = vrsqrt.pop %v2049
        %v2052 = vrsqrt.pop %v2050
        %v2053 = vmul.f32 %v2039, %v2051
        %v2054 = vmul.f32 %v2040, %v2052
        %v2056 = vlaneseq
        %v2057 = vshrl.u32 %v2056, 7
        %v2058 = vsub.s32 0, %v2057
        %v2059 = vrot.slane %v2030, %v2058
        %v2061 = vmul.f32 %v2053, %v2059
        %v2062 = vmul.f32 %v2054, %v2059
        %v2064 = vlaneseq
        %v2065 = vshrl.u32 %v2064, 7
        %v2066 = vsub.s32 0, %v2065
        %v2067 = vrot.slane %v2031, %v2066
        %v2069 = vadd.f32 %v2061, %v2067
        %v2070 = vadd.f32 %v2062, %v2067
        %v2071 = vpack.c.bf16 %v2070, %v2069
        %v2072 = vld [vmem:[%s567] sm:$0xff]
        %v2073 = vld [vmem:[%s567 + $0x8] sm:$0xff]
        %v2074 = vld [vmem:[%s567 + $0x10] sm:$0xff]
        %v2075 = vld [vmem:[%s567 + $0x18] sm:$0xff]
        %v2076 = vld [vmem:[%s567 + $0x20] sm:$0xff]
        %v2077 = vld [vmem:[%s567 + $0x28] sm:$0xff]
        %v2078 = vld [vmem:[%s567 + $0x30] sm:$0xff]
        %v2079 = vld [vmem:[%s567 + $0x38] sm:$0xff]
        %v2080 = vld [vmem:[%s567 + $0x40] sm:$0xff]
        %v2081 = vld [vmem:[%s567 + $0x48] sm:$0xff]
        %v2082 = vld [vmem:[%s567 + $0x50] sm:$0xff]
        %v2083 = vld [vmem:[%s567 + $0x58] sm:$0xff]
        %v2084 = vld [vmem:[%s567 + $0x60] sm:$0xff]
        %v2085 = vld [vmem:[%s567 + $0x68] sm:$0xff]
        %v2086 = vld [vmem:[%s567 + $0x70] sm:$0xff]
        %v2087 = vld [vmem:[%s567 + $0x78] sm:$0xff]
        %v2088 = vld [vmem:[%s678] sm:$0x3]
        %v2090 = vlaneseq
        %v2091 = vshrl.u32 %v2090, 7
        %v2092 = vsub.s32 0, %v2091
        %v2093 = vrot.slane %v2088, %v2092
        %v2094 = vlaneseq
        %v2095 = vshrl.u32 %v2094, 7
        %v2096 = vsub.s32 1, %v2095
        %v2097 = vrot.slane %v2088, %v2096
        %v2116 = vunpack.c.l.b16 %v2072
        %v2117 = vunpack.c.h.b16 %v2072
        %v2118 = vunpack.c.l.b16 %v2073
        %v2119 = vunpack.c.h.b16 %v2073
        %v2120 = vunpack.c.l.b16 %v2074
        %v2121 = vunpack.c.h.b16 %v2074
        %v2122 = vunpack.c.l.b16 %v2075
        %v2123 = vunpack.c.h.b16 %v2075
        %v2124 = vunpack.c.l.b16 %v2076
        %v2125 = vunpack.c.h.b16 %v2076
        %v2126 = vunpack.c.l.b16 %v2077
        %v2127 = vunpack.c.h.b16 %v2077
        %v2128 = vunpack.c.l.b16 %v2078
        %v2129 = vunpack.c.h.b16 %v2078
        %v2130 = vunpack.c.l.b16 %v2079
        %v2131 = vunpack.c.h.b16 %v2079
        %v2132 = vunpack.c.l.b16 %v2080
        %v2133 = vunpack.c.h.b16 %v2080
        %v2134 = vunpack.c.l.b16 %v2081
        %v2135 = vunpack.c.h.b16 %v2081
        %v2136 = vunpack.c.l.b16 %v2082
        %v2137 = vunpack.c.h.b16 %v2082
        %v2138 = vunpack.c.l.b16 %v2083
        %v2139 = vunpack.c.h.b16 %v2083
        %v2140 = vunpack.c.l.b16 %v2084
        %v2141 = vunpack.c.h.b16 %v2084
        %v2142 = vunpack.c.l.b16 %v2085
        %v2143 = vunpack.c.h.b16 %v2085
        %v2144 = vunpack.c.l.b16 %v2086
        %v2145 = vunpack.c.h.b16 %v2086
        %v2146 = vunpack.c.l.b16 %v2087
        %v2147 = vunpack.c.h.b16 %v2087
        %v2148 = vpack.c.b16 %v2118, %v2116
        %v2149 = vpack.c.b16 %v2119, %v2117
        %v2150 = vpack.c.b16 %v2122, %v2120
        %v2151 = vpack.c.b16 %v2123, %v2121
        %v2152 = vpack.c.b16 %v2126, %v2124
        %v2153 = vpack.c.b16 %v2127, %v2125
        %v2154 = vpack.c.b16 %v2130, %v2128
        %v2155 = vpack.c.b16 %v2131, %v2129
        %v2156 = vpack.c.b16 %v2134, %v2132
        %v2157 = vpack.c.b16 %v2135, %v2133
        %v2158 = vpack.c.b16 %v2138, %v2136
        %v2159 = vpack.c.b16 %v2139, %v2137
        %v2160 = vpack.c.b16 %v2142, %v2140
        %v2161 = vpack.c.b16 %v2143, %v2141
        %v2162 = vpack.c.b16 %v2146, %v2144
        %v2163 = vpack.c.b16 %v2147, %v2145
        %2180 = vmatprep.subr.bf16.mxu0 %v2149
        %2181 = vmatpush1.bf16.msra.mxu0 %v2148
        %2182 = vmatprep.subr.bf16.mxu0 %v2151
        %2183 = vmatpush1.bf16.msra.mxu0 %v2150
        %2184 = vmatprep.subr.bf16.mxu0 %v2153
        %2185 = vmatpush1.bf16.msra.mxu0 %v2152
        %2186 = vmatprep.subr.bf16.mxu0 %v2155
        %2187 = vmatpush1.bf16.msra.mxu0 %v2154
        %2188 = vmatprep.subr.bf16.mxu0 %v2157
        %2189 = vmatpush1.bf16.msra.mxu0 %v2156
        %2190 = vmatprep.subr.bf16.mxu0 %v2159
        %2191 = vmatpush1.bf16.msra.mxu0 %v2158
        %2192 = vmatprep.subr.bf16.mxu0 %v2161
        %2193 = vmatpush1.bf16.msra.mxu0 %v2160
        %2194 = vmatprep.subr.bf16.mxu0 %v2163
        %2195 = vmatpush1.bf16.msra.mxu0 %v2162
        %2196 = vmatprep.subr.bf16.mxu0 0
        %2197 = vmatpush1.bf16.msra.mxu0 0
        %2198 = vmatprep.subr.bf16.mxu0 0
        %2199 = vmatpush1.bf16.msra.mxu0 0
        %2200 = vmatprep.subr.bf16.mxu0 0
        %2201 = vmatpush1.bf16.msra.mxu0 0
        %2202 = vmatprep.subr.bf16.mxu0 0
        %2203 = vmatpush1.bf16.msra.mxu0 0
        %2204 = vmatprep.subr.bf16.mxu0 0
        %2205 = vmatpush1.bf16.msra.mxu0 0
        %2206 = vmatprep.subr.bf16.mxu0 0
        %2207 = vmatpush1.bf16.msra.mxu0 0
        %2208 = vmatprep.subr.bf16.mxu0 0
        %2209 = vmatpush1.bf16.msra.mxu0 0
        %2210 = vmatprep.subr.bf16.mxu0 0
        %2211 = vmatpush1.bf16.msra.mxu0 0
        %2212 = vmatprep.mubr.bf16.mxu0 0
        %2213 = vmatmul.mubr.bf16.gmra.mrb[0].mxu0 %v2071
        %v2214 = vpop.f32.mrb[0].mxu0
        %v2215 = vadd.f32 %v2093, %v2214
        %v2216 = vpop.f32.mrb[0].mxu0
        %v2217 = vadd.f32 %v2097, %v2216
        %v2218 = vpop.f32.mrb[0].mxu0
        %v2219 = vadd.f32 %v2093, %v2218
        %v2220 = vpop.f32.mrb[0].mxu0
        %v2221 = vadd.f32 %v2097, %v2220
        %2222 = vdwg.mxu0
        %v2223 = vmax.f32 %v2215, 0.0
        %v2224 = vmax.f32 %v2217, 0.0
        %v2225 = vmax.f32 %v2219, 0.0
        %v2226 = vmax.f32 %v2221, 0.0
        %v2227 = vpack.c.bf16 %v2225, %v2223
        %v2228 = vpack.c.bf16 %v2226, %v2224
        %v2229 = vld [vmem:[%s576] sm:$0xf]
        %v2230 = vld [vmem:[%s576 + $0x4] sm:$0xf]
        %v2231 = vld [vmem:[%s576 + $0x8] sm:$0xf]
        %v2232 = vld [vmem:[%s576 + $0xc] sm:$0xf]
        %v2233 = vld [vmem:[%s576 + $0x10] sm:$0xf]
        %v2234 = vld [vmem:[%s576 + $0x14] sm:$0xf]
        %v2235 = vld [vmem:[%s576 + $0x18] sm:$0xf]
        %v2236 = vld [vmem:[%s576 + $0x1c] sm:$0xf]
        %v2237 = vld [vmem:[%s576 + $0x20] sm:$0xf]
        %v2238 = vld [vmem:[%s576 + $0x24] sm:$0xf]
        %v2239 = vld [vmem:[%s576 + $0x28] sm:$0xf]
        %v2240 = vld [vmem:[%s576 + $0x2c] sm:$0xf]
        %v2241 = vld [vmem:[%s576 + $0x30] sm:$0xf]
        %v2242 = vld [vmem:[%s576 + $0x34] sm:$0xf]
        %v2243 = vld [vmem:[%s576 + $0x38] sm:$0xf]
        %v2244 = vld [vmem:[%s576 + $0x3c] sm:$0xf]
        %v2245 = vld [vmem:[%s576 + $0x40] sm:$0xf]
        %v2246 = vld [vmem:[%s576 + $0x44] sm:$0xf]
        %v2247 = vld [vmem:[%s576 + $0x48] sm:$0xf]
        %v2248 = vld [vmem:[%s576 + $0x4c] sm:$0xf]
        %v2249 = vld [vmem:[%s576 + $0x50] sm:$0xf]
        %v2250 = vld [vmem:[%s576 + $0x54] sm:$0xf]
        %v2251 = vld [vmem:[%s576 + $0x58] sm:$0xf]
        %v2252 = vld [vmem:[%s576 + $0x5c] sm:$0xf]
        %v2253 = vld [vmem:[%s576 + $0x60] sm:$0xf]
        %v2254 = vld [vmem:[%s576 + $0x64] sm:$0xf]
        %v2255 = vld [vmem:[%s576 + $0x68] sm:$0xf]
        %v2256 = vld [vmem:[%s576 + $0x6c] sm:$0xf]
        %v2257 = vld [vmem:[%s576 + $0x70] sm:$0xf]
        %v2258 = vld [vmem:[%s576 + $0x74] sm:$0xf]
        %v2259 = vld [vmem:[%s576 + $0x78] sm:$0xf]
        %v2260 = vld [vmem:[%s576 + $0x7c] sm:$0xf]
        %v2261 = vld [vmem:[%s681] sm:$0x1]
        %v2263 = vlaneseq
        %v2264 = vshrl.u32 %v2263, 7
        %v2265 = vsub.s32 0, %v2264
        %v2266 = vrot.slane %v2261, %v2265
        %v2300 = vunpack.c.l.b16 %v2229
        %v2301 = vunpack.c.l.b16 %v2230
        %v2302 = vunpack.c.l.b16 %v2231
        %v2303 = vunpack.c.l.b16 %v2232
        %v2304 = vunpack.c.l.b16 %v2233
        %v2305 = vunpack.c.l.b16 %v2234
        %v2306 = vunpack.c.l.b16 %v2235
        %v2307 = vunpack.c.l.b16 %v2236
        %v2308 = vunpack.c.l.b16 %v2237
        %v2309 = vunpack.c.l.b16 %v2238
        %v2310 = vunpack.c.l.b16 %v2239
        %v2311 = vunpack.c.l.b16 %v2240
        %v2312 = vunpack.c.l.b16 %v2241
        %v2313 = vunpack.c.l.b16 %v2242
        %v2314 = vunpack.c.l.b16 %v2243
        %v2315 = vunpack.c.l.b16 %v2244
        %v2316 = vunpack.c.l.b16 %v2245
        %v2317 = vunpack.c.l.b16 %v2246
        %v2318 = vunpack.c.l.b16 %v2247
        %v2319 = vunpack.c.l.b16 %v2248
        %v2320 = vunpack.c.l.b16 %v2249
        %v2321 = vunpack.c.l.b16 %v2250
        %v2322 = vunpack.c.l.b16 %v2251
        %v2323 = vunpack.c.l.b16 %v2252
        %v2324 = vunpack.c.l.b16 %v2253
        %v2325 = vunpack.c.l.b16 %v2254
        %v2326 = vunpack.c.l.b16 %v2255
        %v2327 = vunpack.c.l.b16 %v2256
        %v2328 = vunpack.c.l.b16 %v2257
        %v2329 = vunpack.c.l.b16 %v2258
        %v2330 = vunpack.c.l.b16 %v2259
        %v2331 = vunpack.c.l.b16 %v2260
        %v2332 = vpack.c.b16 %v2301, %v2300
        %v2333 = vpack.c.b16 %v2303, %v2302
        %v2334 = vpack.c.b16 %v2305, %v2304
        %v2335 = vpack.c.b16 %v2307, %v2306
        %v2336 = vpack.c.b16 %v2309, %v2308
        %v2337 = vpack.c.b16 %v2311, %v2310
        %v2338 = vpack.c.b16 %v2313, %v2312
        %v2339 = vpack.c.b16 %v2315, %v2314
        %v2340 = vpack.c.b16 %v2317, %v2316
        %v2341 = vpack.c.b16 %v2319, %v2318
        %v2342 = vpack.c.b16 %v2321, %v2320
        %v2343 = vpack.c.b16 %v2323, %v2322
        %v2344 = vpack.c.b16 %v2325, %v2324
        %v2345 = vpack.c.b16 %v2327, %v2326
        %v2346 = vpack.c.b16 %v2329, %v2328
        %v2347 = vpack.c.b16 %v2331, %v2330
        %2364 = vmatprep.subr.bf16.mxu0 0
        %2365 = vmatpush1.bf16.msra.mxu0 %v2332
        %2366 = vmatprep.subr.bf16.mxu0 0
        %2367 = vmatpush1.bf16.msra.mxu0 %v2333
        %2368 = vmatprep.subr.bf16.mxu0 0
        %2369 = vmatpush1.bf16.msra.mxu0 %v2334
        %2370 = vmatprep.subr.bf16.mxu0 0
        %2371 = vmatpush1.bf16.msra.mxu0 %v2335
        %2372 = vmatprep.subr.bf16.mxu0 0
        %2373 = vmatpush1.bf16.msra.mxu0 %v2336
        %2374 = vmatprep.subr.bf16.mxu0 0
        %2375 = vmatpush1.bf16.msra.mxu0 %v2337
        %2376 = vmatprep.subr.bf16.mxu0 0
        %2377 = vmatpush1.bf16.msra.mxu0 %v2338
        %2378 = vmatprep.subr.bf16.mxu0 0
        %2379 = vmatpush1.bf16.msra.mxu0 %v2339
        %2380 = vmatprep.subr.bf16.mxu0 0
        %2381 = vmatpush1.bf16.msra.mxu0 %v2340
        %2382 = vmatprep.subr.bf16.mxu0 0
        %2383 = vmatpush1.bf16.msra.mxu0 %v2341
        %2384 = vmatprep.subr.bf16.mxu0 0
        %2385 = vmatpush1.bf16.msra.mxu0 %v2342
        %2386 = vmatprep.subr.bf16.mxu0 0
        %2387 = vmatpush1.bf16.msra.mxu0 %v2343
        %2388 = vmatprep.subr.bf16.mxu0 0
        %2389 = vmatpush1.bf16.msra.mxu0 %v2344
        %2390 = vmatprep.subr.bf16.mxu0 0
        %2391 = vmatpush1.bf16.msra.mxu0 %v2345
        %2392 = vmatprep.subr.bf16.mxu0 0
        %2393 = vmatpush1.bf16.msra.mxu0 %v2346
        %2394 = vmatprep.subr.bf16.mxu0 0
        %2395 = vmatpush1.bf16.msra.mxu0 %v2347
        %2396 = vmatprep.mubr.bf16.mxu0 %v2228
        %2397 = vmatmul.mubr.bf16.gmra.mrb[0].mxu0 %v2227
        %v2398 = vpop.f32.mrb[0].mxu0
        %v2399 = vadd.f32 %v2266, %v2398
        %v2400 = vpop.f32.mrb[0].mxu0
        %v2401 = vpop.f32.mrb[0].mxu0
        %v2402 = vadd.f32 %v2266, %v2401
        %v2403 = vpop.f32.mrb[0].mxu0
        %2404 = vdwg.mxu0
        %v2405 = vadd.f32 %v2069, %v2399
        %v2406 = vadd.f32 %v2070, %v2402
        %v2407 = vld [vmem:[%s684] sm:$0x1]
        %v2408 = vld [vmem:[%s687] sm:$0x1]
        %2409 = vadd.xlane.f32.xlu0 %v2405
        %v2410 = vpop.xlane.xlu0 %2409
        %2411 = vadd.xlane.f32.xlu0 %v2406
        %v2412 = vpop.xlane.xlu0 %2411
        %v2413 = vmul.f32 %v2410, %v2036
        %v2414 = vmul.f32 %v2412, %v2036
        %v2415 = vsub.f32 %v2405, %v2413
        %v2416 = vsub.f32 %v2406, %v2414
        %v2417 = vmul.f32 %v2415, %v2415
        %v2418 = vmul.f32 %v2416, %v2416
        %2419 = vadd.xlane.f32.xlu0 %v2417
        %v2420 = vpop.xlane.xlu0 %2419
        %2421 = vadd.xlane.f32.xlu0 %v2418
        %v2422 = vpop.xlane.xlu0 %2421
        %v2423 = vmul.f32 %v2420, %v2036
        %v2424 = vmul.f32 %v2422, %v2036
        %v2425 = vadd.f32 %v2423, 1e-05
        %v2426 = vadd.f32 %v2424, 1e-05
        %v2427 = vrsqrt.pop %v2425
        %v2428 = vrsqrt.pop %v2426
        %v2429 = vmul.f32 %v2415, %v2427
        %v2430 = vmul.f32 %v2416, %v2428
        %v2432 = vlaneseq
        %v2433 = vshrl.u32 %v2432, 7
        %v2434 = vsub.s32 0, %v2433
        %v2435 = vrot.slane %v2407, %v2434
        %v2437 = vmul.f32 %v2429, %v2435
        %v2438 = vmul.f32 %v2430, %v2435
        %v2440 = vlaneseq
        %v2441 = vshrl.u32 %v2440, 7
        %v2442 = vsub.s32 0, %v2441
        %v2443 = vrot.slane %v2408, %v2442
        %v2445 = vadd.f32 %v2437, %v2443
        %v2446 = vadd.f32 %v2438, %v2443
        %2447 = vst [vmem:[#allocation2] sm:$0xff] %v2445
        %2448 = vst [vmem:[#allocation2 + $0x8] sm:$0xff] %v2446
        %2449 = vst [vmem:[%s14] sm:$0xff] %v2445
        %2450 = vst [vmem:[%s14 + $0x8] sm:$0xff] %v2446
        // Predicated region
        $region93: #{transformer_forward.3} parent=75 // pred_check
          %p2451 = pneg %p398
        $region94: #{transformer_forward.3} parent=75 // pred_check_branch
          %2453 = sbr.rel (%p2451) target = $region96
        $region95: #{transformer_forward.3} parent=75 // pred_region
          _
        $region96: #{transformer_forward.3} parent=75 // pred_fallthru
          _
        // Predicated region
        $region97: #{transformer_forward.3} parent=75 // pred_check
          %p2454 = pneg %p398
        $region98: #{transformer_forward.3} parent=75 // pred_check_branch
          %2456 = sbr.rel (%p2454) target = $region100
        $region99: #{transformer_forward.3} parent=75 // pred_region
          _
        $region100: #{transformer_forward.3} parent=75 // pred_fallthru
          _
      $region76: #{transformer_forward.3} parent=5 // pred_fallthru
        _
      %p2457 = scmp.le.s32.totalorder 2, %s26
      // Predicated region
      $region101: #{transformer_forward.3} parent=5 // pred_check
        %p2458 = pneg %p2457
      $region102: #{transformer_forward.3} parent=5 // pred_check_branch
        %2460 = sbr.rel (%p2458) target = $region104
      $region103: #{transformer_forward.3} parent=5 // pred_region
        %s2461 = ssub.s32 %s26, 2
      $region104: #{transformer_forward.3} parent=5 // pred_fallthru
        _
    $region6: #{transformer_forward.3} parent=1 // loop_footer
      %s30 = sadd.s32 1, %s26
    $region7: #{transformer_forward.3} parent=1 // loop_footer_branch
      %25 = sbr.rel target = $region3
    $region8: #{transformer_forward.3} parent=1 // loop_exit
      _
    %2462 = vsyncpa [#allocation5], 1
    %s2463 = scalar_lea.sflag [#allocation5], 1
    %2464 = vsyncpa %s2463, 1
    %2465 = vsyncpa [#allocation7], 1
    %s2466 = scalar_lea.sflag [#allocation7], 1
    %2467 = vsyncpa %s2466, 1

// kernel: transformer_forward.4
$region0: #{transformer_forward.4}
  #allocation0 [shape = 'u32[]', space=smem, size = 0x4, offset = 0x4, fixed_abs, tag = 'smem constant byte address 0x4 - core index']
  #allocation1 [shape = 'u32[144,128]{1,0:T(1,128)}', space=vmem, size = 0x12000, scoped, tag = 'internal scratch']
  #allocation2 [shape = 'f32[2,8,128]{2,1,0:T(8,128)}', space=vmem, size = 0x2000, scoped, tag = 'scratch operand']
  #allocation3 [shape = 'f32[2,8,128]{2,1,0:T(8,128)}', space=vmem, size = 0x2000, scoped, tag = 'scratch operand']
  %s0 = inlined_call_operand.vmem [shape: f32[2,8,128], index: 0, kind: input, shape index: {}]
  %s1 = inlined_call_operand.vmem [shape: f32[2,8,128], index: 1, kind: input, shape index: {}]
  %s2 = inlined_call_operand.vmem [shape: f32[2,8,8], index: 2, kind: input, shape index: {}]
  %s3 = inlined_call_operand.vmem [shape: f32[2,8], index: 3, kind: input, shape index: {}]
  %s4 = inlined_call_operand.vmem [shape: bf16[2,128,384], index: 4, kind: input, shape index: {}]
  %s5 = inlined_call_operand.vmem [shape: f32[2,1,384], index: 5, kind: input, shape index: {}]
  %s6 = inlined_call_operand.hbm [shape: bf16[2,128,128], index: 6, kind: input, shape index: {}]
  %s7 = inlined_call_operand.vmem [shape: f32[2,1,128], index: 7, kind: input, shape index: {}]
  %s8 = inlined_call_operand.vmem [shape: f32[2,1,128], index: 8, kind: input, shape index: {}]
  %s9 = inlined_call_operand.vmem [shape: f32[2,1,128], index: 9, kind: input, shape index: {}]
  %s10 = inlined_call_operand.hbm [shape: bf16[2,128,128], index: 10, kind: input, shape index: {}]
  %s11 = inlined_call_operand.vmem [shape: f32[2,1,128], index: 11, kind: input, shape index: {}]
  %s12 = inlined_call_operand.vmem [shape: bf16[2,128,256], index: 12, kind: input, shape index: {}]
  %s13 = inlined_call_operand.vmem [shape: f32[2,1,256], index: 13, kind: input, shape index: {}]
  %s14 = inlined_call_operand.hbm [shape: bf16[2,128,128], index: 14, kind: input, shape index: {}]
  %s15 = inlined_call_operand.vmem [shape: f32[2,1,128], index: 15, kind: input, shape index: {}]
  %s16 = inlined_call_operand.vmem [shape: f32[2,1,128], index: 16, kind: input, shape index: {}]
  %s17 = inlined_call_operand.vmem [shape: f32[2,1,128], index: 17, kind: input, shape index: {}]
  %s18 = inlined_call_operand.vmem [shape: bf16[2,128,256], index: 18, kind: input, shape index: {}]
  %s19 = inlined_call_operand.vmem [shape: f32[2,1,256], index: 19, kind: input, shape index: {}]
  %s20 = inlined_call_operand.vmem [shape: bf16[2,256,128], index: 20, kind: input, shape index: {}]
  %s21 = inlined_call_operand.vmem [shape: f32[2,1,128], index: 21, kind: input, shape index: {}]
  %s22 = inlined_call_operand.vmem [shape: f32[2,1,128], index: 22, kind: input, shape index: {}]
  %s23 = inlined_call_operand.vmem [shape: f32[2,1,128], index: 23, kind: input, shape index: {}]
  %s24 = inlined_call_operand.vmem [shape: f32[2,8,128], index: 24, kind: output, shape index: {}]
  %s25 = sld [smem:[#allocation0]]
  $region145: #{transformer_forward.4} parent=0
    _
  %s27 = ssub.s32 1, %s25
  %s28 = scalar_select 0, %s27, %s25
  $region1: #{transformer_forward.4} parent=0
    #allocation4 [shape = 'u8[65536]{0}', space=vmem, size = 0x10000, scoped, tag = 'input window, operand 6']
    #allocation5 [shape = 's32[2]{0}', space=sflag, size = 0x8, scoped, tag = 'scoped memory for transformer_forward.4']
    #allocation6 [shape = 'u8[65536]{0}', space=vmem, size = 0x10000, scoped, tag = 'input window, operand 10']
    #allocation7 [shape = 's32[2]{0}', space=sflag, size = 0x8, scoped, tag = 'scoped memory for transformer_forward.4']
    #allocation8 [shape = 'u8[65536]{0}', space=vmem, size = 0x10000, scoped, tag = 'input window, operand 14']
    %29 = vsyncpa [#allocation5], 0
    %s30 = scalar_lea.sflag [#allocation5], 1
    %31 = vsyncpa %s30, 0
    %32 = vsyncpa [#allocation7], 0
    %s33 = scalar_lea.sflag [#allocation7], 1
    %34 = vsyncpa %s33, 0
    loop: start=0, step=1, limit=4
    $region2: #{transformer_forward.4} parent=1 // loop_pre_header
      _
    $region3: #{transformer_forward.4} parent=1 // loop_header
      %s36 = sphi 0, %s40
      %p37 = scmp.ge.s32.totalorder %s36, 4
      %s44 = sphi 0, %s44
      %s46 = sphi 0, %s44
      %s47 = sphi 0, %s46
      %s61 = sphi 0, %s47
      %s65 = sphi 0, %s65
      %s67 = sphi 0, %s65
      %s68 = sphi 0, %s67
      %s82 = sphi 0, %s68
      %s86 = sphi 0, %s86
      %s88 = sphi 0, %s86
      %s89 = sphi 0, %s88
      %s103 = sphi 0, %s89
      %s107 = sphi 0, %s107
      %s109 = sphi 0, %s107
      %s110 = sphi 0, %s109
      %s124 = sphi 0, %s110
      %s130 = sphi 0, %s132
      %s133 = sphi 0, %s130
      %s134 = sphi 0, %s133
      %s150 = sphi 0, %s134
      %s156 = sphi 0, %s158
      %s159 = sphi 0, %s156
      %s160 = sphi 0, %s159
      %s176 = sphi 0, %s160
      %s182 = sphi 0, %s184
      %s185 = sphi 0, %s182
      %s186 = sphi 0, %s185
      %s202 = sphi 0, %s186
      %s208 = sphi 0, %s210
      %s211 = sphi 0, %s208
      %s212 = sphi 0, %s211
      %s228 = sphi 0, %s212
      %s234 = sphi 0, %s236
      %s237 = sphi 0, %s234
      %s238 = sphi 0, %s237
      %s254 = sphi 0, %s238
      %s260 = sphi 0, %s262
      %s263 = sphi 0, %s260
      %s264 = sphi 0, %s263
      %s280 = sphi 0, %s264
      %s286 = sphi 0, %s288
      %s289 = sphi 0, %s286
      %s290 = sphi 0, %s289
      %s306 = sphi 0, %s290
      %s312 = sphi 0, %s314
      %s315 = sphi 0, %s312
      %s316 = sphi 0, %s315
      %s332 = sphi 0, %s316
      %s338 = sphi 0, %s340
      %s341 = sphi 0, %s338
      %s342 = sphi 0, %s341
      %s358 = sphi 0, %s342
      %s364 = sphi 0, %s366
      %s367 = sphi 0, %s364
      %s368 = sphi 0, %s367
      %s384 = sphi 0, %s368
      %s390 = sphi 0, %s392
      %s393 = sphi 0, %s390
      %s394 = sphi 0, %s393
      %s410 = sphi 0, %s394
      %s416 = sphi 0, %s418
      %s419 = sphi 0, %s416
      %s420 = sphi 0, %s419
      %s436 = sphi 0, %s420
      %s442 = sphi 0, %s444
      %s445 = sphi 0, %s442
      %s446 = sphi 0, %s445
      %s462 = sphi 0, %s446
      %s468 = sphi 0, %s470
      %s471 = sphi 0, %s468
      %s472 = sphi 0, %s471
      %s488 = sphi 0, %s472
      %s494 = sphi 0, %s496
      %s497 = sphi 0, %s494
      %s498 = sphi 0, %s497
      %s514 = sphi 0, %s498
      %s520 = sphi 0, %s522
      %s523 = sphi 0, %s520
      %s524 = sphi 0, %s523
      %s540 = sphi 0, %s524
      %s546 = sphi 0, %s548
      %s549 = sphi 0, %s546
      %s550 = sphi 0, %s549
      %s566 = sphi 0, %s550
      %s572 = sphi 0, %s574
      %s575 = sphi 0, %s572
      %s576 = sphi 0, %s575
      %s592 = sphi 0, %s576
      %s598 = sphi 0, %s600
      %s601 = sphi 0, %s598
      %s602 = sphi 0, %s601
      %s618 = sphi 0, %s602
      %s624 = sphi 0, %s626
      %s627 = sphi 0, %s624
      %s628 = sphi 0, %s627
      %s644 = sphi 0, %s628
      %s648 = sphi 0, %s648
      %s650 = sphi 0, %s648
      %s651 = sphi 0, %s650
      %s665 = sphi 0, %s651
    $region4: #{transformer_forward.4} parent=1 // loop_header_branch
      %39 = sbr.rel (%p37) target = $region8
    $region5: #{transformer_forward.4} parent=1 // loop_body
      %s41 = ssub.s32 %s36, 1
      %s42 = ssub.s32 %s36, 2
      %s43 = sadd.s32 %s36, 1
      %s45 = sadd.s32 %s44, 1
      %p48 = scmp.eq.s32.totalorder %s36, 1
      %p49 = scmp.ne.s32.totalorder %s44, %s46
      %p50 = scmp.eq.s32.totalorder %s36, 0
      %p51 = por %p49, %p50
      %p52 = scmp.ne.s32.totalorder %s44, %s46
      %p53 = scmp.eq.s32.totalorder %s41, 1
      %p54 = por %p52, %p53
      %p55 = scmp.ne.s32.totalorder %s46, %s47
      %p56 = scmp.eq.s32.totalorder %s41, 0
      %p57 = por %p55, %p56
      %p58 = scmp.ne.s32.totalorder %s46, %s47
      %p59 = scmp.eq.s32.totalorder %s42, 1
      %p60 = por %p58, %p59
      %p62 = scmp.ne.s32.totalorder %s47, %s61
      %p63 = scmp.eq.s32.totalorder %s42, 0
      %p64 = por %p62, %p63
      %s66 = sadd.s32 %s65, 1
      %p69 = scmp.eq.s32.totalorder %s36, 1
      %p70 = scmp.ne.s32.totalorder %s65, %s67
      %p71 = scmp.eq.s32.totalorder %s36, 0
      %p72 = por %p70, %p71
      %p73 = scmp.ne.s32.totalorder %s65, %s67
      %p74 = scmp.eq.s32.totalorder %s41, 1
      %p75 = por %p73, %p74
      %p76 = scmp.ne.s32.totalorder %s67, %s68
      %p77 = scmp.eq.s32.totalorder %s41, 0
      %p78 = por %p76, %p77
      %p79 = scmp.ne.s32.totalorder %s67, %s68
      %p80 = scmp.eq.s32.totalorder %s42, 1
      %p81 = por %p79, %p80
      %p83 = scmp.ne.s32.totalorder %s68, %s82
      %p84 = scmp.eq.s32.totalorder %s42, 0
      %p85 = por %p83, %p84
      %s87 = sadd.s32 %s86, 1
      %p90 = scmp.eq.s32.totalorder %s36, 1
      %p91 = scmp.ne.s32.totalorder %s86, %s88
      %p92 = scmp.eq.s32.totalorder %s36, 0
      %p93 = por %p91, %p92
      %p94 = scmp.ne.s32.totalorder %s86, %s88
      %p95 = scmp.eq.s32.totalorder %s41, 1
      %p96 = por %p94, %p95
      %p97 = scmp.ne.s32.totalorder %s88, %s89
      %p98 = scmp.eq.s32.totalorder %s41, 0
      %p99 = por %p97, %p98
      %p100 = scmp.ne.s32.totalorder %s88, %s89
      %p101 = scmp.eq.s32.totalorder %s42, 1
      %p102 = por %p100, %p101
      %p104 = scmp.ne.s32.totalorder %s89, %s103
      %p105 = scmp.eq.s32.totalorder %s42, 0
      %p106 = por %p104, %p105
      %s108 = sadd.s32 %s107, 1
      %p111 = scmp.eq.s32.totalorder %s36, 1
      %p112 = scmp.ne.s32.totalorder %s107, %s109
      %p113 = scmp.eq.s32.totalorder %s36, 0
      %p114 = por %p112, %p113
      %p115 = scmp.ne.s32.totalorder %s107, %s109
      %p116 = scmp.eq.s32.totalorder %s41, 1
      %p117 = por %p115, %p116
      %p118 = scmp.ne.s32.totalorder %s109, %s110
      %p119 = scmp.eq.s32.totalorder %s41, 0
      %p120 = por %p118, %p119
      %p121 = scmp.ne.s32.totalorder %s109, %s110
      %p122 = scmp.eq.s32.totalorder %s42, 1
      %p123 = por %p121, %p122
      %p125 = scmp.ne.s32.totalorder %s110, %s124
      %p126 = scmp.eq.s32.totalorder %s42, 0
      %p127 = por %p125, %p126
      %s128 = ssub.s32 %s36, %s43
      %p129 = scmp.eq.s32.totalorder %s128, 0
      %s131 = sadd.s32 %s130, 1
      %s132 = scalar_select %p129, %s130, %s131
      %p135 = pneg %p129
      %p136 = scmp.eq.s32.totalorder %s36, 1
      %p137 = por %p135, %p136
      %p138 = scmp.ne.s32.totalorder %s130, %s133
      %p139 = scmp.eq.s32.totalorder %s36, 0
      %p140 = por %p138, %p139
      %p141 = scmp.ne.s32.totalorder %s130, %s133
      %p142 = scmp.eq.s32.totalorder %s41, 1
      %p143 = por %p141, %p142
      %p144 = scmp.ne.s32.totalorder %s133, %s134
      %p145 = scmp.eq.s32.totalorder %s41, 0
      %p146 = por %p144, %p145
      %p147 = scmp.ne.s32.totalorder %s133, %s134
      %p148 = scmp.eq.s32.totalorder %s42, 1
      %p149 = por %p147, %p148
      %p151 = scmp.ne.s32.totalorder %s134, %s150
      %p152 = scmp.eq.s32.totalorder %s42, 0
      %p153 = por %p151, %p152
      %s154 = ssub.s32 %s36, %s43
      %p155 = scmp.eq.s32.totalorder %s154, 0
      %s157 = sadd.s32 %s156, 1
      %s158 = scalar_select %p155, %s156, %s157
      %p161 = pneg %p155
      %p162 = scmp.eq.s32.totalorder %s36, 1
      %p163 = por %p161, %p162
      %p164 = scmp.ne.s32.totalorder %s156, %s159
      %p165 = scmp.eq.s32.totalorder %s36, 0
      %p166 = por %p164, %p165
      %p167 = scmp.ne.s32.totalorder %s156, %s159
      %p168 = scmp.eq.s32.totalorder %s41, 1
      %p169 = por %p167, %p168
      %p170 = scmp.ne.s32.totalorder %s159, %s160
      %p171 = scmp.eq.s32.totalorder %s41, 0
      %p172 = por %p170, %p171
      %p173 = scmp.ne.s32.totalorder %s159, %s160
      %p174 = scmp.eq.s32.totalorder %s42, 1
      %p175 = por %p173, %p174
      %p177 = scmp.ne.s32.totalorder %s160, %s176
      %p178 = scmp.eq.s32.totalorder %s42, 0
      %p179 = por %p177, %p178
      %s180 = ssub.s32 %s36, %s43
      %p181 = scmp.eq.s32.totalorder %s180, 0
      %s183 = sadd.s32 %s182, 1
      %s184 = scalar_select %p181, %s182, %s183
      %p187 = pneg %p181
      %p188 = scmp.eq.s32.totalorder %s36, 1
      %p189 = por %p187, %p188
      %p190 = scmp.ne.s32.totalorder %s182, %s185
      %p191 = scmp.eq.s32.totalorder %s36, 0
      %p192 = por %p190, %p191
      %p193 = scmp.ne.s32.totalorder %s182, %s185
      %p194 = scmp.eq.s32.totalorder %s41, 1
      %p195 = por %p193, %p194
      %p196 = scmp.ne.s32.totalorder %s185, %s186
      %p197 = scmp.eq.s32.totalorder %s41, 0
      %p198 = por %p196, %p197
      %p199 = scmp.ne.s32.totalorder %s185, %s186
      %p200 = scmp.eq.s32.totalorder %s42, 1
      %p201 = por %p199, %p200
      %p203 = scmp.ne.s32.totalorder %s186, %s202
      %p204 = scmp.eq.s32.totalorder %s42, 0
      %p205 = por %p203, %p204
      %s206 = ssub.s32 %s36, %s43
      %p207 = scmp.eq.s32.totalorder %s206, 0
      %s209 = sadd.s32 %s208, 1
      %s210 = scalar_select %p207, %s208, %s209
      %p213 = pneg %p207
      %p214 = scmp.eq.s32.totalorder %s36, 1
      %p215 = por %p213, %p214
      %p216 = scmp.ne.s32.totalorder %s208, %s211
      %p217 = scmp.eq.s32.totalorder %s36, 0
      %p218 = por %p216, %p217
      %p219 = scmp.ne.s32.totalorder %s208, %s211
      %p220 = scmp.eq.s32.totalorder %s41, 1
      %p221 = por %p219, %p220
      %p222 = scmp.ne.s32.totalorder %s211, %s212
      %p223 = scmp.eq.s32.totalorder %s41, 0
      %p224 = por %p222, %p223
      %p225 = scmp.ne.s32.totalorder %s211, %s212
      %p226 = scmp.eq.s32.totalorder %s42, 1
      %p227 = por %p225, %p226
      %p229 = scmp.ne.s32.totalorder %s212, %s228
      %p230 = scmp.eq.s32.totalorder %s42, 0
      %p231 = por %p229, %p230
      %s232 = ssub.s32 %s36, %s43
      %p233 = scmp.eq.s32.totalorder %s232, 0
      %s235 = sadd.s32 %s234, 1
      %s236 = scalar_select %p233, %s234, %s235
      %p239 = pneg %p233
      %p240 = scmp.eq.s32.totalorder %s36, 1
      %p241 = por %p239, %p240
      %p242 = scmp.ne.s32.totalorder %s234, %s237
      %p243 = scmp.eq.s32.totalorder %s36, 0
      %p244 = por %p242, %p243
      %p245 = scmp.ne.s32.totalorder %s234, %s237
      %p246 = scmp.eq.s32.totalorder %s41, 1
      %p247 = por %p245, %p246
      %p248 = scmp.ne.s32.totalorder %s237, %s238
      %p249 = scmp.eq.s32.totalorder %s41, 0
      %p250 = por %p248, %p249
      %p251 = scmp.ne.s32.totalorder %s237, %s238
      %p252 = scmp.eq.s32.totalorder %s42, 1
      %p253 = por %p251, %p252
      %p255 = scmp.ne.s32.totalorder %s238, %s254
      %p256 = scmp.eq.s32.totalorder %s42, 0
      %p257 = por %p255, %p256
      %s258 = ssub.s32 %s36, %s43
      %p259 = scmp.eq.s32.totalorder %s258, 0
      %s261 = sadd.s32 %s260, 1
      %s262 = scalar_select %p259, %s260, %s261
      %p265 = pneg %p259
      %p266 = scmp.eq.s32.totalorder %s36, 1
      %p267 = por %p265, %p266
      %p268 = scmp.ne.s32.totalorder %s260, %s263
      %p269 = scmp.eq.s32.totalorder %s36, 0
      %p270 = por %p268, %p269
      %p271 = scmp.ne.s32.totalorder %s260, %s263
      %p272 = scmp.eq.s32.totalorder %s41, 1
      %p273 = por %p271, %p272
      %p274 = scmp.ne.s32.totalorder %s263, %s264
      %p275 = scmp.eq.s32.totalorder %s41, 0
      %p276 = por %p274, %p275
      %p277 = scmp.ne.s32.totalorder %s263, %s264
      %p278 = scmp.eq.s32.totalorder %s42, 1
      %p279 = por %p277, %p278
      %p281 = scmp.ne.s32.totalorder %s264, %s280
      %p282 = scmp.eq.s32.totalorder %s42, 0
      %p283 = por %p281, %p282
      %s284 = ssub.s32 %s36, %s43
      %p285 = scmp.eq.s32.totalorder %s284, 0
      %s287 = sadd.s32 %s286, 1
      %s288 = scalar_select %p285, %s286, %s287
      %p291 = pneg %p285
      %p292 = scmp.eq.s32.totalorder %s36, 1
      %p293 = por %p291, %p292
      %p294 = scmp.ne.s32.totalorder %s286, %s289
      %p295 = scmp.eq.s32.totalorder %s36, 0
      %p296 = por %p294, %p295
      %p297 = scmp.ne.s32.totalorder %s286, %s289
      %p298 = scmp.eq.s32.totalorder %s41, 1
      %p299 = por %p297, %p298
      %p300 = scmp.ne.s32.totalorder %s289, %s290
      %p301 = scmp.eq.s32.totalorder %s41, 0
      %p302 = por %p300, %p301
      %p303 = scmp.ne.s32.totalorder %s289, %s290
      %p304 = scmp.eq.s32.totalorder %s42, 1
      %p305 = por %p303, %p304
      %p307 = scmp.ne.s32.totalorder %s290, %s306
      %p308 = scmp.eq.s32.totalorder %s42, 0
      %p309 = por %p307, %p308
      %s310 = ssub.s32 %s36, %s43
      %p311 = scmp.eq.s32.totalorder %s310, 0
      %s313 = sadd.s32 %s312, 1
      %s314 = scalar_select %p311, %s312, %s313
      %p317 = pneg %p311
      %p318 = scmp.eq.s32.totalorder %s36, 1
      %p319 = por %p317, %p318
      %p320 = scmp.ne.s32.totalorder %s312, %s315
      %p321 = scmp.eq.s32.totalorder %s36, 0
      %p322 = por %p320, %p321
      %p323 = scmp.ne.s32.totalorder %s312, %s315
      %p324 = scmp.eq.s32.totalorder %s41, 1
      %p325 = por %p323, %p324
      %p326 = scmp.ne.s32.totalorder %s315, %s316
      %p327 = scmp.eq.s32.totalorder %s41, 0
      %p328 = por %p326, %p327
      %p329 = scmp.ne.s32.totalorder %s315, %s316
      %p330 = scmp.eq.s32.totalorder %s42, 1
      %p331 = por %p329, %p330
      %p333 = scmp.ne.s32.totalorder %s316, %s332
      %p334 = scmp.eq.s32.totalorder %s42, 0
      %p335 = por %p333, %p334
      %s336 = ssub.s32 %s36, %s43
      %p337 = scmp.eq.s32.totalorder %s336, 0
      %s339 = sadd.s32 %s338, 1
      %s340 = scalar_select %p337, %s338, %s339
      %p343 = pneg %p337
      %p344 = scmp.eq.s32.totalorder %s36, 1
      %p345 = por %p343, %p344
      %p346 = scmp.ne.s32.totalorder %s338, %s341
      %p347 = scmp.eq.s32.totalorder %s36, 0
      %p348 = por %p346, %p347
      %p349 = scmp.ne.s32.totalorder %s338, %s341
      %p350 = scmp.eq.s32.totalorder %s41, 1
      %p351 = por %p349, %p350
      %p352 = scmp.ne.s32.totalorder %s341, %s342
      %p353 = scmp.eq.s32.totalorder %s41, 0
      %p354 = por %p352, %p353
      %p355 = scmp.ne.s32.totalorder %s341, %s342
      %p356 = scmp.eq.s32.totalorder %s42, 1
      %p357 = por %p355, %p356
      %p359 = scmp.ne.s32.totalorder %s342, %s358
      %p360 = scmp.eq.s32.totalorder %s42, 0
      %p361 = por %p359, %p360
      %s362 = ssub.s32 %s36, %s43
      %p363 = scmp.eq.s32.totalorder %s362, 0
      %s365 = sadd.s32 %s364, 1
      %s366 = scalar_select %p363, %s364, %s365
      %p369 = pneg %p363
      %p370 = scmp.eq.s32.totalorder %s36, 1
      %p371 = por %p369, %p370
      %p372 = scmp.ne.s32.totalorder %s364, %s367
      %p373 = scmp.eq.s32.totalorder %s36, 0
      %p374 = por %p372, %p373
      %p375 = scmp.ne.s32.totalorder %s364, %s367
      %p376 = scmp.eq.s32.totalorder %s41, 1
      %p377 = por %p375, %p376
      %p378 = scmp.ne.s32.totalorder %s367, %s368
      %p379 = scmp.eq.s32.totalorder %s41, 0
      %p380 = por %p378, %p379
      %p381 = scmp.ne.s32.totalorder %s367, %s368
      %p382 = scmp.eq.s32.totalorder %s42, 1
      %p383 = por %p381, %p382
      %p385 = scmp.ne.s32.totalorder %s368, %s384
      %p386 = scmp.eq.s32.totalorder %s42, 0
      %p387 = por %p385, %p386
      %s388 = ssub.s32 %s36, %s43
      %p389 = scmp.eq.s32.totalorder %s388, 0
      %s391 = sadd.s32 %s390, 1
      %s392 = scalar_select %p389, %s390, %s391
      %p395 = pneg %p389
      %p396 = scmp.eq.s32.totalorder %s36, 1
      %p397 = por %p395, %p396
      %p398 = scmp.ne.s32.totalorder %s390, %s393
      %p399 = scmp.eq.s32.totalorder %s36, 0
      %p400 = por %p398, %p399
      %p401 = scmp.ne.s32.totalorder %s390, %s393
      %p402 = scmp.eq.s32.totalorder %s41, 1
      %p403 = por %p401, %p402
      %p404 = scmp.ne.s32.totalorder %s393, %s394
      %p405 = scmp.eq.s32.totalorder %s41, 0
      %p406 = por %p404, %p405
      %p407 = scmp.ne.s32.totalorder %s393, %s394
      %p408 = scmp.eq.s32.totalorder %s42, 1
      %p409 = por %p407, %p408
      %p411 = scmp.ne.s32.totalorder %s394, %s410
      %p412 = scmp.eq.s32.totalorder %s42, 0
      %p413 = por %p411, %p412
      %s414 = ssub.s32 %s36, %s43
      %p415 = scmp.eq.s32.totalorder %s414, 0
      %s417 = sadd.s32 %s416, 1
      %s418 = scalar_select %p415, %s416, %s417
      %p421 = pneg %p415
      %p422 = scmp.eq.s32.totalorder %s36, 1
      %p423 = por %p421, %p422
      %p424 = scmp.ne.s32.totalorder %s416, %s419
      %p425 = scmp.eq.s32.totalorder %s36, 0
      %p426 = por %p424, %p425
      %p427 = scmp.ne.s32.totalorder %s416, %s419
      %p428 = scmp.eq.s32.totalorder %s41, 1
      %p429 = por %p427, %p428
      %p430 = scmp.ne.s32.totalorder %s419, %s420
      %p431 = scmp.eq.s32.totalorder %s41, 0
      %p432 = por %p430, %p431
      %p433 = scmp.ne.s32.totalorder %s419, %s420
      %p434 = scmp.eq.s32.totalorder %s42, 1
      %p435 = por %p433, %p434
      %p437 = scmp.ne.s32.totalorder %s420, %s436
      %p438 = scmp.eq.s32.totalorder %s42, 0
      %p439 = por %p437, %p438
      %s440 = ssub.s32 %s36, %s43
      %p441 = scmp.eq.s32.totalorder %s440, 0
      %s443 = sadd.s32 %s442, 1
      %s444 = scalar_select %p441, %s442, %s443
      %p447 = pneg %p441
      %p448 = scmp.eq.s32.totalorder %s36, 1
      %p449 = por %p447, %p448
      %p450 = scmp.ne.s32.totalorder %s442, %s445
      %p451 = scmp.eq.s32.totalorder %s36, 0
      %p452 = por %p450, %p451
      %p453 = scmp.ne.s32.totalorder %s442, %s445
      %p454 = scmp.eq.s32.totalorder %s41, 1
      %p455 = por %p453, %p454
      %p456 = scmp.ne.s32.totalorder %s445, %s446
      %p457 = scmp.eq.s32.totalorder %s41, 0
      %p458 = por %p456, %p457
      %p459 = scmp.ne.s32.totalorder %s445, %s446
      %p460 = scmp.eq.s32.totalorder %s42, 1
      %p461 = por %p459, %p460
      %p463 = scmp.ne.s32.totalorder %s446, %s462
      %p464 = scmp.eq.s32.totalorder %s42, 0
      %p465 = por %p463, %p464
      %s466 = ssub.s32 %s36, %s43
      %p467 = scmp.eq.s32.totalorder %s466, 0
      %s469 = sadd.s32 %s468, 1
      %s470 = scalar_select %p467, %s468, %s469
      %p473 = pneg %p467
      %p474 = scmp.eq.s32.totalorder %s36, 1
      %p475 = por %p473, %p474
      %p476 = scmp.ne.s32.totalorder %s468, %s471
      %p477 = scmp.eq.s32.totalorder %s36, 0
      %p478 = por %p476, %p477
      %p479 = scmp.ne.s32.totalorder %s468, %s471
      %p480 = scmp.eq.s32.totalorder %s41, 1
      %p481 = por %p479, %p480
      %p482 = scmp.ne.s32.totalorder %s471, %s472
      %p483 = scmp.eq.s32.totalorder %s41, 0
      %p484 = por %p482, %p483
      %p485 = scmp.ne.s32.totalorder %s471, %s472
      %p486 = scmp.eq.s32.totalorder %s42, 1
      %p487 = por %p485, %p486
      %p489 = scmp.ne.s32.totalorder %s472, %s488
      %p490 = scmp.eq.s32.totalorder %s42, 0
      %p491 = por %p489, %p490
      %s492 = ssub.s32 %s36, %s43
      %p493 = scmp.eq.s32.totalorder %s492, 0
      %s495 = sadd.s32 %s494, 1
      %s496 = scalar_select %p493, %s494, %s495
      %p499 = pneg %p493
      %p500 = scmp.eq.s32.totalorder %s36, 1
      %p501 = por %p499, %p500
      %p502 = scmp.ne.s32.totalorder %s494, %s497
      %p503 = scmp.eq.s32.totalorder %s36, 0
      %p504 = por %p502, %p503
      %p505 = scmp.ne.s32.totalorder %s494, %s497
      %p506 = scmp.eq.s32.totalorder %s41, 1
      %p507 = por %p505, %p506
      %p508 = scmp.ne.s32.totalorder %s497, %s498
      %p509 = scmp.eq.s32.totalorder %s41, 0
      %p510 = por %p508, %p509
      %p511 = scmp.ne.s32.totalorder %s497, %s498
      %p512 = scmp.eq.s32.totalorder %s42, 1
      %p513 = por %p511, %p512
      %p515 = scmp.ne.s32.totalorder %s498, %s514
      %p516 = scmp.eq.s32.totalorder %s42, 0
      %p517 = por %p515, %p516
      %s518 = ssub.s32 %s36, %s43
      %p519 = scmp.eq.s32.totalorder %s518, 0
      %s521 = sadd.s32 %s520, 1
      %s522 = scalar_select %p519, %s520, %s521
      %p525 = pneg %p519
      %p526 = scmp.eq.s32.totalorder %s36, 1
      %p527 = por %p525, %p526
      %p528 = scmp.ne.s32.totalorder %s520, %s523
      %p529 = scmp.eq.s32.totalorder %s36, 0
      %p530 = por %p528, %p529
      %p531 = scmp.ne.s32.totalorder %s520, %s523
      %p532 = scmp.eq.s32.totalorder %s41, 1
      %p533 = por %p531, %p532
      %p534 = scmp.ne.s32.totalorder %s523, %s524
      %p535 = scmp.eq.s32.totalorder %s41, 0
      %p536 = por %p534, %p535
      %p537 = scmp.ne.s32.totalorder %s523, %s524
      %p538 = scmp.eq.s32.totalorder %s42, 1
      %p539 = por %p537, %p538
      %p541 = scmp.ne.s32.totalorder %s524, %s540
      %p542 = scmp.eq.s32.totalorder %s42, 0
      %p543 = por %p541, %p542
      %s544 = ssub.s32 %s36, %s43
      %p545 = scmp.eq.s32.totalorder %s544, 0
      %s547 = sadd.s32 %s546, 1
      %s548 = scalar_select %p545, %s546, %s547
      %p551 = pneg %p545
      %p552 = scmp.eq.s32.totalorder %s36, 1
      %p553 = por %p551, %p552
      %p554 = scmp.ne.s32.totalorder %s546, %s549
      %p555 = scmp.eq.s32.totalorder %s36, 0
      %p556 = por %p554, %p555
      %p557 = scmp.ne.s32.totalorder %s546, %s549
      %p558 = scmp.eq.s32.totalorder %s41, 1
      %p559 = por %p557, %p558
      %p560 = scmp.ne.s32.totalorder %s549, %s550
      %p561 = scmp.eq.s32.totalorder %s41, 0
      %p562 = por %p560, %p561
      %p563 = scmp.ne.s32.totalorder %s549, %s550
      %p564 = scmp.eq.s32.totalorder %s42, 1
      %p565 = por %p563, %p564
      %p567 = scmp.ne.s32.totalorder %s550, %s566
      %p568 = scmp.eq.s32.totalorder %s42, 0
      %p569 = por %p567, %p568
      %s570 = ssub.s32 %s36, %s43
      %p571 = scmp.eq.s32.totalorder %s570, 0
      %s573 = sadd.s32 %s572, 1
      %s574 = scalar_select %p571, %s572, %s573
      %p577 = pneg %p571
      %p578 = scmp.eq.s32.totalorder %s36, 1
      %p579 = por %p577, %p578
      %p580 = scmp.ne.s32.totalorder %s572, %s575
      %p581 = scmp.eq.s32.totalorder %s36, 0
      %p582 = por %p580, %p581
      %p583 = scmp.ne.s32.totalorder %s572, %s575
      %p584 = scmp.eq.s32.totalorder %s41, 1
      %p585 = por %p583, %p584
      %p586 = scmp.ne.s32.totalorder %s575, %s576
      %p587 = scmp.eq.s32.totalorder %s41, 0
      %p588 = por %p586, %p587
      %p589 = scmp.ne.s32.totalorder %s575, %s576
      %p590 = scmp.eq.s32.totalorder %s42, 1
      %p591 = por %p589, %p590
      %p593 = scmp.ne.s32.totalorder %s576, %s592
      %p594 = scmp.eq.s32.totalorder %s42, 0
      %p595 = por %p593, %p594
      %s596 = ssub.s32 %s36, %s43
      %p597 = scmp.eq.s32.totalorder %s596, 0
      %s599 = sadd.s32 %s598, 1
      %s600 = scalar_select %p597, %s598, %s599
      %p603 = pneg %p597
      %p604 = scmp.eq.s32.totalorder %s36, 1
      %p605 = por %p603, %p604
      %p606 = scmp.ne.s32.totalorder %s598, %s601
      %p607 = scmp.eq.s32.totalorder %s36, 0
      %p608 = por %p606, %p607
      %p609 = scmp.ne.s32.totalorder %s598, %s601
      %p610 = scmp.eq.s32.totalorder %s41, 1
      %p611 = por %p609, %p610
      %p612 = scmp.ne.s32.totalorder %s601, %s602
      %p613 = scmp.eq.s32.totalorder %s41, 0
      %p614 = por %p612, %p613
      %p615 = scmp.ne.s32.totalorder %s601, %s602
      %p616 = scmp.eq.s32.totalorder %s42, 1
      %p617 = por %p615, %p616
      %p619 = scmp.ne.s32.totalorder %s602, %s618
      %p620 = scmp.eq.s32.totalorder %s42, 0
      %p621 = por %p619, %p620
      %s622 = ssub.s32 %s36, %s43
      %p623 = scmp.eq.s32.totalorder %s622, 0
      %s625 = sadd.s32 %s624, 1
      %s626 = scalar_select %p623, %s624, %s625
      %p629 = pneg %p623
      %p630 = scmp.eq.s32.totalorder %s36, 1
      %p631 = por %p629, %p630
      %p632 = scmp.ne.s32.totalorder %s624, %s627
      %p633 = scmp.eq.s32.totalorder %s36, 0
      %p634 = por %p632, %p633
      %p635 = scmp.ne.s32.totalorder %s624, %s627
      %p636 = scmp.eq.s32.totalorder %s41, 1
      %p637 = por %p635, %p636
      %p638 = scmp.ne.s32.totalorder %s627, %s628
      %p639 = scmp.eq.s32.totalorder %s41, 0
      %p640 = por %p638, %p639
      %p641 = scmp.ne.s32.totalorder %s627, %s628
      %p642 = scmp.eq.s32.totalorder %s42, 1
      %p643 = por %p641, %p642
      %p645 = scmp.ne.s32.totalorder %s628, %s644
      %p646 = scmp.eq.s32.totalorder %s42, 0
      %p647 = por %p645, %p646
      %s649 = sadd.s32 %s648, 1
      %p652 = scmp.eq.s32.totalorder %s36, 1
      %p653 = scmp.ne.s32.totalorder %s648, %s650
      %p654 = scmp.eq.s32.totalorder %s36, 0
      %p655 = por %p653, %p654
      %p656 = scmp.ne.s32.totalorder %s648, %s650
      %p657 = scmp.eq.s32.totalorder %s41, 1
      %p658 = por %p656, %p657
      %p659 = scmp.ne.s32.totalorder %s650, %s651
      %p660 = scmp.eq.s32.totalorder %s41, 0
      %p661 = por %p659, %p660
      %p662 = scmp.ne.s32.totalorder %s650, %s651
      %p663 = scmp.eq.s32.totalorder %s42, 1
      %p664 = por %p662, %p663
      %p666 = scmp.ne.s32.totalorder %s651, %s665
      %p667 = scmp.eq.s32.totalorder %s42, 0
      %p668 = por %p666, %p667
      %p669 = scmp.le.s32.totalorder 1, %s36
      %p670 = scmp.lt.s32.totalorder %s36, 3
      %p671 = pnand %p669, %p670
      %p672 = pneg %p671
      // Predicated region
      $region9: #{transformer_forward.4} parent=5 // pred_check
        _
      $region10: #{transformer_forward.4} parent=5 // pred_check_branch
        %674 = sbr.rel (%p671) target = $region12
      $region11: #{transformer_forward.4} parent=5 // pred_region
        %s675 = ssub.s32 %s36, 1
        // Predicated region
        $region13: #{transformer_forward.4} parent=11 // pred_check
          %p676 = pneg %p57
        $region14: #{transformer_forward.4} parent=11 // pred_check_branch
          %678 = sbr.rel (%p676) target = $region16
        $region15: #{transformer_forward.4} parent=11 // pred_region
          _
        $region16: #{transformer_forward.4} parent=11 // pred_fallthru
          _
        // Predicated region
        $region17: #{transformer_forward.4} parent=11 // pred_check
          %p679 = pneg %p78
        $region18: #{transformer_forward.4} parent=11 // pred_check_branch
          %681 = sbr.rel (%p679) target = $region20
        $region19: #{transformer_forward.4} parent=11 // pred_region
          _
        $region20: #{transformer_forward.4} parent=11 // pred_fallthru
          _
        // Predicated region
        $region21: #{transformer_forward.4} parent=11 // pred_check
          %p682 = pneg %p99
        $region22: #{transformer_forward.4} parent=11 // pred_check_branch
          %684 = sbr.rel (%p682) target = $region24
        $region23: #{transformer_forward.4} parent=11 // pred_region
          _
        $region24: #{transformer_forward.4} parent=11 // pred_fallthru
          _
        // Predicated region
        $region25: #{transformer_forward.4} parent=11 // pred_check
          %p685 = pneg %p120
        $region26: #{transformer_forward.4} parent=11 // pred_check_branch
          %687 = sbr.rel (%p685) target = $region28
        $region27: #{transformer_forward.4} parent=11 // pred_region
          _
        $region28: #{transformer_forward.4} parent=11 // pred_fallthru
          _
      $region12: #{transformer_forward.4} parent=5 // pred_fallthru
        _
      %p688 = scmp.lt.s32.totalorder %s36, 2
      // Predicated region
      $region29: #{transformer_forward.4} parent=5 // pred_check
        %p689 = pneg %p688
      $region30: #{transformer_forward.4} parent=5 // pred_check_branch
        %691 = sbr.rel (%p689) target = $region32
      $region31: #{transformer_forward.4} parent=5 // pred_region
        // Predicated region
        $region33: #{transformer_forward.4} parent=31 // pred_check
          %p692 = pneg %p140
        $region34: #{transformer_forward.4} parent=31 // pred_check_branch
          %694 = sbr.rel (%p692) target = $region36
        $region35: #{transformer_forward.4} parent=31 // pred_region
          %p695 = scmp.lt.s32.totalorder %s36, 1
          %s696 = scalar_select %p695, %s36, 1
          %s697 = smul.addr %s696, 48
          %s698 = smul.addr %s697, 4
          %s699 = scalar_lea.vmem %s4, %s698
        $region36: #{transformer_forward.4} parent=31 // pred_fallthru
          _
        // Predicated region
        $region37: #{transformer_forward.4} parent=31 // pred_check
          %p700 = pneg %p166
        $region38: #{transformer_forward.4} parent=31 // pred_check_branch
          %702 = sbr.rel (%p700) target = $region40
        $region39: #{transformer_forward.4} parent=31 // pred_region
          %p703 = scmp.lt.s32.totalorder %s36, 1
          %s704 = scalar_select %p703, %s36, 1
          %s705 = smul.addr %s704, 3
          %s706 = scalar_lea.vmem %s5, %s705
        $region40: #{transformer_forward.4} parent=31 // pred_fallthru
          _
        // Predicated region
        $region41: #{transformer_forward.4} parent=31 // pred_check
          %p707 = pneg %p192
        $region42: #{transformer_forward.4} parent=31 // pred_check_branch
          %709 = sbr.rel (%p707) target = $region44
        $region43: #{transformer_forward.4} parent=31 // pred_region
          %s710 = sand.u32 %s182, 1
          %s711 = scalar_lea.sflag [#allocation5], %s710
          %s712 = sand.u32 %s182, 1
          %s713 = smul.addr %s712, 64
          %s714 = scalar_lea.vmem [#allocation4], %s713
          %s716 = ssub.s32 1024, 1024
          %717 = vsyncadd %s711, %s716
          %s718 = smul.addr %s36, 16
          %s719 = smul.addr %s718, 64
          %s720 = scalar_lea.hbm %s6, %s719
          %s721 = sshll.u32 %s714, 4
          %s722 = int_to_ptr.vmem [resolvable:$true] %s721
          %727 = dma.hbm_to_vmem [thread:$0]  %s720, 1024, %s722, %s711, 64, 64, 4
        $region44: #{transformer_forward.4} parent=31 // pred_fallthru
          _
        // Predicated region
        $region45: #{transformer_forward.4} parent=31 // pred_check
          %p728 = pneg %p218
        $region46: #{transformer_forward.4} parent=31 // pred_check_branch
          %730 = sbr.rel (%p728) target = $region48
        $region47: #{transformer_forward.4} parent=31 // pred_region
          %p731 = scmp.lt.s32.totalorder %s36, 1
          %s732 = scalar_select %p731, %s36, 1
          %s733 = scalar_lea.vmem %s7, %s732
        $region48: #{transformer_forward.4} parent=31 // pred_fallthru
          _
        // Predicated region
        $region49: #{transformer_forward.4} parent=31 // pred_check
          %p734 = pneg %p244
        $region50: #{transformer_forward.4} parent=31 // pred_check_branch
          %736 = sbr.rel (%p734) target = $region52
        $region51: #{transformer_forward.4} parent=31 // pred_region
          %p737 = scmp.lt.s32.totalorder %s36, 1
          %s738 = scalar_select %p737, %s36, 1
          %s739 = scalar_lea.vmem %s8, %s738
        $region52: #{transformer_forward.4} parent=31 // pred_fallthru
          _
        // Predicated region
        $region53: #{transformer_forward.4} parent=31 // pred_check
          %p740 = pneg %p270
        $region54: #{transformer_forward.4} parent=31 // pred_check_branch
          %742 = sbr.rel (%p740) target = $region56
        $region55: #{transformer_forward.4} parent=31 // pred_region
          %p743 = scmp.lt.s32.totalorder %s36, 1
          %s744 = scalar_select %p743, %s36, 1
          %s745 = scalar_lea.vmem %s9, %s744
        $region56: #{transformer_forward.4} parent=31 // pred_fallthru
          _
        // Predicated region
        $region57: #{transformer_forward.4} parent=31 // pred_check
          %p746 = pneg %p296
        $region58: #{transformer_forward.4} parent=31 // pred_check_branch
          %748 = sbr.rel (%p746) target = $region60
        $region59: #{transformer_forward.4} parent=31 // pred_region
          %s749 = sand.u32 %s36, 1
          %s750 = scalar_lea.sflag [#allocation7], %s749
          %s751 = sand.u32 %s286, 1
          %s752 = smul.addr %s751, 64
          %s753 = scalar_lea.vmem [#allocation6], %s752
          %s755 = ssub.s32 1024, 1024
          %756 = vsyncadd %s750, %s755
          %s757 = smul.addr %s36, 16
          %s758 = smul.addr %s757, 64
          %s759 = scalar_lea.hbm %s10, %s758
          %s760 = sshll.u32 %s753, 4
          %s761 = int_to_ptr.vmem [resolvable:$true] %s760
          %766 = dma.hbm_to_vmem [thread:$0]  %s759, 1024, %s761, %s750, 64, 64, 4
        $region60: #{transformer_forward.4} parent=31 // pred_fallthru
          _
        // Predicated region
        $region61: #{transformer_forward.4} parent=31 // pred_check
          %p767 = pneg %p322
        $region62: #{transformer_forward.4} parent=31 // pred_check_branch
          %769 = sbr.rel (%p767) target = $region64
        $region63: #{transformer_forward.4} parent=31 // pred_region
          %p770 = scmp.lt.s32.totalorder %s36, 1
          %s771 = scalar_select %p770, %s36, 1
          %s772 = scalar_lea.vmem %s11, %s771
        $region64: #{transformer_forward.4} parent=31 // pred_fallthru
          _
        // Predicated region
        $region65: #{transformer_forward.4} parent=31 // pred_check
          %p773 = pneg %p348
        $region66: #{transformer_forward.4} parent=31 // pred_check_branch
          %775 = sbr.rel (%p773) target = $region68
        $region67: #{transformer_forward.4} parent=31 // pred_region
          %p776 = scmp.lt.s32.totalorder %s36, 1
          %s777 = scalar_select %p776, %s36, 1
          %s778 = smul.addr %s777, 32
          %s779 = smul.addr %s778, 4
          %s780 = scalar_lea.vmem %s12, %s779
        $region68: #{transformer_forward.4} parent=31 // pred_fallthru
          _
        // Predicated region
        $region69: #{transformer_forward.4} parent=31 // pred_check
          %p781 = pneg %p374
        $region70: #{transformer_forward.4} parent=31 // pred_check_branch
          %783 = sbr.rel (%p781) target = $region72
        $region71: #{transformer_forward.4} parent=31 // pred_region
          %p784 = scmp.lt.s32.totalorder %s36, 1
          %s785 = scalar_select %p784, %s36, 1
          %s786 = smul.addr %s785, 2
          %s787 = scalar_lea.vmem %s13, %s786
        $region72: #{transformer_forward.4} parent=31 // pred_fallthru
          _
        // Predicated region
        $region73: #{transformer_forward.4} parent=31 // pred_check
          %p788 = pneg %p400
        $region74: #{transformer_forward.4} parent=31 // pred_check_branch
          %790 = sbr.rel (%p788) target = $region76
        $region75: #{transformer_forward.4} parent=31 // pred_region
          %s791 = sand.u32 %s36, 1
          %s792 = scalar_lea.sflag [#allocation7], %s791
          %s793 = sand.u32 %s390, 1
          %s794 = smul.addr %s793, 64
          %s795 = scalar_lea.vmem [#allocation8], %s794
          %s797 = ssub.s32 1024, 1024
          %798 = vsyncadd %s792, %s797
          %s799 = smul.addr %s36, 16
          %s800 = smul.addr %s799, 64
          %s801 = scalar_lea.hbm %s14, %s800
          %s802 = sshll.u32 %s795, 4
          %s803 = int_to_ptr.vmem [resolvable:$true] %s802
          %808 = dma.hbm_to_vmem [thread:$0]  %s801, 1024, %s803, %s792, 64, 64, 4
        $region76: #{transformer_forward.4} parent=31 // pred_fallthru
          _
        // Predicated region
        $region77: #{transformer_forward.4} parent=31 // pred_check
          %p809 = pneg %p426
        $region78: #{transformer_forward.4} parent=31 // pred_check_branch
          %811 = sbr.rel (%p809) target = $region80
        $region79: #{transformer_forward.4} parent=31 // pred_region
          %p812 = scmp.lt.s32.totalorder %s36, 1
          %s813 = scalar_select %p812, %s36, 1
          %s814 = scalar_lea.vmem %s15, %s813
        $region80: #{transformer_forward.4} parent=31 // pred_fallthru
          _
        // Predicated region
        $region81: #{transformer_forward.4} parent=31 // pred_check
          %p815 = pneg %p452
        $region82: #{transformer_forward.4} parent=31 // pred_check_branch
          %817 = sbr.rel (%p815) target = $region84
        $region83: #{transformer_forward.4} parent=31 // pred_region
          %p818 = scmp.lt.s32.totalorder %s36, 1
          %s819 = scalar_select %p818, %s36, 1
          %s820 = scalar_lea.vmem %s16, %s819
        $region84: #{transformer_forward.4} parent=31 // pred_fallthru
          _
        // Predicated region
        $region85: #{transformer_forward.4} parent=31 // pred_check
          %p821 = pneg %p478
        $region86: #{transformer_forward.4} parent=31 // pred_check_branch
          %823 = sbr.rel (%p821) target = $region88
        $region87: #{transformer_forward.4} parent=31 // pred_region
          %p824 = scmp.lt.s32.totalorder %s36, 1
          %s825 = scalar_select %p824, %s36, 1
          %s826 = scalar_lea.vmem %s17, %s825
        $region88: #{transformer_forward.4} parent=31 // pred_fallthru
          _
        // Predicated region
        $region89: #{transformer_forward.4} parent=31 // pred_check
          %p827 = pneg %p504
        $region90: #{transformer_forward.4} parent=31 // pred_check_branch
          %829 = sbr.rel (%p827) target = $region92
        $region91: #{transformer_forward.4} parent=31 // pred_region
          %p830 = scmp.lt.s32.totalorder %s36, 1
          %s831 = scalar_select %p830, %s36, 1
          %s832 = smul.addr %s831, 32
          %s833 = smul.addr %s832, 4
          %s834 = scalar_lea.vmem %s18, %s833
        $region92: #{transformer_forward.4} parent=31 // pred_fallthru
          _
        // Predicated region
        $region93: #{transformer_forward.4} parent=31 // pred_check
          %p835 = pneg %p530
        $region94: #{transformer_forward.4} parent=31 // pred_check_branch
          %837 = sbr.rel (%p835) target = $region96
        $region95: #{transformer_forward.4} parent=31 // pred_region
          %p838 = scmp.lt.s32.totalorder %s36, 1
          %s839 = scalar_select %p838, %s36, 1
          %s840 = smul.addr %s839, 2
          %s841 = scalar_lea.vmem %s19, %s840
        $region96: #{transformer_forward.4} parent=31 // pred_fallthru
          _
        // Predicated region
        $region97: #{transformer_forward.4} parent=31 // pred_check
          %p842 = pneg %p556
        $region98: #{transformer_forward.4} parent=31 // pred_check_branch
          %844 = sbr.rel (%p842) target = $region100
        $region99: #{transformer_forward.4} parent=31 // pred_region
          %p845 = scmp.lt.s32.totalorder %s36, 1
          %s846 = scalar_select %p845, %s36, 1
          %s847 = smul.addr %s846, 32
          %s848 = smul.addr %s847, 4
          %s849 = scalar_lea.vmem %s20, %s848
        $region100: #{transformer_forward.4} parent=31 // pred_fallthru
          _
        // Predicated region
        $region101: #{transformer_forward.4} parent=31 // pred_check
          %p850 = pneg %p582
        $region102: #{transformer_forward.4} parent=31 // pred_check_branch
          %852 = sbr.rel (%p850) target = $region104
        $region103: #{transformer_forward.4} parent=31 // pred_region
          %p853 = scmp.lt.s32.totalorder %s36, 1
          %s854 = scalar_select %p853, %s36, 1
          %s855 = scalar_lea.vmem %s21, %s854
        $region104: #{transformer_forward.4} parent=31 // pred_fallthru
          _
        // Predicated region
        $region105: #{transformer_forward.4} parent=31 // pred_check
          %p856 = pneg %p608
        $region106: #{transformer_forward.4} parent=31 // pred_check_branch
          %858 = sbr.rel (%p856) target = $region108
        $region107: #{transformer_forward.4} parent=31 // pred_region
          %p859 = scmp.lt.s32.totalorder %s36, 1
          %s860 = scalar_select %p859, %s36, 1
          %s861 = scalar_lea.vmem %s22, %s860
        $region108: #{transformer_forward.4} parent=31 // pred_fallthru
          _
        // Predicated region
        $region109: #{transformer_forward.4} parent=31 // pred_check
          %p862 = pneg %p634
        $region110: #{transformer_forward.4} parent=31 // pred_check_branch
          %864 = sbr.rel (%p862) target = $region112
        $region111: #{transformer_forward.4} parent=31 // pred_region
          %p865 = scmp.lt.s32.totalorder %s36, 1
          %s866 = scalar_select %p865, %s36, 1
          %s867 = scalar_lea.vmem %s23, %s866
        $region112: #{transformer_forward.4} parent=31 // pred_fallthru
          _
      $region32: #{transformer_forward.4} parent=5 // pred_fallthru
        _
      %p868 = scmp.le.s32.totalorder 1, %s36
      %p869 = scmp.lt.s32.totalorder %s36, 3
      %p870 = pnand %p868, %p869
      %p871 = pneg %p870
      // Predicated region
      $region113: #{transformer_forward.4} parent=5 // pred_check
        _
      $region114: #{transformer_forward.4} parent=5 // pred_check_branch
        %873 = sbr.rel (%p870) target = $region116
      $region115: #{transformer_forward.4} parent=5 // pred_region
        %s874 = ssub.s32 %s36, 1
        %s875 = sand.u32 %s185, 1
        %s876 = scalar_lea.sflag [#allocation5], %s875
        %s877 = sand.u32 %s185, 1
        %s878 = smul.addr %s877, 64
        %s879 = scalar_lea.vmem [#allocation4], %s878
        // Predicated region
        $region117: #{transformer_forward.4} parent=115 // pred_check
          %p880 = pneg %p198
        $region118: #{transformer_forward.4} parent=115 // pred_check_branch
          %882 = sbr.rel (%p880) target = $region120
        $region119: #{transformer_forward.4} parent=115 // pred_region
          %883 = dma.done %s876, 1024
        $region120: #{transformer_forward.4} parent=115 // pred_fallthru
          _
        %s884 = sand.u32 %s41, 1
        %s885 = scalar_lea.sflag [#allocation7], %s884
        %s886 = sand.u32 %s289, 1
        %s887 = smul.addr %s886, 64
        %s888 = scalar_lea.vmem [#allocation6], %s887
        // Predicated region
        $region121: #{transformer_forward.4} parent=115 // pred_check
          %p889 = pneg %p302
        $region122: #{transformer_forward.4} parent=115 // pred_check_branch
          %891 = sbr.rel (%p889) target = $region124
        $region123: #{transformer_forward.4} parent=115 // pred_region
          %892 = dma.done %s885, 1024
        $region124: #{transformer_forward.4} parent=115 // pred_fallthru
          _
        %s893 = sand.u32 %s41, 1
        %s894 = scalar_lea.sflag [#allocation7], %s893
        %s895 = sand.u32 %s393, 1
        %s896 = smul.addr %s895, 64
        %s897 = scalar_lea.vmem [#allocation8], %s896
        // Predicated region
        $region125: #{transformer_forward.4} parent=115 // pred_check
          %p898 = pneg %p406
        $region126: #{transformer_forward.4} parent=115 // pred_check_branch
          %900 = sbr.rel (%p898) target = $region128
        $region127: #{transformer_forward.4} parent=115 // pred_region
          %901 = dma.done %s894, 1024
        $region128: #{transformer_forward.4} parent=115 // pred_fallthru
          _
        %p902 = pneg %p57
        %p903 = pneg %p54
        %p904 = pneg %p78
        %p905 = pneg %p75
        %p906 = pneg %p99
        %p907 = pneg %p96
        %p908 = pneg %p120
        %p909 = pneg %p117
        %p910 = scmp.lt.s32.totalorder %s41, 1
        %s911 = scalar_select %p910, %s41, 1
        %s912 = smul.addr %s911, 48
        %s913 = smul.addr %s912, 4
        %s914 = scalar_lea.vmem %s4, %s913
        %p915 = pneg %p146
        %p916 = pneg %p143
        %p917 = scmp.lt.s32.totalorder %s41, 1
        %s918 = scalar_select %p917, %s41, 1
        %s919 = smul.addr %s918, 3
        %s920 = scalar_lea.vmem %s5, %s919
        %p921 = pneg %p172
        %p922 = pneg %p169
        %s923 = sand.u32 %s185, 1
        %s924 = scalar_lea.sflag [#allocation5], %s923
        %s925 = sand.u32 %s185, 1
        %s926 = smul.addr %s925, 64
        %s927 = scalar_lea.vmem [#allocation4], %s926
        %p928 = pneg %p198
        %p929 = pneg %p195
        %p930 = scmp.lt.s32.totalorder %s41, 1
        %s931 = scalar_select %p930, %s41, 1
        %s932 = scalar_lea.vmem %s7, %s931
        %p933 = pneg %p224
        %p934 = pneg %p221
        %p935 = scmp.lt.s32.totalorder %s41, 1
        %s936 = scalar_select %p935, %s41, 1
        %s937 = scalar_lea.vmem %s8, %s936
        %p938 = pneg %p250
        %p939 = pneg %p247
        %p940 = scmp.lt.s32.totalorder %s41, 1
        %s941 = scalar_select %p940, %s41, 1
        %s942 = scalar_lea.vmem %s9, %s941
        %p943 = pneg %p276
        %p944 = pneg %p273
        %s945 = sand.u32 %s41, 1
        %s946 = scalar_lea.sflag [#allocation7], %s945
        %s947 = sand.u32 %s289, 1
        %s948 = smul.addr %s947, 64
        %s949 = scalar_lea.vmem [#allocation6], %s948
        %p950 = pneg %p302
        %p951 = pneg %p299
        %p952 = scmp.lt.s32.totalorder %s41, 1
        %s953 = scalar_select %p952, %s41, 1
        %s954 = scalar_lea.vmem %s11, %s953
        %p955 = pneg %p328
        %p956 = pneg %p325
        %p957 = scmp.lt.s32.totalorder %s41, 1
        %s958 = scalar_select %p957, %s41, 1
        %s959 = smul.addr %s958, 32
        %s960 = smul.addr %s959, 4
        %s961 = scalar_lea.vmem %s12, %s960
        %p962 = pneg %p354
        %p963 = pneg %p351
        %p964 = scmp.lt.s32.totalorder %s41, 1
        %s965 = scalar_select %p964, %s41, 1
        %s966 = smul.addr %s965, 2
        %s967 = scalar_lea.vmem %s13, %s966
        %p968 = pneg %p380
        %p969 = pneg %p377
        %s970 = sand.u32 %s41, 1
        %s971 = scalar_lea.sflag [#allocation7], %s970
        %s972 = sand.u32 %s393, 1
        %s973 = smul.addr %s972, 64
        %s974 = scalar_lea.vmem [#allocation8], %s973
        %p975 = pneg %p406
        %p976 = pneg %p403
        %p977 = scmp.lt.s32.totalorder %s41, 1
        %s978 = scalar_select %p977, %s41, 1
        %s979 = scalar_lea.vmem %s15, %s978
        %p980 = pneg %p432
        %p981 = pneg %p429
        %p982 = scmp.lt.s32.totalorder %s41, 1
        %s983 = scalar_select %p982, %s41, 1
        %s984 = scalar_lea.vmem %s16, %s983
        %p985 = pneg %p458
        %p986 = pneg %p455
        %p987 = scmp.lt.s32.totalorder %s41, 1
        %s988 = scalar_select %p987, %s41, 1
        %s989 = scalar_lea.vmem %s17, %s988
        %p990 = pneg %p484
        %p991 = pneg %p481
        %p992 = scmp.lt.s32.totalorder %s41, 1
        %s993 = scalar_select %p992, %s41, 1
        %s994 = smul.addr %s993, 32
        %s995 = smul.addr %s994, 4
        %s996 = scalar_lea.vmem %s18, %s995
        %p997 = pneg %p510
        %p998 = pneg %p507
        %p999 = scmp.lt.s32.totalorder %s41, 1
        %s1000 = scalar_select %p999, %s41, 1
        %s1001 = smul.addr %s1000, 2
        %s1002 = scalar_lea.vmem %s19, %s1001
        %p1003 = pneg %p536
        %p1004 = pneg %p533
        %p1005 = scmp.lt.s32.totalorder %s41, 1
        %s1006 = scalar_select %p1005, %s41, 1
        %s1007 = smul.addr %s1006, 32
        %s1008 = smul.addr %s1007, 4
        %s1009 = scalar_lea.vmem %s20, %s1008
        %p1010 = pneg %p562
        %p1011 = pneg %p559
        %p1012 = scmp.lt.s32.totalorder %s41, 1
        %s1013 = scalar_select %p1012, %s41, 1
        %s1014 = scalar_lea.vmem %s21, %s1013
        %p1015 = pneg %p588
        %p1016 = pneg %p585
        %p1017 = scmp.lt.s32.totalorder %s41, 1
        %s1018 = scalar_select %p1017, %s41, 1
        %s1019 = scalar_lea.vmem %s22, %s1018
        %p1020 = pneg %p614
        %p1021 = pneg %p611
        %p1022 = scmp.lt.s32.totalorder %s41, 1
        %s1023 = scalar_select %p1022, %s41, 1
        %s1024 = scalar_lea.vmem %s23, %s1023
        %p1025 = pneg %p640
        %p1026 = pneg %p637
        %p1027 = pneg %p661
        %p1028 = pneg %p658
        %p1029 = scmp.lt.s32.totalorder %s41, 1
        %s1030 = scalar_select %p1029, %s41, 1
        %s1031 = smul.addr %s1030, 48
        %s1032 = smul.addr %s1031, 4
        %s1033 = scalar_lea.vmem %s4, %s1032
        %p1034 = scmp.lt.s32.totalorder %s41, 1
        %s1035 = scalar_select %p1034, %s41, 1
        %s1036 = smul.addr %s1035, 3
        %s1037 = scalar_lea.vmem %s5, %s1036
        %p1038 = scmp.lt.s32.totalorder %s41, 1
        %s1039 = scalar_select %p1038, %s41, 1
        %s1040 = scalar_lea.vmem %s7, %s1039
        %p1041 = scmp.lt.s32.totalorder %s41, 1
        %s1042 = scalar_select %p1041, %s41, 1
        %s1043 = scalar_lea.vmem %s8, %s1042
        %p1044 = scmp.lt.s32.totalorder %s41, 1
        %s1045 = scalar_select %p1044, %s41, 1
        %s1046 = scalar_lea.vmem %s9, %s1045
        %p1047 = scmp.lt.s32.totalorder %s41, 1
        %s1048 = scalar_select %p1047, %s41, 1
        %s1049 = scalar_lea.vmem %s11, %s1048
        %p1050 = scmp.lt.s32.totalorder %s41, 1
        %s1051 = scalar_select %p1050, %s41, 1
        %s1052 = smul.addr %s1051, 32
        %s1053 = smul.addr %s1052, 4
        %s1054 = scalar_lea.vmem %s12, %s1053
        %p1055 = scmp.lt.s32.totalorder %s41, 1
        %s1056 = scalar_select %p1055, %s41, 1
        %s1057 = smul.addr %s1056, 2
        %s1058 = scalar_lea.vmem %s13, %s1057
        %p1059 = scmp.lt.s32.totalorder %s41, 1
        %s1060 = scalar_select %p1059, %s41, 1
        %s1061 = scalar_lea.vmem %s15, %s1060
        %p1062 = scmp.lt.s32.totalorder %s41, 1
        %s1063 = scalar_select %p1062, %s41, 1
        %s1064 = scalar_lea.vmem %s16, %s1063
        %p1065 = scmp.lt.s32.totalorder %s41, 1
        %s1066 = scalar_select %p1065, %s41, 1
        %s1067 = scalar_lea.vmem %s17, %s1066
        %p1068 = scmp.lt.s32.totalorder %s41, 1
        %s1069 = scalar_select %p1068, %s41, 1
        %s1070 = smul.addr %s1069, 32
        %s1071 = smul.addr %s1070, 4
        %s1072 = scalar_lea.vmem %s18, %s1071
        %p1073 = scmp.lt.s32.totalorder %s41, 1
        %s1074 = scalar_select %p1073, %s41, 1
        %s1075 = smul.addr %s1074, 2
        %s1076 = scalar_lea.vmem %s19, %s1075
        %p1077 = scmp.lt.s32.totalorder %s41, 1
        %s1078 = scalar_select %p1077, %s41, 1
        %s1079 = smul.addr %s1078, 32
        %s1080 = smul.addr %s1079, 4
        %s1081 = scalar_lea.vmem %s20, %s1080
        %p1082 = scmp.lt.s32.totalorder %s41, 1
        %s1083 = scalar_select %p1082, %s41, 1
        %s1084 = scalar_lea.vmem %s21, %s1083
        %p1085 = scmp.lt.s32.totalorder %s41, 1
        %s1086 = scalar_select %p1085, %s41, 1
        %s1087 = scalar_lea.vmem %s22, %s1086
        %p1088 = scmp.lt.s32.totalorder %s41, 1
        %s1089 = scalar_select %p1088, %s41, 1
        %s1090 = scalar_lea.vmem %s23, %s1089
        %p1092 = scmp.eq.s32.totalorder %s41, 0
        // Predicated region
        $region129: #{transformer_forward.4} parent=115 // pred_check
          %p1093 = pneg %p1092
        $region130: #{transformer_forward.4} parent=115 // pred_check_branch
          %1095 = sbr.rel (%p1093) target = $region132
        $region131: #{transformer_forward.4} parent=115 // pred_region
          %v1096 = vld [vmem:[%s0] sm:$0xff]
          %v1097 = vld [vmem:[%s0 + $0x8] sm:$0xff]
          %1098 = vst [vmem:[#allocation2] sm:$0xff] %v1096
          %1099 = vst [vmem:[#allocation2 + $0x8] sm:$0xff] %v1097
        $region132: #{transformer_forward.4} parent=115 // pred_fallthru
          _
        %v1100 = vld [vmem:[#allocation2] sm:$0xff]
        %v1101 = vld [vmem:[#allocation2 + $0x8] sm:$0xff]
        %v1102 = vpack.c.bf16 %v1101, %v1100
        %v1103 = vld [vmem:[%s1033] sm:$0xff]
        %v1104 = vld [vmem:[%s1033 + $0x8] sm:$0xf]
        %v1105 = vld [vmem:[%s1033 + $0xc] sm:$0xff]
        %v1106 = vld [vmem:[%s1033 + $0x14] sm:$0xf]
        %v1107 = vld [vmem:[%s1033 + $0x18] sm:$0xff]
        %v1108 = vld [vmem:[%s1033 + $0x20] sm:$0xf]
        %v1109 = vld [vmem:[%s1033 + $0x24] sm:$0xff]
        %v1110 = vld [vmem:[%s1033 + $0x2c] sm:$0xf]
        %v1111 = vld [vmem:[%s1033 + $0x30] sm:$0xff]
        %v1112 = vld [vmem:[%s1033 + $0x38] sm:$0xf]
        %v1113 = vld [vmem:[%s1033 + $0x3c] sm:$0xff]
        %v1114 = vld [vmem:[%s1033 + $0x44] sm:$0xf]
        %v1115 = vld [vmem:[%s1033 + $0x48] sm:$0xff]
        %v1116 = vld [vmem:[%s1033 + $0x50] sm:$0xf]
        %v1117 = vld [vmem:[%s1033 + $0x54] sm:$0xff]
        %v1118 = vld [vmem:[%s1033 + $0x5c] sm:$0xf]
        %v1119 = vld [vmem:[%s1033 + $0x60] sm:$0xff]
        %v1120 = vld [vmem:[%s1033 + $0x68] sm:$0xf]
        %v1121 = vld [vmem:[%s1033 + $0x6c] sm:$0xff]
        %v1122 = vld [vmem:[%s1033 + $0x74] sm:$0xf]
        %v1123 = vld [vmem:[%s1033 + $0x78] sm:$0xff]
        %v1124 = vld [vmem:[%s1033 + $0x80] sm:$0xf]
        %v1125 = vld [vmem:[%s1033 + $0x84] sm:$0xff]
        %v1126 = vld [vmem:[%s1033 + $0x8c] sm:$0xf]
        %v1127 = vld [vmem:[%s1033 + $0x90] sm:$0xff]
        %v1128 = vld [vmem:[%s1033 + $0x98] sm:$0xf]
        %v1129 = vld [vmem:[%s1033 + $0x9c] sm:$0xff]
        %v1130 = vld [vmem:[%s1033 + $0xa4] sm:$0xf]
        %v1131 = vld [vmem:[%s1033 + $0xa8] sm:$0xff]
        %v1132 = vld [vmem:[%s1033 + $0xb0] sm:$0xf]
        %v1133 = vld [vmem:[%s1033 + $0xb4] sm:$0xff]
        %v1134 = vld [vmem:[%s1033 + $0xbc] sm:$0xf]
        %v1135 = vld [vmem:[%s1037] sm:$0x7]
        %v1137 = vlaneseq
        %v1138 = vshrl.u32 %v1137, 7
        %v1139 = vsub.s32 0, %v1138
        %v1140 = vrot.slane %v1135, %v1139
        %v1141 = vlaneseq
        %v1142 = vshrl.u32 %v1141, 7
        %v1143 = vsub.s32 1, %v1142
        %v1144 = vrot.slane %v1135, %v1143
        %v1145 = vlaneseq
        %v1146 = vshrl.u32 %v1145, 7
        %v1147 = vsub.s32 2, %v1146
        %v1148 = vrot.slane %v1135, %v1147
        %v1184 = vunpack.c.l.b16 %v1103
        %v1185 = vunpack.c.h.b16 %v1103
        %v1186 = vunpack.c.l.b16 %v1104
        %v1187 = vunpack.c.l.b16 %v1105
        %v1188 = vunpack.c.h.b16 %v1105
        %v1189 = vunpack.c.l.b16 %v1106
        %v1190 = vunpack.c.l.b16 %v1107
        %v1191 = vunpack.c.h.b16 %v1107
        %v1192 = vunpack.c.l.b16 %v1108
        %v1193 = vunpack.c.l.b16 %v1109
        %v1194 = vunpack.c.h.b16 %v1109
        %v1195 = vunpack.c.l.b16 %v1110
        %v1196 = vunpack.c.l.b16 %v1111
        %v1197 = vunpack.c.h.b16 %v1111
        %v1198 = vunpack.c.l.b16 %v1112
        %v1199 = vunpack.c.l.b16 %v1113
        %v1200 = vunpack.c.h.b16 %v1113
        %v1201 = vunpack.c.l.b16 %v1114
        %v1202 = vunpack.c.l.b16 %v1115
        %v1203 = vunpack.c.h.b16 %v1115
        %v1204 = vunpack.c.l.b16 %v1116
        %v1205 = vunpack.c.l.b16 %v1117
        %v1206 = vunpack.c.h.b16 %v1117
        %v1207 = vunpack.c.l.b16 %v1118
        %v1208 = vunpack.c.l.b16 %v1119
        %v1209 = vunpack.c.h.b16 %v1119
        %v1210 = vunpack.c.l.b16 %v1120
        %v1211 = vunpack.c.l.b16 %v1121
        %v1212 = vunpack.c.h.b16 %v1121
        %v1213 = vunpack.c.l.b16 %v1122
        %v1214 = vunpack.c.l.b16 %v1123
        %v1215 = vunpack.c.h.b16 %v1123
        %v1216 = vunpack.c.l.b16 %v1124
        %v1217 = vunpack.c.l.b16 %v1125
        %v1218 = vunpack.c.h.b16 %v1125
        %v1219 = vunpack.c.l.b16 %v1126
        %v1220 = vunpack.c.l.b16 %v1127
        %v1221 = vunpack.c.h.b16 %v1127
        %v1222 = vunpack.c.l.b16 %v1128
        %v1223 = vunpack.c.l.b16 %v1129
        %v1224 = vunpack.c.h.b16 %v1129
        %v1225 = vunpack.c.l.b16 %v1130
        %v1226 = vunpack.c.l.b16 %v1131
        %v1227 = vunpack.c.h.b16 %v1131
        %v1228 = vunpack.c.l.b16 %v1132
        %v1229 = vunpack.c.l.b16 %v1133
        %v1230 = vunpack.c.h.b16 %v1133
        %v1231 = vunpack.c.l.b16 %v1134
        %v1232 = vpack.c.b16 %v1187, %v1184
        %v1233 = vpack.c.b16 %v1188, %v1185
        %v1234 = vpack.c.b16 %v1189, %v1186
        %v1235 = vpack.c.b16 %v1193, %v1190
        %v1236 = vpack.c.b16 %v1194, %v1191
        %v1237 = vpack.c.b16 %v1195, %v1192
        %v1238 = vpack.c.b16 %v1199, %v1196
        %v1239 = vpack.c.b16 %v1200, %v1197
        %v1240 = vpack.c.b16 %v1201, %v1198
        %v1241 = vpack.c.b16 %v1205, %v1202
        %v1242 = vpack.c.b16 %v1206, %v1203
        %v1243 = vpack.c.b16 %v1207, %v1204
        %v1244 = vpack.c.b16 %v1211, %v1208
        %v1245 = vpack.c.b16 %v1212, %v1209
        %v1246 = vpack.c.b16 %v1213, %v1210
        %v1247 = vpack.c.b16 %v1217, %v1214
        %v1248 = vpack.c.b16 %v1218, %v1215
        %v1249 = vpack.c.b16 %v1219, %v1216
        %v1250 = vpack.c.b16 %v1223, %v1220
        %v1251 = vpack.c.b16 %v1224, %v1221
        %v1252 = vpack.c.b16 %v1225, %v1222
        %v1253 = vpack.c.b16 %v1229, %v1226
        %v1254 = vpack.c.b16 %v1230, %v1227
        %v1255 = vpack.c.b16 %v1231, %v1228
        %1280 = vmatprep.subr.bf16.mxu0 %v1233
        %1281 = vmatpush1.bf16.msra.mxu0 %v1232
        %1282 = vmatprep.subr.bf16.mxu0 %v1236
        %1283 = vmatpush1.bf16.msra.mxu0 %v1235
        %1284 = vmatprep.subr.bf16.mxu0 %v1239
        %1285 = vmatpush1.bf16.msra.mxu0 %v1238
        %1286 = vmatprep.subr.bf16.mxu0 %v1242
        %1287 = vmatpush1.bf16.msra.mxu0 %v1241
        %1288 = vmatprep.subr.bf16.mxu0 %v1245
        %1289 = vmatpush1.bf16.msra.mxu0 %v1244
        %1290 = vmatprep.subr.bf16.mxu0 %v1248
        %1291 = vmatpush1.bf16.msra.mxu0 %v1247
        %1292 = vmatprep.subr.bf16.mxu0 %v1251
        %1293 = vmatpush1.bf16.msra.mxu0 %v1250
        %1294 = vmatprep.subr.bf16.mxu0 %v1254
        %1295 = vmatpush1.bf16.msra.mxu0 %v1253
        %1296 = vmatprep.subr.bf16.mxu0 0
        %1297 = vmatpush1.bf16.msra.mxu0 0
        %1298 = vmatprep.subr.bf16.mxu0 0
        %1299 = vmatpush1.bf16.msra.mxu0 0
        %1300 = vmatprep.subr.bf16.mxu0 0
        %1301 = vmatpush1.bf16.msra.mxu0 0
        %1302 = vmatprep.subr.bf16.mxu0 0
        %1303 = vmatpush1.bf16.msra.mxu0 0
        %1304 = vmatprep.subr.bf16.mxu0 0
        %1305 = vmatpush1.bf16.msra.mxu0 0
        %1306 = vmatprep.subr.bf16.mxu0 0
        %1307 = vmatpush1.bf16.msra.mxu0 0
        %1308 = vmatprep.subr.bf16.mxu0 0
        %1309 = vmatpush1.bf16.msra.mxu0 0
        %1310 = vmatprep.subr.bf16.mxu0 0
        %1311 = vmatpush1.bf16.msra.mxu0 0
        %1312 = vmatprep.mubr.bf16.mxu0 0
        %1313 = vmatmul.mubr.bf16.gmra.mrb[0].mxu0 %v1102
        %v1314 = vpop.f32.mrb[0].mxu0
        %v1315 = vadd.f32 %v1140, %v1314
        %v1316 = vpop.f32.mrb[0].mxu0
        %v1317 = vadd.f32 %v1144, %v1316
        %v1318 = vpop.f32.mrb[0].mxu0
        %v1319 = vadd.f32 %v1140, %v1318
        %v1320 = vpop.f32.mrb[0].mxu0
        %v1321 = vadd.f32 %v1144, %v1320
        %1322 = vdwg.mxu0
        %1323 = vmatprep.subr.bf16.mxu0 0
        %1324 = vmatpush1.bf16.msra.mxu0 %v1234
        %1325 = vmatprep.subr.bf16.mxu0 0
        %1326 = vmatpush1.bf16.msra.mxu0 %v1237
        %1327 = vmatprep.subr.bf16.mxu0 0
        %1328 = vmatpush1.bf16.msra.mxu0 %v1240
        %1329 = vmatprep.subr.bf16.mxu0 0
        %1330 = vmatpush1.bf16.msra.mxu0 %v1243
        %1331 = vmatprep.subr.bf16.mxu0 0
        %1332 = vmatpush1.bf16.msra.mxu0 %v1246
        %1333 = vmatprep.subr.bf16.mxu0 0
        %1334 = vmatpush1.bf16.msra.mxu0 %v1249
        %1335 = vmatprep.subr.bf16.mxu0 0
        %1336 = vmatpush1.bf16.msra.mxu0 %v1252
        %1337 = vmatprep.subr.bf16.mxu0 0
        %1338 = vmatpush1.bf16.msra.mxu0 %v1255
        %1339 = vmatprep.subr.bf16.mxu0 0
        %1340 = vmatpush1.bf16.msra.mxu0 0
        %1341 = vmatprep.subr.bf16.mxu0 0
        %1342 = vmatpush1.bf16.msra.mxu0 0
        %1343 = vmatprep.subr.bf16.mxu0 0
        %1344 = vmatpush1.bf16.msra.mxu0 0
        %1345 = vmatprep.subr.bf16.mxu0 0
        %1346 = vmatpush1.bf16.msra.mxu0 0
        %1347 = vmatprep.subr.bf16.mxu0 0
        %1348 = vmatpush1.bf16.msra.mxu0 0
        %1349 = vmatprep.subr.bf16.mxu0 0
        %1350 = vmatpush1.bf16.msra.mxu0 0
        %1351 = vmatprep.subr.bf16.mxu0 0
        %1352 = vmatpush1.bf16.msra.mxu0 0
        %1353 = vmatprep.subr.bf16.mxu0 0
        %1354 = vmatpush1.bf16.msra.mxu0 0
        %1355 = vmatprep.mubr.bf16.mxu0 0
        %1356 = vmatmul.mubr.bf16.gmra.mrb[0].mxu0 %v1102
        %v1357 = vpop.f32.mrb[0].mxu0
        %v1358 = vadd.f32 %v1148, %v1357
        %v1359 = vpop.f32.mrb[0].mxu0
        %v1360 = vpop.f32.mrb[0].mxu0
        %v1361 = vadd.f32 %v1148, %v1360
        %v1362 = vpop.f32.mrb[0].mxu0
        %1363 = vdwg.mxu0
        %v1364 = vld [vmem:[%s2] sm:$0xff]
        %v1365 = vld [vmem:[%s2 + $0x8] sm:$0xff]
        %v1366 = vpack.c.bf16 %v1315, %v1315
        %v1367 = vpack.c.bf16 %v1319, %v1319
        %v1368 = vpack.c.bf16 %v1317, %v1317
        %v1369 = vpack.c.bf16 %v1321, %v1321
        %vm1370 = vcmask 261120
        %v1372 = vsel %vm1370, %v1366, 0
        %v1375 = vsel %vm1370, %v1368, 0
        %1377 = vmatprep.subr.bf16.mxu0 0
        %1378 = vmatpush1.bf16.xpose.msra.mxu0 %v1375
        %1379 = vmatprep.subr.bf16.mxu0 0
        %1380 = vmatpush1.bf16.xpose.msra.mxu0 0
        %1381 = vmatprep.subr.bf16.mxu0 0
        %1382 = vmatpush1.bf16.xpose.msra.mxu0 0
        %1383 = vmatprep.subr.bf16.mxu0 0
        %1384 = vmatpush1.bf16.xpose.msra.mxu0 0
        %1385 = vmatprep.subr.bf16.mxu0 0
        %1386 = vmatpush1.bf16.xpose.msra.mxu0 0
        %1387 = vmatprep.subr.bf16.mxu0 0
        %1388 = vmatpush1.bf16.xpose.msra.mxu0 0
        %1389 = vmatprep.subr.bf16.mxu0 0
        %1390 = vmatpush1.bf16.xpose.msra.mxu0 0
        %1391 = vmatprep.subr.bf16.mxu0 0
        %1392 = vmatpush1.bf16.xpose.msra.mxu0 0
        %1393 = vmatprep.subr.bf16.mxu0 0
        %1394 = vmatpush1.bf16.xpose.msra.mxu0 0
        %1395 = vmatprep.subr.bf16.mxu0 0
        %1396 = vmatpush1.bf16.xpose.msra.mxu0 0
        %1397 = vmatprep.subr.bf16.mxu0 0
        %1398 = vmatpush1.bf16.xpose.msra.mxu0 0
        %1399 = vmatprep.subr.bf16.mxu0 0
        %1400 = vmatpush1.bf16.xpose.msra.mxu0 0
        %1401 = vmatprep.subr.bf16.mxu0 0
        %1402 = vmatpush1.bf16.xpose.msra.mxu0 0
        %1403 = vmatprep.subr.bf16.mxu0 0
        %1404 = vmatpush1.bf16.xpose.msra.mxu0 0
        %1405 = vmatprep.subr.bf16.mxu0 0
        %1406 = vmatpush1.bf16.xpose.msra.mxu0 0
        %1407 = vmatprep.subr.bf16.mxu0 0
        %1408 = vmatpush1.bf16.xpose.msra.mxu0 0
        %1409 = vmatprep.mubr.bf16.mxu0 0
        %1410 = vmatmul.mubr.bf16.gmra.mrb[0].mxu0 %v1372
        %v1411 = vpop.f32.mrb[0].mxu0
        %v1412 = vadd.f32 %v1364, %v1411
        %v1413 = vpop.f32.mrb[0].mxu0
        %v1414 = vpop.f32.mrb[0].mxu0
        %v1415 = vpop.f32.mrb[0].mxu0
        %1416 = vdwg.mxu0
        %v1418 = vsel %vm1370, %v1367, 0
        %v1421 = vsel %vm1370, %v1369, 0
        %1423 = vmatprep.subr.bf16.mxu0 0
        %1424 = vmatpush1.bf16.xpose.msra.mxu0 %v1421
        %1425 = vmatprep.subr.bf16.mxu0 0
        %1426 = vmatpush1.bf16.xpose.msra.mxu0 0
        %1427 = vmatprep.subr.bf16.mxu0 0
        %1428 = vmatpush1.bf16.xpose.msra.mxu0 0
        %1429 = vmatprep.subr.bf16.mxu0 0
        %1430 = vmatpush1.bf16.xpose.msra.mxu0 0
        %1431 = vmatprep.subr.bf16.mxu0 0
        %1432 = vmatpush1.bf16.xpose.msra.mxu0 0
        %1433 = vmatprep.subr.bf16.mxu0 0
        %1434 = vmatpush1.bf16.xpose.msra.mxu0 0
        %1435 = vmatprep.subr.bf16.mxu0 0
        %1436 = vmatpush1.bf16.xpose.msra.mxu0 0
        %1437 = vmatprep.subr.bf16.mxu0 0
        %1438 = vmatpush1.bf16.xpose.msra.mxu0 0
        %1439 = vmatprep.subr.bf16.mxu0 0
        %1440 = vmatpush1.bf16.xpose.msra.mxu0 0
        %1441 = vmatprep.subr.bf16.mxu0 0
        %1442 = vmatpush1.bf16.xpose.msra.mxu0 0
        %1443 = vmatprep.subr.bf16.mxu0 0
        %1444 = vmatpush1.bf16.xpose.msra.mxu0 0
        %1445 = vmatprep.subr.bf16.mxu0 0
        %1446 = vmatpush1.bf16.xpose.msra.mxu0 0
        %1447 = vmatprep.subr.bf16.mxu0 0
        %1448 = vmatpush1.bf16.xpose.msra.mxu0 0
        %1449 = vmatprep.subr.bf16.mxu0 0
        %1450 = vmatpush1.bf16.xpose.msra.mxu0 0
        %1451 = vmatprep.subr.bf16.mxu0 0
        %1452 = vmatpush1.bf16.xpose.msra.mxu0 0
        %1453 = vmatprep.subr.bf16.mxu0 0
        %1454 = vmatpush1.bf16.xpose.msra.mxu0 0
        %1455 = vmatprep.mubr.bf16.mxu0 0
        %1456 = vmatmul.mubr.bf16.gmra.mrb[0].mxu0 %v1418
        %v1457 = vpop.f32.mrb[0].mxu0
        %v1458 = vadd.f32 %v1365, %v1457
        %v1459 = vpop.f32.mrb[0].mxu0
        %v1460 = vpop.f32.mrb[0].mxu0
        %v1461 = vpop.f32.mrb[0].mxu0
        %1462 = vdwg.mxu0
        %vm1463 = vcmask 64512
        %v1464 = vsel %vm1463, %v1412, -inf
        %1465 = vmax.xlane.f32.xlu0 %v1464
        %v1466 = vpop.xlane.xlu0 %1465
        %v1467 = vsel %vm1463, %v1458, -inf
        %1468 = vmax.xlane.f32.xlu0 %v1467
        %v1469 = vpop.xlane.xlu0 %1468
        %v1470 = vsub.f32 %v1412, %v1466
        %v1471 = vsub.f32 %v1458, %v1469
        %v1472 = vmul.f32 %v1470, 1.442695
        %v1473 = vpow.pop %v1472
        %v1474 = vmul.f32 %v1471, 1.442695
        %v1475 = vpow.pop %v1474
        %v1476 = vsel %vm1463, %v1473, 0.0
        %1477 = vadd.xlane.f32.xlu0 %v1476
        %v1478 = vpop.xlane.xlu0 %1477
        %v1479 = vsel %vm1463, %v1475, 0.0
        %1480 = vadd.xlane.f32.xlu0 %v1479
        %v1481 = vpop.xlane.xlu0 %1480
        %v1482 = vrcp.pop %v1478
        %v1483 = vmul.f32 %v1473, %v1482
        %v1484 = vrcp.pop %v1481
        %v1485 = vmul.f32 %v1475, %v1484
        %v1486 = vpack.c.bf16 %v1483, %v1483
        %v1487 = vpack.c.bf16 %v1485, %v1485
        %v1488 = vpack.c.bf16 %v1358, %v1358
        %v1489 = vpack.c.bf16 %v1361, %v1361
        %v1491 = vsel %vm1463, %v1486, 0
        %vm1493 = vcmask 1043456
        %v1495 = vsel %vm1493, %v1488, 0
        %1497 = vmatprep.subr.bf16.mxu0 0
        %1498 = vmatpush1.bf16.msra.mxu0 %v1495
        %1499 = vmatprep.subr.bf16.mxu0 0
        %1500 = vmatpush1.bf16.msra.mxu0 0
        %1501 = vmatprep.subr.bf16.mxu0 0
        %1502 = vmatpush1.bf16.msra.mxu0 0
        %1503 = vmatprep.subr.bf16.mxu0 0
        %1504 = vmatpush1.bf16.msra.mxu0 0
        %1505 = vmatprep.subr.bf16.mxu0 0
        %1506 = vmatpush1.bf16.msra.mxu0 0
        %1507 = vmatprep.subr.bf16.mxu0 0
        %1508 = vmatpush1.bf16.msra.mxu0 0
        %1509 = vmatprep.subr.bf16.mxu0 0
        %1510 = vmatpush1.bf16.msra.mxu0 0
        %1511 = vmatprep.subr.bf16.mxu0 0
        %1512 = vmatpush1.bf16.msra.mxu0 0
        %1513 = vmatprep.subr.bf16.mxu0 0
        %1514 = vmatpush1.bf16.msra.mxu0 0
        %1515 = vmatprep.subr.bf16.mxu0 0
        %1516 = vmatpush1.bf16.msra.mxu0 0
        %1517 = vmatprep.subr.bf16.mxu0 0
        %1518 = vmatpush1.bf16.msra.mxu0 0
        %1519 = vmatprep.subr.bf16.mxu0 0
        %1520 = vmatpush1.bf16.msra.mxu0 0
        %1521 = vmatprep.subr.bf16.mxu0 0
        %1522 = vmatpush1.bf16.msra.mxu0 0
        %1523 = vmatprep.subr.bf16.mxu0 0
        %1524 = vmatpush1.bf16.msra.mxu0 0
        %1525 = vmatprep.subr.bf16.mxu0 0
        %1526 = vmatpush1.bf16.msra.mxu0 0
        %1527 = vmatprep.subr.bf16.mxu0 0
        %1528 = vmatpush1.bf16.msra.mxu0 0
        %1529 = vmatprep.mubr.bf16.mxu0 0
        %1530 = vmatmul.mubr.bf16.gmra.mrb[0].mxu0 %v1491
        %v1531 = vpop.f32.mrb[0].mxu0
        %v1532 = vadd.f32 0.0, %v1531
        %v1533 = vpop.f32.mrb[0].mxu0
        %v1534 = vpop.f32.mrb[0].mxu0
        %v1535 = vpop.f32.mrb[0].mxu0
        %1536 = vdwg.mxu0
        %v1538 = vsel %vm1463, %v1487, 0
        %v1541 = vsel %vm1493, %v1489, 0
        %1543 = vmatprep.subr.bf16.mxu0 0
        %1544 = vmatpush1.bf16.msra.mxu0 %v1541
        %1545 = vmatprep.subr.bf16.mxu0 0
        %1546 = vmatpush1.bf16.msra.mxu0 0
        %1547 = vmatprep.subr.bf16.mxu0 0
        %1548 = vmatpush1.bf16.msra.mxu0 0
        %1549 = vmatprep.subr.bf16.mxu0 0
        %1550 = vmatpush1.bf16.msra.mxu0 0
        %1551 = vmatprep.subr.bf16.mxu0 0
        %1552 = vmatpush1.bf16.msra.mxu0 0
        %1553 = vmatprep.subr.bf16.mxu0 0
        %1554 = vmatpush1.bf16.msra.mxu0 0
        %1555 = vmatprep.subr.bf16.mxu0 0
        %1556 = vmatpush1.bf16.msra.mxu0 0
        %1557 = vmatprep.subr.bf16.mxu0 0
        %1558 = vmatpush1.bf16.msra.mxu0 0
        %1559 = vmatprep.subr.bf16.mxu0 0
        %1560 = vmatpush1.bf16.msra.mxu0 0
        %1561 = vmatprep.subr.bf16.mxu0 0
        %1562 = vmatpush1.bf16.msra.mxu0 0
        %1563 = vmatprep.subr.bf16.mxu0 0
        %1564 = vmatpush1.bf16.msra.mxu0 0
        %1565 = vmatprep.subr.bf16.mxu0 0
        %1566 = vmatpush1.bf16.msra.mxu0 0
        %1567 = vmatprep.subr.bf16.mxu0 0
        %1568 = vmatpush1.bf16.msra.mxu0 0
        %1569 = vmatprep.subr.bf16.mxu0 0
        %1570 = vmatpush1.bf16.msra.mxu0 0
        %1571 = vmatprep.subr.bf16.mxu0 0
        %1572 = vmatpush1.bf16.msra.mxu0 0
        %1573 = vmatprep.subr.bf16.mxu0 0
        %1574 = vmatpush1.bf16.msra.mxu0 0
        %1575 = vmatprep.mubr.bf16.mxu0 0
        %1576 = vmatmul.mubr.bf16.gmra.mrb[0].mxu0 %v1538
        %v1577 = vpop.f32.mrb[0].mxu0
        %v1578 = vadd.f32 0.0, %v1577
        %v1579 = vpop.f32.mrb[0].mxu0
        %v1580 = vpop.f32.mrb[0].mxu0
        %v1581 = vpop.f32.mrb[0].mxu0
        %1582 = vdwg.mxu0
        %1583 = vst.msk [vmem:[#allocation3] sm:$0xff] %vm1370, %v1532
        %1584 = vst.msk [vmem:[#allocation3 + $0x8] sm:$0xff] %vm1370, %v1578
        %1586 = vrot.lane.b32.xlu0 %v1366, 96
        %v1587 = vpop.permute.xlu0 %1586
        %1589 = vrot.lane.b32.xlu0 %v1368, 96
        %v1590 = vpop.permute.xlu0 %1589
        %v1592 = vsel %vm1370, %v1587, 0
        %v1595 = vsel %vm1370, %v1590, 0
        %1597 = vmatprep.subr.bf16.mxu0 0
        %1598 = vmatpush1.bf16.xpose.msra.mxu0 %v1595
        %1599 = vmatprep.subr.bf16.mxu0 0
        %1600 = vmatpush1.bf16.xpose.msra.mxu0 0
        %1601 = vmatprep.subr.bf16.mxu0 0
        %1602 = vmatpush1.bf16.xpose.msra.mxu0 0
        %1603 = vmatprep.subr.bf16.mxu0 0
        %1604 = vmatpush1.bf16.xpose.msra.mxu0 0
        %1605 = vmatprep.subr.bf16.mxu0 0
        %1606 = vmatpush1.bf16.xpose.msra.mxu0 0
        %1607 = vmatprep.subr.bf16.mxu0 0
        %1608 = vmatpush1.bf16.xpose.msra.mxu0 0
        %1609 = vmatprep.subr.bf16.mxu0 0
        %1610 = vmatpush1.bf16.xpose.msra.mxu0 0
        %1611 = vmatprep.subr.bf16.mxu0 0
        %1612 = vmatpush1.bf16.xpose.msra.mxu0 0
        %1613 = vmatprep.subr.bf16.mxu0 0
        %1614 = vmatpush1.bf16.xpose.msra.mxu0 0
        %1615 = vmatprep.subr.bf16.mxu0 0
        %1616 = vmatpush1.bf16.xpose.msra.mxu0 0
        %1617 = vmatprep.subr.bf16.mxu0 0
        %1618 = vmatpush1.bf16.xpose.msra.mxu0 0
        %1619 = vmatprep.subr.bf16.mxu0 0
        %1620 = vmatpush1.bf16.xpose.msra.mxu0 0
        %1621 = vmatprep.subr.bf16.mxu0 0
        %1622 = vmatpush1.bf16.xpose.msra.mxu0 0
        %1623 = vmatprep.subr.bf16.mxu0 0
        %1624 = vmatpush1.bf16.xpose.msra.mxu0 0
        %1625 = vmatprep.subr.bf16.mxu0 0
        %1626 = vmatpush1.bf16.xpose.msra.mxu0 0
        %1627 = vmatprep.subr.bf16.mxu0 0
        %1628 = vmatpush1.bf16.xpose.msra.mxu0 0
        %1629 = vmatprep.mubr.bf16.mxu0 0
        %1630 = vmatmul.mubr.bf16.gmra.mrb[0].mxu0 %v1592
        %v1631 = vpop.f32.mrb[0].mxu0
        %v1632 = vadd.f32 %v1364, %v1631
        %v1633 = vpop.f32.mrb[0].mxu0
        %v1634 = vpop.f32.mrb[0].mxu0
        %v1635 = vpop.f32.mrb[0].mxu0
        %1636 = vdwg.mxu0
        %1638 = vrot.lane.b32.xlu0 %v1367, 96
        %v1639 = vpop.permute.xlu0 %1638
        %1641 = vrot.lane.b32.xlu0 %v1369, 96
        %v1642 = vpop.permute.xlu0 %1641
        %v1644 = vsel %vm1370, %v1639, 0
        %v1647 = vsel %vm1370, %v1642, 0
        %1649 = vmatprep.subr.bf16.mxu0 0
        %1650 = vmatpush1.bf16.xpose.msra.mxu0 %v1647
        %1651 = vmatprep.subr.bf16.mxu0 0
        %1652 = vmatpush1.bf16.xpose.msra.mxu0 0
        %1653 = vmatprep.subr.bf16.mxu0 0
        %1654 = vmatpush1.bf16.xpose.msra.mxu0 0
        %1655 = vmatprep.subr.bf16.mxu0 0
        %1656 = vmatpush1.bf16.xpose.msra.mxu0 0
        %1657 = vmatprep.subr.bf16.mxu0 0
        %1658 = vmatpush1.bf16.xpose.msra.mxu0 0
        %1659 = vmatprep.subr.bf16.mxu0 0
        %1660 = vmatpush1.bf16.xpose.msra.mxu0 0
        %1661 = vmatprep.subr.bf16.mxu0 0
        %1662 = vmatpush1.bf16.xpose.msra.mxu0 0
        %1663 = vmatprep.subr.bf16.mxu0 0
        %1664 = vmatpush1.bf16.xpose.msra.mxu0 0
        %1665 = vmatprep.subr.bf16.mxu0 0
        %1666 = vmatpush1.bf16.xpose.msra.mxu0 0
        %1667 = vmatprep.subr.bf16.mxu0 0
        %1668 = vmatpush1.bf16.xpose.msra.mxu0 0
        %1669 = vmatprep.subr.bf16.mxu0 0
        %1670 = vmatpush1.bf16.xpose.msra.mxu0 0
        %1671 = vmatprep.subr.bf16.mxu0 0
        %1672 = vmatpush1.bf16.xpose.msra.mxu0 0
        %1673 = vmatprep.subr.bf16.mxu0 0
        %1674 = vmatpush1.bf16.xpose.msra.mxu0 0
        %1675 = vmatprep.subr.bf16.mxu0 0
        %1676 = vmatpush1.bf16.xpose.msra.mxu0 0
        %1677 = vmatprep.subr.bf16.mxu0 0
        %1678 = vmatpush1.bf16.xpose.msra.mxu0 0
        %1679 = vmatprep.subr.bf16.mxu0 0
        %1680 = vmatpush1.bf16.xpose.msra.mxu0 0
        %1681 = vmatprep.mubr.bf16.mxu0 0
        %1682 = vmatmul.mubr.bf16.gmra.mrb[0].mxu0 %v1644
        %v1683 = vpop.f32.mrb[0].mxu0
        %v1684 = vadd.f32 %v1365, %v1683
        %v1685 = vpop.f32.mrb[0].mxu0
        %v1686 = vpop.f32.mrb[0].mxu0
        %v1687 = vpop.f32.mrb[0].mxu0
        %1688 = vdwg.mxu0
        %v1689 = vsel %vm1463, %v1632, -inf
        %1690 = vmax.xlane.f32.xlu0 %v1689
        %v1691 = vpop.xlane.xlu0 %1690
        %v1692 = vsel %vm1463, %v1684, -inf
        %1693 = vmax.xlane.f32.xlu0 %v1692
        %v1694 = vpop.xlane.xlu0 %1693
        %v1695 = vsub.f32 %v1632, %v1691
        %v1696 = vsub.f32 %v1684, %v1694
        %v1697 = vmul.f32 %v1695, 1.442695
        %v1698 = vpow.pop %v1697
        %v1699 = vmul.f32 %v1696, 1.442695
        %v1700 = vpow.pop %v1699
        %v1701 = vsel %vm1463, %v1698, 0.0
        %1702 = vadd.xlane.f32.xlu0 %v1701
        %v1703 = vpop.xlane.xlu0 %1702
        %v1704 = vsel %vm1463, %v1700, 0.0
        %1705 = vadd.xlane.f32.xlu0 %v1704
        %v1706 = vpop.xlane.xlu0 %1705
        %v1707 = vrcp.pop %v1703
        %v1708 = vmul.f32 %v1698, %v1707
        %v1709 = vrcp.pop %v1706
        %v1710 = vmul.f32 %v1700, %v1709
        %v1711 = vpack.c.bf16 %v1708, %v1708
        %v1712 = vpack.c.bf16 %v1710, %v1710
        %1714 = vrot.lane.b32.xlu0 %v1488, 96
        %v1715 = vpop.permute.xlu0 %1714
        %v1717 = vsel %vm1463, %v1711, 0
        %v1720 = vsel %vm1493, %v1715, 0
        %1722 = vmatprep.subr.bf16.mxu0 0
        %1723 = vmatpush1.bf16.msra.mxu0 %v1720
        %1724 = vmatprep.subr.bf16.mxu0 0
        %1725 = vmatpush1.bf16.msra.mxu0 0
        %1726 = vmatprep.subr.bf16.mxu0 0
        %1727 = vmatpush1.bf16.msra.mxu0 0
        %1728 = vmatprep.subr.bf16.mxu0 0
        %1729 = vmatpush1.bf16.msra.mxu0 0
        %1730 = vmatprep.subr.bf16.mxu0 0
        %1731 = vmatpush1.bf16.msra.mxu0 0
        %1732 = vmatprep.subr.bf16.mxu0 0
        %1733 = vmatpush1.bf16.msra.mxu0 0
        %1734 = vmatprep.subr.bf16.mxu0 0
        %1735 = vmatpush1.bf16.msra.mxu0 0
        %1736 = vmatprep.subr.bf16.mxu0 0
        %1737 = vmatpush1.bf16.msra.mxu0 0
        %1738 = vmatprep.subr.bf16.mxu0 0
        %1739 = vmatpush1.bf16.msra.mxu0 0
        %1740 = vmatprep.subr.bf16.mxu0 0
        %1741 = vmatpush1.bf16.msra.mxu0 0
        %1742 = vmatprep.subr.bf16.mxu0 0
        %1743 = vmatpush1.bf16.msra.mxu0 0
        %1744 = vmatprep.subr.bf16.mxu0 0
        %1745 = vmatpush1.bf16.msra.mxu0 0
        %1746 = vmatprep.subr.bf16.mxu0 0
        %1747 = vmatpush1.bf16.msra.mxu0 0
        %1748 = vmatprep.subr.bf16.mxu0 0
        %1749 = vmatpush1.bf16.msra.mxu0 0
        %1750 = vmatprep.subr.bf16.mxu0 0
        %1751 = vmatpush1.bf16.msra.mxu0 0
        %1752 = vmatprep.subr.bf16.mxu0 0
        %1753 = vmatpush1.bf16.msra.mxu0 0
        %1754 = vmatprep.mubr.bf16.mxu0 0
        %1755 = vmatmul.mubr.bf16.gmra.mrb[0].mxu0 %v1717
        %v1756 = vpop.f32.mrb[0].mxu0
        %v1757 = vadd.f32 0.0, %v1756
        %v1758 = vpop.f32.mrb[0].mxu0
        %v1759 = vpop.f32.mrb[0].mxu0
        %v1760 = vpop.f32.mrb[0].mxu0
        %1761 = vdwg.mxu0
        %1763 = vrot.lane.b32.xlu0 %v1489, 96
        %v1764 = vpop.permute.xlu0 %1763
        %v1766 = vsel %vm1463, %v1712, 0
        %v1769 = vsel %vm1493, %v1764, 0
        %1771 = vmatprep.subr.bf16.mxu0 0
        %1772 = vmatpush1.bf16.msra.mxu0 %v1769
        %1773 = vmatprep.subr.bf16.mxu0 0
        %1774 = vmatpush1.bf16.msra.mxu0 0
        %1775 = vmatprep.subr.bf16.mxu0 0
        %1776 = vmatpush1.bf16.msra.mxu0 0
        %1777 = vmatprep.subr.bf16.mxu0 0
        %1778 = vmatpush1.bf16.msra.mxu0 0
        %1779 = vmatprep.subr.bf16.mxu0 0
        %1780 = vmatpush1.bf16.msra.mxu0 0
        %1781 = vmatprep.subr.bf16.mxu0 0
        %1782 = vmatpush1.bf16.msra.mxu0 0
        %1783 = vmatprep.subr.bf16.mxu0 0
        %1784 = vmatpush1.bf16.msra.mxu0 0
        %1785 = vmatprep.subr.bf16.mxu0 0
        %1786 = vmatpush1.bf16.msra.mxu0 0
        %1787 = vmatprep.subr.bf16.mxu0 0
        %1788 = vmatpush1.bf16.msra.mxu0 0
        %1789 = vmatprep.subr.bf16.mxu0 0
        %1790 = vmatpush1.bf16.msra.mxu0 0
        %1791 = vmatprep.subr.bf16.mxu0 0
        %1792 = vmatpush1.bf16.msra.mxu0 0
        %1793 = vmatprep.subr.bf16.mxu0 0
        %1794 = vmatpush1.bf16.msra.mxu0 0
        %1795 = vmatprep.subr.bf16.mxu0 0
        %1796 = vmatpush1.bf16.msra.mxu0 0
        %1797 = vmatprep.subr.bf16.mxu0 0
        %1798 = vmatpush1.bf16.msra.mxu0 0
        %1799 = vmatprep.subr.bf16.mxu0 0
        %1800 = vmatpush1.bf16.msra.mxu0 0
        %1801 = vmatprep.subr.bf16.mxu0 0
        %1802 = vmatpush1.bf16.msra.mxu0 0
        %1803 = vmatprep.mubr.bf16.mxu0 0
        %1804 = vmatmul.mubr.bf16.gmra.mrb[0].mxu0 %v1766
        %v1805 = vpop.f32.mrb[0].mxu0
        %v1806 = vadd.f32 0.0, %v1805
        %v1807 = vpop.f32.mrb[0].mxu0
        %v1808 = vpop.f32.mrb[0].mxu0
        %v1809 = vpop.f32.mrb[0].mxu0
        %1810 = vdwg.mxu0
        %1813 = vrot.lane.b32.xlu0 %v1757, 32
        %v1814 = vpop.permute.xlu0 %1813
        %1815 = vrot.lane.b32.xlu0 %v1806, 32
        %v1816 = vpop.permute.xlu0 %1815
        %vm1819 = vcmask 523520
        %1820 = vst.msk [vmem:[#allocation3] sm:$0xff] %vm1819, %v1814
        %1821 = vst.msk [vmem:[#allocation3 + $0x8] sm:$0xff] %vm1819, %v1816
        %1822 = vrot.lane.b32.xlu0 %v1366, 64
        %v1823 = vpop.permute.xlu0 %1822
        %1824 = vrot.lane.b32.xlu0 %v1368, 64
        %v1825 = vpop.permute.xlu0 %1824
        %v1827 = vsel %vm1370, %v1823, 0
        %v1830 = vsel %vm1370, %v1825, 0
        %1832 = vmatprep.subr.bf16.mxu0 0
        %1833 = vmatpush1.bf16.xpose.msra.mxu0 %v1830
        %1834 = vmatprep.subr.bf16.mxu0 0
        %1835 = vmatpush1.bf16.xpose.msra.mxu0 0
        %1836 = vmatprep.subr.bf16.mxu0 0
        %1837 = vmatpush1.bf16.xpose.msra.mxu0 0
        %1838 = vmatprep.subr.bf16.mxu0 0
        %1839 = vmatpush1.bf16.xpose.msra.mxu0 0
        %1840 = vmatprep.subr.bf16.mxu0 0
        %1841 = vmatpush1.bf16.xpose.msra.mxu0 0
        %1842 = vmatprep.subr.bf16.mxu0 0
        %1843 = vmatpush1.bf16.xpose.msra.mxu0 0
        %1844 = vmatprep.subr.bf16.mxu0 0
        %1845 = vmatpush1.bf16.xpose.msra.mxu0 0
        %1846 = vmatprep.subr.bf16.mxu0 0
        %1847 = vmatpush1.bf16.xpose.msra.mxu0 0
        %1848 = vmatprep.subr.bf16.mxu0 0
        %1849 = vmatpush1.bf16.xpose.msra.mxu0 0
        %1850 = vmatprep.subr.bf16.mxu0 0
        %1851 = vmatpush1.bf16.xpose.msra.mxu0 0
        %1852 = vmatprep.subr.bf16.mxu0 0
        %1853 = vmatpush1.bf16.xpose.msra.mxu0 0
        %1854 = vmatprep.subr.bf16.mxu0 0
        %1855 = vmatpush1.bf16.xpose.msra.mxu0 0
        %1856 = vmatprep.subr.bf16.mxu0 0
        %1857 = vmatpush1.bf16.xpose.msra.mxu0 0
        %1858 = vmatprep.subr.bf16.mxu0 0
        %1859 = vmatpush1.bf16.xpose.msra.mxu0 0
        %1860 = vmatprep.subr.bf16.mxu0 0
        %1861 = vmatpush1.bf16.xpose.msra.mxu0 0
        %1862 = vmatprep.subr.bf16.mxu0 0
        %1863 = vmatpush1.bf16.xpose.msra.mxu0 0
        %1864 = vmatprep.mubr.bf16.mxu0 0
        %1865 = vmatmul.mubr.bf16.gmra.mrb[0].mxu0 %v1827
        %v1866 = vpop.f32.mrb[0].mxu0
        %v1867 = vadd.f32 %v1364, %v1866
        %v1868 = vpop.f32.mrb[0].mxu0
        %v1869 = vpop.f32.mrb[0].mxu0
        %v1870 = vpop.f32.mrb[0].mxu0
        %1871 = vdwg.mxu0
        %1872 = vrot.lane.b32.xlu0 %v1367, 64
        %v1873 = vpop.permute.xlu0 %1872
        %1874 = vrot.lane.b32.xlu0 %v1369, 64
        %v1875 = vpop.permute.xlu0 %1874
        %v1877 = vsel %vm1370, %v1873, 0
        %v1880 = vsel %vm1370, %v1875, 0
        %1882 = vmatprep.subr.bf16.mxu0 0
        %1883 = vmatpush1.bf16.xpose.msra.mxu0 %v1880
        %1884 = vmatprep.subr.bf16.mxu0 0
        %1885 = vmatpush1.bf16.xpose.msra.mxu0 0
        %1886 = vmatprep.subr.bf16.mxu0 0
        %1887 = vmatpush1.bf16.xpose.msra.mxu0 0
        %1888 = vmatprep.subr.bf16.mxu0 0
        %1889 = vmatpush1.bf16.xpose.msra.mxu0 0
        %1890 = vmatprep.subr.bf16.mxu0 0
        %1891 = vmatpush1.bf16.xpose.msra.mxu0 0
        %1892 = vmatprep.subr.bf16.mxu0 0
        %1893 = vmatpush1.bf16.xpose.msra.mxu0 0
        %1894 = vmatprep.subr.bf16.mxu0 0
        %1895 = vmatpush1.bf16.xpose.msra.mxu0 0
        %1896 = vmatprep.subr.bf16.mxu0 0
        %1897 = vmatpush1.bf16.xpose.msra.mxu0 0
        %1898 = vmatprep.subr.bf16.mxu0 0
        %1899 = vmatpush1.bf16.xpose.msra.mxu0 0
        %1900 = vmatprep.subr.bf16.mxu0 0
        %1901 = vmatpush1.bf16.xpose.msra.mxu0 0
        %1902 = vmatprep.subr.bf16.mxu0 0
        %1903 = vmatpush1.bf16.xpose.msra.mxu0 0
        %1904 = vmatprep.subr.bf16.mxu0 0
        %1905 = vmatpush1.bf16.xpose.msra.mxu0 0
        %1906 = vmatprep.subr.bf16.mxu0 0
        %1907 = vmatpush1.bf16.xpose.msra.mxu0 0
        %1908 = vmatprep.subr.bf16.mxu0 0
        %1909 = vmatpush1.bf16.xpose.msra.mxu0 0
        %1910 = vmatprep.subr.bf16.mxu0 0
        %1911 = vmatpush1.bf16.xpose.msra.mxu0 0
        %1912 = vmatprep.subr.bf16.mxu0 0
        %1913 = vmatpush1.bf16.xpose.msra.mxu0 0
        %1914 = vmatprep.mubr.bf16.mxu0 0
        %1915 = vmatmul.mubr.bf16.gmra.mrb[0].mxu0 %v1877
        %v1916 = vpop.f32.mrb[0].mxu0
        %v1917 = vadd.f32 %v1365, %v1916
        %v1918 = vpop.f32.mrb[0].mxu0
        %v1919 = vpop.f32.mrb[0].mxu0
        %v1920 = vpop.f32.mrb[0].mxu0
        %1921 = vdwg.mxu0
        %v1922 = vsel %vm1463, %v1867, -inf
        %1923 = vmax.xlane.f32.xlu0 %v1922
        %v1924 = vpop.xlane.xlu0 %1923
        %v1925 = vsel %vm1463, %v1917, -inf
        %1926 = vmax.xlane.f32.xlu0 %v1925
        %v1927 = vpop.xlane.xlu0 %1926
        %v1928 = vsub.f32 %v1867, %v1924
        %v1929 = vsub.f32 %v1917, %v1927
        %v1930 = vmul.f32 %v1928, 1.442695
        %v1931 = vpow.pop %v1930
        %v1932 = vmul.f32 %v1929, 1.442695
        %v1933 = vpow.pop %v1932
        %v1934 = vsel %vm1463, %v1931, 0.0
        %1935 = vadd.xlane.f32.xlu0 %v1934
        %v1936 = vpop.xlane.xlu0 %1935
        %v1937 = vsel %vm1463, %v1933, 0.0
        %1938 = vadd.xlane.f32.xlu0 %v1937
        %v1939 = vpop.xlane.xlu0 %1938
        %v1940 = vrcp.pop %v1936
        %v1941 = vmul.f32 %v1931, %v1940
        %v1942 = vrcp.pop %v1939
        %v1943 = vmul.f32 %v1933, %v1942
        %v1944 = vpack.c.bf16 %v1941, %v1941
        %v1945 = vpack.c.bf16 %v1943, %v1943
        %1946 = vrot.lane.b32.xlu0 %v1488, 64
        %v1947 = vpop.permute.xlu0 %1946
        %v1949 = vsel %vm1463, %v1944, 0
        %v1952 = vsel %vm1493, %v1947, 0
        %1954 = vmatprep.subr.bf16.mxu0 0
        %1955 = vmatpush1.bf16.msra.mxu0 %v1952
        %1956 = vmatprep.subr.bf16.mxu0 0
        %1957 = vmatpush1.bf16.msra.mxu0 0
        %1958 = vmatprep.subr.bf16.mxu0 0
        %1959 = vmatpush1.bf16.msra.mxu0 0
        %1960 = vmatprep.subr.bf16.mxu0 0
        %1961 = vmatpush1.bf16.msra.mxu0 0
        %1962 = vmatprep.subr.bf16.mxu0 0
        %1963 = vmatpush1.bf16.msra.mxu0 0
        %1964 = vmatprep.subr.bf16.mxu0 0
        %1965 = vmatpush1.bf16.msra.mxu0 0
        %1966 = vmatprep.subr.bf16.mxu0 0
        %1967 = vmatpush1.bf16.msra.mxu0 0
        %1968 = vmatprep.subr.bf16.mxu0 0
        %1969 = vmatpush1.bf16.msra.mxu0 0
        %1970 = vmatprep.subr.bf16.mxu0 0
        %1971 = vmatpush1.bf16.msra.mxu0 0
        %1972 = vmatprep.subr.bf16.mxu0 0
        %1973 = vmatpush1.bf16.msra.mxu0 0
        %1974 = vmatprep.subr.bf16.mxu0 0
        %1975 = vmatpush1.bf16.msra.mxu0 0
        %1976 = vmatprep.subr.bf16.mxu0 0
        %1977 = vmatpush1.bf16.msra.mxu0 0
        %1978 = vmatprep.subr.bf16.mxu0 0
        %1979 = vmatpush1.bf16.msra.mxu0 0
        %1980 = vmatprep.subr.bf16.mxu0 0
        %1981 = vmatpush1.bf16.msra.mxu0 0
        %1982 = vmatprep.subr.bf16.mxu0 0
        %1983 = vmatpush1.bf16.msra.mxu0 0
        %1984 = vmatprep.subr.bf16.mxu0 0
        %1985 = vmatpush1.bf16.msra.mxu0 0
        %1986 = vmatprep.mubr.bf16.mxu0 0
        %1987 = vmatmul.mubr.bf16.gmra.mrb[0].mxu0 %v1949
        %v1988 = vpop.f32.mrb[0].mxu0
        %v1989 = vadd.f32 0.0, %v1988
        %v1990 = vpop.f32.mrb[0].mxu0
        %v1991 = vpop.f32.mrb[0].mxu0
        %v1992 = vpop.f32.mrb[0].mxu0
        %1993 = vdwg.mxu0
        %1994 = vrot.lane.b32.xlu0 %v1489, 64
        %v1995 = vpop.permute.xlu0 %1994
        %v1997 = vsel %vm1463, %v1945, 0
        %v2000 = vsel %vm1493, %v1995, 0
        %2002 = vmatprep.subr.bf16.mxu0 0
        %2003 = vmatpush1.bf16.msra.mxu0 %v2000
        %2004 = vmatprep.subr.bf16.mxu0 0
        %2005 = vmatpush1.bf16.msra.mxu0 0
        %2006 = vmatprep.subr.bf16.mxu0 0
        %2007 = vmatpush1.bf16.msra.mxu0 0
        %2008 = vmatprep.subr.bf16.mxu0 0
        %2009 = vmatpush1.bf16.msra.mxu0 0
        %2010 = vmatprep.subr.bf16.mxu0 0
        %2011 = vmatpush1.bf16.msra.mxu0 0
        %2012 = vmatprep.subr.bf16.mxu0 0
        %2013 = vmatpush1.bf16.msra.mxu0 0
        %2014 = vmatprep.subr.bf16.mxu0 0
        %2015 = vmatpush1.bf16.msra.mxu0 0
        %2016 = vmatprep.subr.bf16.mxu0 0
        %2017 = vmatpush1.bf16.msra.mxu0 0
        %2018 = vmatprep.subr.bf16.mxu0 0
        %2019 = vmatpush1.bf16.msra.mxu0 0
        %2020 = vmatprep.subr.bf16.mxu0 0
        %2021 = vmatpush1.bf16.msra.mxu0 0
        %2022 = vmatprep.subr.bf16.mxu0 0
        %2023 = vmatpush1.bf16.msra.mxu0 0
        %2024 = vmatprep.subr.bf16.mxu0 0
        %2025 = vmatpush1.bf16.msra.mxu0 0
        %2026 = vmatprep.subr.bf16.mxu0 0
        %2027 = vmatpush1.bf16.msra.mxu0 0
        %2028 = vmatprep.subr.bf16.mxu0 0
        %2029 = vmatpush1.bf16.msra.mxu0 0
        %2030 = vmatprep.subr.bf16.mxu0 0
        %2031 = vmatpush1.bf16.msra.mxu0 0
        %2032 = vmatprep.subr.bf16.mxu0 0
        %2033 = vmatpush1.bf16.msra.mxu0 0
        %2034 = vmatprep.mubr.bf16.mxu0 0
        %2035 = vmatmul.mubr.bf16.gmra.mrb[0].mxu0 %v1997
        %v2036 = vpop.f32.mrb[0].mxu0
        %v2037 = vadd.f32 0.0, %v2036
        %v2038 = vpop.f32.mrb[0].mxu0
        %v2039 = vpop.f32.mrb[0].mxu0
        %v2040 = vpop.f32.mrb[0].mxu0
        %2041 = vdwg.mxu0
        %2044 = vrot.lane.b32.xlu0 %v1989, 64
        %v2045 = vpop.permute.xlu0 %2044
        %2046 = vrot.lane.b32.xlu0 %v2037, 64
        %v2047 = vpop.permute.xlu0 %2046
        %vm2050 = vcmask 785920
        %2051 = vst.msk [vmem:[#allocation3] sm:$0xff] %vm2050, %v2045
        %2052 = vst.msk [vmem:[#allocation3 + $0x8] sm:$0xff] %vm2050, %v2047
        %2053 = vrot.lane.b32.xlu0 %v1366, 32
        %v2054 = vpop.permute.xlu0 %2053
        %2055 = vrot.lane.b32.xlu0 %v1368, 32
        %v2056 = vpop.permute.xlu0 %2055
        %v2058 = vsel %vm1370, %v2054, 0
        %v2061 = vsel %vm1370, %v2056, 0
        %2063 = vmatprep.subr.bf16.mxu0 0
        %2064 = vmatpush1.bf16.xpose.msra.mxu0 %v2061
        %2065 = vmatprep.subr.bf16.mxu0 0
        %2066 = vmatpush1.bf16.xpose.msra.mxu0 0
        %2067 = vmatprep.subr.bf16.mxu0 0
        %2068 = vmatpush1.bf16.xpose.msra.mxu0 0
        %2069 = vmatprep.subr.bf16.mxu0 0
        %2070 = vmatpush1.bf16.xpose.msra.mxu0 0
        %2071 = vmatprep.subr.bf16.mxu0 0
        %2072 = vmatpush1.bf16.xpose.msra.mxu0 0
        %2073 = vmatprep.subr.bf16.mxu0 0
        %2074 = vmatpush1.bf16.xpose.msra.mxu0 0
        %2075 = vmatprep.subr.bf16.mxu0 0
        %2076 = vmatpush1.bf16.xpose.msra.mxu0 0
        %2077 = vmatprep.subr.bf16.mxu0 0
        %2078 = vmatpush1.bf16.xpose.msra.mxu0 0
        %2079 = vmatprep.subr.bf16.mxu0 0
        %2080 = vmatpush1.bf16.xpose.msra.mxu0 0
        %2081 = vmatprep.subr.bf16.mxu0 0
        %2082 = vmatpush1.bf16.xpose.msra.mxu0 0
        %2083 = vmatprep.subr.bf16.mxu0 0
        %2084 = vmatpush1.bf16.xpose.msra.mxu0 0
        %2085 = vmatprep.subr.bf16.mxu0 0
        %2086 = vmatpush1.bf16.xpose.msra.mxu0 0
        %2087 = vmatprep.subr.bf16.mxu0 0
        %2088 = vmatpush1.bf16.xpose.msra.mxu0 0
        %2089 = vmatprep.subr.bf16.mxu0 0
        %2090 = vmatpush1.bf16.xpose.msra.mxu0 0
        %2091 = vmatprep.subr.bf16.mxu0 0
        %2092 = vmatpush1.bf16.xpose.msra.mxu0 0
        %2093 = vmatprep.subr.bf16.mxu0 0
        %2094 = vmatpush1.bf16.xpose.msra.mxu0 0
        %2095 = vmatprep.mubr.bf16.mxu0 0
        %2096 = vmatmul.mubr.bf16.gmra.mrb[0].mxu0 %v2058
        %v2097 = vpop.f32.mrb[0].mxu0
        %v2098 = vadd.f32 %v1364, %v2097
        %v2099 = vpop.f32.mrb[0].mxu0
        %v2100 = vpop.f32.mrb[0].mxu0
        %v2101 = vpop.f32.mrb[0].mxu0
        %2102 = vdwg.mxu0
        %2103 = vrot.lane.b32.xlu0 %v1367, 32
        %v2104 = vpop.permute.xlu0 %2103
        %2105 = vrot.lane.b32.xlu0 %v1369, 32
        %v2106 = vpop.permute.xlu0 %2105
        %v2108 = vsel %vm1370, %v2104, 0
        %v2111 = vsel %vm1370, %v2106, 0
        %2113 = vmatprep.subr.bf16.mxu0 0
        %2114 = vmatpush1.bf16.xpose.msra.mxu0 %v2111
        %2115 = vmatprep.subr.bf16.mxu0 0
        %2116 = vmatpush1.bf16.xpose.msra.mxu0 0
        %2117 = vmatprep.subr.bf16.mxu0 0
        %2118 = vmatpush1.bf16.xpose.msra.mxu0 0
        %2119 = vmatprep.subr.bf16.mxu0 0
        %2120 = vmatpush1.bf16.xpose.msra.mxu0 0
        %2121 = vmatprep.subr.bf16.mxu0 0
        %2122 = vmatpush1.bf16.xpose.msra.mxu0 0
        %2123 = vmatprep.subr.bf16.mxu0 0
        %2124 = vmatpush1.bf16.xpose.msra.mxu0 0
        %2125 = vmatprep.subr.bf16.mxu0 0
        %2126 = vmatpush1.bf16.xpose.msra.mxu0 0
        %2127 = vmatprep.subr.bf16.mxu0 0
        %2128 = vmatpush1.bf16.xpose.msra.mxu0 0
        %2129 = vmatprep.subr.bf16.mxu0 0
        %2130 = vmatpush1.bf16.xpose.msra.mxu0 0
        %2131 = vmatprep.subr.bf16.mxu0 0
        %2132 = vmatpush1.bf16.xpose.msra.mxu0 0
        %2133 = vmatprep.subr.bf16.mxu0 0
        %2134 = vmatpush1.bf16.xpose.msra.mxu0 0
        %2135 = vmatprep.subr.bf16.mxu0 0
        %2136 = vmatpush1.bf16.xpose.msra.mxu0 0
        %2137 = vmatprep.subr.bf16.mxu0 0
        %2138 = vmatpush1.bf16.xpose.msra.mxu0 0
        %2139 = vmatprep.subr.bf16.mxu0 0
        %2140 = vmatpush1.bf16.xpose.msra.mxu0 0
        %2141 = vmatprep.subr.bf16.mxu0 0
        %2142 = vmatpush1.bf16.xpose.msra.mxu0 0
        %2143 = vmatprep.subr.bf16.mxu0 0
        %2144 = vmatpush1.bf16.xpose.msra.mxu0 0
        %2145 = vmatprep.mubr.bf16.mxu0 0
        %2146 = vmatmul.mubr.bf16.gmra.mrb[0].mxu0 %v2108
        %v2147 = vpop.f32.mrb[0].mxu0
        %v2148 = vadd.f32 %v1365, %v2147
        %v2149 = vpop.f32.mrb[0].mxu0
        %v2150 = vpop.f32.mrb[0].mxu0
        %v2151 = vpop.f32.mrb[0].mxu0
        %2152 = vdwg.mxu0
        %v2153 = vsel %vm1463, %v2098, -inf
        %2154 = vmax.xlane.f32.xlu0 %v2153
        %v2155 = vpop.xlane.xlu0 %2154
        %v2156 = vsel %vm1463, %v2148, -inf
        %2157 = vmax.xlane.f32.xlu0 %v2156
        %v2158 = vpop.xlane.xlu0 %2157
        %v2159 = vsub.f32 %v2098, %v2155
        %v2160 = vsub.f32 %v2148, %v2158
        %v2161 = vmul.f32 %v2159, 1.442695
        %v2162 = vpow.pop %v2161
        %v2163 = vmul.f32 %v2160, 1.442695
        %v2164 = vpow.pop %v2163
        %v2165 = vsel %vm1463, %v2162, 0.0
        %2166 = vadd.xlane.f32.xlu0 %v2165
        %v2167 = vpop.xlane.xlu0 %2166
        %v2168 = vsel %vm1463, %v2164, 0.0
        %2169 = vadd.xlane.f32.xlu0 %v2168
        %v2170 = vpop.xlane.xlu0 %2169
        %v2171 = vrcp.pop %v2167
        %v2172 = vmul.f32 %v2162, %v2171
        %v2173 = vrcp.pop %v2170
        %v2174 = vmul.f32 %v2164, %v2173
        %v2175 = vpack.c.bf16 %v2172, %v2172
        %v2176 = vpack.c.bf16 %v2174, %v2174
        %2177 = vrot.lane.b32.xlu0 %v1488, 32
        %v2178 = vpop.permute.xlu0 %2177
        %v2180 = vsel %vm1463, %v2175, 0
        %v2183 = vsel %vm1493, %v2178, 0
        %2185 = vmatprep.subr.bf16.mxu0 0
        %2186 = vmatpush1.bf16.msra.mxu0 %v2183
        %2187 = vmatprep.subr.bf16.mxu0 0
        %2188 = vmatpush1.bf16.msra.mxu0 0
        %2189 = vmatprep.subr.bf16.mxu0 0
        %2190 = vmatpush1.bf16.msra.mxu0 0
        %2191 = vmatprep.subr.bf16.mxu0 0
        %2192 = vmatpush1.bf16.msra.mxu0 0
        %2193 = vmatprep.subr.bf16.mxu0 0
        %2194 = vmatpush1.bf16.msra.mxu0 0
        %2195 = vmatprep.subr.bf16.mxu0 0
        %2196 = vmatpush1.bf16.msra.mxu0 0
        %2197 = vmatprep.subr.bf16.mxu0 0
        %2198 = vmatpush1.bf16.msra.mxu0 0
        %2199 = vmatprep.subr.bf16.mxu0 0
        %2200 = vmatpush1.bf16.msra.mxu0 0
        %2201 = vmatprep.subr.bf16.mxu0 0
        %2202 = vmatpush1.bf16.msra.mxu0 0
        %2203 = vmatprep.subr.bf16.mxu0 0
        %2204 = vmatpush1.bf16.msra.mxu0 0
        %2205 = vmatprep.subr.bf16.mxu0 0
        %2206 = vmatpush1.bf16.msra.mxu0 0
        %2207 = vmatprep.subr.bf16.mxu0 0
        %2208 = vmatpush1.bf16.msra.mxu0 0
        %2209 = vmatprep.subr.bf16.mxu0 0
        %2210 = vmatpush1.bf16.msra.mxu0 0
        %2211 = vmatprep.subr.bf16.mxu0 0
        %2212 = vmatpush1.bf16.msra.mxu0 0
        %2213 = vmatprep.subr.bf16.mxu0 0
        %2214 = vmatpush1.bf16.msra.mxu0 0
        %2215 = vmatprep.subr.bf16.mxu0 0
        %2216 = vmatpush1.bf16.msra.mxu0 0
        %2217 = vmatprep.mubr.bf16.mxu0 0
        %2218 = vmatmul.mubr.bf16.gmra.mrb[0].mxu0 %v2180
        %v2219 = vpop.f32.mrb[0].mxu0
        %v2220 = vadd.f32 0.0, %v2219
        %v2221 = vpop.f32.mrb[0].mxu0
        %v2222 = vpop.f32.mrb[0].mxu0
        %v2223 = vpop.f32.mrb[0].mxu0
        %2224 = vdwg.mxu0
        %2225 = vrot.lane.b32.xlu0 %v1489, 32
        %v2226 = vpop.permute.xlu0 %2225
        %v2228 = vsel %vm1463, %v2176, 0
        %v2231 = vsel %vm1493, %v2226, 0
        %2233 = vmatprep.subr.bf16.mxu0 0
        %2234 = vmatpush1.bf16.msra.mxu0 %v2231
        %2235 = vmatprep.subr.bf16.mxu0 0
        %2236 = vmatpush1.bf16.msra.mxu0 0
        %2237 = vmatprep.subr.bf16.mxu0 0
        %2238 = vmatpush1.bf16.msra.mxu0 0
        %2239 = vmatprep.subr.bf16.mxu0 0
        %2240 = vmatpush1.bf16.msra.mxu0 0
        %2241 = vmatprep.subr.bf16.mxu0 0
        %2242 = vmatpush1.bf16.msra.mxu0 0
        %2243 = vmatprep.subr.bf16.mxu0 0
        %2244 = vmatpush1.bf16.msra.mxu0 0
        %2245 = vmatprep.subr.bf16.mxu0 0
        %2246 = vmatpush1.bf16.msra.mxu0 0
        %2247 = vmatprep.subr.bf16.mxu0 0
        %2248 = vmatpush1.bf16.msra.mxu0 0
        %2249 = vmatprep.subr.bf16.mxu0 0
        %2250 = vmatpush1.bf16.msra.mxu0 0
        %2251 = vmatprep.subr.bf16.mxu0 0
        %2252 = vmatpush1.bf16.msra.mxu0 0
        %2253 = vmatprep.subr.bf16.mxu0 0
        %2254 = vmatpush1.bf16.msra.mxu0 0
        %2255 = vmatprep.subr.bf16.mxu0 0
        %2256 = vmatpush1.bf16.msra.mxu0 0
        %2257 = vmatprep.subr.bf16.mxu0 0
        %2258 = vmatpush1.bf16.msra.mxu0 0
        %2259 = vmatprep.subr.bf16.mxu0 0
        %2260 = vmatpush1.bf16.msra.mxu0 0
        %2261 = vmatprep.subr.bf16.mxu0 0
        %2262 = vmatpush1.bf16.msra.mxu0 0
        %2263 = vmatprep.subr.bf16.mxu0 0
        %2264 = vmatpush1.bf16.msra.mxu0 0
        %2265 = vmatprep.mubr.bf16.mxu0 0
        %2266 = vmatmul.mubr.bf16.gmra.mrb[0].mxu0 %v2228
        %v2267 = vpop.f32.mrb[0].mxu0
        %v2268 = vadd.f32 0.0, %v2267
        %v2269 = vpop.f32.mrb[0].mxu0
        %v2270 = vpop.f32.mrb[0].mxu0
        %v2271 = vpop.f32.mrb[0].mxu0
        %2272 = vdwg.mxu0
        %2275 = vrot.lane.b32.xlu0 %v2220, 96
        %v2276 = vpop.permute.xlu0 %2275
        %2277 = vrot.lane.b32.xlu0 %v2268, 96
        %v2278 = vpop.permute.xlu0 %2277
        %vm2281 = vcmask 1048320
        %2282 = vst.msk [vmem:[#allocation3] sm:$0xff] %vm2281, %v2276
        %2283 = vst.msk [vmem:[#allocation3 + $0x8] sm:$0xff] %vm2281, %v2278
        %v2284 = vld [vmem:[#allocation3] sm:$0xff]
        %v2285 = vld [vmem:[#allocation3 + $0x8] sm:$0xff]
        %v2286 = vpack.c.bf16 %v2285, %v2284
        %v2287 = vld [vmem:[%s879] sm:$0xf]
        %v2288 = vld [vmem:[%s879 + $0x4] sm:$0xf]
        %v2289 = vld [vmem:[%s879 + $0x8] sm:$0xf]
        %v2290 = vld [vmem:[%s879 + $0xc] sm:$0xf]
        %v2291 = vld [vmem:[%s879 + $0x10] sm:$0xf]
        %v2292 = vld [vmem:[%s879 + $0x14] sm:$0xf]
        %v2293 = vld [vmem:[%s879 + $0x18] sm:$0xf]
        %v2294 = vld [vmem:[%s879 + $0x1c] sm:$0xf]
        %v2295 = vld [vmem:[%s879 + $0x20] sm:$0xf]
        %v2296 = vld [vmem:[%s879 + $0x24] sm:$0xf]
        %v2297 = vld [vmem:[%s879 + $0x28] sm:$0xf]
        %v2298 = vld [vmem:[%s879 + $0x2c] sm:$0xf]
        %v2299 = vld [vmem:[%s879 + $0x30] sm:$0xf]
        %v2300 = vld [vmem:[%s879 + $0x34] sm:$0xf]
        %v2301 = vld [vmem:[%s879 + $0x38] sm:$0xf]
        %v2302 = vld [vmem:[%s879 + $0x3c] sm:$0xf]
        %v2303 = vld [vmem:[%s1040] sm:$0x1]
        %v2305 = vlaneseq
        %v2306 = vshrl.u32 %v2305, 7
        %v2307 = vsub.s32 0, %v2306
        %v2308 = vrot.slane %v2303, %v2307
        %v2326 = vunpack.c.l.b16 %v2287
        %v2327 = vunpack.c.l.b16 %v2288
        %v2328 = vunpack.c.l.b16 %v2289
        %v2329 = vunpack.c.l.b16 %v2290
        %v2330 = vunpack.c.l.b16 %v2291
        %v2331 = vunpack.c.l.b16 %v2292
        %v2332 = vunpack.c.l.b16 %v2293
        %v2333 = vunpack.c.l.b16 %v2294
        %v2334 = vunpack.c.l.b16 %v2295
        %v2335 = vunpack.c.l.b16 %v2296
        %v2336 = vunpack.c.l.b16 %v2297
        %v2337 = vunpack.c.l.b16 %v2298
        %v2338 = vunpack.c.l.b16 %v2299
        %v2339 = vunpack.c.l.b16 %v2300
        %v2340 = vunpack.c.l.b16 %v2301
        %v2341 = vunpack.c.l.b16 %v2302
        %v2342 = vpack.c.b16 %v2327, %v2326
        %v2343 = vpack.c.b16 %v2329, %v2328
        %v2344 = vpack.c.b16 %v2331, %v2330
        %v2345 = vpack.c.b16 %v2333, %v2332
        %v2346 = vpack.c.b16 %v2335, %v2334
        %v2347 = vpack.c.b16 %v2337, %v2336
        %v2348 = vpack.c.b16 %v2339, %v2338
        %v2349 = vpack.c.b16 %v2341, %v2340
        %2358 = vmatprep.subr.bf16.mxu0 0
        %2359 = vmatpush1.bf16.msra.mxu0 %v2342
        %2360 = vmatprep.subr.bf16.mxu0 0
        %2361 = vmatpush1.bf16.msra.mxu0 %v2343
        %2362 = vmatprep.subr.bf16.mxu0 0
        %2363 = vmatpush1.bf16.msra.mxu0 %v2344
        %2364 = vmatprep.subr.bf16.mxu0 0
        %2365 = vmatpush1.bf16.msra.mxu0 %v2345
        %2366 = vmatprep.subr.bf16.mxu0 0
        %2367 = vmatpush1.bf16.msra.mxu0 %v2346
        %2368 = vmatprep.subr.bf16.mxu0 0
        %2369 = vmatpush1.bf16.msra.mxu0 %v2347
        %2370 = vmatprep.subr.bf16.mxu0 0
        %2371 = vmatpush1.bf16.msra.mxu0 %v2348
        %2372 = vmatprep.subr.bf16.mxu0 0
        %2373 = vmatpush1.bf16.msra.mxu0 %v2349
        %2374 = vmatprep.subr.bf16.mxu0 0
        %2375 = vmatpush1.bf16.msra.mxu0 0
        %2376 = vmatprep.subr.bf16.mxu0 0
        %2377 = vmatpush1.bf16.msra.mxu0 0
        %2378 = vmatprep.subr.bf16.mxu0 0
        %2379 = vmatpush1.bf16.msra.mxu0 0
        %2380 = vmatprep.subr.bf16.mxu0 0
        %2381 = vmatpush1.bf16.msra.mxu0 0
        %2382 = vmatprep.subr.bf16.mxu0 0
        %2383 = vmatpush1.bf16.msra.mxu0 0
        %2384 = vmatprep.subr.bf16.mxu0 0
        %2385 = vmatpush1.bf16.msra.mxu0 0
        %2386 = vmatprep.subr.bf16.mxu0 0
        %2387 = vmatpush1.bf16.msra.mxu0 0
        %2388 = vmatprep.subr.bf16.mxu0 0
        %2389 = vmatpush1.bf16.msra.mxu0 0
        %2390 = vmatprep.mubr.bf16.mxu0 0
        %2391 = vmatmul.mubr.bf16.gmra.mrb[0].mxu0 %v2286
        %v2392 = vpop.f32.mrb[0].mxu0
        %v2393 = vadd.f32 %v2308, %v2392
        %v2394 = vpop.f32.mrb[0].mxu0
        %v2395 = vpop.f32.mrb[0].mxu0
        %v2396 = vadd.f32 %v2308, %v2395
        %v2397 = vpop.f32.mrb[0].mxu0
        %2398 = vdwg.mxu0
        %v2399 = vadd.f32 %v1100, %v2393
        %v2400 = vadd.f32 %v1101, %v2396
        %v2401 = vld [vmem:[%s1043] sm:$0x1]
        %v2402 = vld [vmem:[%s1046] sm:$0x1]
        %2403 = vadd.xlane.f32.xlu0 %v2399
        %v2404 = vpop.xlane.xlu0 %2403
        %2405 = vadd.xlane.f32.xlu0 %v2400
        %v2406 = vpop.xlane.xlu0 %2405
        %v2407 = vrcp.pop 128.0
        %v2408 = vmul.f32 %v2404, %v2407
        %v2409 = vmul.f32 %v2406, %v2407
        %v2410 = vsub.f32 %v2399, %v2408
        %v2411 = vsub.f32 %v2400, %v2409
        %v2412 = vmul.f32 %v2410, %v2410
        %v2413 = vmul.f32 %v2411, %v2411
        %2414 = vadd.xlane.f32.xlu0 %v2412
        %v2415 = vpop.xlane.xlu0 %2414
        %2416 = vadd.xlane.f32.xlu0 %v2413
        %v2417 = vpop.xlane.xlu0 %2416
        %v2418 = vmul.f32 %v2415, %v2407
        %v2419 = vmul.f32 %v2417, %v2407
        %v2420 = vadd.f32 %v2418, 1e-05
        %v2421 = vadd.f32 %v2419, 1e-05
        %v2422 = vrsqrt.pop %v2420
        %v2423 = vrsqrt.pop %v2421
        %v2424 = vmul.f32 %v2410, %v2422
        %v2425 = vmul.f32 %v2411, %v2423
        %v2427 = vlaneseq
        %v2428 = vshrl.u32 %v2427, 7
        %v2429 = vsub.s32 0, %v2428
        %v2430 = vrot.slane %v2401, %v2429
        %v2432 = vmul.f32 %v2424, %v2430
        %v2433 = vmul.f32 %v2425, %v2430
        %v2435 = vlaneseq
        %v2436 = vshrl.u32 %v2435, 7
        %v2437 = vsub.s32 0, %v2436
        %v2438 = vrot.slane %v2402, %v2437
        %v2440 = vadd.f32 %v2432, %v2438
        %v2441 = vadd.f32 %v2433, %v2438
        %v2442 = vld [vmem:[%s1] sm:$0xff]
        %v2443 = vld [vmem:[%s1 + $0x8] sm:$0xff]
        %v2444 = vpack.c.bf16 %v2441, %v2440
        %v2445 = vld [vmem:[%s888] sm:$0xf]
        %v2446 = vld [vmem:[%s888 + $0x4] sm:$0xf]
        %v2447 = vld [vmem:[%s888 + $0x8] sm:$0xf]
        %v2448 = vld [vmem:[%s888 + $0xc] sm:$0xf]
        %v2449 = vld [vmem:[%s888 + $0x10] sm:$0xf]
        %v2450 = vld [vmem:[%s888 + $0x14] sm:$0xf]
        %v2451 = vld [vmem:[%s888 + $0x18] sm:$0xf]
        %v2452 = vld [vmem:[%s888 + $0x1c] sm:$0xf]
        %v2453 = vld [vmem:[%s888 + $0x20] sm:$0xf]
        %v2454 = vld [vmem:[%s888 + $0x24] sm:$0xf]
        %v2455 = vld [vmem:[%s888 + $0x28] sm:$0xf]
        %v2456 = vld [vmem:[%s888 + $0x2c] sm:$0xf]
        %v2457 = vld [vmem:[%s888 + $0x30] sm:$0xf]
        %v2458 = vld [vmem:[%s888 + $0x34] sm:$0xf]
        %v2459 = vld [vmem:[%s888 + $0x38] sm:$0xf]
        %v2460 = vld [vmem:[%s888 + $0x3c] sm:$0xf]
        %v2461 = vld [vmem:[%s1049] sm:$0x1]
        %v2463 = vlaneseq
        %v2464 = vshrl.u32 %v2463, 7
        %v2465 = vsub.s32 0, %v2464
        %v2466 = vrot.slane %v2461, %v2465
        %v2484 = vunpack.c.l.b16 %v2445
        %v2485 = vunpack.c.l.b16 %v2446
        %v2486 = vunpack.c.l.b16 %v2447
        %v2487 = vunpack.c.l.b16 %v2448
        %v2488 = vunpack.c.l.b16 %v2449
        %v2489 = vunpack.c.l.b16 %v2450
        %v2490 = vunpack.c.l.b16 %v2451
        %v2491 = vunpack.c.l.b16 %v2452
        %v2492 = vunpack.c.l.b16 %v2453
        %v2493 = vunpack.c.l.b16 %v2454
        %v2494 = vunpack.c.l.b16 %v2455
        %v2495 = vunpack.c.l.b16 %v2456
        %v2496 = vunpack.c.l.b16 %v2457
        %v2497 = vunpack.c.l.b16 %v2458
        %v2498 = vunpack.c.l.b16 %v2459
        %v2499 = vunpack.c.l.b16 %v2460
        %v2500 = vpack.c.b16 %v2485, %v2484
        %v2501 = vpack.c.b16 %v2487, %v2486
        %v2502 = vpack.c.b16 %v2489, %v2488
        %v2503 = vpack.c.b16 %v2491, %v2490
        %v2504 = vpack.c.b16 %v2493, %v2492
        %v2505 = vpack.c.b16 %v2495, %v2494
        %v2506 = vpack.c.b16 %v2497, %v2496
        %v2507 = vpack.c.b16 %v2499, %v2498
        %2516 = vmatprep.subr.bf16.mxu0 0
        %2517 = vmatpush1.bf16.msra.mxu0 %v2500
        %2518 = vmatprep.subr.bf16.mxu0 0
        %2519 = vmatpush1.bf16.msra.mxu0 %v2501
        %2520 = vmatprep.subr.bf16.mxu0 0
        %2521 = vmatpush1.bf16.msra.mxu0 %v2502
        %2522 = vmatprep.subr.bf16.mxu0 0
        %2523 = vmatpush1.bf16.msra.mxu0 %v2503
        %2524 = vmatprep.subr.bf16.mxu0 0
        %2525 = vmatpush1.bf16.msra.mxu0 %v2504
        %2526 = vmatprep.subr.bf16.mxu0 0
        %2527 = vmatpush1.bf16.msra.mxu0 %v2505
        %2528 = vmatprep.subr.bf16.mxu0 0
        %2529 = vmatpush1.bf16.msra.mxu0 %v2506
        %2530 = vmatprep.subr.bf16.mxu0 0
        %2531 = vmatpush1.bf16.msra.mxu0 %v2507
        %2532 = vmatprep.subr.bf16.mxu0 0
        %2533 = vmatpush1.bf16.msra.mxu0 0
        %2534 = vmatprep.subr.bf16.mxu0 0
        %2535 = vmatpush1.bf16.msra.mxu0 0
        %2536 = vmatprep.subr.bf16.mxu0 0
        %2537 = vmatpush1.bf16.msra.mxu0 0
        %2538 = vmatprep.subr.bf16.mxu0 0
        %2539 = vmatpush1.bf16.msra.mxu0 0
        %2540 = vmatprep.subr.bf16.mxu0 0
        %2541 = vmatpush1.bf16.msra.mxu0 0
        %2542 = vmatprep.subr.bf16.mxu0 0
        %2543 = vmatpush1.bf16.msra.mxu0 0
        %2544 = vmatprep.subr.bf16.mxu0 0
        %2545 = vmatpush1.bf16.msra.mxu0 0
        %2546 = vmatprep.subr.bf16.mxu0 0
        %2547 = vmatpush1.bf16.msra.mxu0 0
        %2548 = vmatprep.mubr.bf16.mxu0 0
        %2549 = vmatmul.mubr.bf16.gmra.mrb[0].mxu0 %v2444
        %v2550 = vpop.f32.mrb[0].mxu0
        %v2551 = vadd.f32 %v2466, %v2550
        %v2552 = vpop.f32.mrb[0].mxu0
        %v2553 = vpop.f32.mrb[0].mxu0
        %v2554 = vadd.f32 %v2466, %v2553
        %v2555 = vpop.f32.mrb[0].mxu0
        %2556 = vdwg.mxu0
        %v2557 = vpack.c.bf16 %v2443, %v2442
        %v2558 = vld [vmem:[%s1054] sm:$0xff]
        %v2559 = vld [vmem:[%s1054 + $0x8] sm:$0xff]
        %v2560 = vld [vmem:[%s1054 + $0x10] sm:$0xff]
        %v2561 = vld [vmem:[%s1054 + $0x18] sm:$0xff]
        %v2562 = vld [vmem:[%s1054 + $0x20] sm:$0xff]
        %v2563 = vld [vmem:[%s1054 + $0x28] sm:$0xff]
        %v2564 = vld [vmem:[%s1054 + $0x30] sm:$0xff]
        %v2565 = vld [vmem:[%s1054 + $0x38] sm:$0xff]
        %v2566 = vld [vmem:[%s1054 + $0x40] sm:$0xff]
        %v2567 = vld [vmem:[%s1054 + $0x48] sm:$0xff]
        %v2568 = vld [vmem:[%s1054 + $0x50] sm:$0xff]
        %v2569 = vld [vmem:[%s1054 + $0x58] sm:$0xff]
        %v2570 = vld [vmem:[%s1054 + $0x60] sm:$0xff]
        %v2571 = vld [vmem:[%s1054 + $0x68] sm:$0xff]
        %v2572 = vld [vmem:[%s1054 + $0x70] sm:$0xff]
        %v2573 = vld [vmem:[%s1054 + $0x78] sm:$0xff]
        %v2574 = vld [vmem:[%s1058] sm:$0x3]
        %v2576 = vlaneseq
        %v2577 = vshrl.u32 %v2576, 7
        %v2578 = vsub.s32 0, %v2577
        %v2579 = vrot.slane %v2574, %v2578
        %v2580 = vlaneseq
        %v2581 = vshrl.u32 %v2580, 7
        %v2582 = vsub.s32 1, %v2581
        %v2583 = vrot.slane %v2574, %v2582
        %v2602 = vunpack.c.l.b16 %v2558
        %v2603 = vunpack.c.h.b16 %v2558
        %v2604 = vunpack.c.l.b16 %v2559
        %v2605 = vunpack.c.h.b16 %v2559
        %v2606 = vunpack.c.l.b16 %v2560
        %v2607 = vunpack.c.h.b16 %v2560
        %v2608 = vunpack.c.l.b16 %v2561
        %v2609 = vunpack.c.h.b16 %v2561
        %v2610 = vunpack.c.l.b16 %v2562
        %v2611 = vunpack.c.h.b16 %v2562
        %v2612 = vunpack.c.l.b16 %v2563
        %v2613 = vunpack.c.h.b16 %v2563
        %v2614 = vunpack.c.l.b16 %v2564
        %v2615 = vunpack.c.h.b16 %v2564
        %v2616 = vunpack.c.l.b16 %v2565
        %v2617 = vunpack.c.h.b16 %v2565
        %v2618 = vunpack.c.l.b16 %v2566
        %v2619 = vunpack.c.h.b16 %v2566
        %v2620 = vunpack.c.l.b16 %v2567
        %v2621 = vunpack.c.h.b16 %v2567
        %v2622 = vunpack.c.l.b16 %v2568
        %v2623 = vunpack.c.h.b16 %v2568
        %v2624 = vunpack.c.l.b16 %v2569
        %v2625 = vunpack.c.h.b16 %v2569
        %v2626 = vunpack.c.l.b16 %v2570
        %v2627 = vunpack.c.h.b16 %v2570
        %v2628 = vunpack.c.l.b16 %v2571
        %v2629 = vunpack.c.h.b16 %v2571
        %v2630 = vunpack.c.l.b16 %v2572
        %v2631 = vunpack.c.h.b16 %v2572
        %v2632 = vunpack.c.l.b16 %v2573
        %v2633 = vunpack.c.h.b16 %v2573
        %v2634 = vpack.c.b16 %v2604, %v2602
        %v2635 = vpack.c.b16 %v2605, %v2603
        %v2636 = vpack.c.b16 %v2608, %v2606
        %v2637 = vpack.c.b16 %v2609, %v2607
        %v2638 = vpack.c.b16 %v2612, %v2610
        %v2639 = vpack.c.b16 %v2613, %v2611
        %v2640 = vpack.c.b16 %v2616, %v2614
        %v2641 = vpack.c.b16 %v2617, %v2615
        %v2642 = vpack.c.b16 %v2620, %v2618
        %v2643 = vpack.c.b16 %v2621, %v2619
        %v2644 = vpack.c.b16 %v2624, %v2622
        %v2645 = vpack.c.b16 %v2625, %v2623
        %v2646 = vpack.c.b16 %v2628, %v2626
        %v2647 = vpack.c.b16 %v2629, %v2627
        %v2648 = vpack.c.b16 %v2632, %v2630
        %v2649 = vpack.c.b16 %v2633, %v2631
        %2666 = vmatprep.subr.bf16.mxu0 %v2635
        %2667 = vmatpush1.bf16.msra.mxu0 %v2634
        %2668 = vmatprep.subr.bf16.mxu0 %v2637
        %2669 = vmatpush1.bf16.msra.mxu0 %v2636
        %2670 = vmatprep.subr.bf16.mxu0 %v2639
        %2671 = vmatpush1.bf16.msra.mxu0 %v2638
        %2672 = vmatprep.subr.bf16.mxu0 %v2641
        %2673 = vmatpush1.bf16.msra.mxu0 %v2640
        %2674 = vmatprep.subr.bf16.mxu0 %v2643
        %2675 = vmatpush1.bf16.msra.mxu0 %v2642
        %2676 = vmatprep.subr.bf16.mxu0 %v2645
        %2677 = vmatpush1.bf16.msra.mxu0 %v2644
        %2678 = vmatprep.subr.bf16.mxu0 %v2647
        %2679 = vmatpush1.bf16.msra.mxu0 %v2646
        %2680 = vmatprep.subr.bf16.mxu0 %v2649
        %2681 = vmatpush1.bf16.msra.mxu0 %v2648
        %2682 = vmatprep.subr.bf16.mxu0 0
        %2683 = vmatpush1.bf16.msra.mxu0 0
        %2684 = vmatprep.subr.bf16.mxu0 0
        %2685 = vmatpush1.bf16.msra.mxu0 0
        %2686 = vmatprep.subr.bf16.mxu0 0
        %2687 = vmatpush1.bf16.msra.mxu0 0
        %2688 = vmatprep.subr.bf16.mxu0 0
        %2689 = vmatpush1.bf16.msra.mxu0 0
        %2690 = vmatprep.subr.bf16.mxu0 0
        %2691 = vmatpush1.bf16.msra.mxu0 0
        %2692 = vmatprep.subr.bf16.mxu0 0
        %2693 = vmatpush1.bf16.msra.mxu0 0
        %2694 = vmatprep.subr.bf16.mxu0 0
        %2695 = vmatpush1.bf16.msra.mxu0 0
        %2696 = vmatprep.subr.bf16.mxu0 0
        %2697 = vmatpush1.bf16.msra.mxu0 0
        %2698 = vmatprep.mubr.bf16.mxu0 0
        %2699 = vmatmul.mubr.bf16.gmra.mrb[0].mxu0 %v2557
        %v2700 = vpop.f32.mrb[0].mxu0
        %v2701 = vadd.f32 %v2579, %v2700
        %v2702 = vpop.f32.mrb[0].mxu0
        %v2703 = vadd.f32 %v2583, %v2702
        %v2704 = vpop.f32.mrb[0].mxu0
        %v2705 = vadd.f32 %v2579, %v2704
        %v2706 = vpop.f32.mrb[0].mxu0
        %v2707 = vadd.f32 %v2583, %v2706
        %2708 = vdwg.mxu0
        %v2709 = vld [vmem:[%s3] sm:$0x3]
        %v2712 = vunpack.c.l.s4 1966171168
        %v2713 = vunpack.c.0.s8 %v2712
        %v2714 = vlaneseq
        %v2715 = vshrl.u32 %v2714, 7
        %v2716 = vsub.s32 %v2713, %v2715
        %v2717 = vrot.slane %v2709, %v2716
        %v2718 = vcombine.high %v2717, %v2717
        %v2720 = vunpack.c.l.s4 1966171168
        %v2721 = vunpack.c.0.s8 %v2720
        %v2722 = vlaneseq
        %v2723 = vshrl.u32 %v2722, 7
        %v2724 = vsub.s32 %v2721, %v2723
        %v2725 = vrot.slane %v2717, %v2724
        %v2727 = vunpack.c.l.s4 1966171168
        %v2728 = vunpack.c.0.s8 %v2727
        %v2729 = vlaneseq
        %v2730 = vshrl.u32 %v2729, 7
        %v2731 = vsub.s32 %v2728, %v2730
        %v2732 = vrot.slane %v2718, %v2731
        %v2733 = vpack.c.bf16 %v2551, %v2551
        %v2734 = vpack.c.bf16 %v2554, %v2554
        %v2735 = vpack.c.bf16 %v2701, %v2701
        %v2736 = vpack.c.bf16 %v2705, %v2705
        %v2737 = vlaneseq
        %v2738 = vshrl.u32 %v2737, 7
        %v2739 = vsub.s32 0, %v2738
        %v2740 = vrot.slane %v2725, %v2739
        %v2741 = vlaneseq
        %v2742 = vshrl.u32 %v2741, 7
        %v2743 = vsub.s32 0, %v2742
        %v2744 = vrot.slane %v2732, %v2743
        %v2748 = vsel %vm1370, %v2733, 0
        %v2751 = vsel %vm1370, %v2735, 0
        %2753 = vmatprep.subr.bf16.mxu0 0
        %2754 = vmatpush1.bf16.xpose.msra.mxu0 %v2751
        %2755 = vmatprep.subr.bf16.mxu0 0
        %2756 = vmatpush1.bf16.xpose.msra.mxu0 0
        %2757 = vmatprep.subr.bf16.mxu0 0
        %2758 = vmatpush1.bf16.xpose.msra.mxu0 0
        %2759 = vmatprep.subr.bf16.mxu0 0
        %2760 = vmatpush1.bf16.xpose.msra.mxu0 0
        %2761 = vmatprep.subr.bf16.mxu0 0
        %2762 = vmatpush1.bf16.xpose.msra.mxu0 0
        %2763 = vmatprep.subr.bf16.mxu0 0
        %2764 = vmatpush1.bf16.xpose.msra.mxu0 0
        %2765 = vmatprep.subr.bf16.mxu0 0
        %2766 = vmatpush1.bf16.xpose.msra.mxu0 0
        %2767 = vmatprep.subr.bf16.mxu0 0
        %2768 = vmatpush1.bf16.xpose.msra.mxu0 0
        %2769 = vmatprep.subr.bf16.mxu0 0
        %2770 = vmatpush1.bf16.xpose.msra.mxu0 0
        %2771 = vmatprep.subr.bf16.mxu0 0
        %2772 = vmatpush1.bf16.xpose.msra.mxu0 0
        %2773 = vmatprep.subr.bf16.mxu0 0
        %2774 = vmatpush1.bf16.xpose.msra.mxu0 0
        %2775 = vmatprep.subr.bf16.mxu0 0
        %2776 = vmatpush1.bf16.xpose.msra.mxu0 0
        %2777 = vmatprep.subr.bf16.mxu0 0
        %2778 = vmatpush1.bf16.xpose.msra.mxu0 0
        %2779 = vmatprep.subr.bf16.mxu0 0
        %2780 = vmatpush1.bf16.xpose.msra.mxu0 0
        %2781 = vmatprep.subr.bf16.mxu0 0
        %2782 = vmatpush1.bf16.xpose.msra.mxu0 0
        %2783 = vmatprep.subr.bf16.mxu0 0
        %2784 = vmatpush1.bf16.xpose.msra.mxu0 0
        %2785 = vmatprep.mubr.bf16.mxu0 0
        %2786 = vmatmul.mubr.bf16.gmra.mrb[0].mxu0 %v2748
        %v2787 = vpop.f32.mrb[0].mxu0
        %v2788 = vadd.f32 %v2740, %v2787
        %v2789 = vpop.f32.mrb[0].mxu0
        %v2790 = vpop.f32.mrb[0].mxu0
        %v2791 = vpop.f32.mrb[0].mxu0
        %2792 = vdwg.mxu0
        %v2794 = vsel %vm1370, %v2734, 0
        %v2797 = vsel %vm1370, %v2736, 0
        %2799 = vmatprep.subr.bf16.mxu0 0
        %2800 = vmatpush1.bf16.xpose.msra.mxu0 %v2797
        %2801 = vmatprep.subr.bf16.mxu0 0
        %2802 = vmatpush1.bf16.xpose.msra.mxu0 0
        %2803 = vmatprep.subr.bf16.mxu0 0
        %2804 = vmatpush1.bf16.xpose.msra.mxu0 0
        %2805 = vmatprep.subr.bf16.mxu0 0
        %2806 = vmatpush1.bf16.xpose.msra.mxu0 0
        %2807 = vmatprep.subr.bf16.mxu0 0
        %2808 = vmatpush1.bf16.xpose.msra.mxu0 0
        %2809 = vmatprep.subr.bf16.mxu0 0
        %2810 = vmatpush1.bf16.xpose.msra.mxu0 0
        %2811 = vmatprep.subr.bf16.mxu0 0
        %2812 = vmatpush1.bf16.xpose.msra.mxu0 0
        %2813 = vmatprep.subr.bf16.mxu0 0
        %2814 = vmatpush1.bf16.xpose.msra.mxu0 0
        %2815 = vmatprep.subr.bf16.mxu0 0
        %2816 = vmatpush1.bf16.xpose.msra.mxu0 0
        %2817 = vmatprep.subr.bf16.mxu0 0
        %2818 = vmatpush1.bf16.xpose.msra.mxu0 0
        %2819 = vmatprep.subr.bf16.mxu0 0
        %2820 = vmatpush1.bf16.xpose.msra.mxu0 0
        %2821 = vmatprep.subr.bf16.mxu0 0
        %2822 = vmatpush1.bf16.xpose.msra.mxu0 0
        %2823 = vmatprep.subr.bf16.mxu0 0
        %2824 = vmatpush1.bf16.xpose.msra.mxu0 0
        %2825 = vmatprep.subr.bf16.mxu0 0
        %2826 = vmatpush1.bf16.xpose.msra.mxu0 0
        %2827 = vmatprep.subr.bf16.mxu0 0
        %2828 = vmatpush1.bf16.xpose.msra.mxu0 0
        %2829 = vmatprep.subr.bf16.mxu0 0
        %2830 = vmatpush1.bf16.xpose.msra.mxu0 0
        %2831 = vmatprep.mubr.bf16.mxu0 0
        %2832 = vmatmul.mubr.bf16.gmra.mrb[0].mxu0 %v2794
        %v2833 = vpop.f32.mrb[0].mxu0
        %v2834 = vadd.f32 %v2744, %v2833
        %v2835 = vpop.f32.mrb[0].mxu0
        %v2836 = vpop.f32.mrb[0].mxu0
        %v2837 = vpop.f32.mrb[0].mxu0
        %2838 = vdwg.mxu0
        %v2839 = vsel %vm1463, %v2788, -inf
        %2840 = vmax.xlane.f32.xlu0 %v2839
        %v2841 = vpop.xlane.xlu0 %2840
        %v2842 = vsel %vm1463, %v2834, -inf
        %2843 = vmax.xlane.f32.xlu0 %v2842
        %v2844 = vpop.xlane.xlu0 %2843
        %v2845 = vsub.f32 %v2788, %v2841
        %v2846 = vsub.f32 %v2834, %v2844
        %v2847 = vmul.f32 %v2845, 1.442695
        %v2848 = vpow.pop %v2847
        %v2849 = vmul.f32 %v2846, 1.442695
        %v2850 = vpow.pop %v2849
        %v2851 = vsel %vm1463, %v2848, 0.0
        %2852 = vadd.xlane.f32.xlu0 %v2851
        %v2853 = vpop.xlane.xlu0 %2852
        %v2854 = vsel %vm1463, %v2850, 0.0
        %2855 = vadd.xlane.f32.xlu0 %v2854
        %v2856 = vpop.xlane.xlu0 %2855
        %v2857 = vrcp.pop %v2853
        %v2858 = vmul.f32 %v2848, %v2857
        %v2859 = vrcp.pop %v2856
        %v2860 = vmul.f32 %v2850, %v2859
        %v2861 = vpack.c.bf16 %v2858, %v2858
        %v2862 = vpack.c.bf16 %v2860, %v2860
        %v2863 = vpack.c.bf16 %v2703, %v2703
        %v2864 = vpack.c.bf16 %v2707, %v2707
        %v2866 = vsel %vm1463, %v2861, 0
        %v2869 = vsel %vm1493, %v2863, 0
        %2871 = vmatprep.subr.bf16.mxu0 0
        %2872 = vmatpush1.bf16.msra.mxu0 %v2869
        %2873 = vmatprep.subr.bf16.mxu0 0
        %2874 = vmatpush1.bf16.msra.mxu0 0
        %2875 = vmatprep.subr.bf16.mxu0 0
        %2876 = vmatpush1.bf16.msra.mxu0 0
        %2877 = vmatprep.subr.bf16.mxu0 0
        %2878 = vmatpush1.bf16.msra.mxu0 0
        %2879 = vmatprep.subr.bf16.mxu0 0
        %2880 = vmatpush1.bf16.msra.mxu0 0
        %2881 = vmatprep.subr.bf16.mxu0 0
        %2882 = vmatpush1.bf16.msra.mxu0 0
        %2883 = vmatprep.subr.bf16.mxu0 0
        %2884 = vmatpush1.bf16.msra.mxu0 0
        %2885 = vmatprep.subr.bf16.mxu0 0
        %2886 = vmatpush1.bf16.msra.mxu0 0
        %2887 = vmatprep.subr.bf16.mxu0 0
        %2888 = vmatpush1.bf16.msra.mxu0 0
        %2889 = vmatprep.subr.bf16.mxu0 0
        %2890 = vmatpush1.bf16.msra.mxu0 0
        %2891 = vmatprep.subr.bf16.mxu0 0
        %2892 = vmatpush1.bf16.msra.mxu0 0
        %2893 = vmatprep.subr.bf16.mxu0 0
        %2894 = vmatpush1.bf16.msra.mxu0 0
        %2895 = vmatprep.subr.bf16.mxu0 0
        %2896 = vmatpush1.bf16.msra.mxu0 0
        %2897 = vmatprep.subr.bf16.mxu0 0
        %2898 = vmatpush1.bf16.msra.mxu0 0
        %2899 = vmatprep.subr.bf16.mxu0 0
        %2900 = vmatpush1.bf16.msra.mxu0 0
        %2901 = vmatprep.subr.bf16.mxu0 0
        %2902 = vmatpush1.bf16.msra.mxu0 0
        %2903 = vmatprep.mubr.bf16.mxu0 0
        %2904 = vmatmul.mubr.bf16.gmra.mrb[0].mxu0 %v2866
        %v2905 = vpop.f32.mrb[0].mxu0
        %v2906 = vadd.f32 0.0, %v2905
        %v2907 = vpop.f32.mrb[0].mxu0
        %v2908 = vpop.f32.mrb[0].mxu0
        %v2909 = vpop.f32.mrb[0].mxu0
        %2910 = vdwg.mxu0
        %v2912 = vsel %vm1463, %v2862, 0
        %v2915 = vsel %vm1493, %v2864, 0
        %2917 = vmatprep.subr.bf16.mxu0 0
        %2918 = vmatpush1.bf16.msra.mxu0 %v2915
        %2919 = vmatprep.subr.bf16.mxu0 0
        %2920 = vmatpush1.bf16.msra.mxu0 0
        %2921 = vmatprep.subr.bf16.mxu0 0
        %2922 = vmatpush1.bf16.msra.mxu0 0
        %2923 = vmatprep.subr.bf16.mxu0 0
        %2924 = vmatpush1.bf16.msra.mxu0 0
        %2925 = vmatprep.subr.bf16.mxu0 0
        %2926 = vmatpush1.bf16.msra.mxu0 0
        %2927 = vmatprep.subr.bf16.mxu0 0
        %2928 = vmatpush1.bf16.msra.mxu0 0
        %2929 = vmatprep.subr.bf16.mxu0 0
        %2930 = vmatpush1.bf16.msra.mxu0 0
        %2931 = vmatprep.subr.bf16.mxu0 0
        %2932 = vmatpush1.bf16.msra.mxu0 0
        %2933 = vmatprep.subr.bf16.mxu0 0
        %2934 = vmatpush1.bf16.msra.mxu0 0
        %2935 = vmatprep.subr.bf16.mxu0 0
        %2936 = vmatpush1.bf16.msra.mxu0 0
        %2937 = vmatprep.subr.bf16.mxu0 0
        %2938 = vmatpush1.bf16.msra.mxu0 0
        %2939 = vmatprep.subr.bf16.mxu0 0
        %2940 = vmatpush1.bf16.msra.mxu0 0
        %2941 = vmatprep.subr.bf16.mxu0 0
        %2942 = vmatpush1.bf16.msra.mxu0 0
        %2943 = vmatprep.subr.bf16.mxu0 0
        %2944 = vmatpush1.bf16.msra.mxu0 0
        %2945 = vmatprep.subr.bf16.mxu0 0
        %2946 = vmatpush1.bf16.msra.mxu0 0
        %2947 = vmatprep.subr.bf16.mxu0 0
        %2948 = vmatpush1.bf16.msra.mxu0 0
        %2949 = vmatprep.mubr.bf16.mxu0 0
        %2950 = vmatmul.mubr.bf16.gmra.mrb[0].mxu0 %v2912
        %v2951 = vpop.f32.mrb[0].mxu0
        %v2952 = vadd.f32 0.0, %v2951
        %v2953 = vpop.f32.mrb[0].mxu0
        %v2954 = vpop.f32.mrb[0].mxu0
        %v2955 = vpop.f32.mrb[0].mxu0
        %2956 = vdwg.mxu0
        %2957 = vst.msk [vmem:[#allocation3] sm:$0xff] %vm1370, %v2906
        %2958 = vst.msk [vmem:[#allocation3 + $0x8] sm:$0xff] %vm1370, %v2952
        %2960 = vrot.lane.b32.xlu0 %v2733, 96
        %v2961 = vpop.permute.xlu0 %2960
        %2963 = vrot.lane.b32.xlu0 %v2735, 96
        %v2964 = vpop.permute.xlu0 %2963
        %v2966 = vsel %vm1370, %v2961, 0
        %v2969 = vsel %vm1370, %v2964, 0
        %2971 = vmatprep.subr.bf16.mxu0 0
        %2972 = vmatpush1.bf16.xpose.msra.mxu0 %v2969
        %2973 = vmatprep.subr.bf16.mxu0 0
        %2974 = vmatpush1.bf16.xpose.msra.mxu0 0
        %2975 = vmatprep.subr.bf16.mxu0 0
        %2976 = vmatpush1.bf16.xpose.msra.mxu0 0
        %2977 = vmatprep.subr.bf16.mxu0 0
        %2978 = vmatpush1.bf16.xpose.msra.mxu0 0
        %2979 = vmatprep.subr.bf16.mxu0 0
        %2980 = vmatpush1.bf16.xpose.msra.mxu0 0
        %2981 = vmatprep.subr.bf16.mxu0 0
        %2982 = vmatpush1.bf16.xpose.msra.mxu0 0
        %2983 = vmatprep.subr.bf16.mxu0 0
        %2984 = vmatpush1.bf16.xpose.msra.mxu0 0
        %2985 = vmatprep.subr.bf16.mxu0 0
        %2986 = vmatpush1.bf16.xpose.msra.mxu0 0
        %2987 = vmatprep.subr.bf16.mxu0 0
        %2988 = vmatpush1.bf16.xpose.msra.mxu0 0
        %2989 = vmatprep.subr.bf16.mxu0 0
        %2990 = vmatpush1.bf16.xpose.msra.mxu0 0
        %2991 = vmatprep.subr.bf16.mxu0 0
        %2992 = vmatpush1.bf16.xpose.msra.mxu0 0
        %2993 = vmatprep.subr.bf16.mxu0 0
        %2994 = vmatpush1.bf16.xpose.msra.mxu0 0
        %2995 = vmatprep.subr.bf16.mxu0 0
        %2996 = vmatpush1.bf16.xpose.msra.mxu0 0
        %2997 = vmatprep.subr.bf16.mxu0 0
        %2998 = vmatpush1.bf16.xpose.msra.mxu0 0
        %2999 = vmatprep.subr.bf16.mxu0 0
        %3000 = vmatpush1.bf16.xpose.msra.mxu0 0
        %3001 = vmatprep.subr.bf16.mxu0 0
        %3002 = vmatpush1.bf16.xpose.msra.mxu0 0
        %3003 = vmatprep.mubr.bf16.mxu0 0
        %3004 = vmatmul.mubr.bf16.gmra.mrb[0].mxu0 %v2966
        %v3005 = vpop.f32.mrb[0].mxu0
        %v3006 = vadd.f32 %v2740, %v3005
        %v3007 = vpop.f32.mrb[0].mxu0
        %v3008 = vpop.f32.mrb[0].mxu0
        %v3009 = vpop.f32.mrb[0].mxu0
        %3010 = vdwg.mxu0
        %3012 = vrot.lane.b32.xlu0 %v2734, 96
        %v3013 = vpop.permute.xlu0 %3012
        %3015 = vrot.lane.b32.xlu0 %v2736, 96
        %v3016 = vpop.permute.xlu0 %3015
        %v3018 = vsel %vm1370, %v3013, 0
        %v3021 = vsel %vm1370, %v3016, 0
        %3023 = vmatprep.subr.bf16.mxu0 0
        %3024 = vmatpush1.bf16.xpose.msra.mxu0 %v3021
        %3025 = vmatprep.subr.bf16.mxu0 0
        %3026 = vmatpush1.bf16.xpose.msra.mxu0 0
        %3027 = vmatprep.subr.bf16.mxu0 0
        %3028 = vmatpush1.bf16.xpose.msra.mxu0 0
        %3029 = vmatprep.subr.bf16.mxu0 0
        %3030 = vmatpush1.bf16.xpose.msra.mxu0 0
        %3031 = vmatprep.subr.bf16.mxu0 0
        %3032 = vmatpush1.bf16.xpose.msra.mxu0 0
        %3033 = vmatprep.subr.bf16.mxu0 0
        %3034 = vmatpush1.bf16.xpose.msra.mxu0 0
        %3035 = vmatprep.subr.bf16.mxu0 0
        %3036 = vmatpush1.bf16.xpose.msra.mxu0 0
        %3037 = vmatprep.subr.bf16.mxu0 0
        %3038 = vmatpush1.bf16.xpose.msra.mxu0 0
        %3039 = vmatprep.subr.bf16.mxu0 0
        %3040 = vmatpush1.bf16.xpose.msra.mxu0 0
        %3041 = vmatprep.subr.bf16.mxu0 0
        %3042 = vmatpush1.bf16.xpose.msra.mxu0 0
        %3043 = vmatprep.subr.bf16.mxu0 0
        %3044 = vmatpush1.bf16.xpose.msra.mxu0 0
        %3045 = vmatprep.subr.bf16.mxu0 0
        %3046 = vmatpush1.bf16.xpose.msra.mxu0 0
        %3047 = vmatprep.subr.bf16.mxu0 0
        %3048 = vmatpush1.bf16.xpose.msra.mxu0 0
        %3049 = vmatprep.subr.bf16.mxu0 0
        %3050 = vmatpush1.bf16.xpose.msra.mxu0 0
        %3051 = vmatprep.subr.bf16.mxu0 0
        %3052 = vmatpush1.bf16.xpose.msra.mxu0 0
        %3053 = vmatprep.subr.bf16.mxu0 0
        %3054 = vmatpush1.bf16.xpose.msra.mxu0 0
        %3055 = vmatprep.mubr.bf16.mxu0 0
        %3056 = vmatmul.mubr.bf16.gmra.mrb[0].mxu0 %v3018
        %v3057 = vpop.f32.mrb[0].mxu0
        %v3058 = vadd.f32 %v2744, %v3057
        %v3059 = vpop.f32.mrb[0].mxu0
        %v3060 = vpop.f32.mrb[0].mxu0
        %v3061 = vpop.f32.mrb[0].mxu0
        %3062 = vdwg.mxu0
        %v3063 = vsel %vm1463, %v3006, -inf
        %3064 = vmax.xlane.f32.xlu0 %v3063
        %v3065 = vpop.xlane.xlu0 %3064
        %v3066 = vsel %vm1463, %v3058, -inf
        %3067 = vmax.xlane.f32.xlu0 %v3066
        %v3068 = vpop.xlane.xlu0 %3067
        %v3069 = vsub.f32 %v3006, %v3065
        %v3070 = vsub.f32 %v3058, %v3068
        %v3071 = vmul.f32 %v3069, 1.442695
        %v3072 = vpow.pop %v3071
        %v3073 = vmul.f32 %v3070, 1.442695
        %v3074 = vpow.pop %v3073
        %v3075 = vsel %vm1463, %v3072, 0.0
        %3076 = vadd.xlane.f32.xlu0 %v3075
        %v3077 = vpop.xlane.xlu0 %3076
        %v3078 = vsel %vm1463, %v3074, 0.0
        %3079 = vadd.xlane.f32.xlu0 %v3078
        %v3080 = vpop.xlane.xlu0 %3079
        %v3081 = vrcp.pop %v3077
        %v3082 = vmul.f32 %v3072, %v3081
        %v3083 = vrcp.pop %v3080
        %v3084 = vmul.f32 %v3074, %v3083
        %v3085 = vpack.c.bf16 %v3082, %v3082
        %v3086 = vpack.c.bf16 %v3084, %v3084
        %3088 = vrot.lane.b32.xlu0 %v2863, 96
        %v3089 = vpop.permute.xlu0 %3088
        %v3091 = vsel %vm1463, %v3085, 0
        %v3094 = vsel %vm1493, %v3089, 0
        %3096 = vmatprep.subr.bf16.mxu0 0
        %3097 = vmatpush1.bf16.msra.mxu0 %v3094
        %3098 = vmatprep.subr.bf16.mxu0 0
        %3099 = vmatpush1.bf16.msra.mxu0 0
        %3100 = vmatprep.subr.bf16.mxu0 0
        %3101 = vmatpush1.bf16.msra.mxu0 0
        %3102 = vmatprep.subr.bf16.mxu0 0
        %3103 = vmatpush1.bf16.msra.mxu0 0
        %3104 = vmatprep.subr.bf16.mxu0 0
        %3105 = vmatpush1.bf16.msra.mxu0 0
        %3106 = vmatprep.subr.bf16.mxu0 0
        %3107 = vmatpush1.bf16.msra.mxu0 0
        %3108 = vmatprep.subr.bf16.mxu0 0
        %3109 = vmatpush1.bf16.msra.mxu0 0
        %3110 = vmatprep.subr.bf16.mxu0 0
        %3111 = vmatpush1.bf16.msra.mxu0 0
        %3112 = vmatprep.subr.bf16.mxu0 0
        %3113 = vmatpush1.bf16.msra.mxu0 0
        %3114 = vmatprep.subr.bf16.mxu0 0
        %3115 = vmatpush1.bf16.msra.mxu0 0
        %3116 = vmatprep.subr.bf16.mxu0 0
        %3117 = vmatpush1.bf16.msra.mxu0 0
        %3118 = vmatprep.subr.bf16.mxu0 0
        %3119 = vmatpush1.bf16.msra.mxu0 0
        %3120 = vmatprep.subr.bf16.mxu0 0
        %3121 = vmatpush1.bf16.msra.mxu0 0
        %3122 = vmatprep.subr.bf16.mxu0 0
        %3123 = vmatpush1.bf16.msra.mxu0 0
        %3124 = vmatprep.subr.bf16.mxu0 0
        %3125 = vmatpush1.bf16.msra.mxu0 0
        %3126 = vmatprep.subr.bf16.mxu0 0
        %3127 = vmatpush1.bf16.msra.mxu0 0
        %3128 = vmatprep.mubr.bf16.mxu0 0
        %3129 = vmatmul.mubr.bf16.gmra.mrb[0].mxu0 %v3091
        %v3130 = vpop.f32.mrb[0].mxu0
        %v3131 = vadd.f32 0.0, %v3130
        %v3132 = vpop.f32.mrb[0].mxu0
        %v3133 = vpop.f32.mrb[0].mxu0
        %v3134 = vpop.f32.mrb[0].mxu0
        %3135 = vdwg.mxu0
        %3137 = vrot.lane.b32.xlu0 %v2864, 96
        %v3138 = vpop.permute.xlu0 %3137
        %v3140 = vsel %vm1463, %v3086, 0
        %v3143 = vsel %vm1493, %v3138, 0
        %3145 = vmatprep.subr.bf16.mxu0 0
        %3146 = vmatpush1.bf16.msra.mxu0 %v3143
        %3147 = vmatprep.subr.bf16.mxu0 0
        %3148 = vmatpush1.bf16.msra.mxu0 0
        %3149 = vmatprep.subr.bf16.mxu0 0
        %3150 = vmatpush1.bf16.msra.mxu0 0
        %3151 = vmatprep.subr.bf16.mxu0 0
        %3152 = vmatpush1.bf16.msra.mxu0 0
        %3153 = vmatprep.subr.bf16.mxu0 0
        %3154 = vmatpush1.bf16.msra.mxu0 0
        %3155 = vmatprep.subr.bf16.mxu0 0
        %3156 = vmatpush1.bf16.msra.mxu0 0
        %3157 = vmatprep.subr.bf16.mxu0 0
        %3158 = vmatpush1.bf16.msra.mxu0 0
        %3159 = vmatprep.subr.bf16.mxu0 0
        %3160 = vmatpush1.bf16.msra.mxu0 0
        %3161 = vmatprep.subr.bf16.mxu0 0
        %3162 = vmatpush1.bf16.msra.mxu0 0
        %3163 = vmatprep.subr.bf16.mxu0 0
        %3164 = vmatpush1.bf16.msra.mxu0 0
        %3165 = vmatprep.subr.bf16.mxu0 0
        %3166 = vmatpush1.bf16.msra.mxu0 0
        %3167 = vmatprep.subr.bf16.mxu0 0
        %3168 = vmatpush1.bf16.msra.mxu0 0
        %3169 = vmatprep.subr.bf16.mxu0 0
        %3170 = vmatpush1.bf16.msra.mxu0 0
        %3171 = vmatprep.subr.bf16.mxu0 0
        %3172 = vmatpush1.bf16.msra.mxu0 0
        %3173 = vmatprep.subr.bf16.mxu0 0
        %3174 = vmatpush1.bf16.msra.mxu0 0
        %3175 = vmatprep.subr.bf16.mxu0 0
        %3176 = vmatpush1.bf16.msra.mxu0 0
        %3177 = vmatprep.mubr.bf16.mxu0 0
        %3178 = vmatmul.mubr.bf16.gmra.mrb[0].mxu0 %v3140
        %v3179 = vpop.f32.mrb[0].mxu0
        %v3180 = vadd.f32 0.0, %v3179
        %v3181 = vpop.f32.mrb[0].mxu0
        %v3182 = vpop.f32.mrb[0].mxu0
        %v3183 = vpop.f32.mrb[0].mxu0
        %3184 = vdwg.mxu0
        %3187 = vrot.lane.b32.xlu0 %v3131, 32
        %v3188 = vpop.permute.xlu0 %3187
        %3189 = vrot.lane.b32.xlu0 %v3180, 32
        %v3190 = vpop.permute.xlu0 %3189
        %3193 = vst.msk [vmem:[#allocation3] sm:$0xff] %vm1819, %v3188
        %3194 = vst.msk [vmem:[#allocation3 + $0x8] sm:$0xff] %vm1819, %v3190
        %3195 = vrot.lane.b32.xlu0 %v2733, 64
        %v3196 = vpop.permute.xlu0 %3195
        %3197 = vrot.lane.b32.xlu0 %v2735, 64
        %v3198 = vpop.permute.xlu0 %3197
        %v3200 = vsel %vm1370, %v3196, 0
        %v3203 = vsel %vm1370, %v3198, 0
        %3205 = vmatprep.subr.bf16.mxu0 0
        %3206 = vmatpush1.bf16.xpose.msra.mxu0 %v3203
        %3207 = vmatprep.subr.bf16.mxu0 0
        %3208 = vmatpush1.bf16.xpose.msra.mxu0 0
        %3209 = vmatprep.subr.bf16.mxu0 0
        %3210 = vmatpush1.bf16.xpose.msra.mxu0 0
        %3211 = vmatprep.subr.bf16.mxu0 0
        %3212 = vmatpush1.bf16.xpose.msra.mxu0 0
        %3213 = vmatprep.subr.bf16.mxu0 0
        %3214 = vmatpush1.bf16.xpose.msra.mxu0 0
        %3215 = vmatprep.subr.bf16.mxu0 0
        %3216 = vmatpush1.bf16.xpose.msra.mxu0 0
        %3217 = vmatprep.subr.bf16.mxu0 0
        %3218 = vmatpush1.bf16.xpose.msra.mxu0 0
        %3219 = vmatprep.subr.bf16.mxu0 0
        %3220 = vmatpush1.bf16.xpose.msra.mxu0 0
        %3221 = vmatprep.subr.bf16.mxu0 0
        %3222 = vmatpush1.bf16.xpose.msra.mxu0 0
        %3223 = vmatprep.subr.bf16.mxu0 0
        %3224 = vmatpush1.bf16.xpose.msra.mxu0 0
        %3225 = vmatprep.subr.bf16.mxu0 0
        %3226 = vmatpush1.bf16.xpose.msra.mxu0 0
        %3227 = vmatprep.subr.bf16.mxu0 0
        %3228 = vmatpush1.bf16.xpose.msra.mxu0 0
        %3229 = vmatprep.subr.bf16.mxu0 0
        %3230 = vmatpush1.bf16.xpose.msra.mxu0 0
        %3231 = vmatprep.subr.bf16.mxu0 0
        %3232 = vmatpush1.bf16.xpose.msra.mxu0 0
        %3233 = vmatprep.subr.bf16.mxu0 0
        %3234 = vmatpush1.bf16.xpose.msra.mxu0 0
        %3235 = vmatprep.subr.bf16.mxu0 0
        %3236 = vmatpush1.bf16.xpose.msra.mxu0 0
        %3237 = vmatprep.mubr.bf16.mxu0 0
        %3238 = vmatmul.mubr.bf16.gmra.mrb[0].mxu0 %v3200
        %v3239 = vpop.f32.mrb[0].mxu0
        %v3240 = vadd.f32 %v2740, %v3239
        %v3241 = vpop.f32.mrb[0].mxu0
        %v3242 = vpop.f32.mrb[0].mxu0
        %v3243 = vpop.f32.mrb[0].mxu0
        %3244 = vdwg.mxu0
        %3245 = vrot.lane.b32.xlu0 %v2734, 64
        %v3246 = vpop.permute.xlu0 %3245
        %3247 = vrot.lane.b32.xlu0 %v2736, 64
        %v3248 = vpop.permute.xlu0 %3247
        %v3250 = vsel %vm1370, %v3246, 0
        %v3253 = vsel %vm1370, %v3248, 0
        %3255 = vmatprep.subr.bf16.mxu0 0
        %3256 = vmatpush1.bf16.xpose.msra.mxu0 %v3253
        %3257 = vmatprep.subr.bf16.mxu0 0
        %3258 = vmatpush1.bf16.xpose.msra.mxu0 0
        %3259 = vmatprep.subr.bf16.mxu0 0
        %3260 = vmatpush1.bf16.xpose.msra.mxu0 0
        %3261 = vmatprep.subr.bf16.mxu0 0
        %3262 = vmatpush1.bf16.xpose.msra.mxu0 0
        %3263 = vmatprep.subr.bf16.mxu0 0
        %3264 = vmatpush1.bf16.xpose.msra.mxu0 0
        %3265 = vmatprep.subr.bf16.mxu0 0
        %3266 = vmatpush1.bf16.xpose.msra.mxu0 0
        %3267 = vmatprep.subr.bf16.mxu0 0
        %3268 = vmatpush1.bf16.xpose.msra.mxu0 0
        %3269 = vmatprep.subr.bf16.mxu0 0
        %3270 = vmatpush1.bf16.xpose.msra.mxu0 0
        %3271 = vmatprep.subr.bf16.mxu0 0
        %3272 = vmatpush1.bf16.xpose.msra.mxu0 0
        %3273 = vmatprep.subr.bf16.mxu0 0
        %3274 = vmatpush1.bf16.xpose.msra.mxu0 0
        %3275 = vmatprep.subr.bf16.mxu0 0
        %3276 = vmatpush1.bf16.xpose.msra.mxu0 0
        %3277 = vmatprep.subr.bf16.mxu0 0
        %3278 = vmatpush1.bf16.xpose.msra.mxu0 0
        %3279 = vmatprep.subr.bf16.mxu0 0
        %3280 = vmatpush1.bf16.xpose.msra.mxu0 0
        %3281 = vmatprep.subr.bf16.mxu0 0
        %3282 = vmatpush1.bf16.xpose.msra.mxu0 0
        %3283 = vmatprep.subr.bf16.mxu0 0
        %3284 = vmatpush1.bf16.xpose.msra.mxu0 0
        %3285 = vmatprep.subr.bf16.mxu0 0
        %3286 = vmatpush1.bf16.xpose.msra.mxu0 0
        %3287 = vmatprep.mubr.bf16.mxu0 0
        %3288 = vmatmul.mubr.bf16.gmra.mrb[0].mxu0 %v3250
        %v3289 = vpop.f32.mrb[0].mxu0
        %v3290 = vadd.f32 %v2744, %v3289
        %v3291 = vpop.f32.mrb[0].mxu0
        %v3292 = vpop.f32.mrb[0].mxu0
        %v3293 = vpop.f32.mrb[0].mxu0
        %3294 = vdwg.mxu0
        %v3295 = vsel %vm1463, %v3240, -inf
        %3296 = vmax.xlane.f32.xlu0 %v3295
        %v3297 = vpop.xlane.xlu0 %3296
        %v3298 = vsel %vm1463, %v3290, -inf
        %3299 = vmax.xlane.f32.xlu0 %v3298
        %v3300 = vpop.xlane.xlu0 %3299
        %v3301 = vsub.f32 %v3240, %v3297
        %v3302 = vsub.f32 %v3290, %v3300
        %v3303 = vmul.f32 %v3301, 1.442695
        %v3304 = vpow.pop %v3303
        %v3305 = vmul.f32 %v3302, 1.442695
        %v3306 = vpow.pop %v3305
        %v3307 = vsel %vm1463, %v3304, 0.0
        %3308 = vadd.xlane.f32.xlu0 %v3307
        %v3309 = vpop.xlane.xlu0 %3308
        %v3310 = vsel %vm1463, %v3306, 0.0
        %3311 = vadd.xlane.f32.xlu0 %v3310
        %v3312 = vpop.xlane.xlu0 %3311
        %v3313 = vrcp.pop %v3309
        %v3314 = vmul.f32 %v3304, %v3313
        %v3315 = vrcp.pop %v3312
        %v3316 = vmul.f32 %v3306, %v3315
        %v3317 = vpack.c.bf16 %v3314, %v3314
        %v3318 = vpack.c.bf16 %v3316, %v3316
        %3319 = vrot.lane.b32.xlu0 %v2863, 64
        %v3320 = vpop.permute.xlu0 %3319
        %v3322 = vsel %vm1463, %v3317, 0
        %v3325 = vsel %vm1493, %v3320, 0
        %3327 = vmatprep.subr.bf16.mxu0 0
        %3328 = vmatpush1.bf16.msra.mxu0 %v3325
        %3329 = vmatprep.subr.bf16.mxu0 0
        %3330 = vmatpush1.bf16.msra.mxu0 0
        %3331 = vmatprep.subr.bf16.mxu0 0
        %3332 = vmatpush1.bf16.msra.mxu0 0
        %3333 = vmatprep.subr.bf16.mxu0 0
        %3334 = vmatpush1.bf16.msra.mxu0 0
        %3335 = vmatprep.subr.bf16.mxu0 0
        %3336 = vmatpush1.bf16.msra.mxu0 0
        %3337 = vmatprep.subr.bf16.mxu0 0
        %3338 = vmatpush1.bf16.msra.mxu0 0
        %3339 = vmatprep.subr.bf16.mxu0 0
        %3340 = vmatpush1.bf16.msra.mxu0 0
        %3341 = vmatprep.subr.bf16.mxu0 0
        %3342 = vmatpush1.bf16.msra.mxu0 0
        %3343 = vmatprep.subr.bf16.mxu0 0
        %3344 = vmatpush1.bf16.msra.mxu0 0
        %3345 = vmatprep.subr.bf16.mxu0 0
        %3346 = vmatpush1.bf16.msra.mxu0 0
        %3347 = vmatprep.subr.bf16.mxu0 0
        %3348 = vmatpush1.bf16.msra.mxu0 0
        %3349 = vmatprep.subr.bf16.mxu0 0
        %3350 = vmatpush1.bf16.msra.mxu0 0
        %3351 = vmatprep.subr.bf16.mxu0 0
        %3352 = vmatpush1.bf16.msra.mxu0 0
        %3353 = vmatprep.subr.bf16.mxu0 0
        %3354 = vmatpush1.bf16.msra.mxu0 0
        %3355 = vmatprep.subr.bf16.mxu0 0
        %3356 = vmatpush1.bf16.msra.mxu0 0
        %3357 = vmatprep.subr.bf16.mxu0 0
        %3358 = vmatpush1.bf16.msra.mxu0 0
        %3359 = vmatprep.mubr.bf16.mxu0 0
        %3360 = vmatmul.mubr.bf16.gmra.mrb[0].mxu0 %v3322
        %v3361 = vpop.f32.mrb[0].mxu0
        %v3362 = vadd.f32 0.0, %v3361
        %v3363 = vpop.f32.mrb[0].mxu0
        %v3364 = vpop.f32.mrb[0].mxu0
        %v3365 = vpop.f32.mrb[0].mxu0
        %3366 = vdwg.mxu0
        %3367 = vrot.lane.b32.xlu0 %v2864, 64
        %v3368 = vpop.permute.xlu0 %3367
        %v3370 = vsel %vm1463, %v3318, 0
        %v3373 = vsel %vm1493, %v3368, 0
        %3375 = vmatprep.subr.bf16.mxu0 0
        %3376 = vmatpush1.bf16.msra.mxu0 %v3373
        %3377 = vmatprep.subr.bf16.mxu0 0
        %3378 = vmatpush1.bf16.msra.mxu0 0
        %3379 = vmatprep.subr.bf16.mxu0 0
        %3380 = vmatpush1.bf16.msra.mxu0 0
        %3381 = vmatprep.subr.bf16.mxu0 0
        %3382 = vmatpush1.bf16.msra.mxu0 0
        %3383 = vmatprep.subr.bf16.mxu0 0
        %3384 = vmatpush1.bf16.msra.mxu0 0
        %3385 = vmatprep.subr.bf16.mxu0 0
        %3386 = vmatpush1.bf16.msra.mxu0 0
        %3387 = vmatprep.subr.bf16.mxu0 0
        %3388 = vmatpush1.bf16.msra.mxu0 0
        %3389 = vmatprep.subr.bf16.mxu0 0
        %3390 = vmatpush1.bf16.msra.mxu0 0
        %3391 = vmatprep.subr.bf16.mxu0 0
        %3392 = vmatpush1.bf16.msra.mxu0 0
        %3393 = vmatprep.subr.bf16.mxu0 0
        %3394 = vmatpush1.bf16.msra.mxu0 0
        %3395 = vmatprep.subr.bf16.mxu0 0
        %3396 = vmatpush1.bf16.msra.mxu0 0
        %3397 = vmatprep.subr.bf16.mxu0 0
        %3398 = vmatpush1.bf16.msra.mxu0 0
        %3399 = vmatprep.subr.bf16.mxu0 0
        %3400 = vmatpush1.bf16.msra.mxu0 0
        %3401 = vmatprep.subr.bf16.mxu0 0
        %3402 = vmatpush1.bf16.msra.mxu0 0
        %3403 = vmatprep.subr.bf16.mxu0 0
        %3404 = vmatpush1.bf16.msra.mxu0 0
        %3405 = vmatprep.subr.bf16.mxu0 0
        %3406 = vmatpush1.bf16.msra.mxu0 0
        %3407 = vmatprep.mubr.bf16.mxu0 0
        %3408 = vmatmul.mubr.bf16.gmra.mrb[0].mxu0 %v3370
        %v3409 = vpop.f32.mrb[0].mxu0
        %v3410 = vadd.f32 0.0, %v3409
        %v3411 = vpop.f32.mrb[0].mxu0
        %v3412 = vpop.f32.mrb[0].mxu0
        %v3413 = vpop.f32.mrb[0].mxu0
        %3414 = vdwg.mxu0
        %3417 = vrot.lane.b32.xlu0 %v3362, 64
        %v3418 = vpop.permute.xlu0 %3417
        %3419 = vrot.lane.b32.xlu0 %v3410, 64
        %v3420 = vpop.permute.xlu0 %3419
        %3423 = vst.msk [vmem:[#allocation3] sm:$0xff] %vm2050, %v3418
        %3424 = vst.msk [vmem:[#allocation3 + $0x8] sm:$0xff] %vm2050, %v3420
        %3425 = vrot.lane.b32.xlu0 %v2733, 32
        %v3426 = vpop.permute.xlu0 %3425
        %3427 = vrot.lane.b32.xlu0 %v2735, 32
        %v3428 = vpop.permute.xlu0 %3427
        %v3430 = vsel %vm1370, %v3426, 0
        %v3433 = vsel %vm1370, %v3428, 0
        %3435 = vmatprep.subr.bf16.mxu0 0
        %3436 = vmatpush1.bf16.xpose.msra.mxu0 %v3433
        %3437 = vmatprep.subr.bf16.mxu0 0
        %3438 = vmatpush1.bf16.xpose.msra.mxu0 0
        %3439 = vmatprep.subr.bf16.mxu0 0
        %3440 = vmatpush1.bf16.xpose.msra.mxu0 0
        %3441 = vmatprep.subr.bf16.mxu0 0
        %3442 = vmatpush1.bf16.xpose.msra.mxu0 0
        %3443 = vmatprep.subr.bf16.mxu0 0
        %3444 = vmatpush1.bf16.xpose.msra.mxu0 0
        %3445 = vmatprep.subr.bf16.mxu0 0
        %3446 = vmatpush1.bf16.xpose.msra.mxu0 0
        %3447 = vmatprep.subr.bf16.mxu0 0
        %3448 = vmatpush1.bf16.xpose.msra.mxu0 0
        %3449 = vmatprep.subr.bf16.mxu0 0
        %3450 = vmatpush1.bf16.xpose.msra.mxu0 0
        %3451 = vmatprep.subr.bf16.mxu0 0
        %3452 = vmatpush1.bf16.xpose.msra.mxu0 0
        %3453 = vmatprep.subr.bf16.mxu0 0
        %3454 = vmatpush1.bf16.xpose.msra.mxu0 0
        %3455 = vmatprep.subr.bf16.mxu0 0
        %3456 = vmatpush1.bf16.xpose.msra.mxu0 0
        %3457 = vmatprep.subr.bf16.mxu0 0
        %3458 = vmatpush1.bf16.xpose.msra.mxu0 0
        %3459 = vmatprep.subr.bf16.mxu0 0
        %3460 = vmatpush1.bf16.xpose.msra.mxu0 0
        %3461 = vmatprep.subr.bf16.mxu0 0
        %3462 = vmatpush1.bf16.xpose.msra.mxu0 0
        %3463 = vmatprep.subr.bf16.mxu0 0
        %3464 = vmatpush1.bf16.xpose.msra.mxu0 0
        %3465 = vmatprep.subr.bf16.mxu0 0
        %3466 = vmatpush1.bf16.xpose.msra.mxu0 0
        %3467 = vmatprep.mubr.bf16.mxu0 0
        %3468 = vmatmul.mubr.bf16.gmra.mrb[0].mxu0 %v3430
        %v3469 = vpop.f32.mrb[0].mxu0
        %v3470 = vadd.f32 %v2740, %v3469
        %v3471 = vpop.f32.mrb[0].mxu0
        %v3472 = vpop.f32.mrb[0].mxu0
        %v3473 = vpop.f32.mrb[0].mxu0
        %3474 = vdwg.mxu0
        %3475 = vrot.lane.b32.xlu0 %v2734, 32
        %v3476 = vpop.permute.xlu0 %3475
        %3477 = vrot.lane.b32.xlu0 %v2736, 32
        %v3478 = vpop.permute.xlu0 %3477
        %v3480 = vsel %vm1370, %v3476, 0
        %v3483 = vsel %vm1370, %v3478, 0
        %3485 = vmatprep.subr.bf16.mxu0 0
        %3486 = vmatpush1.bf16.xpose.msra.mxu0 %v3483
        %3487 = vmatprep.subr.bf16.mxu0 0
        %3488 = vmatpush1.bf16.xpose.msra.mxu0 0
        %3489 = vmatprep.subr.bf16.mxu0 0
        %3490 = vmatpush1.bf16.xpose.msra.mxu0 0
        %3491 = vmatprep.subr.bf16.mxu0 0
        %3492 = vmatpush1.bf16.xpose.msra.mxu0 0
        %3493 = vmatprep.subr.bf16.mxu0 0
        %3494 = vmatpush1.bf16.xpose.msra.mxu0 0
        %3495 = vmatprep.subr.bf16.mxu0 0
        %3496 = vmatpush1.bf16.xpose.msra.mxu0 0
        %3497 = vmatprep.subr.bf16.mxu0 0
        %3498 = vmatpush1.bf16.xpose.msra.mxu0 0
        %3499 = vmatprep.subr.bf16.mxu0 0
        %3500 = vmatpush1.bf16.xpose.msra.mxu0 0
        %3501 = vmatprep.subr.bf16.mxu0 0
        %3502 = vmatpush1.bf16.xpose.msra.mxu0 0
        %3503 = vmatprep.subr.bf16.mxu0 0
        %3504 = vmatpush1.bf16.xpose.msra.mxu0 0
        %3505 = vmatprep.subr.bf16.mxu0 0
        %3506 = vmatpush1.bf16.xpose.msra.mxu0 0
        %3507 = vmatprep.subr.bf16.mxu0 0
        %3508 = vmatpush1.bf16.xpose.msra.mxu0 0
        %3509 = vmatprep.subr.bf16.mxu0 0
        %3510 = vmatpush1.bf16.xpose.msra.mxu0 0
        %3511 = vmatprep.subr.bf16.mxu0 0
        %3512 = vmatpush1.bf16.xpose.msra.mxu0 0
        %3513 = vmatprep.subr.bf16.mxu0 0
        %3514 = vmatpush1.bf16.xpose.msra.mxu0 0
        %3515 = vmatprep.subr.bf16.mxu0 0
        %3516 = vmatpush1.bf16.xpose.msra.mxu0 0
        %3517 = vmatprep.mubr.bf16.mxu0 0
        %3518 = vmatmul.mubr.bf16.gmra.mrb[0].mxu0 %v3480
        %v3519 = vpop.f32.mrb[0].mxu0
        %v3520 = vadd.f32 %v2744, %v3519
        %v3521 = vpop.f32.mrb[0].mxu0
        %v3522 = vpop.f32.mrb[0].mxu0
        %v3523 = vpop.f32.mrb[0].mxu0
        %3524 = vdwg.mxu0
        %v3525 = vsel %vm1463, %v3470, -inf
        %3526 = vmax.xlane.f32.xlu0 %v3525
        %v3527 = vpop.xlane.xlu0 %3526
        %v3528 = vsel %vm1463, %v3520, -inf
        %3529 = vmax.xlane.f32.xlu0 %v3528
        %v3530 = vpop.xlane.xlu0 %3529
        %v3531 = vsub.f32 %v3470, %v3527
        %v3532 = vsub.f32 %v3520, %v3530
        %v3533 = vmul.f32 %v3531, 1.442695
        %v3534 = vpow.pop %v3533
        %v3535 = vmul.f32 %v3532, 1.442695
        %v3536 = vpow.pop %v3535
        %v3537 = vsel %vm1463, %v3534, 0.0
        %3538 = vadd.xlane.f32.xlu0 %v3537
        %v3539 = vpop.xlane.xlu0 %3538
        %v3540 = vsel %vm1463, %v3536, 0.0
        %3541 = vadd.xlane.f32.xlu0 %v3540
        %v3542 = vpop.xlane.xlu0 %3541
        %v3543 = vrcp.pop %v3539
        %v3544 = vmul.f32 %v3534, %v3543
        %v3545 = vrcp.pop %v3542
        %v3546 = vmul.f32 %v3536, %v3545
        %v3547 = vpack.c.bf16 %v3544, %v3544
        %v3548 = vpack.c.bf16 %v3546, %v3546
        %3549 = vrot.lane.b32.xlu0 %v2863, 32
        %v3550 = vpop.permute.xlu0 %3549
        %v3552 = vsel %vm1463, %v3547, 0
        %v3555 = vsel %vm1493, %v3550, 0
        %3557 = vmatprep.subr.bf16.mxu0 0
        %3558 = vmatpush1.bf16.msra.mxu0 %v3555
        %3559 = vmatprep.subr.bf16.mxu0 0
        %3560 = vmatpush1.bf16.msra.mxu0 0
        %3561 = vmatprep.subr.bf16.mxu0 0
        %3562 = vmatpush1.bf16.msra.mxu0 0
        %3563 = vmatprep.subr.bf16.mxu0 0
        %3564 = vmatpush1.bf16.msra.mxu0 0
        %3565 = vmatprep.subr.bf16.mxu0 0
        %3566 = vmatpush1.bf16.msra.mxu0 0
        %3567 = vmatprep.subr.bf16.mxu0 0
        %3568 = vmatpush1.bf16.msra.mxu0 0
        %3569 = vmatprep.subr.bf16.mxu0 0
        %3570 = vmatpush1.bf16.msra.mxu0 0
        %3571 = vmatprep.subr.bf16.mxu0 0
        %3572 = vmatpush1.bf16.msra.mxu0 0
        %3573 = vmatprep.subr.bf16.mxu0 0
        %3574 = vmatpush1.bf16.msra.mxu0 0
        %3575 = vmatprep.subr.bf16.mxu0 0
        %3576 = vmatpush1.bf16.msra.mxu0 0
        %3577 = vmatprep.subr.bf16.mxu0 0
        %3578 = vmatpush1.bf16.msra.mxu0 0
        %3579 = vmatprep.subr.bf16.mxu0 0
        %3580 = vmatpush1.bf16.msra.mxu0 0
        %3581 = vmatprep.subr.bf16.mxu0 0
        %3582 = vmatpush1.bf16.msra.mxu0 0
        %3583 = vmatprep.subr.bf16.mxu0 0
        %3584 = vmatpush1.bf16.msra.mxu0 0
        %3585 = vmatprep.subr.bf16.mxu0 0
        %3586 = vmatpush1.bf16.msra.mxu0 0
        %3587 = vmatprep.subr.bf16.mxu0 0
        %3588 = vmatpush1.bf16.msra.mxu0 0
        %3589 = vmatprep.mubr.bf16.mxu0 0
        %3590 = vmatmul.mubr.bf16.gmra.mrb[0].mxu0 %v3552
        %v3591 = vpop.f32.mrb[0].mxu0
        %v3592 = vadd.f32 0.0, %v3591
        %v3593 = vpop.f32.mrb[0].mxu0
        %v3594 = vpop.f32.mrb[0].mxu0
        %v3595 = vpop.f32.mrb[0].mxu0
        %3596 = vdwg.mxu0
        %3597 = vrot.lane.b32.xlu0 %v2864, 32
        %v3598 = vpop.permute.xlu0 %3597
        %v3600 = vsel %vm1463, %v3548, 0
        %v3603 = vsel %vm1493, %v3598, 0
        %3605 = vmatprep.subr.bf16.mxu0 0
        %3606 = vmatpush1.bf16.msra.mxu0 %v3603
        %3607 = vmatprep.subr.bf16.mxu0 0
        %3608 = vmatpush1.bf16.msra.mxu0 0
        %3609 = vmatprep.subr.bf16.mxu0 0
        %3610 = vmatpush1.bf16.msra.mxu0 0
        %3611 = vmatprep.subr.bf16.mxu0 0
        %3612 = vmatpush1.bf16.msra.mxu0 0
        %3613 = vmatprep.subr.bf16.mxu0 0
        %3614 = vmatpush1.bf16.msra.mxu0 0
        %3615 = vmatprep.subr.bf16.mxu0 0
        %3616 = vmatpush1.bf16.msra.mxu0 0
        %3617 = vmatprep.subr.bf16.mxu0 0
        %3618 = vmatpush1.bf16.msra.mxu0 0
        %3619 = vmatprep.subr.bf16.mxu0 0
        %3620 = vmatpush1.bf16.msra.mxu0 0
        %3621 = vmatprep.subr.bf16.mxu0 0
        %3622 = vmatpush1.bf16.msra.mxu0 0
        %3623 = vmatprep.subr.bf16.mxu0 0
        %3624 = vmatpush1.bf16.msra.mxu0 0
        %3625 = vmatprep.subr.bf16.mxu0 0
        %3626 = vmatpush1.bf16.msra.mxu0 0
        %3627 = vmatprep.subr.bf16.mxu0 0
        %3628 = vmatpush1.bf16.msra.mxu0 0
        %3629 = vmatprep.subr.bf16.mxu0 0
        %3630 = vmatpush1.bf16.msra.mxu0 0
        %3631 = vmatprep.subr.bf16.mxu0 0
        %3632 = vmatpush1.bf16.msra.mxu0 0
        %3633 = vmatprep.subr.bf16.mxu0 0
        %3634 = vmatpush1.bf16.msra.mxu0 0
        %3635 = vmatprep.subr.bf16.mxu0 0
        %3636 = vmatpush1.bf16.msra.mxu0 0
        %3637 = vmatprep.mubr.bf16.mxu0 0
        %3638 = vmatmul.mubr.bf16.gmra.mrb[0].mxu0 %v3600
        %v3639 = vpop.f32.mrb[0].mxu0
        %v3640 = vadd.f32 0.0, %v3639
        %v3641 = vpop.f32.mrb[0].mxu0
        %v3642 = vpop.f32.mrb[0].mxu0
        %v3643 = vpop.f32.mrb[0].mxu0
        %3644 = vdwg.mxu0
        %3647 = vrot.lane.b32.xlu0 %v3592, 96
        %v3648 = vpop.permute.xlu0 %3647
        %3649 = vrot.lane.b32.xlu0 %v3640, 96
        %v3650 = vpop.permute.xlu0 %3649
        %3653 = vst.msk [vmem:[#allocation3] sm:$0xff] %vm2281, %v3648
        %3654 = vst.msk [vmem:[#allocation3 + $0x8] sm:$0xff] %vm2281, %v3650
        %v3655 = vld [vmem:[#allocation3] sm:$0xff]
        %v3656 = vld [vmem:[#allocation3 + $0x8] sm:$0xff]
        %v3657 = vpack.c.bf16 %v3656, %v3655
        %v3658 = vld [vmem:[%s897] sm:$0xf]
        %v3659 = vld [vmem:[%s897 + $0x4] sm:$0xf]
        %v3660 = vld [vmem:[%s897 + $0x8] sm:$0xf]
        %v3661 = vld [vmem:[%s897 + $0xc] sm:$0xf]
        %v3662 = vld [vmem:[%s897 + $0x10] sm:$0xf]
        %v3663 = vld [vmem:[%s897 + $0x14] sm:$0xf]
        %v3664 = vld [vmem:[%s897 + $0x18] sm:$0xf]
        %v3665 = vld [vmem:[%s897 + $0x1c] sm:$0xf]
        %v3666 = vld [vmem:[%s897 + $0x20] sm:$0xf]
        %v3667 = vld [vmem:[%s897 + $0x24] sm:$0xf]
        %v3668 = vld [vmem:[%s897 + $0x28] sm:$0xf]
        %v3669 = vld [vmem:[%s897 + $0x2c] sm:$0xf]
        %v3670 = vld [vmem:[%s897 + $0x30] sm:$0xf]
        %v3671 = vld [vmem:[%s897 + $0x34] sm:$0xf]
        %v3672 = vld [vmem:[%s897 + $0x38] sm:$0xf]
        %v3673 = vld [vmem:[%s897 + $0x3c] sm:$0xf]
        %v3674 = vld [vmem:[%s1061] sm:$0x1]
        %v3676 = vlaneseq
        %v3677 = vshrl.u32 %v3676, 7
        %v3678 = vsub.s32 0, %v3677
        %v3679 = vrot.slane %v3674, %v3678
        %v3697 = vunpack.c.l.b16 %v3658
        %v3698 = vunpack.c.l.b16 %v3659
        %v3699 = vunpack.c.l.b16 %v3660
        %v3700 = vunpack.c.l.b16 %v3661
        %v3701 = vunpack.c.l.b16 %v3662
        %v3702 = vunpack.c.l.b16 %v3663
        %v3703 = vunpack.c.l.b16 %v3664
        %v3704 = vunpack.c.l.b16 %v3665
        %v3705 = vunpack.c.l.b16 %v3666
        %v3706 = vunpack.c.l.b16 %v3667
        %v3707 = vunpack.c.l.b16 %v3668
        %v3708 = vunpack.c.l.b16 %v3669
        %v3709 = vunpack.c.l.b16 %v3670
        %v3710 = vunpack.c.l.b16 %v3671
        %v3711 = vunpack.c.l.b16 %v3672
        %v3712 = vunpack.c.l.b16 %v3673
        %v3713 = vpack.c.b16 %v3698, %v3697
        %v3714 = vpack.c.b16 %v3700, %v3699
        %v3715 = vpack.c.b16 %v3702, %v3701
        %v3716 = vpack.c.b16 %v3704, %v3703
        %v3717 = vpack.c.b16 %v3706, %v3705
        %v3718 = vpack.c.b16 %v3708, %v3707
        %v3719 = vpack.c.b16 %v3710, %v3709
        %v3720 = vpack.c.b16 %v3712, %v3711
        %3729 = vmatprep.subr.bf16.mxu0 0
        %3730 = vmatpush1.bf16.msra.mxu0 %v3713
        %3731 = vmatprep.subr.bf16.mxu0 0
        %3732 = vmatpush1.bf16.msra.mxu0 %v3714
        %3733 = vmatprep.subr.bf16.mxu0 0
        %3734 = vmatpush1.bf16.msra.mxu0 %v3715
        %3735 = vmatprep.subr.bf16.mxu0 0
        %3736 = vmatpush1.bf16.msra.mxu0 %v3716
        %3737 = vmatprep.subr.bf16.mxu0 0
        %3738 = vmatpush1.bf16.msra.mxu0 %v3717
        %3739 = vmatprep.subr.bf16.mxu0 0
        %3740 = vmatpush1.bf16.msra.mxu0 %v3718
        %3741 = vmatprep.subr.bf16.mxu0 0
        %3742 = vmatpush1.bf16.msra.mxu0 %v3719
        %3743 = vmatprep.subr.bf16.mxu0 0
        %3744 = vmatpush1.bf16.msra.mxu0 %v3720
        %3745 = vmatprep.subr.bf16.mxu0 0
        %3746 = vmatpush1.bf16.msra.mxu0 0
        %3747 = vmatprep.subr.bf16.mxu0 0
        %3748 = vmatpush1.bf16.msra.mxu0 0
        %3749 = vmatprep.subr.bf16.mxu0 0
        %3750 = vmatpush1.bf16.msra.mxu0 0
        %3751 = vmatprep.subr.bf16.mxu0 0
        %3752 = vmatpush1.bf16.msra.mxu0 0
        %3753 = vmatprep.subr.bf16.mxu0 0
        %3754 = vmatpush1.bf16.msra.mxu0 0
        %3755 = vmatprep.subr.bf16.mxu0 0
        %3756 = vmatpush1.bf16.msra.mxu0 0
        %3757 = vmatprep.subr.bf16.mxu0 0
        %3758 = vmatpush1.bf16.msra.mxu0 0
        %3759 = vmatprep.subr.bf16.mxu0 0
        %3760 = vmatpush1.bf16.msra.mxu0 0
        %3761 = vmatprep.mubr.bf16.mxu0 0
        %3762 = vmatmul.mubr.bf16.gmra.mrb[0].mxu0 %v3657
        %v3763 = vpop.f32.mrb[0].mxu0
        %v3764 = vadd.f32 %v3679, %v3763
        %v3765 = vpop.f32.mrb[0].mxu0
        %v3766 = vpop.f32.mrb[0].mxu0
        %v3767 = vadd.f32 %v3679, %v3766
        %v3768 = vpop.f32.mrb[0].mxu0
        %3769 = vdwg.mxu0
        %v3770 = vadd.f32 %v2440, %v3764
        %v3771 = vadd.f32 %v2441, %v3767
        %v3772 = vld [vmem:[%s1064] sm:$0x1]
        %v3773 = vld [vmem:[%s1067] sm:$0x1]
        %3774 = vadd.xlane.f32.xlu0 %v3770
        %v3775 = vpop.xlane.xlu0 %3774
        %3776 = vadd.xlane.f32.xlu0 %v3771
        %v3777 = vpop.xlane.xlu0 %3776
        %v3778 = vmul.f32 %v3775, %v2407
        %v3779 = vmul.f32 %v3777, %v2407
        %v3780 = vsub.f32 %v3770, %v3778
        %v3781 = vsub.f32 %v3771, %v3779
        %v3782 = vmul.f32 %v3780, %v3780
        %v3783 = vmul.f32 %v3781, %v3781
        %3784 = vadd.xlane.f32.xlu0 %v3782
        %v3785 = vpop.xlane.xlu0 %3784
        %3786 = vadd.xlane.f32.xlu0 %v3783
        %v3787 = vpop.xlane.xlu0 %3786
        %v3788 = vmul.f32 %v3785, %v2407
        %v3789 = vmul.f32 %v3787, %v2407
        %v3790 = vadd.f32 %v3788, 1e-05
        %v3791 = vadd.f32 %v3789, 1e-05
        %v3792 = vrsqrt.pop %v3790
        %v3793 = vrsqrt.pop %v3791
        %v3794 = vmul.f32 %v3780, %v3792
        %v3795 = vmul.f32 %v3781, %v3793
        %v3797 = vlaneseq
        %v3798 = vshrl.u32 %v3797, 7
        %v3799 = vsub.s32 0, %v3798
        %v3800 = vrot.slane %v3772, %v3799
        %v3802 = vmul.f32 %v3794, %v3800
        %v3803 = vmul.f32 %v3795, %v3800
        %v3805 = vlaneseq
        %v3806 = vshrl.u32 %v3805, 7
        %v3807 = vsub.s32 0, %v3806
        %v3808 = vrot.slane %v3773, %v3807
        %v3810 = vadd.f32 %v3802, %v3808
        %v3811 = vadd.f32 %v3803, %v3808
        %v3812 = vpack.c.bf16 %v3811, %v3810
        %v3813 = vld [vmem:[%s1072] sm:$0xff]
        %v3814 = vld [vmem:[%s1072 + $0x8] sm:$0xff]
        %v3815 = vld [vmem:[%s1072 + $0x10] sm:$0xff]
        %v3816 = vld [vmem:[%s1072 + $0x18] sm:$0xff]
        %v3817 = vld [vmem:[%s1072 + $0x20] sm:$0xff]
        %v3818 = vld [vmem:[%s1072 + $0x28] sm:$0xff]
        %v3819 = vld [vmem:[%s1072 + $0x30] sm:$0xff]
        %v3820 = vld [vmem:[%s1072 + $0x38] sm:$0xff]
        %v3821 = vld [vmem:[%s1072 + $0x40] sm:$0xff]
        %v3822 = vld [vmem:[%s1072 + $0x48] sm:$0xff]
        %v3823 = vld [vmem:[%s1072 + $0x50] sm:$0xff]
        %v3824 = vld [vmem:[%s1072 + $0x58] sm:$0xff]
        %v3825 = vld [vmem:[%s1072 + $0x60] sm:$0xff]
        %v3826 = vld [vmem:[%s1072 + $0x68] sm:$0xff]
        %v3827 = vld [vmem:[%s1072 + $0x70] sm:$0xff]
        %v3828 = vld [vmem:[%s1072 + $0x78] sm:$0xff]
        %v3829 = vld [vmem:[%s1076] sm:$0x3]
        %v3831 = vlaneseq
        %v3832 = vshrl.u32 %v3831, 7
        %v3833 = vsub.s32 0, %v3832
        %v3834 = vrot.slane %v3829, %v3833
        %v3835 = vlaneseq
        %v3836 = vshrl.u32 %v3835, 7
        %v3837 = vsub.s32 1, %v3836
        %v3838 = vrot.slane %v3829, %v3837
        %v3857 = vunpack.c.l.b16 %v3813
        %v3858 = vunpack.c.h.b16 %v3813
        %v3859 = vunpack.c.l.b16 %v3814
        %v3860 = vunpack.c.h.b16 %v3814
        %v3861 = vunpack.c.l.b16 %v3815
        %v3862 = vunpack.c.h.b16 %v3815
        %v3863 = vunpack.c.l.b16 %v3816
        %v3864 = vunpack.c.h.b16 %v3816
        %v3865 = vunpack.c.l.b16 %v3817
        %v3866 = vunpack.c.h.b16 %v3817
        %v3867 = vunpack.c.l.b16 %v3818
        %v3868 = vunpack.c.h.b16 %v3818
        %v3869 = vunpack.c.l.b16 %v3819
        %v3870 = vunpack.c.h.b16 %v3819
        %v3871 = vunpack.c.l.b16 %v3820
        %v3872 = vunpack.c.h.b16 %v3820
        %v3873 = vunpack.c.l.b16 %v3821
        %v3874 = vunpack.c.h.b16 %v3821
        %v3875 = vunpack.c.l.b16 %v3822
        %v3876 = vunpack.c.h.b16 %v3822
        %v3877 = vunpack.c.l.b16 %v3823
        %v3878 = vunpack.c.h.b16 %v3823
        %v3879 = vunpack.c.l.b16 %v3824
        %v3880 = vunpack.c.h.b16 %v3824
        %v3881 = vunpack.c.l.b16 %v3825
        %v3882 = vunpack.c.h.b16 %v3825
        %v3883 = vunpack.c.l.b16 %v3826
        %v3884 = vunpack.c.h.b16 %v3826
        %v3885 = vunpack.c.l.b16 %v3827
        %v3886 = vunpack.c.h.b16 %v3827
        %v3887 = vunpack.c.l.b16 %v3828
        %v3888 = vunpack.c.h.b16 %v3828
        %v3889 = vpack.c.b16 %v3859, %v3857
        %v3890 = vpack.c.b16 %v3860, %v3858
        %v3891 = vpack.c.b16 %v3863, %v3861
        %v3892 = vpack.c.b16 %v3864, %v3862
        %v3893 = vpack.c.b16 %v3867, %v3865
        %v3894 = vpack.c.b16 %v3868, %v3866
        %v3895 = vpack.c.b16 %v3871, %v3869
        %v3896 = vpack.c.b16 %v3872, %v3870
        %v3897 = vpack.c.b16 %v3875, %v3873
        %v3898 = vpack.c.b16 %v3876, %v3874
        %v3899 = vpack.c.b16 %v3879, %v3877
        %v3900 = vpack.c.b16 %v3880, %v3878
        %v3901 = vpack.c.b16 %v3883, %v3881
        %v3902 = vpack.c.b16 %v3884, %v3882
        %v3903 = vpack.c.b16 %v3887, %v3885
        %v3904 = vpack.c.b16 %v3888, %v3886
        %3921 = vmatprep.subr.bf16.mxu0 %v3890
        %3922 = vmatpush1.bf16.msra.mxu0 %v3889
        %3923 = vmatprep.subr.bf16.mxu0 %v3892
        %3924 = vmatpush1.bf16.msra.mxu0 %v3891
        %3925 = vmatprep.subr.bf16.mxu0 %v3894
        %3926 = vmatpush1.bf16.msra.mxu0 %v3893
        %3927 = vmatprep.subr.bf16.mxu0 %v3896
        %3928 = vmatpush1.bf16.msra.mxu0 %v3895
        %3929 = vmatprep.subr.bf16.mxu0 %v3898
        %3930 = vmatpush1.bf16.msra.mxu0 %v3897
        %3931 = vmatprep.subr.bf16.mxu0 %v3900
        %3932 = vmatpush1.bf16.msra.mxu0 %v3899
        %3933 = vmatprep.subr.bf16.mxu0 %v3902
        %3934 = vmatpush1.bf16.msra.mxu0 %v3901
        %3935 = vmatprep.subr.bf16.mxu0 %v3904
        %3936 = vmatpush1.bf16.msra.mxu0 %v3903
        %3937 = vmatprep.subr.bf16.mxu0 0
        %3938 = vmatpush1.bf16.msra.mxu0 0
        %3939 = vmatprep.subr.bf16.mxu0 0
        %3940 = vmatpush1.bf16.msra.mxu0 0
        %3941 = vmatprep.subr.bf16.mxu0 0
        %3942 = vmatpush1.bf16.msra.mxu0 0
        %3943 = vmatprep.subr.bf16.mxu0 0
        %3944 = vmatpush1.bf16.msra.mxu0 0
        %3945 = vmatprep.subr.bf16.mxu0 0
        %3946 = vmatpush1.bf16.msra.mxu0 0
        %3947 = vmatprep.subr.bf16.mxu0 0
        %3948 = vmatpush1.bf16.msra.mxu0 0
        %3949 = vmatprep.subr.bf16.mxu0 0
        %3950 = vmatpush1.bf16.msra.mxu0 0
        %3951 = vmatprep.subr.bf16.mxu0 0
        %3952 = vmatpush1.bf16.msra.mxu0 0
        %3953 = vmatprep.mubr.bf16.mxu0 0
        %3954 = vmatmul.mubr.bf16.gmra.mrb[0].mxu0 %v3812
        %v3955 = vpop.f32.mrb[0].mxu0
        %v3956 = vadd.f32 %v3834, %v3955
        %v3957 = vpop.f32.mrb[0].mxu0
        %v3958 = vadd.f32 %v3838, %v3957
        %v3959 = vpop.f32.mrb[0].mxu0
        %v3960 = vadd.f32 %v3834, %v3959
        %v3961 = vpop.f32.mrb[0].mxu0
        %v3962 = vadd.f32 %v3838, %v3961
        %3963 = vdwg.mxu0
        %v3964 = vmax.f32 %v3956, 0.0
        %v3965 = vmax.f32 %v3958, 0.0
        %v3966 = vmax.f32 %v3960, 0.0
        %v3967 = vmax.f32 %v3962, 0.0
        %v3968 = vpack.c.bf16 %v3966, %v3964
        %v3969 = vpack.c.bf16 %v3967, %v3965
        %v3970 = vld [vmem:[%s1081] sm:$0xf]
        %v3971 = vld [vmem:[%s1081 + $0x4] sm:$0xf]
        %v3972 = vld [vmem:[%s1081 + $0x8] sm:$0xf]
        %v3973 = vld [vmem:[%s1081 + $0xc] sm:$0xf]
        %v3974 = vld [vmem:[%s1081 + $0x10] sm:$0xf]
        %v3975 = vld [vmem:[%s1081 + $0x14] sm:$0xf]
        %v3976 = vld [vmem:[%s1081 + $0x18] sm:$0xf]
        %v3977 = vld [vmem:[%s1081 + $0x1c] sm:$0xf]
        %v3978 = vld [vmem:[%s1081 + $0x20] sm:$0xf]
        %v3979 = vld [vmem:[%s1081 + $0x24] sm:$0xf]
        %v3980 = vld [vmem:[%s1081 + $0x28] sm:$0xf]
        %v3981 = vld [vmem:[%s1081 + $0x2c] sm:$0xf]
        %v3982 = vld [vmem:[%s1081 + $0x30] sm:$0xf]
        %v3983 = vld [vmem:[%s1081 + $0x34] sm:$0xf]
        %v3984 = vld [vmem:[%s1081 + $0x38] sm:$0xf]
        %v3985 = vld [vmem:[%s1081 + $0x3c] sm:$0xf]
        %v3986 = vld [vmem:[%s1081 + $0x40] sm:$0xf]
        %v3987 = vld [vmem:[%s1081 + $0x44] sm:$0xf]
        %v3988 = vld [vmem:[%s1081 + $0x48] sm:$0xf]
        %v3989 = vld [vmem:[%s1081 + $0x4c] sm:$0xf]
        %v3990 = vld [vmem:[%s1081 + $0x50] sm:$0xf]
        %v3991 = vld [vmem:[%s1081 + $0x54] sm:$0xf]
        %v3992 = vld [vmem:[%s1081 + $0x58] sm:$0xf]
        %v3993 = vld [vmem:[%s1081 + $0x5c] sm:$0xf]
        %v3994 = vld [vmem:[%s1081 + $0x60] sm:$0xf]
        %v3995 = vld [vmem:[%s1081 + $0x64] sm:$0xf]
        %v3996 = vld [vmem:[%s1081 + $0x68] sm:$0xf]
        %v3997 = vld [vmem:[%s1081 + $0x6c] sm:$0xf]
        %v3998 = vld [vmem:[%s1081 + $0x70] sm:$0xf]
        %v3999 = vld [vmem:[%s1081 + $0x74] sm:$0xf]
        %v4000 = vld [vmem:[%s1081 + $0x78] sm:$0xf]
        %v4001 = vld [vmem:[%s1081 + $0x7c] sm:$0xf]
        %v4002 = vld [vmem:[%s1084] sm:$0x1]
        %v4004 = vlaneseq
        %v4005 = vshrl.u32 %v4004, 7
        %v4006 = vsub.s32 0, %v4005
        %v4007 = vrot.slane %v4002, %v4006
        %v4041 = vunpack.c.l.b16 %v3970
        %v4042 = vunpack.c.l.b16 %v3971
        %v4043 = vunpack.c.l.b16 %v3972
        %v4044 = vunpack.c.l.b16 %v3973
        %v4045 = vunpack.c.l.b16 %v3974
        %v4046 = vunpack.c.l.b16 %v3975
        %v4047 = vunpack.c.l.b16 %v3976
        %v4048 = vunpack.c.l.b16 %v3977
        %v4049 = vunpack.c.l.b16 %v3978
        %v4050 = vunpack.c.l.b16 %v3979
        %v4051 = vunpack.c.l.b16 %v3980
        %v4052 = vunpack.c.l.b16 %v3981
        %v4053 = vunpack.c.l.b16 %v3982
        %v4054 = vunpack.c.l.b16 %v3983
        %v4055 = vunpack.c.l.b16 %v3984
        %v4056 = vunpack.c.l.b16 %v3985
        %v4057 = vunpack.c.l.b16 %v3986
        %v4058 = vunpack.c.l.b16 %v3987
        %v4059 = vunpack.c.l.b16 %v3988
        %v4060 = vunpack.c.l.b16 %v3989
        %v4061 = vunpack.c.l.b16 %v3990
        %v4062 = vunpack.c.l.b16 %v3991
        %v4063 = vunpack.c.l.b16 %v3992
        %v4064 = vunpack.c.l.b16 %v3993
        %v4065 = vunpack.c.l.b16 %v3994
        %v4066 = vunpack.c.l.b16 %v3995
        %v4067 = vunpack.c.l.b16 %v3996
        %v4068 = vunpack.c.l.b16 %v3997
        %v4069 = vunpack.c.l.b16 %v3998
        %v4070 = vunpack.c.l.b16 %v3999
        %v4071 = vunpack.c.l.b16 %v4000
        %v4072 = vunpack.c.l.b16 %v4001
        %v4073 = vpack.c.b16 %v4042, %v4041
        %v4074 = vpack.c.b16 %v4044, %v4043
        %v4075 = vpack.c.b16 %v4046, %v4045
        %v4076 = vpack.c.b16 %v4048, %v4047
        %v4077 = vpack.c.b16 %v4050, %v4049
        %v4078 = vpack.c.b16 %v4052, %v4051
        %v4079 = vpack.c.b16 %v4054, %v4053
        %v4080 = vpack.c.b16 %v4056, %v4055
        %v4081 = vpack.c.b16 %v4058, %v4057
        %v4082 = vpack.c.b16 %v4060, %v4059
        %v4083 = vpack.c.b16 %v4062, %v4061
        %v4084 = vpack.c.b16 %v4064, %v4063
        %v4085 = vpack.c.b16 %v4066, %v4065
        %v4086 = vpack.c.b16 %v4068, %v4067
        %v4087 = vpack.c.b16 %v4070, %v4069
        %v4088 = vpack.c.b16 %v4072, %v4071
        %4105 = vmatprep.subr.bf16.mxu0 0
        %4106 = vmatpush1.bf16.msra.mxu0 %v4073
        %4107 = vmatprep.subr.bf16.mxu0 0
        %4108 = vmatpush1.bf16.msra.mxu0 %v4074
        %4109 = vmatprep.subr.bf16.mxu0 0
        %4110 = vmatpush1.bf16.msra.mxu0 %v4075
        %4111 = vmatprep.subr.bf16.mxu0 0
        %4112 = vmatpush1.bf16.msra.mxu0 %v4076
        %4113 = vmatprep.subr.bf16.mxu0 0
        %4114 = vmatpush1.bf16.msra.mxu0 %v4077
        %4115 = vmatprep.subr.bf16.mxu0 0
        %4116 = vmatpush1.bf16.msra.mxu0 %v4078
        %4117 = vmatprep.subr.bf16.mxu0 0
        %4118 = vmatpush1.bf16.msra.mxu0 %v4079
        %4119 = vmatprep.subr.bf16.mxu0 0
        %4120 = vmatpush1.bf16.msra.mxu0 %v4080
        %4121 = vmatprep.subr.bf16.mxu0 0
        %4122 = vmatpush1.bf16.msra.mxu0 %v4081
        %4123 = vmatprep.subr.bf16.mxu0 0
        %4124 = vmatpush1.bf16.msra.mxu0 %v4082
        %4125 = vmatprep.subr.bf16.mxu0 0
        %4126 = vmatpush1.bf16.msra.mxu0 %v4083
        %4127 = vmatprep.subr.bf16.mxu0 0
        %4128 = vmatpush1.bf16.msra.mxu0 %v4084
        %4129 = vmatprep.subr.bf16.mxu0 0
        %4130 = vmatpush1.bf16.msra.mxu0 %v4085
        %4131 = vmatprep.subr.bf16.mxu0 0
        %4132 = vmatpush1.bf16.msra.mxu0 %v4086
        %4133 = vmatprep.subr.bf16.mxu0 0
        %4134 = vmatpush1.bf16.msra.mxu0 %v4087
        %4135 = vmatprep.subr.bf16.mxu0 0
        %4136 = vmatpush1.bf16.msra.mxu0 %v4088
        %4137 = vmatprep.mubr.bf16.mxu0 %v3969
        %4138 = vmatmul.mubr.bf16.gmra.mrb[0].mxu0 %v3968
        %v4139 = vpop.f32.mrb[0].mxu0
        %v4140 = vadd.f32 %v4007, %v4139
        %v4141 = vpop.f32.mrb[0].mxu0
        %v4142 = vpop.f32.mrb[0].mxu0
        %v4143 = vadd.f32 %v4007, %v4142
        %v4144 = vpop.f32.mrb[0].mxu0
        %4145 = vdwg.mxu0
        %v4146 = vadd.f32 %v3810, %v4140
        %v4147 = vadd.f32 %v3811, %v4143
        %v4148 = vld [vmem:[%s1087] sm:$0x1]
        %v4149 = vld [vmem:[%s1090] sm:$0x1]
        %4150 = vadd.xlane.f32.xlu0 %v4146
        %v4151 = vpop.xlane.xlu0 %4150
        %4152 = vadd.xlane.f32.xlu0 %v4147
        %v4153 = vpop.xlane.xlu0 %4152
        %v4154 = vmul.f32 %v4151, %v2407
        %v4155 = vmul.f32 %v4153, %v2407
        %v4156 = vsub.f32 %v4146, %v4154
        %v4157 = vsub.f32 %v4147, %v4155
        %v4158 = vmul.f32 %v4156, %v4156
        %v4159 = vmul.f32 %v4157, %v4157
        %4160 = vadd.xlane.f32.xlu0 %v4158
        %v4161 = vpop.xlane.xlu0 %4160
        %4162 = vadd.xlane.f32.xlu0 %v4159
        %v4163 = vpop.xlane.xlu0 %4162
        %v4164 = vmul.f32 %v4161, %v2407
        %v4165 = vmul.f32 %v4163, %v2407
        %v4166 = vadd.f32 %v4164, 1e-05
        %v4167 = vadd.f32 %v4165, 1e-05
        %v4168 = vrsqrt.pop %v4166
        %v4169 = vrsqrt.pop %v4167
        %v4170 = vmul.f32 %v4156, %v4168
        %v4171 = vmul.f32 %v4157, %v4169
        %v4173 = vlaneseq
        %v4174 = vshrl.u32 %v4173, 7
        %v4175 = vsub.s32 0, %v4174
        %v4176 = vrot.slane %v4148, %v4175
        %v4178 = vmul.f32 %v4170, %v4176
        %v4179 = vmul.f32 %v4171, %v4176
        %v4181 = vlaneseq
        %v4182 = vshrl.u32 %v4181, 7
        %v4183 = vsub.s32 0, %v4182
        %v4184 = vrot.slane %v4149, %v4183
        %v4186 = vadd.f32 %v4178, %v4184
        %v4187 = vadd.f32 %v4179, %v4184
        %4188 = vst [vmem:[#allocation2] sm:$0xff] %v4186
        %4189 = vst [vmem:[#allocation2 + $0x8] sm:$0xff] %v4187
        %4190 = vst [vmem:[%s24] sm:$0xff] %v4186
        %4191 = vst [vmem:[%s24 + $0x8] sm:$0xff] %v4187
        // Predicated region
        $region133: #{transformer_forward.4} parent=115 // pred_check
          %p4192 = pneg %p658
        $region134: #{transformer_forward.4} parent=115 // pred_check_branch
          %4194 = sbr.rel (%p4192) target = $region136
        $region135: #{transformer_forward.4} parent=115 // pred_region
          _
        $region136: #{transformer_forward.4} parent=115 // pred_fallthru
          _
        // Predicated region
        $region137: #{transformer_forward.4} parent=115 // pred_check
          %p4195 = pneg %p658
        $region138: #{transformer_forward.4} parent=115 // pred_check_branch
          %4197 = sbr.rel (%p4195) target = $region140
        $region139: #{transformer_forward.4} parent=115 // pred_region
          _
        $region140: #{transformer_forward.4} parent=115 // pred_fallthru
          _
      $region116: #{transformer_forward.4} parent=5 // pred_fallthru
        _
      %p4198 = scmp.le.s32.totalorder 2, %s36
      // Predicated region
      $region141: #{transformer_forward.4} parent=5 // pred_check
        %p4199 = pneg %p4198
      $region142: #{transformer_forward.4} parent=5 // pred_check_branch
        %4201 = sbr.rel (%p4199) target = $region144
      $region143: #{transformer_forward.4} parent=5 // pred_region
        %s4202 = ssub.s32 %s36, 2
      $region144: #{transformer_forward.4} parent=5 // pred_fallthru
        _
    $region6: #{transformer_forward.4} parent=1 // loop_footer
      %s40 = sadd.s32 1, %s36
    $region7: #{transformer_forward.4} parent=1 // loop_footer_branch
      %35 = sbr.rel target = $region3
    $region8: #{transformer_forward.4} parent=1 // loop_exit
      _
    %4203 = vsyncpa [#allocation5], 1
    %s4204 = scalar_lea.sflag [#allocation5], 1
    %4205 = vsyncpa %s4204, 1
    %4206 = vsyncpa [#allocation7], 1
    %s4207 = scalar_lea.sflag [#allocation7], 1
    %4208 = vsyncpa %s4207, 1

</llo_original>
